<compile_context>
chip_gen: v6e
topology: v6e:2x2x1
jax: 0.10.0
libtpu: 0.0.40
codegen_flags: <defaults>
</compile_context>

<pallas_src>
import functools

import jax
import jax.numpy as jnp
import numpy as np
from jax.experimental import pallas as pl
from jax.experimental.pallas import tpu as pltpu

# ---------------------------------------------------------------------------- sizes
H_IN = W_IN = 28
H1 = W1 = 26            # after conv1 (3x3, valid)
HP = WP = 12            # after maxpool (3x3, stride 2)
H2 = W2 = 10            # after conv2 (3x3, valid)
C1 = 32                 # conv1 out channels
C2 = 64                 # conv2 out channels
N_CLS = 10
K1 = 3 * W_IN           # 84  : fused (ky, w_in) contraction dim of the conv1 dot
N1 = W1 * C1            # 832 : fused (w_out, c) lane width after conv1
K2 = 2 * WP * C1        # 768 : 24 pre-stride w-groups x 32 ch (odd groups zeroed in r2)
N2 = W2 * C2            # 640 : fused (w_out, c2) lane width after conv2


# ---------------------------------------------------------------------------- kernel
def _cnn_kernel(xs_ref, r1_ref, b1_ref, r2_ref, b2_ref, wl_ref, bl_ref, out_ref):
    # xs_ref: (26, TN, 84) = [h_out, n, ky*28 + w_in]  (batch on sublanes, fused K on lanes)
    tn = xs_ref.shape[1]
    wdt = r1_ref.dtype                       # matmul operand dtype (bf16 in production)

    # ---- conv1 + ReLU: ONE banded MXU matmul (K=84) ---------------------------------
    acc1 = jnp.dot(xs_ref[...].astype(wdt).reshape(H1 * tn, K1), r1_ref[...],
                   preferred_element_type=jnp.float32)                 # (26*TN, 832)
    h1 = jnp.maximum(acc1 + b1_ref[...], 0.0).reshape(H1, tn, N1)      # (26, TN, 832)

    # ---- maxpool 3x3, stride 2 -------------------------------------------------------
    # H direction: shifted maxima on the major row axis, then keep rows 0,2,...,22 (free).
    mh = jnp.maximum(jnp.maximum(h1[0:2 * HP], h1[1:2 * HP + 1]), h1[2:2 * HP + 2])
    mh = mh.reshape(HP, 2, tn, N1)[:, 0]                               # (12, TN, 832)
    # W direction: shifted maxima over 32-lane channel groups.  The stride-2 pick is folded
    # into zero rows of r2 host-side, so NO per-group gather / concat is needed here.
    mw = jnp.maximum(jnp.maximum(mh[:, :, 0:K2],
                                 mh[:, :, C1:K2 + C1]),
                     mh[:, :, 2 * C1:K2 + 2 * C1])                     # (12, TN, 768)
    mwb = mw.astype(wdt)

    # ---- conv2 + ReLU: 3 banded MXU matmuls contracting the fused (w-group, C) axis ---
    acc2 = jnp.dot(mwb[0:H2].reshape(H2 * tn, K2), r2_ref[0],
                   preferred_element_type=jnp.float32)
    acc2 = acc2 + jnp.dot(mwb[1:H2 + 1].reshape(H2 * tn, K2), r2_ref[1],
                          preferred_element_type=jnp.float32)
    acc2 = acc2 + jnp.dot(mwb[2:H2 + 2].reshape(H2 * tn, K2), r2_ref[2],
                          preferred_element_type=jnp.float32)          # (10*TN, 640)
    h2 = jnp.maximum(acc2 + b2_ref[...], 0.0).reshape(H2, tn, N2)      # (10, TN, 640)

    # ---- fused Linear(6400 -> 10): lane-dense weight (10, 10, 640), contract 640 lanes,
    #      then a cheap major-axis sum over the 10 conv2 output rows.
    v = jnp.einsum("inf,iqf->inq", h2.astype(wl_ref.dtype), wl_ref[...],
                   preferred_element_type=jnp.float32)                 # (10, TN, 10)
    out_ref[...] = jnp.sum(v, axis=0) + bl_ref[...]                    # (TN, 10)


# ---------------------------------------------------------------------------- wrapper
def _round_up(v, m):
    return ((int(v) + m - 1) // m) * m


def _pick_tiling(n):
    """Per-generation batch tile + VMEM limit (v7x: 64 MiB/TC & 2 TCs; v5e/v6e: 128 MiB)."""
    try:
        kind = jax.devices()[0].device_kind.lower()
    except Exception:
        kind = ""
    big_vmem = ("v5" in kind) or ("v6" in kind)
    cap = 128 if big_vmem else 64
    vmem_limit = (96 if big_vmem else 44) * 1024 * 1024
    # >= 2 grid steps so both v7x TensorCores (and the input pipeline) have work.
    tn = max(8, min(cap, _round_up(pl.cdiv(n, 2), 8)))
    return tn, vmem_limit


@functools.partial(jax.jit, static_argnames=("tile_n",))
def cnn_forward(x_nchw, params, *, tile_n=None):
    """Forward pass matching CNNModel.forward.  x_nchw: (N, 1, 28, 28) float32."""
    r1, b1t, r2, b2t, wlf, blt = params
    n = x_nchw.shape[0]

    tn_auto, vmem_limit = _pick_tiling(n)
    tn = tn_auto if tile_n is None else _round_up(min(int(tile_n), _round_up(n, 8)), 8)
    n_pad = _round_up(n, tn)

    # Layout prep (XLA side, tiny input): NCHW -> (H, N, W), then stack the three ky-shifted
    # row windows on the lane axis so conv1 is a single K=84 MXU dot inside the kernel.
    x_hnw = jnp.transpose(x_nchw[:, 0, :, :], (1, 0, 2))                       # (28, N, 28)
    xs = jnp.concatenate([x_hnw[0:H1], x_hnw[1:H1 + 1], x_hnw[2:H1 + 2]], -1)  # (26, N, 84)
    if n_pad != n:
        xs = jnp.pad(xs, ((0, 0), (0, n_pad - n), (0, 0)))

    out = pl.pallas_call(
        _cnn_kernel,
        out_shape=jax.ShapeDtypeStruct((n_pad, N_CLS), jnp.float32),
        grid=(n_pad // tn,),
        in_specs=[
            pl.BlockSpec((H1, tn, K1), lambda i: (0, i, 0)),       # x, batch-tiled (f32)
            pl.BlockSpec((K1, N1), lambda i: (0, 0)),              # conv1 banded weight
            pl.BlockSpec((1, N1), lambda i: (0, 0)),               # conv1 bias (per w,c)
            pl.BlockSpec((3, K2, N2), lambda i: (0, 0, 0)),        # conv2 banded weights
            pl.BlockSpec((1, N2), lambda i: (0, 0)),               # conv2 bias (per w,c2)
            pl.BlockSpec((H2, N_CLS, N2), lambda i: (0, 0, 0)),    # linear weight (lane-dense)
            pl.BlockSpec((1, N_CLS), lambda i: (0, 0)),            # linear bias
        ],
        out_specs=pl.BlockSpec((tn, N_CLS), lambda i: (i, 0)),
        compiler_params=pltpu.CompilerParams(
            dimension_semantics=("parallel",),
            vmem_limit_bytes=vmem_limit,
        ),
    )(xs, r1, b1t, r2, b2t, wlf, blt)
    return out[:n]


# ---------------------------------------------------------------------------- params
def prepare_params(w1_t, b1_t, w2_t, b2_t, wl_t, bl_t, *, dtype=jnp.bfloat16):
    """Convert torch-layout weights into the banded / fused matrices used by the kernel."""
    w1 = np.asarray(w1_t, np.float32)   # (32, 1, 3, 3)   (O, I, KH, KW)
    b1 = np.asarray(b1_t, np.float32)   # (32,)
    w2 = np.asarray(w2_t, np.float32)   # (64, 32, 3, 3)
    b2 = np.asarray(b2_t, np.float32)   # (64,)
    wl = np.asarray(wl_t, np.float32)   # (10, 6400)
    bl = np.asarray(bl_t, np.float32)   # (10,)

    # conv1: ONE banded matmul.  r1[ky*28 + w_in, w_out*32 + c] = w1[c, 0, ky, w_in - w_out].
    r1 = np.zeros((K1, N1), np.float32)
    for ky in range(3):
        for kx in range(3):
            for j in range(W1):
                r1[ky * W_IN + j + kx, j * C1:(j + 1) * C1] = w1[:, 0, ky, kx]
    b1t = np.tile(b1, W1)[None, :]                                   # (1, 832)

    # conv2: 3 banded matmuls over the pre-stride (24-group, 32-ch) axis; the stride-2 W pick
    # is folded in by writing weights only into even group rows g = 2*(j + kx):
    #   r2[ky, g*32 + c, j*64 + o] = w2[o, c, ky, kx]        (all other rows stay zero)
    r2 = np.zeros((3, K2, N2), np.float32)
    for ky in range(3):
        for kx in range(3):
            for j in range(W2):
                g = 2 * (j + kx)
                r2[ky, g * C1:(g + 1) * C1, j * C2:(j + 1) * C2] = w2[:, :, ky, kx].T
    b2t = np.tile(b2, W2)[None, :]                                   # (1, 640)

    # Linear(6400,10), torch (C,H,W) flatten order, lane-dense per conv2 output row i:
    #   wlf[i, q, j*64 + o] = wl[q, o*100 + i*10 + j]
    wl4 = wl.reshape(N_CLS, C2, H2, W2)                              # (q, o, i, j)
    wlf = np.transpose(wl4, (2, 0, 3, 1)).reshape(H2, N_CLS, W2 * C2)
    blt = bl[None, :]                                                # (1, 10)

    mm = lambda a: jnp.asarray(a, dtype)          # matmul operands (bf16 in production)
    f32 = lambda a: jnp.asarray(a, jnp.float32)   # biases add into f32 accumulators
    return (mm(r1), f32(b1t), mm(r2), f32(b2t), mm(wlf), f32(blt))


def init_torch_params(key):
    """Deterministic parameters in PyTorch layouts."""
    k1, k2, k3, k4, k5, k6 = jax.random.split(key, 6)
    w1 = 0.2 * jax.random.normal(k1, (C1, 1, 3, 3), jnp.float32)
    b1 = 0.1 * jax.random.normal(k2, (C1,), jnp.float32)
    w2 = 0.05 * jax.random.normal(k3, (C2, C1, 3, 3), jnp.float32)
    b2 = 0.1 * jax.random.normal(k4, (C2,), jnp.float32)
    wl = 0.02 * jax.random.normal(k5, (N_CLS, C2 * H2 * W2), jnp.float32)
    bl = 0.1 * jax.random.normal(k6, (N_CLS,), jnp.float32)
    return (w1, b1, w2, b2, wl, bl)


# ---------------------------------------------------------------------------- reference
def reference_forward(x, w1_t, b1_t, w2_t, b2_t, wl_t, bl_t):
    """Pure-JAX reference mirroring the PyTorch module (highest precision)."""
    hp = jax.lax.Precision.HIGHEST
    y = jax.lax.conv_general_dilated(
        x, w1_t, (1, 1), "VALID",
        dimension_numbers=("NCHW", "OIHW", "NCHW"), precision=hp
    ) + b1_t[None, :, None, None]
    y = jnp.maximum(y, 0.0)
    y = jax.lax.reduce_window(y, -jnp.inf, jax.lax.max,
                              (1, 1, 3, 3), (1, 1, 2, 2), "VALID")
    y = jax.lax.conv_general_dilated(
        y, w2_t, (1, 1), "VALID",
        dimension_numbers=("NCHW", "OIHW", "NCHW"), precision=hp
    ) + b2_t[None, :, None, None]
    y = jnp.maximum(y, 0.0)
    y = y.reshape(y.shape[0], -1)
    return jnp.dot(y, wl_t.T, precision=hp) + bl_t


if __name__ == "__main__":
    key = jax.random.PRNGKey(0)
    kx, kp = jax.random.split(key)

    # Input shape implied by Linear(6400, 10): 28x28 single-channel images; small batch.
    batch = 16
    x = jax.random.normal(kx, (batch, 1, H_IN, W_IN), jnp.float32)

    torch_params = init_torch_params(kp)
    ref = jax.block_until_ready(reference_forward(x, *torch_params))

    # f32-operand path: strict check of the banded weights / pooling / flatten indexing.
    params_f32 = prepare_params(*torch_params, dtype=jnp.float32)
    logits_f32 = jax.block_until_ready(cnn_forward(x, params_f32))
    assert logits_f32.shape == (batch, N_CLS)
    np.testing.assert_allclose(np.asarray(logits_f32), np.asarray(ref), rtol=5e-3, atol=5e-3)

    # bf16-operand path (production default; f32 MXU accumulation) with a looser tolerance.
    params_bf16 = prepare_params(*torch_params, dtype=jnp.bfloat16)
    logits_bf16 = jax.block_until_ready(cnn_forward(x, params_bf16))
    np.testing.assert_allclose(np.asarray(logits_bf16), np.asarray(ref), rtol=1e-1, atol=1e-1)

    print("KERNEL_OK")
</pallas_src>

<mosaic_0001>
module attributes {stable_mosaic.version = 11 : i64} {
  func.func @_cnn_kernel(%arg0: i32, %arg1: memref<26x8x84xf32, #tpu.memory_space<vmem>>, %arg2: memref<84x832xf32, #tpu.memory_space<vmem>>, %arg3: memref<1x832xf32, #tpu.memory_space<vmem>>, %arg4: memref<3x768x640xf32, #tpu.memory_space<vmem>>, %arg5: memref<1x640xf32, #tpu.memory_space<vmem>>, %arg6: memref<10x10x640xf32, #tpu.memory_space<vmem>>, %arg7: memref<1x10xf32, #tpu.memory_space<vmem>>, %arg8: memref<8x10xf32, #tpu.memory_space<vmem>>) attributes {dimension_semantics = [#tpu.dimension_semantics<parallel>], iteration_bounds = array<i64: 2>, scalar_prefetch = 0 : i64, scratch_operands = 0 : i64, tpu.core_type = #tpu.core_type<tc>, window_params = [{transform_indices = @transform_0, window_bounds = array<i64: 26, 8, 84>}, {pipeline_mode = #tpu.pipeline_mode<synchronous>, transform_indices = @transform_1, window_bounds = array<i64: 84, 832>}, {pipeline_mode = #tpu.pipeline_mode<synchronous>, transform_indices = @transform_2, window_bounds = array<i64: 1, 832>}, {pipeline_mode = #tpu.pipeline_mode<synchronous>, transform_indices = @transform_3, window_bounds = array<i64: 3, 768, 640>}, {pipeline_mode = #tpu.pipeline_mode<synchronous>, transform_indices = @transform_4, window_bounds = array<i64: 1, 640>}, {pipeline_mode = #tpu.pipeline_mode<synchronous>, transform_indices = @transform_5, window_bounds = array<i64: 10, 10, 640>}, {pipeline_mode = #tpu.pipeline_mode<synchronous>, transform_indices = @transform_6, window_bounds = array<i64: 1, 10>}, {transform_indices = @transform_7, window_bounds = array<i64: 8, 10>}]} {
    %c0 = arith.constant 0 : index
    %c0_0 = arith.constant 0 : index
    %c0_1 = arith.constant 0 : index
    %0 = vector.load %arg1[%c0, %c0_0, %c0_1] : memref<26x8x84xf32, #tpu.memory_space<vmem>>, vector<26x8x84xf32>
    %1 = vector.shape_cast %0 : vector<26x8x84xf32> to vector<208x84xf32>
    %c0_2 = arith.constant 0 : index
    %c0_3 = arith.constant 0 : index
    %2 = vector.load %arg2[%c0_2, %c0_3] : memref<84x832xf32, #tpu.memory_space<vmem>>, vector<84x832xf32>
    %cst = arith.constant dense<0.000000e+00> : vector<208x832xf32>
    %3 = tpu.matmul %1, %2, %cst {dimension_numbers = #tpu.dot_dimension_numbers<[1], [0], [0], [1], [0, 0, 1, 1], [], []>} : vector<208x84xf32>, vector<84x832xf32>, vector<208x832xf32> -> vector<208x832xf32>
    %c0_4 = arith.constant 0 : index
    %c0_5 = arith.constant 0 : index
    %4 = vector.load %arg3[%c0_4, %c0_5] : memref<1x832xf32, #tpu.memory_space<vmem>>, vector<1x832xf32>
    %5 = vector.broadcast %4 : vector<1x832xf32> to vector<208x832xf32>
    %6 = arith.addf %3, %5 : vector<208x832xf32>
    %cst_6 = arith.constant 0.000000e+00 : f32
    %7 = vector.broadcast %cst_6 : f32 to vector<208x832xf32>
    %8 = arith.maximumf %6, %7 : vector<208x832xf32>
    %9 = vector.shape_cast %8 : vector<208x832xf32> to vector<26x8x832xf32>
    %10 = vector.extract_strided_slice %9 {offsets = [0, 0, 0], sizes = [24, 8, 832], strides = [1, 1, 1]} : vector<26x8x832xf32> to vector<24x8x832xf32>
    %11 = vector.extract_strided_slice %9 {offsets = [1, 0, 0], sizes = [24, 8, 832], strides = [1, 1, 1]} : vector<26x8x832xf32> to vector<24x8x832xf32>
    %12 = arith.maximumf %10, %11 : vector<24x8x832xf32>
    %13 = vector.extract_strided_slice %9 {offsets = [2, 0, 0], sizes = [24, 8, 832], strides = [1, 1, 1]} : vector<26x8x832xf32> to vector<24x8x832xf32>
    %14 = arith.maximumf %12, %13 : vector<24x8x832xf32>
    %15 = vector.shape_cast %14 : vector<24x8x832xf32> to vector<12x2x8x832xf32>
    %16 = vector.extract_strided_slice %15 {offsets = [0, 0, 0, 0], sizes = [12, 1, 8, 832], strides = [1, 1, 1, 1]} : vector<12x2x8x832xf32> to vector<12x1x8x832xf32>
    %17 = vector.shape_cast %16 : vector<12x1x8x832xf32> to vector<12x8x832xf32>
    %18 = vector.extract_strided_slice %17 {offsets = [0, 0, 0], sizes = [12, 8, 768], strides = [1, 1, 1]} : vector<12x8x832xf32> to vector<12x8x768xf32>
    %19 = vector.extract_strided_slice %17 {offsets = [0, 0, 32], sizes = [12, 8, 768], strides = [1, 1, 1]} : vector<12x8x832xf32> to vector<12x8x768xf32>
    %20 = arith.maximumf %18, %19 : vector<12x8x768xf32>
    %21 = vector.extract_strided_slice %17 {offsets = [0, 0, 64], sizes = [12, 8, 768], strides = [1, 1, 1]} : vector<12x8x832xf32> to vector<12x8x768xf32>
    %22 = arith.maximumf %20, %21 : vector<12x8x768xf32>
    %23 = vector.extract_strided_slice %22 {offsets = [0, 0, 0], sizes = [10, 8, 768], strides = [1, 1, 1]} : vector<12x8x768xf32> to vector<10x8x768xf32>
    %24 = vector.shape_cast %23 : vector<10x8x768xf32> to vector<80x768xf32>
    %c0_7 = arith.constant 0 : index
    %c0_8 = arith.constant 0 : index
    %c0_9 = arith.constant 0 : index
    %25 = vector.load %arg4[%c0_7, %c0_8, %c0_9] : memref<3x768x640xf32, #tpu.memory_space<vmem>>, vector<1x768x640xf32>
    %26 = vector.shape_cast %25 : vector<1x768x640xf32> to vector<768x640xf32>
    %cst_10 = arith.constant dense<0.000000e+00> : vector<80x640xf32>
    %27 = tpu.matmul %24, %26, %cst_10 {dimension_numbers = #tpu.dot_dimension_numbers<[1], [0], [0], [1], [0, 0, 1, 1], [], []>} : vector<80x768xf32>, vector<768x640xf32>, vector<80x640xf32> -> vector<80x640xf32>
    %28 = vector.extract_strided_slice %22 {offsets = [1, 0, 0], sizes = [10, 8, 768], strides = [1, 1, 1]} : vector<12x8x768xf32> to vector<10x8x768xf32>
    %29 = vector.shape_cast %28 : vector<10x8x768xf32> to vector<80x768xf32>
    %c1 = arith.constant 1 : index
    %c0_11 = arith.constant 0 : index
    %c0_12 = arith.constant 0 : index
    %30 = vector.load %arg4[%c1, %c0_11, %c0_12] : memref<3x768x640xf32, #tpu.memory_space<vmem>>, vector<1x768x640xf32>
    %31 = vector.shape_cast %30 : vector<1x768x640xf32> to vector<768x640xf32>
    %cst_13 = arith.constant dense<0.000000e+00> : vector<80x640xf32>
    %32 = tpu.matmul %29, %31, %cst_13 {dimension_numbers = #tpu.dot_dimension_numbers<[1], [0], [0], [1], [0, 0, 1, 1], [], []>} : vector<80x768xf32>, vector<768x640xf32>, vector<80x640xf32> -> vector<80x640xf32>
    %33 = arith.addf %27, %32 : vector<80x640xf32>
    %34 = vector.extract_strided_slice %22 {offsets = [2, 0, 0], sizes = [10, 8, 768], strides = [1, 1, 1]} : vector<12x8x768xf32> to vector<10x8x768xf32>
    %35 = vector.shape_cast %34 : vector<10x8x768xf32> to vector<80x768xf32>
    %c2 = arith.constant 2 : index
    %c0_14 = arith.constant 0 : index
    %c0_15 = arith.constant 0 : index
    %36 = vector.load %arg4[%c2, %c0_14, %c0_15] : memref<3x768x640xf32, #tpu.memory_space<vmem>>, vector<1x768x640xf32>
    %37 = vector.shape_cast %36 : vector<1x768x640xf32> to vector<768x640xf32>
    %cst_16 = arith.constant dense<0.000000e+00> : vector<80x640xf32>
    %38 = tpu.matmul %35, %37, %cst_16 {dimension_numbers = #tpu.dot_dimension_numbers<[1], [0], [0], [1], [0, 0, 1, 1], [], []>} : vector<80x768xf32>, vector<768x640xf32>, vector<80x640xf32> -> vector<80x640xf32>
    %39 = arith.addf %33, %38 : vector<80x640xf32>
    %c0_17 = arith.constant 0 : index
    %c0_18 = arith.constant 0 : index
    %40 = vector.load %arg5[%c0_17, %c0_18] : memref<1x640xf32, #tpu.memory_space<vmem>>, vector<1x640xf32>
    %41 = vector.broadcast %40 : vector<1x640xf32> to vector<80x640xf32>
    %42 = arith.addf %39, %41 : vector<80x640xf32>
    %cst_19 = arith.constant 0.000000e+00 : f32
    %43 = vector.broadcast %cst_19 : f32 to vector<80x640xf32>
    %44 = arith.maximumf %42, %43 : vector<80x640xf32>
    %45 = vector.shape_cast %44 : vector<80x640xf32> to vector<10x8x640xf32>
    %c0_20 = arith.constant 0 : index
    %c0_21 = arith.constant 0 : index
    %c0_22 = arith.constant 0 : index
    %46 = vector.load %arg6[%c0_20, %c0_21, %c0_22] : memref<10x10x640xf32, #tpu.memory_space<vmem>>, vector<10x10x640xf32>
    "tpu.trace_start"() <{level = 10 : i32, message = "inf,iqf->inq"}> : () -> ()
    %cst_23 = arith.constant dense<0.000000e+00> : vector<10x8x10xf32>
    %47 = tpu.matmul %45, %46, %cst_23 {dimension_numbers = #tpu.dot_dimension_numbers<[2], [2], [1], [1], [0, 0, 0, 1, 1, 1], [0], [0]>} : vector<10x8x640xf32>, vector<10x10x640xf32>, vector<10x8x10xf32> -> vector<10x8x10xf32>
    "tpu.trace_stop"() : () -> ()
    %cst_24 = arith.constant dense<0.000000e+00> : vector<8x10xf32>
    %48 = vector.multi_reduction <add>, %47, %cst_24 [0] : vector<10x8x10xf32> to vector<8x10xf32>
    %c0_25 = arith.constant 0 : index
    %c0_26 = arith.constant 0 : index
    %49 = vector.load %arg7[%c0_25, %c0_26] : memref<1x10xf32, #tpu.memory_space<vmem>>, vector<1x10xf32>
    %50 = vector.broadcast %49 : vector<1x10xf32> to vector<8x10xf32>
    %51 = arith.addf %48, %50 : vector<8x10xf32>
    %c0_27 = arith.constant 0 : index
    %c0_28 = arith.constant 0 : index
    %52 = vector.load %arg8[%c0_27, %c0_28] : memref<8x10xf32, #tpu.memory_space<vmem>>, vector<8x10xf32>
    tpu.vector_store %arg8[%c0_27, %c0_28], %51 {strides = array<i32>} : memref<8x10xf32, #tpu.memory_space<vmem>>, vector<8x10xf32>,
    return
  }
  func.func @transform_0(%arg0: i32) -> (i32, i32, i32) {
    %c0_i32 = arith.constant 0 : i32
    %c0_i32_0 = arith.constant 0 : i32
    %c0_i32_1 = arith.constant 0 : i32
    return %c0_i32, %arg0, %c0_i32_0 : i32, i32, i32
  }
  func.func @transform_1(%arg0: i32) -> (i32, i32) {
    %c0_i32 = arith.constant 0 : i32
    %c0_i32_0 = arith.constant 0 : i32
    %c0_i32_1 = arith.constant 0 : i32
    return %c0_i32, %c0_i32_0 : i32, i32
  }
  func.func @transform_2(%arg0: i32) -> (i32, i32) {
    %c0_i32 = arith.constant 0 : i32
    %c0_i32_0 = arith.constant 0 : i32
    %c0_i32_1 = arith.constant 0 : i32
    return %c0_i32, %c0_i32_0 : i32, i32
  }
  func.func @transform_3(%arg0: i32) -> (i32, i32, i32) {
    %c0_i32 = arith.constant 0 : i32
    %c0_i32_0 = arith.constant 0 : i32
    %c0_i32_1 = arith.constant 0 : i32
    %c0_i32_2 = arith.constant 0 : i32
    return %c0_i32, %c0_i32_0, %c0_i32_1 : i32, i32, i32
  }
  func.func @transform_4(%arg0: i32) -> (i32, i32) {
    %c0_i32 = arith.constant 0 : i32
    %c0_i32_0 = arith.constant 0 : i32
    %c0_i32_1 = arith.constant 0 : i32
    return %c0_i32, %c0_i32_0 : i32, i32
  }
  func.func @transform_5(%arg0: i32) -> (i32, i32, i32) {
    %c0_i32 = arith.constant 0 : i32
    %c0_i32_0 = arith.constant 0 : i32
    %c0_i32_1 = arith.constant 0 : i32
    %c0_i32_2 = arith.constant 0 : i32
    return %c0_i32, %c0_i32_0, %c0_i32_1 : i32, i32, i32
  }
  func.func @transform_6(%arg0: i32) -> (i32, i32) {
    %c0_i32 = arith.constant 0 : i32
    %c0_i32_0 = arith.constant 0 : i32
    %c0_i32_1 = arith.constant 0 : i32
    return %c0_i32, %c0_i32_0 : i32, i32
  }
  func.func @transform_7(%arg0: i32) -> (i32, i32) {
    %c0_i32 = arith.constant 0 : i32
    %c0_i32_0 = arith.constant 0 : i32
    return %arg0, %c0_i32 : i32, i32
  }
}

</mosaic_0001>

<llo_original>
// kernel: cnn_forward.1
$region0: #{cnn_forward.1}
  #allocation0 [shape = 'u32[]', space=smem, size = 0x4, offset = 0x4, fixed_abs, tag = 'smem constant byte address 0x4 - core index']
  #allocation1 [shape = 'u32[144,128]{1,0:T(1,128)}', space=vmem, size = 0x12000, scoped, tag = 'internal scratch']
  %s0 = inlined_call_operand.vmem [shape: f32[26,16,84], index: 0, kind: input, shape index: {}]
  %s1 = inlined_call_operand.hbm [shape: f32[84,832], index: 1, kind: input, shape index: {}]
  %s2 = inlined_call_operand.hbm [shape: f32[1,832], index: 2, kind: input, shape index: {}]
  %s3 = inlined_call_operand.hbm [shape: f32[3,768,640], index: 3, kind: input, shape index: {}]
  %s4 = inlined_call_operand.hbm [shape: f32[1,640], index: 4, kind: input, shape index: {}]
  %s5 = inlined_call_operand.hbm [shape: f32[10,10,640], index: 5, kind: input, shape index: {}]
  %s6 = inlined_call_operand.hbm [shape: f32[1,10], index: 6, kind: input, shape index: {}]
  %s7 = inlined_call_operand.hbm [shape: f32[16,10], index: 7, kind: output, shape index: {}]
  %s8 = sld [smem:[#allocation0]]
  $region123: #{cnn_forward.1} parent=0
    _
  %s10 = ssub.s32 1, %s8
  %s11 = scalar_select 0, %s10, %s8
  $region1: #{cnn_forward.1} parent=0
    #allocation2 [shape = 'u8[212992]{0}', space=vmem, size = 0x34000, scoped, tag = 'input window, operand 0']
    #allocation3 [shape = 'u8[315392]{0}', space=vmem, size = 0x4d000, scoped, tag = 'input window, operand 1, single buffered']
    #allocation4 [shape = 's32[2]{0}', space=sflag, size = 0x8, scoped, tag = 'scoped memory for cnn_forward.1']
    #allocation5 [shape = 's32[2]{0}', space=sflag, size = 0x8, scoped, tag = 'scoped memory for cnn_forward.1']
    #allocation6 [shape = 'u8[3584]{0}', space=vmem, size = 0x1000, scoped, tag = 'input window, operand 2, single buffered']
    #allocation7 [shape = 's32[1]{0}', space=sflag, size = 0x4, scoped, tag = 'scoped memory for cnn_forward.1']
    #allocation8 [shape = 'u8[5898240]{0}', space=vmem, size = 0x5a0000, scoped, tag = 'input window, operand 3, single buffered']
    #allocation9 [shape = 'u8[2560]{0}', space=vmem, size = 0xc00, scoped, tag = 'input window, operand 4, single buffered']
    #allocation10 [shape = 's32[1]{0}', space=sflag, size = 0x4, scoped, tag = 'scoped memory for cnn_forward.1']
    #allocation11 [shape = 'u8[409600]{0}', space=vmem, size = 0x64000, scoped, tag = 'input window, operand 5, single buffered']
    #allocation12 [shape = 'u8[512]{0}', space=vmem, size = 0x400, scoped, tag = 'input window, operand 6, single buffered']
    #allocation13 [shape = 's32[1]{0}', space=sflag, size = 0x4, scoped, tag = 'scoped memory for cnn_forward.1']
    #allocation14 [shape = 'u8[8192]{0}', space=vmem, size = 0x2000, scoped, tag = 'output window, operand 0']
    %12 = vsyncpa [#allocation4], 0
    %13 = vsyncpa [#allocation7], 0
    %14 = vsyncpa [#allocation10], 0
    %15 = vsyncpa [#allocation13], 0
    %16 = vsyncpa [#allocation5], 0
    %s17 = scalar_lea.sflag [#allocation5], 1
    %18 = vsyncpa %s17, 0
    loop: start=0, step=1, limit=4
    $region2: #{cnn_forward.1} parent=1 // loop_pre_header
      _
    $region3: #{cnn_forward.1} parent=1 // loop_header
      %s20 = sphi 0, %s24
      %p21 = scmp.ge.s32.totalorder %s20, 4
      %s30 = sphi 0, %s32
      %s33 = sphi 0, %s30
      %s34 = sphi 0, %s33
      %s50 = sphi 0, %s34
      %s54 = sphi 0, %s54
      %s56 = sphi 0, %s54
      %s57 = sphi 0, %s56
      %s71 = sphi 0, %s57
      %s75 = sphi 0, %s75
      %s77 = sphi 0, %s75
      %s78 = sphi 0, %s77
      %s92 = sphi 0, %s78
      %s96 = sphi 0, %s96
      %s98 = sphi 0, %s96
      %s99 = sphi 0, %s98
      %s113 = sphi 0, %s99
      %s117 = sphi 0, %s117
      %s119 = sphi 0, %s117
      %s120 = sphi 0, %s119
      %s134 = sphi 0, %s120
      %s138 = sphi 0, %s138
      %s140 = sphi 0, %s138
      %s141 = sphi 0, %s140
      %s155 = sphi 0, %s141
      %s159 = sphi 0, %s159
      %s161 = sphi 0, %s159
      %s162 = sphi 0, %s161
      %s176 = sphi 0, %s162
      %s182 = sphi 0, %s184
      %s185 = sphi 0, %s182
      %s186 = sphi 0, %s185
      %s202 = sphi 0, %s186
    $region4: #{cnn_forward.1} parent=1 // loop_header_branch
      %23 = sbr.rel (%p21) target = $region8
    $region5: #{cnn_forward.1} parent=1 // loop_body
      %s25 = ssub.s32 %s20, 1
      %s26 = ssub.s32 %s20, 2
      %s27 = sadd.s32 %s20, 1
      %s28 = ssub.s32 %s20, %s27
      %p29 = scmp.eq.s32.totalorder %s28, 0
      %s31 = sadd.s32 %s30, 1
      %s32 = scalar_select %p29, %s30, %s31
      %p35 = pneg %p29
      %p36 = scmp.eq.s32.totalorder %s20, 1
      %p37 = por %p35, %p36
      %p38 = scmp.ne.s32.totalorder %s30, %s33
      %p39 = scmp.eq.s32.totalorder %s20, 0
      %p40 = por %p38, %p39
      %p41 = scmp.ne.s32.totalorder %s30, %s33
      %p42 = scmp.eq.s32.totalorder %s25, 1
      %p43 = por %p41, %p42
      %p44 = scmp.ne.s32.totalorder %s33, %s34
      %p45 = scmp.eq.s32.totalorder %s25, 0
      %p46 = por %p44, %p45
      %p47 = scmp.ne.s32.totalorder %s33, %s34
      %p48 = scmp.eq.s32.totalorder %s26, 1
      %p49 = por %p47, %p48
      %p51 = scmp.ne.s32.totalorder %s34, %s50
      %p52 = scmp.eq.s32.totalorder %s26, 0
      %p53 = por %p51, %p52
      %s55 = sadd.s32 %s54, 1
      %p58 = scmp.eq.s32.totalorder %s20, 1
      %p59 = scmp.ne.s32.totalorder %s54, %s56
      %p60 = scmp.eq.s32.totalorder %s20, 0
      %p61 = por %p59, %p60
      %p62 = scmp.ne.s32.totalorder %s54, %s56
      %p63 = scmp.eq.s32.totalorder %s25, 1
      %p64 = por %p62, %p63
      %p65 = scmp.ne.s32.totalorder %s56, %s57
      %p66 = scmp.eq.s32.totalorder %s25, 0
      %p67 = por %p65, %p66
      %p68 = scmp.ne.s32.totalorder %s56, %s57
      %p69 = scmp.eq.s32.totalorder %s26, 1
      %p70 = por %p68, %p69
      %p72 = scmp.ne.s32.totalorder %s57, %s71
      %p73 = scmp.eq.s32.totalorder %s26, 0
      %p74 = por %p72, %p73
      %s76 = sadd.s32 %s75, 1
      %p79 = scmp.eq.s32.totalorder %s20, 1
      %p80 = scmp.ne.s32.totalorder %s75, %s77
      %p81 = scmp.eq.s32.totalorder %s20, 0
      %p82 = por %p80, %p81
      %p83 = scmp.ne.s32.totalorder %s75, %s77
      %p84 = scmp.eq.s32.totalorder %s25, 1
      %p85 = por %p83, %p84
      %p86 = scmp.ne.s32.totalorder %s77, %s78
      %p87 = scmp.eq.s32.totalorder %s25, 0
      %p88 = por %p86, %p87
      %p89 = scmp.ne.s32.totalorder %s77, %s78
      %p90 = scmp.eq.s32.totalorder %s26, 1
      %p91 = por %p89, %p90
      %p93 = scmp.ne.s32.totalorder %s78, %s92
      %p94 = scmp.eq.s32.totalorder %s26, 0
      %p95 = por %p93, %p94
      %s97 = sadd.s32 %s96, 1
      %p100 = scmp.eq.s32.totalorder %s20, 1
      %p101 = scmp.ne.s32.totalorder %s96, %s98
      %p102 = scmp.eq.s32.totalorder %s20, 0
      %p103 = por %p101, %p102
      %p104 = scmp.ne.s32.totalorder %s96, %s98
      %p105 = scmp.eq.s32.totalorder %s25, 1
      %p106 = por %p104, %p105
      %p107 = scmp.ne.s32.totalorder %s98, %s99
      %p108 = scmp.eq.s32.totalorder %s25, 0
      %p109 = por %p107, %p108
      %p110 = scmp.ne.s32.totalorder %s98, %s99
      %p111 = scmp.eq.s32.totalorder %s26, 1
      %p112 = por %p110, %p111
      %p114 = scmp.ne.s32.totalorder %s99, %s113
      %p115 = scmp.eq.s32.totalorder %s26, 0
      %p116 = por %p114, %p115
      %s118 = sadd.s32 %s117, 1
      %p121 = scmp.eq.s32.totalorder %s20, 1
      %p122 = scmp.ne.s32.totalorder %s117, %s119
      %p123 = scmp.eq.s32.totalorder %s20, 0
      %p124 = por %p122, %p123
      %p125 = scmp.ne.s32.totalorder %s117, %s119
      %p126 = scmp.eq.s32.totalorder %s25, 1
      %p127 = por %p125, %p126
      %p128 = scmp.ne.s32.totalorder %s119, %s120
      %p129 = scmp.eq.s32.totalorder %s25, 0
      %p130 = por %p128, %p129
      %p131 = scmp.ne.s32.totalorder %s119, %s120
      %p132 = scmp.eq.s32.totalorder %s26, 1
      %p133 = por %p131, %p132
      %p135 = scmp.ne.s32.totalorder %s120, %s134
      %p136 = scmp.eq.s32.totalorder %s26, 0
      %p137 = por %p135, %p136
      %s139 = sadd.s32 %s138, 1
      %p142 = scmp.eq.s32.totalorder %s20, 1
      %p143 = scmp.ne.s32.totalorder %s138, %s140
      %p144 = scmp.eq.s32.totalorder %s20, 0
      %p145 = por %p143, %p144
      %p146 = scmp.ne.s32.totalorder %s138, %s140
      %p147 = scmp.eq.s32.totalorder %s25, 1
      %p148 = por %p146, %p147
      %p149 = scmp.ne.s32.totalorder %s140, %s141
      %p150 = scmp.eq.s32.totalorder %s25, 0
      %p151 = por %p149, %p150
      %p152 = scmp.ne.s32.totalorder %s140, %s141
      %p153 = scmp.eq.s32.totalorder %s26, 1
      %p154 = por %p152, %p153
      %p156 = scmp.ne.s32.totalorder %s141, %s155
      %p157 = scmp.eq.s32.totalorder %s26, 0
      %p158 = por %p156, %p157
      %s160 = sadd.s32 %s159, 1
      %p163 = scmp.eq.s32.totalorder %s20, 1
      %p164 = scmp.ne.s32.totalorder %s159, %s161
      %p165 = scmp.eq.s32.totalorder %s20, 0
      %p166 = por %p164, %p165
      %p167 = scmp.ne.s32.totalorder %s159, %s161
      %p168 = scmp.eq.s32.totalorder %s25, 1
      %p169 = por %p167, %p168
      %p170 = scmp.ne.s32.totalorder %s161, %s162
      %p171 = scmp.eq.s32.totalorder %s25, 0
      %p172 = por %p170, %p171
      %p173 = scmp.ne.s32.totalorder %s161, %s162
      %p174 = scmp.eq.s32.totalorder %s26, 1
      %p175 = por %p173, %p174
      %p177 = scmp.ne.s32.totalorder %s162, %s176
      %p178 = scmp.eq.s32.totalorder %s26, 0
      %p179 = por %p177, %p178
      %s180 = ssub.s32 %s20, %s27
      %p181 = scmp.eq.s32.totalorder %s180, 0
      %s183 = sadd.s32 %s182, 1
      %s184 = scalar_select %p181, %s182, %s183
      %p187 = pneg %p181
      %p188 = scmp.eq.s32.totalorder %s20, 1
      %p189 = por %p187, %p188
      %p190 = scmp.ne.s32.totalorder %s182, %s185
      %p191 = scmp.eq.s32.totalorder %s20, 0
      %p192 = por %p190, %p191
      %p193 = scmp.ne.s32.totalorder %s182, %s185
      %p194 = scmp.eq.s32.totalorder %s25, 1
      %p195 = por %p193, %p194
      %p196 = scmp.ne.s32.totalorder %s185, %s186
      %p197 = scmp.eq.s32.totalorder %s25, 0
      %p198 = por %p196, %p197
      %p199 = scmp.ne.s32.totalorder %s185, %s186
      %p200 = scmp.eq.s32.totalorder %s26, 1
      %p201 = por %p199, %p200
      %p203 = scmp.ne.s32.totalorder %s186, %s202
      %p204 = scmp.eq.s32.totalorder %s26, 0
      %p205 = por %p203, %p204
      %p206 = scmp.le.s32.totalorder 1, %s20
      %p207 = scmp.lt.s32.totalorder %s20, 3
      %p208 = pnand %p206, %p207
      %p209 = pneg %p208
      // Predicated region
      $region9: #{cnn_forward.1} parent=5 // pred_check
        _
      $region10: #{cnn_forward.1} parent=5 // pred_check_branch
        %211 = sbr.rel (%p208) target = $region12
      $region11: #{cnn_forward.1} parent=5 // pred_region
        %s212 = ssub.s32 %s20, 1
        // Predicated region
        $region13: #{cnn_forward.1} parent=11 // pred_check
          %p213 = pneg %p67
        $region14: #{cnn_forward.1} parent=11 // pred_check_branch
          %215 = sbr.rel (%p213) target = $region16
        $region15: #{cnn_forward.1} parent=11 // pred_region
          %s217 = ssub.s32 9856, 9856
          %218 = vsyncadd [#allocation4], %s217
          %s219 = sshll.u32 [#allocation3], 4
          %s220 = int_to_ptr.vmem [resolvable:$true] %s219
          %225 = dma.hbm_to_vmem [thread:$0]  %s1, 9856, %s220, [#allocation4], 896, 896, 56
        $region16: #{cnn_forward.1} parent=11 // pred_fallthru
          _
        // Predicated region
        $region17: #{cnn_forward.1} parent=11 // pred_check
          %p226 = pneg %p88
        $region18: #{cnn_forward.1} parent=11 // pred_check_branch
          %228 = sbr.rel (%p226) target = $region20
        $region19: #{cnn_forward.1} parent=11 // pred_region
          %s230 = ssub.s32 112, 112
          %231 = vsyncadd [#allocation7], %s230
          %s233 = sshll.u32 [#allocation6], 4
          %s234 = int_to_ptr.vmem [resolvable:$true] %s233
          %236 = dma.hbm_to_vmem [thread:$0]  %s2, 112, %s234, [#allocation7]
        $region20: #{cnn_forward.1} parent=11 // pred_fallthru
          _
        // Predicated region
        $region21: #{cnn_forward.1} parent=11 // pred_check
          %p237 = pneg %p109
        $region22: #{cnn_forward.1} parent=11 // pred_check_branch
          %239 = sbr.rel (%p237) target = $region24
        $region23: #{cnn_forward.1} parent=11 // pred_region
          %s241 = ssub.s32 184320, 184320
          %242 = vsyncadd [#allocation7], %s241
          %s243 = sshll.u32 [#allocation8], 4
          %s244 = int_to_ptr.vmem [resolvable:$true] %s243
          %249 = dma.hbm_to_vmem [thread:$0]  %s3, 184320, %s244, [#allocation7], 640, 640, 40
        $region24: #{cnn_forward.1} parent=11 // pred_fallthru
          _
        // Predicated region
        $region25: #{cnn_forward.1} parent=11 // pred_check
          %p250 = pneg %p130
        $region26: #{cnn_forward.1} parent=11 // pred_check_branch
          %252 = sbr.rel (%p250) target = $region28
        $region27: #{cnn_forward.1} parent=11 // pred_region
          %s254 = ssub.s32 80, 80
          %255 = vsyncadd [#allocation10], %s254
          %s257 = sshll.u32 [#allocation9], 4
          %s258 = int_to_ptr.vmem [resolvable:$true] %s257
          %260 = dma.hbm_to_vmem [thread:$0]  %s4, 80, %s258, [#allocation10]
        $region28: #{cnn_forward.1} parent=11 // pred_fallthru
          _
        // Predicated region
        $region29: #{cnn_forward.1} parent=11 // pred_check
          %p261 = pneg %p151
        $region30: #{cnn_forward.1} parent=11 // pred_check_branch
          %263 = sbr.rel (%p261) target = $region32
        $region31: #{cnn_forward.1} parent=11 // pred_region
          %s265 = ssub.s32 12800, 12800
          %266 = vsyncadd [#allocation10], %s265
          %s267 = sshll.u32 [#allocation11], 4
          %s268 = int_to_ptr.vmem [resolvable:$true] %s267
          %273 = dma.hbm_to_vmem [thread:$0]  %s5, 12800, %s268, [#allocation10], 640, 640, 40
        $region32: #{cnn_forward.1} parent=11 // pred_fallthru
          _
        // Predicated region
        $region33: #{cnn_forward.1} parent=11 // pred_check
          %p274 = pneg %p172
        $region34: #{cnn_forward.1} parent=11 // pred_check_branch
          %276 = sbr.rel (%p274) target = $region36
        $region35: #{cnn_forward.1} parent=11 // pred_region
          %s278 = ssub.s32 16, 16
          %279 = vsyncadd [#allocation13], %s278
          %s281 = sshll.u32 [#allocation12], 4
          %s282 = int_to_ptr.vmem [resolvable:$true] %s281
          %284 = dma.hbm_to_vmem [thread:$0]  %s6, 16, %s282, [#allocation13]
        $region36: #{cnn_forward.1} parent=11 // pred_fallthru
          _
      $region12: #{cnn_forward.1} parent=5 // pred_fallthru
        _
      %p285 = scmp.lt.s32.totalorder %s20, 2
      // Predicated region
      $region37: #{cnn_forward.1} parent=5 // pred_check
        %p286 = pneg %p285
      $region38: #{cnn_forward.1} parent=5 // pred_check_branch
        %288 = sbr.rel (%p286) target = $region40
      $region39: #{cnn_forward.1} parent=5 // pred_region
        // Predicated region
        $region41: #{cnn_forward.1} parent=39 // pred_check
          %p289 = pneg %p40
        $region42: #{cnn_forward.1} parent=39 // pred_check_branch
          %291 = sbr.rel (%p289) target = $region44
        $region43: #{cnn_forward.1} parent=39 // pred_region
          %s292 = sand.u32 %s30, 1
          %s293 = sand.u32 %s30, 1
          %s294 = smul.addr %s293, 208
          %s295 = scalar_lea.vmem [#allocation2], %s294
          %s296 = smul.addr %s20, 8
          %s297 = scalar_lea.vmem %s0, %s296
          // Predicated region
          $region45: #{cnn_forward.1} parent=43 // pred_check
            _
          $region46: #{cnn_forward.1} parent=43 // pred_check_branch
            %299 = sbr.rel (0) target = $region48
          $region47: #{cnn_forward.1} parent=43 // pred_region
            // Predicated region
            $region49: #{cnn_forward.1} parent=47 // pred_check
              _
            $region50: #{cnn_forward.1} parent=47 // pred_check_branch
              %301 = sbr.rel (0) target = $region52
            $region51: #{cnn_forward.1} parent=47 // pred_region
              // Predicated region
              $region64: #{cnn_forward.1} parent=51 // pred_check
                _
              $region65: #{cnn_forward.1} parent=51 // pred_check_branch
                %367 = sbr.rel (0) target = $region67
              $region66: #{cnn_forward.1} parent=51 // pred_region
                loop: start=0, step=1, limit=1
                $region68: #{cnn_forward.1} parent=66 // loop_pre_header
                  _
                $region69: #{cnn_forward.1} parent=66 // loop_header
                  %s369 = sphi 0, %s373
                  %p370 = scmp.ge.s32.totalorder %s369, 1
                  %s374 = sphi %s297, %s297
                  %s375 = sphi %s295, %s295
                $region70: #{cnn_forward.1} parent=66 // loop_header_branch
                  %372 = sbr.rel (%p370) target = $region74
                $region71: #{cnn_forward.1} parent=66 // loop_body
                  %v376 = vld [vmem:[%s374] sm:$0xff]
                  %377 = vst [vmem:[%s375] sm:$0xff] %v376
                  %v378 = vld [vmem:[%s374 + $0x10] sm:$0xff]
                  %379 = vst [vmem:[%s375 + $0x8] sm:$0xff] %v378
                  %v380 = vld [vmem:[%s374 + $0x20] sm:$0xff]
                  %381 = vst [vmem:[%s375 + $0x10] sm:$0xff] %v380
                  %v382 = vld [vmem:[%s374 + $0x30] sm:$0xff]
                  %383 = vst [vmem:[%s375 + $0x18] sm:$0xff] %v382
                  %v384 = vld [vmem:[%s374 + $0x40] sm:$0xff]
                  %385 = vst [vmem:[%s375 + $0x20] sm:$0xff] %v384
                  %v386 = vld [vmem:[%s374 + $0x50] sm:$0xff]
                  %387 = vst [vmem:[%s375 + $0x28] sm:$0xff] %v386
                  %v388 = vld [vmem:[%s374 + $0x60] sm:$0xff]
                  %389 = vst [vmem:[%s375 + $0x30] sm:$0xff] %v388
                  %v390 = vld [vmem:[%s374 + $0x70] sm:$0xff]
                  %391 = vst [vmem:[%s375 + $0x38] sm:$0xff] %v390
                  %v392 = vld [vmem:[%s374 + $0x80] sm:$0xff]
                  %393 = vst [vmem:[%s375 + $0x40] sm:$0xff] %v392
                  %v394 = vld [vmem:[%s374 + $0x90] sm:$0xff]
                  %395 = vst [vmem:[%s375 + $0x48] sm:$0xff] %v394
                  %v396 = vld [vmem:[%s374 + $0xa0] sm:$0xff]
                  %397 = vst [vmem:[%s375 + $0x50] sm:$0xff] %v396
                  %v398 = vld [vmem:[%s374 + $0xb0] sm:$0xff]
                  %399 = vst [vmem:[%s375 + $0x58] sm:$0xff] %v398
                  %v400 = vld [vmem:[%s374 + $0xc0] sm:$0xff]
                  %401 = vst [vmem:[%s375 + $0x60] sm:$0xff] %v400
                  %v402 = vld [vmem:[%s374 + $0xd0] sm:$0xff]
                  %403 = vst [vmem:[%s375 + $0x68] sm:$0xff] %v402
                  %v404 = vld [vmem:[%s374 + $0xe0] sm:$0xff]
                  %405 = vst [vmem:[%s375 + $0x70] sm:$0xff] %v404
                  %v406 = vld [vmem:[%s374 + $0xf0] sm:$0xff]
                  %407 = vst [vmem:[%s375 + $0x78] sm:$0xff] %v406
                  %v408 = vld [vmem:[%s374 + $0x100] sm:$0xff]
                  %409 = vst [vmem:[%s375 + $0x80] sm:$0xff] %v408
                  %v410 = vld [vmem:[%s374 + $0x110] sm:$0xff]
                  %411 = vst [vmem:[%s375 + $0x88] sm:$0xff] %v410
                  %v412 = vld [vmem:[%s374 + $0x120] sm:$0xff]
                  %413 = vst [vmem:[%s375 + $0x90] sm:$0xff] %v412
                  %v414 = vld [vmem:[%s374 + $0x130] sm:$0xff]
                  %415 = vst [vmem:[%s375 + $0x98] sm:$0xff] %v414
                  %v416 = vld [vmem:[%s374 + $0x140] sm:$0xff]
                  %417 = vst [vmem:[%s375 + $0xa0] sm:$0xff] %v416
                  %v418 = vld [vmem:[%s374 + $0x150] sm:$0xff]
                  %419 = vst [vmem:[%s375 + $0xa8] sm:$0xff] %v418
                  %v420 = vld [vmem:[%s374 + $0x160] sm:$0xff]
                  %421 = vst [vmem:[%s375 + $0xb0] sm:$0xff] %v420
                  %v422 = vld [vmem:[%s374 + $0x170] sm:$0xff]
                  %423 = vst [vmem:[%s375 + $0xb8] sm:$0xff] %v422
                  %v424 = vld [vmem:[%s374 + $0x180] sm:$0xff]
                  %425 = vst [vmem:[%s375 + $0xc0] sm:$0xff] %v424
                  %v426 = vld [vmem:[%s374 + $0x190] sm:$0xff]
                  %427 = vst [vmem:[%s375 + $0xc8] sm:$0xff] %v426
                $region72: #{cnn_forward.1} parent=66 // loop_footer
                  %s373 = sadd.s32 1, %s369
                $region73: #{cnn_forward.1} parent=66 // loop_footer_branch
                  %368 = sbr.rel target = $region69
                $region74: #{cnn_forward.1} parent=66 // loop_exit
                  _
              $region67: #{cnn_forward.1} parent=51 // pred_fallthru
                _
              // Predicated region
              $region75: #{cnn_forward.1} parent=51 // pred_check
                _
              $region76: #{cnn_forward.1} parent=51 // pred_check_branch
                %429 = sbr.rel target = $region78
              $region77: #{cnn_forward.1} parent=51 // pred_region
                _
              $region78: #{cnn_forward.1} parent=51 // pred_fallthru
                _
            $region52: #{cnn_forward.1} parent=47 // pred_fallthru
              _
            // Predicated region
            $region53: #{cnn_forward.1} parent=47 // pred_check
              _
            $region54: #{cnn_forward.1} parent=47 // pred_check_branch
              %303 = sbr.rel target = $region56
            $region55: #{cnn_forward.1} parent=47 // pred_region
              %s305 = ssub.s32 256, 1
              loop: start=0, step=1, limit=1
              $region57: #{cnn_forward.1} parent=55 // loop_pre_header
                _
              $region58: #{cnn_forward.1} parent=55 // loop_header
                %s307 = sphi 0, %s311
                %p308 = scmp.ge.s32.totalorder %s307, 1
                %s312 = sphi %s297, %s297
                %s313 = sphi %s295, %s295
              $region59: #{cnn_forward.1} parent=55 // loop_header_branch
                %310 = sbr.rel (%p308) target = $region63
              $region60: #{cnn_forward.1} parent=55 // loop_body
                %v314 = vld [vmem:[%s312] sm:%s305]
                %315 = vst [vmem:[%s313] sm:%s305] %v314
                %v316 = vld [vmem:[%s312 + $0x10] sm:%s305]
                %317 = vst [vmem:[%s313 + $0x8] sm:%s305] %v316
                %v318 = vld [vmem:[%s312 + $0x20] sm:%s305]
                %319 = vst [vmem:[%s313 + $0x10] sm:%s305] %v318
                %v320 = vld [vmem:[%s312 + $0x30] sm:%s305]
                %321 = vst [vmem:[%s313 + $0x18] sm:%s305] %v320
                %v322 = vld [vmem:[%s312 + $0x40] sm:%s305]
                %323 = vst [vmem:[%s313 + $0x20] sm:%s305] %v322
                %v324 = vld [vmem:[%s312 + $0x50] sm:%s305]
                %325 = vst [vmem:[%s313 + $0x28] sm:%s305] %v324
                %v326 = vld [vmem:[%s312 + $0x60] sm:%s305]
                %327 = vst [vmem:[%s313 + $0x30] sm:%s305] %v326
                %v328 = vld [vmem:[%s312 + $0x70] sm:%s305]
                %329 = vst [vmem:[%s313 + $0x38] sm:%s305] %v328
                %v330 = vld [vmem:[%s312 + $0x80] sm:%s305]
                %331 = vst [vmem:[%s313 + $0x40] sm:%s305] %v330
                %v332 = vld [vmem:[%s312 + $0x90] sm:%s305]
                %333 = vst [vmem:[%s313 + $0x48] sm:%s305] %v332
                %v334 = vld [vmem:[%s312 + $0xa0] sm:%s305]
                %335 = vst [vmem:[%s313 + $0x50] sm:%s305] %v334
                %v336 = vld [vmem:[%s312 + $0xb0] sm:%s305]
                %337 = vst [vmem:[%s313 + $0x58] sm:%s305] %v336
                %v338 = vld [vmem:[%s312 + $0xc0] sm:%s305]
                %339 = vst [vmem:[%s313 + $0x60] sm:%s305] %v338
                %v340 = vld [vmem:[%s312 + $0xd0] sm:%s305]
                %341 = vst [vmem:[%s313 + $0x68] sm:%s305] %v340
                %v342 = vld [vmem:[%s312 + $0xe0] sm:%s305]
                %343 = vst [vmem:[%s313 + $0x70] sm:%s305] %v342
                %v344 = vld [vmem:[%s312 + $0xf0] sm:%s305]
                %345 = vst [vmem:[%s313 + $0x78] sm:%s305] %v344
                %v346 = vld [vmem:[%s312 + $0x100] sm:%s305]
                %347 = vst [vmem:[%s313 + $0x80] sm:%s305] %v346
                %v348 = vld [vmem:[%s312 + $0x110] sm:%s305]
                %349 = vst [vmem:[%s313 + $0x88] sm:%s305] %v348
                %v350 = vld [vmem:[%s312 + $0x120] sm:%s305]
                %351 = vst [vmem:[%s313 + $0x90] sm:%s305] %v350
                %v352 = vld [vmem:[%s312 + $0x130] sm:%s305]
                %353 = vst [vmem:[%s313 + $0x98] sm:%s305] %v352
                %v354 = vld [vmem:[%s312 + $0x140] sm:%s305]
                %355 = vst [vmem:[%s313 + $0xa0] sm:%s305] %v354
                %v356 = vld [vmem:[%s312 + $0x150] sm:%s305]
                %357 = vst [vmem:[%s313 + $0xa8] sm:%s305] %v356
                %v358 = vld [vmem:[%s312 + $0x160] sm:%s305]
                %359 = vst [vmem:[%s313 + $0xb0] sm:%s305] %v358
                %v360 = vld [vmem:[%s312 + $0x170] sm:%s305]
                %361 = vst [vmem:[%s313 + $0xb8] sm:%s305] %v360
                %v362 = vld [vmem:[%s312 + $0x180] sm:%s305]
                %363 = vst [vmem:[%s313 + $0xc0] sm:%s305] %v362
                %v364 = vld [vmem:[%s312 + $0x190] sm:%s305]
                %365 = vst [vmem:[%s313 + $0xc8] sm:%s305] %v364
              $region61: #{cnn_forward.1} parent=55 // loop_footer
                %s311 = sadd.s32 1, %s307
              $region62: #{cnn_forward.1} parent=55 // loop_footer_branch
                %306 = sbr.rel target = $region58
              $region63: #{cnn_forward.1} parent=55 // loop_exit
                _
            $region56: #{cnn_forward.1} parent=47 // pred_fallthru
              _
          $region48: #{cnn_forward.1} parent=43 // pred_fallthru
            _
          %430 = vnop
        $region44: #{cnn_forward.1} parent=39 // pred_fallthru
          _
      $region40: #{cnn_forward.1} parent=5 // pred_fallthru
        _
      %p431 = scmp.le.s32.totalorder 1, %s20
      %p432 = scmp.lt.s32.totalorder %s20, 3
      %p433 = pnand %p431, %p432
      %p434 = pneg %p433
      // Predicated region
      $region79: #{cnn_forward.1} parent=5 // pred_check
        _
      $region80: #{cnn_forward.1} parent=5 // pred_check_branch
        %436 = sbr.rel (%p433) target = $region82
      $region81: #{cnn_forward.1} parent=5 // pred_region
        %s437 = ssub.s32 %s20, 1
        %s438 = sand.u32 %s33, 1
        %s439 = sand.u32 %s33, 1
        %s440 = smul.addr %s439, 208
        %s441 = scalar_lea.vmem [#allocation2], %s440
        // Predicated region
        $region83: #{cnn_forward.1} parent=81 // pred_check
          %p442 = pneg %p46
        $region84: #{cnn_forward.1} parent=81 // pred_check_branch
          %444 = sbr.rel (%p442) target = $region86
        $region85: #{cnn_forward.1} parent=81 // pred_region
          _
        $region86: #{cnn_forward.1} parent=81 // pred_fallthru
          _
        // Predicated region
        $region87: #{cnn_forward.1} parent=81 // pred_check
          %p445 = pneg %p67
        $region88: #{cnn_forward.1} parent=81 // pred_check_branch
          %447 = sbr.rel (%p445) target = $region90
        $region89: #{cnn_forward.1} parent=81 // pred_region
          %448 = dma.done [#allocation4], 9856
        $region90: #{cnn_forward.1} parent=81 // pred_fallthru
          _
        // Predicated region
        $region91: #{cnn_forward.1} parent=81 // pred_check
          %p449 = pneg %p88
        $region92: #{cnn_forward.1} parent=81 // pred_check_branch
          %451 = sbr.rel (%p449) target = $region94
        $region93: #{cnn_forward.1} parent=81 // pred_region
          %452 = dma.done [#allocation7], 112
        $region94: #{cnn_forward.1} parent=81 // pred_fallthru
          _
        // Predicated region
        $region95: #{cnn_forward.1} parent=81 // pred_check
          %p453 = pneg %p109
        $region96: #{cnn_forward.1} parent=81 // pred_check_branch
          %455 = sbr.rel (%p453) target = $region98
        $region97: #{cnn_forward.1} parent=81 // pred_region
          %456 = dma.done [#allocation7], 184320
        $region98: #{cnn_forward.1} parent=81 // pred_fallthru
          _
        // Predicated region
        $region99: #{cnn_forward.1} parent=81 // pred_check
          %p457 = pneg %p130
        $region100: #{cnn_forward.1} parent=81 // pred_check_branch
          %459 = sbr.rel (%p457) target = $region102
        $region101: #{cnn_forward.1} parent=81 // pred_region
          %460 = dma.done [#allocation10], 80
        $region102: #{cnn_forward.1} parent=81 // pred_fallthru
          _
        // Predicated region
        $region103: #{cnn_forward.1} parent=81 // pred_check
          %p461 = pneg %p151
        $region104: #{cnn_forward.1} parent=81 // pred_check_branch
          %463 = sbr.rel (%p461) target = $region106
        $region105: #{cnn_forward.1} parent=81 // pred_region
          %464 = dma.done [#allocation10], 12800
        $region106: #{cnn_forward.1} parent=81 // pred_fallthru
          _
        // Predicated region
        $region107: #{cnn_forward.1} parent=81 // pred_check
          %p465 = pneg %p172
        $region108: #{cnn_forward.1} parent=81 // pred_check_branch
          %467 = sbr.rel (%p465) target = $region110
        $region109: #{cnn_forward.1} parent=81 // pred_region
          %468 = dma.done [#allocation13], 16
        $region110: #{cnn_forward.1} parent=81 // pred_fallthru
          _
        %s469 = sand.u32 %s33, 1
        %s470 = sand.u32 %s33, 1
        %s471 = smul.addr %s470, 208
        %s472 = scalar_lea.vmem [#allocation2], %s471
        %p473 = pneg %p46
        %p474 = pneg %p43
        %p475 = pneg %p67
        %p476 = pneg %p64
        %p477 = pneg %p88
        %p478 = pneg %p85
        %p479 = pneg %p109
        %p480 = pneg %p106
        %p481 = pneg %p130
        %p482 = pneg %p127
        %p483 = pneg %p151
        %p484 = pneg %p148
        %p485 = pneg %p172
        %p486 = pneg %p169
        %p487 = pneg %p198
        %p488 = pneg %p195
        %s489 = sand.u32 %s185, 1
        %s490 = scalar_lea.sflag [#allocation5], %s489
        %s491 = sand.u32 %s185, 1
        %s492 = smul.addr %s491, 8
        %s493 = scalar_lea.vmem [#allocation14], %s492
        %v494 = vld [vmem:[%s441] sm:$0xff]
        %v495 = vld [vmem:[%s441 + $0x8] sm:$0xff]
        %v496 = vld [vmem:[%s441 + $0x10] sm:$0xff]
        %v497 = vld [vmem:[%s441 + $0x18] sm:$0xff]
        %v498 = vld [vmem:[%s441 + $0x20] sm:$0xff]
        %v499 = vld [vmem:[%s441 + $0x28] sm:$0xff]
        %v500 = vld [vmem:[%s441 + $0x30] sm:$0xff]
        %v501 = vld [vmem:[%s441 + $0x38] sm:$0xff]
        %v502 = vld [vmem:[%s441 + $0x40] sm:$0xff]
        %v503 = vld [vmem:[%s441 + $0x48] sm:$0xff]
        %v504 = vld [vmem:[%s441 + $0x50] sm:$0xff]
        %v505 = vld [vmem:[%s441 + $0x58] sm:$0xff]
        %v506 = vld [vmem:[%s441 + $0x60] sm:$0xff]
        %v507 = vld [vmem:[%s441 + $0x68] sm:$0xff]
        %v508 = vld [vmem:[%s441 + $0x70] sm:$0xff]
        %v509 = vld [vmem:[%s441 + $0x78] sm:$0xff]
        %v510 = vld [vmem:[%s441 + $0x80] sm:$0xff]
        %v511 = vld [vmem:[%s441 + $0x88] sm:$0xff]
        %v512 = vld [vmem:[%s441 + $0x90] sm:$0xff]
        %v513 = vld [vmem:[%s441 + $0x98] sm:$0xff]
        %v514 = vld [vmem:[%s441 + $0xa0] sm:$0xff]
        %v515 = vld [vmem:[%s441 + $0xa8] sm:$0xff]
        %v516 = vld [vmem:[%s441 + $0xb0] sm:$0xff]
        %v517 = vld [vmem:[%s441 + $0xb8] sm:$0xff]
        %v518 = vld [vmem:[%s441 + $0xc0] sm:$0xff]
        %v519 = vld [vmem:[%s441 + $0xc8] sm:$0xff]
        %v520 = vld [vmem:[#allocation3] sm:$0xff]
        %v521 = vld [vmem:[#allocation3 + $0x8] sm:$0xff]
        %v522 = vld [vmem:[#allocation3 + $0x10] sm:$0xff]
        %v523 = vld [vmem:[#allocation3 + $0x18] sm:$0xff]
        %v524 = vld [vmem:[#allocation3 + $0x20] sm:$0xff]
        %v525 = vld [vmem:[#allocation3 + $0x28] sm:$0xff]
        %v526 = vld [vmem:[#allocation3 + $0x30] sm:$0xff]
        %v527 = vld [vmem:[#allocation3 + $0x38] sm:$0xff]
        %v528 = vld [vmem:[#allocation3 + $0x40] sm:$0xff]
        %v529 = vld [vmem:[#allocation3 + $0x48] sm:$0xff]
        %v530 = vld [vmem:[#allocation3 + $0x50] sm:$0xff]
        %v531 = vld [vmem:[#allocation3 + $0x58] sm:$0xff]
        %v532 = vld [vmem:[#allocation3 + $0x60] sm:$0xff]
        %v533 = vld [vmem:[#allocation3 + $0x68] sm:$0xff]
        %v534 = vld [vmem:[#allocation3 + $0x70] sm:$0xff]
        %v535 = vld [vmem:[#allocation3 + $0x78] sm:$0xff]
        %v536 = vld [vmem:[#allocation3 + $0x80] sm:$0xff]
        %v537 = vld [vmem:[#allocation3 + $0x88] sm:$0xff]
        %v538 = vld [vmem:[#allocation3 + $0x90] sm:$0xff]
        %v539 = vld [vmem:[#allocation3 + $0x98] sm:$0xff]
        %v540 = vld [vmem:[#allocation3 + $0xa0] sm:$0xff]
        %v541 = vld [vmem:[#allocation3 + $0xa8] sm:$0xff]
        %v542 = vld [vmem:[#allocation3 + $0xb0] sm:$0xff]
        %v543 = vld [vmem:[#allocation3 + $0xb8] sm:$0xff]
        %v544 = vld [vmem:[#allocation3 + $0xc0] sm:$0xff]
        %v545 = vld [vmem:[#allocation3 + $0xc8] sm:$0xff]
        %v546 = vld [vmem:[#allocation3 + $0xd0] sm:$0xff]
        %v547 = vld [vmem:[#allocation3 + $0xd8] sm:$0xff]
        %v548 = vld [vmem:[#allocation3 + $0xe0] sm:$0xff]
        %v549 = vld [vmem:[#allocation3 + $0xe8] sm:$0xff]
        %v550 = vld [vmem:[#allocation3 + $0xf0] sm:$0xff]
        %v551 = vld [vmem:[#allocation3 + $0xf8] sm:$0xff]
        %v552 = vld [vmem:[#allocation3 + $0x100] sm:$0xff]
        %v553 = vld [vmem:[#allocation3 + $0x108] sm:$0xff]
        %v554 = vld [vmem:[#allocation3 + $0x110] sm:$0xff]
        %v555 = vld [vmem:[#allocation3 + $0x118] sm:$0xff]
        %v556 = vld [vmem:[#allocation3 + $0x120] sm:$0xff]
        %v557 = vld [vmem:[#allocation3 + $0x128] sm:$0xff]
        %v558 = vld [vmem:[#allocation3 + $0x130] sm:$0xff]
        %v559 = vld [vmem:[#allocation3 + $0x138] sm:$0xff]
        %v560 = vld [vmem:[#allocation3 + $0x140] sm:$0xff]
        %v561 = vld [vmem:[#allocation3 + $0x148] sm:$0xff]
        %v562 = vld [vmem:[#allocation3 + $0x150] sm:$0xff]
        %v563 = vld [vmem:[#allocation3 + $0x158] sm:$0xff]
        %v564 = vld [vmem:[#allocation3 + $0x160] sm:$0xff]
        %v565 = vld [vmem:[#allocation3 + $0x168] sm:$0xff]
        %v566 = vld [vmem:[#allocation3 + $0x170] sm:$0xff]
        %v567 = vld [vmem:[#allocation3 + $0x178] sm:$0xff]
        %v568 = vld [vmem:[#allocation3 + $0x180] sm:$0xff]
        %v569 = vld [vmem:[#allocation3 + $0x188] sm:$0xff]
        %v570 = vld [vmem:[#allocation3 + $0x190] sm:$0xff]
        %v571 = vld [vmem:[#allocation3 + $0x198] sm:$0xff]
        %v572 = vld [vmem:[#allocation3 + $0x1a0] sm:$0xff]
        %v573 = vld [vmem:[#allocation3 + $0x1a8] sm:$0xff]
        %v574 = vld [vmem:[#allocation3 + $0x1b0] sm:$0xff]
        %v575 = vld [vmem:[#allocation3 + $0x1b8] sm:$0xff]
        %v576 = vld [vmem:[#allocation3 + $0x1c0] sm:$0xff]
        %v577 = vld [vmem:[#allocation3 + $0x1c8] sm:$0xff]
        %v578 = vld [vmem:[#allocation3 + $0x1d0] sm:$0xff]
        %v579 = vld [vmem:[#allocation3 + $0x1d8] sm:$0xff]
        %v580 = vld [vmem:[#allocation3 + $0x1e0] sm:$0xff]
        %v581 = vld [vmem:[#allocation3 + $0x1e8] sm:$0xff]
        %v582 = vld [vmem:[#allocation3 + $0x1f0] sm:$0xff]
        %v583 = vld [vmem:[#allocation3 + $0x1f8] sm:$0xff]
        %v584 = vld [vmem:[#allocation3 + $0x200] sm:$0xff]
        %v585 = vld [vmem:[#allocation3 + $0x208] sm:$0xff]
        %v586 = vld [vmem:[#allocation3 + $0x210] sm:$0xff]
        %v587 = vld [vmem:[#allocation3 + $0x218] sm:$0xff]
        %v588 = vld [vmem:[#allocation3 + $0x220] sm:$0xff]
        %v589 = vld [vmem:[#allocation3 + $0x228] sm:$0xff]
        %v590 = vld [vmem:[#allocation3 + $0x230] sm:$0xf]
        %v591 = vld [vmem:[#allocation3 + $0x238] sm:$0xf]
        %v592 = vld [vmem:[#allocation3 + $0x240] sm:$0xf]
        %v593 = vld [vmem:[#allocation3 + $0x248] sm:$0xf]
        %v594 = vld [vmem:[#allocation3 + $0x250] sm:$0xf]
        %v595 = vld [vmem:[#allocation3 + $0x258] sm:$0xf]
        %v596 = vld [vmem:[#allocation3 + $0x260] sm:$0xf]
        %v597 = vld [vmem:[#allocation6] sm:$0x7f]
        %v599 = vlaneseq
        %v600 = vshrl.u32 %v599, 7
        %v601 = vsub.s32 0, %v600
        %v602 = vrot.slane %v597, %v601
        %v603 = vlaneseq
        %v604 = vshrl.u32 %v603, 7
        %v605 = vsub.s32 1, %v604
        %v606 = vrot.slane %v597, %v605
        %v607 = vlaneseq
        %v608 = vshrl.u32 %v607, 7
        %v609 = vsub.s32 2, %v608
        %v610 = vrot.slane %v597, %v609
        %v611 = vlaneseq
        %v612 = vshrl.u32 %v611, 7
        %v613 = vsub.s32 3, %v612
        %v614 = vrot.slane %v597, %v613
        %v615 = vlaneseq
        %v616 = vshrl.u32 %v615, 7
        %v617 = vsub.s32 4, %v616
        %v618 = vrot.slane %v597, %v617
        %v619 = vlaneseq
        %v620 = vshrl.u32 %v619, 7
        %v621 = vsub.s32 5, %v620
        %v622 = vrot.slane %v597, %v621
        %v623 = vlaneseq
        %v624 = vshrl.u32 %v623, 7
        %v625 = vsub.s32 6, %v624
        %v626 = vrot.slane %v597, %v625
        %vm634 = vcmask 687104
        %v636 = vsel %vm634, %v494, 0
        %v639 = vsel %vm634, %v495, 0
        %v642 = vsel %vm634, %v496, 0
        %v645 = vsel %vm634, %v497, 0
        %v648 = vsel %vm634, %v498, 0
        %v651 = vsel %vm634, %v499, 0
        %v654 = vsel %vm634, %v500, 0
        %v657 = vsel %vm634, %v501, 0
        %v660 = vsel %vm634, %v502, 0
        %v663 = vsel %vm634, %v503, 0
        %v666 = vsel %vm634, %v504, 0
        %v669 = vsel %vm634, %v505, 0
        %v672 = vsel %vm634, %v506, 0
        %v675 = vsel %vm634, %v507, 0
        %v678 = vsel %vm634, %v508, 0
        %v681 = vsel %vm634, %v509, 0
        %v684 = vsel %vm634, %v510, 0
        %v687 = vsel %vm634, %v511, 0
        %v690 = vsel %vm634, %v512, 0
        %v693 = vsel %vm634, %v513, 0
        %v696 = vsel %vm634, %v514, 0
        %v699 = vsel %vm634, %v515, 0
        %v702 = vsel %vm634, %v516, 0
        %v705 = vsel %vm634, %v517, 0
        %v708 = vsel %vm634, %v518, 0
        %v711 = vsel %vm634, %v519, 0
        %vm713 = vcmask 1043456
        %v715 = vsel %vm713, %v590, 0
        %v718 = vsel %vm713, %v591, 0
        %v721 = vsel %vm713, %v592, 0
        %v724 = vsel %vm713, %v593, 0
        %v727 = vsel %vm713, %v594, 0
        %v730 = vsel %vm713, %v595, 0
        %v733 = vsel %vm713, %v596, 0
        %735 = vmatprep.subr.mxu0 0.0
        %736 = vmatpush1.msra.mxu0 0.0
        %737 = vmatprep.subr.mxu0 0.0
        %738 = vmatpush1.msra.mxu0 0.0
        %739 = vmatprep.subr.mxu0 0.0
        %740 = vmatpush1.msra.mxu0 0.0
        %741 = vmatprep.subr.mxu0 0.0
        %742 = vmatpush1.msra.mxu0 0.0
        %743 = vmatprep.subr.mxu0 0.0
        %744 = vmatpush1.msra.mxu0 0.0
        %745 = vmatprep.subr.mxu0 %v718
        %746 = vmatpush1.msra.mxu0 %v715
        %747 = vmatprep.subr.mxu0 %v584
        %748 = vmatpush1.msra.mxu0 %v583
        %749 = vmatprep.subr.mxu0 %v577
        %750 = vmatpush1.msra.mxu0 %v576
        %751 = vmatprep.subr.mxu0 %v570
        %752 = vmatpush1.msra.mxu0 %v569
        %753 = vmatprep.subr.mxu0 %v563
        %754 = vmatpush1.msra.mxu0 %v562
        %755 = vmatprep.subr.mxu0 %v556
        %756 = vmatpush1.msra.mxu0 %v555
        %757 = vmatprep.subr.mxu0 %v549
        %758 = vmatpush1.msra.mxu0 %v548
        %759 = vmatprep.subr.mxu0 %v542
        %760 = vmatpush1.msra.mxu0 %v541
        %761 = vmatprep.subr.mxu0 %v535
        %762 = vmatpush1.msra.mxu0 %v534
        %763 = vmatprep.subr.mxu0 %v528
        %764 = vmatpush1.msra.mxu0 %v527
        %765 = vmatprep.subr.mxu0 %v521
        %766 = vmatpush1.msra.mxu0 %v520
        %767 = vmatprep.subr.mxu0 0.0
        %768 = vmatpush2.msra.mxu0 0.0
        %769 = vmatprep.subr.mxu0 0.0
        %770 = vmatpush2.msra.mxu0 0.0
        %771 = vmatprep.subr.mxu0 0.0
        %772 = vmatpush2.msra.mxu0 0.0
        %773 = vmatprep.subr.mxu0 0.0
        %774 = vmatpush2.msra.mxu0 0.0
        %775 = vmatprep.subr.mxu0 0.0
        %776 = vmatpush2.msra.mxu0 0.0
        %777 = vmatprep.subr.mxu0 0.0
        %778 = vmatpush2.msra.mxu0 0.0
        %779 = vmatprep.subr.mxu0 0.0
        %780 = vmatpush2.msra.mxu0 0.0
        %781 = vmatprep.subr.mxu0 0.0
        %782 = vmatpush2.msra.mxu0 0.0
        %783 = vmatprep.subr.mxu0 0.0
        %784 = vmatpush2.msra.mxu0 0.0
        %785 = vmatprep.subr.mxu0 0.0
        %786 = vmatpush2.msra.mxu0 0.0
        %787 = vmatprep.subr.mxu0 0.0
        %788 = vmatpush2.msra.mxu0 0.0
        %789 = vmatprep.subr.mxu0 0.0
        %790 = vmatpush2.msra.mxu0 0.0
        %791 = vmatprep.subr.mxu0 0.0
        %792 = vmatpush2.msra.mxu0 0.0
        %793 = vmatprep.subr.mxu0 0.0
        %794 = vmatpush2.msra.mxu0 0.0
        %795 = vmatprep.subr.mxu0 0.0
        %796 = vmatpush2.msra.mxu0 0.0
        %797 = vmatprep.subr.mxu0 0.0
        %798 = vmatpush2.msra.mxu0 0.0
        %799 = vmatprep.mubr.f32.mxu0 0.0
        %800 = vmatmul.mubr.f32.gmra.mxu0 %v636
        %v801 = vpop.f32.mrf.mxu0
        %v802 = vadd.f32 %v602, %v801
        %v803 = vpop.f32.mrf.mxu0
        %v804 = vadd.f32 %v606, %v803
        %805 = vmatprep.mubr.f32.mxu0 0.0
        %806 = vmatmul.mubr.f32.gmra.mxu0 %v639
        %v807 = vpop.f32.mrf.mxu0
        %v808 = vadd.f32 %v602, %v807
        %v809 = vpop.f32.mrf.mxu0
        %v810 = vadd.f32 %v606, %v809
        %811 = vmatprep.mubr.f32.mxu0 0.0
        %812 = vmatmul.mubr.f32.gmra.mxu0 %v642
        %v813 = vpop.f32.mrf.mxu0
        %v814 = vadd.f32 %v602, %v813
        %v815 = vpop.f32.mrf.mxu0
        %v816 = vadd.f32 %v606, %v815
        %817 = vmatprep.mubr.f32.mxu0 0.0
        %818 = vmatmul.mubr.f32.gmra.mxu0 %v645
        %v819 = vpop.f32.mrf.mxu0
        %v820 = vadd.f32 %v602, %v819
        %v821 = vpop.f32.mrf.mxu0
        %v822 = vadd.f32 %v606, %v821
        %823 = vmatprep.mubr.f32.mxu0 0.0
        %824 = vmatmul.mubr.f32.gmra.mxu0 %v648
        %v825 = vpop.f32.mrf.mxu0
        %v826 = vadd.f32 %v602, %v825
        %v827 = vpop.f32.mrf.mxu0
        %v828 = vadd.f32 %v606, %v827
        %829 = vmatprep.mubr.f32.mxu0 0.0
        %830 = vmatmul.mubr.f32.gmra.mxu0 %v651
        %v831 = vpop.f32.mrf.mxu0
        %v832 = vadd.f32 %v602, %v831
        %v833 = vpop.f32.mrf.mxu0
        %v834 = vadd.f32 %v606, %v833
        %835 = vmatprep.mubr.f32.mxu0 0.0
        %836 = vmatmul.mubr.f32.gmra.mxu0 %v654
        %v837 = vpop.f32.mrf.mxu0
        %v838 = vadd.f32 %v602, %v837
        %v839 = vpop.f32.mrf.mxu0
        %v840 = vadd.f32 %v606, %v839
        %841 = vmatprep.mubr.f32.mxu0 0.0
        %842 = vmatmul.mubr.f32.gmra.mxu0 %v657
        %v843 = vpop.f32.mrf.mxu0
        %v844 = vadd.f32 %v602, %v843
        %v845 = vpop.f32.mrf.mxu0
        %v846 = vadd.f32 %v606, %v845
        %847 = vmatprep.mubr.f32.mxu0 0.0
        %848 = vmatmul.mubr.f32.gmra.mxu0 %v660
        %v849 = vpop.f32.mrf.mxu0
        %v850 = vadd.f32 %v602, %v849
        %v851 = vpop.f32.mrf.mxu0
        %v852 = vadd.f32 %v606, %v851
        %853 = vmatprep.mubr.f32.mxu0 0.0
        %854 = vmatmul.mubr.f32.gmra.mxu0 %v663
        %v855 = vpop.f32.mrf.mxu0
        %v856 = vadd.f32 %v602, %v855
        %v857 = vpop.f32.mrf.mxu0
        %v858 = vadd.f32 %v606, %v857
        %859 = vmatprep.mubr.f32.mxu0 0.0
        %860 = vmatmul.mubr.f32.gmra.mxu0 %v666
        %v861 = vpop.f32.mrf.mxu0
        %v862 = vadd.f32 %v602, %v861
        %v863 = vpop.f32.mrf.mxu0
        %v864 = vadd.f32 %v606, %v863
        %865 = vmatprep.mubr.f32.mxu0 0.0
        %866 = vmatmul.mubr.f32.gmra.mxu0 %v669
        %v867 = vpop.f32.mrf.mxu0
        %v868 = vadd.f32 %v602, %v867
        %v869 = vpop.f32.mrf.mxu0
        %v870 = vadd.f32 %v606, %v869
        %871 = vmatprep.mubr.f32.mxu0 0.0
        %872 = vmatmul.mubr.f32.gmra.mxu0 %v672
        %v873 = vpop.f32.mrf.mxu0
        %v874 = vadd.f32 %v602, %v873
        %v875 = vpop.f32.mrf.mxu0
        %v876 = vadd.f32 %v606, %v875
        %877 = vmatprep.mubr.f32.mxu0 0.0
        %878 = vmatmul.mubr.f32.gmra.mxu0 %v675
        %v879 = vpop.f32.mrf.mxu0
        %v880 = vadd.f32 %v602, %v879
        %v881 = vpop.f32.mrf.mxu0
        %v882 = vadd.f32 %v606, %v881
        %883 = vmatprep.mubr.f32.mxu0 0.0
        %884 = vmatmul.mubr.f32.gmra.mxu0 %v678
        %v885 = vpop.f32.mrf.mxu0
        %v886 = vadd.f32 %v602, %v885
        %v887 = vpop.f32.mrf.mxu0
        %v888 = vadd.f32 %v606, %v887
        %889 = vmatprep.mubr.f32.mxu0 0.0
        %890 = vmatmul.mubr.f32.gmra.mxu0 %v681
        %v891 = vpop.f32.mrf.mxu0
        %v892 = vadd.f32 %v602, %v891
        %v893 = vpop.f32.mrf.mxu0
        %v894 = vadd.f32 %v606, %v893
        %895 = vmatprep.mubr.f32.mxu0 0.0
        %896 = vmatmul.mubr.f32.gmra.mxu0 %v684
        %v897 = vpop.f32.mrf.mxu0
        %v898 = vadd.f32 %v602, %v897
        %v899 = vpop.f32.mrf.mxu0
        %v900 = vadd.f32 %v606, %v899
        %901 = vmatprep.mubr.f32.mxu0 0.0
        %902 = vmatmul.mubr.f32.gmra.mxu0 %v687
        %v903 = vpop.f32.mrf.mxu0
        %v904 = vadd.f32 %v602, %v903
        %v905 = vpop.f32.mrf.mxu0
        %v906 = vadd.f32 %v606, %v905
        %907 = vmatprep.mubr.f32.mxu0 0.0
        %908 = vmatmul.mubr.f32.gmra.mxu0 %v690
        %v909 = vpop.f32.mrf.mxu0
        %v910 = vadd.f32 %v602, %v909
        %v911 = vpop.f32.mrf.mxu0
        %v912 = vadd.f32 %v606, %v911
        %913 = vmatprep.mubr.f32.mxu0 0.0
        %914 = vmatmul.mubr.f32.gmra.mxu0 %v693
        %v915 = vpop.f32.mrf.mxu0
        %v916 = vadd.f32 %v602, %v915
        %v917 = vpop.f32.mrf.mxu0
        %v918 = vadd.f32 %v606, %v917
        %919 = vmatprep.mubr.f32.mxu0 0.0
        %920 = vmatmul.mubr.f32.gmra.mxu0 %v696
        %v921 = vpop.f32.mrf.mxu0
        %v922 = vadd.f32 %v602, %v921
        %v923 = vpop.f32.mrf.mxu0
        %v924 = vadd.f32 %v606, %v923
        %925 = vmatprep.mubr.f32.mxu0 0.0
        %926 = vmatmul.mubr.f32.gmra.mxu0 %v699
        %v927 = vpop.f32.mrf.mxu0
        %v928 = vadd.f32 %v602, %v927
        %v929 = vpop.f32.mrf.mxu0
        %v930 = vadd.f32 %v606, %v929
        %931 = vmatprep.mubr.f32.mxu0 0.0
        %932 = vmatmul.mubr.f32.gmra.mxu0 %v702
        %v933 = vpop.f32.mrf.mxu0
        %v934 = vadd.f32 %v602, %v933
        %v935 = vpop.f32.mrf.mxu0
        %v936 = vadd.f32 %v606, %v935
        %937 = vmatprep.mubr.f32.mxu0 0.0
        %938 = vmatmul.mubr.f32.gmra.mxu0 %v705
        %v939 = vpop.f32.mrf.mxu0
        %v940 = vadd.f32 %v602, %v939
        %v941 = vpop.f32.mrf.mxu0
        %v942 = vadd.f32 %v606, %v941
        %943 = vmatprep.mubr.f32.mxu0 0.0
        %944 = vmatmul.mubr.f32.gmra.mxu0 %v708
        %v945 = vpop.f32.mrf.mxu0
        %v946 = vadd.f32 %v602, %v945
        %v947 = vpop.f32.mrf.mxu0
        %v948 = vadd.f32 %v606, %v947
        %949 = vmatprep.mubr.f32.mxu0 0.0
        %950 = vmatmul.mubr.f32.gmra.mxu0 %v711
        %v951 = vpop.f32.mrf.mxu0
        %v952 = vpop.f32.mrf.mxu0
        %953 = vdwg.mxu0
        %954 = vmatprep.subr.mxu0 0.0
        %955 = vmatpush1.msra.mxu0 0.0
        %956 = vmatprep.subr.mxu0 0.0
        %957 = vmatpush1.msra.mxu0 0.0
        %958 = vmatprep.subr.mxu0 0.0
        %959 = vmatpush1.msra.mxu0 0.0
        %960 = vmatprep.subr.mxu0 0.0
        %961 = vmatpush1.msra.mxu0 0.0
        %962 = vmatprep.subr.mxu0 0.0
        %963 = vmatpush1.msra.mxu0 0.0
        %964 = vmatprep.subr.mxu0 %v724
        %965 = vmatpush1.msra.mxu0 %v721
        %966 = vmatprep.subr.mxu0 %v586
        %967 = vmatpush1.msra.mxu0 %v585
        %968 = vmatprep.subr.mxu0 %v579
        %969 = vmatpush1.msra.mxu0 %v578
        %970 = vmatprep.subr.mxu0 %v572
        %971 = vmatpush1.msra.mxu0 %v571
        %972 = vmatprep.subr.mxu0 %v565
        %973 = vmatpush1.msra.mxu0 %v564
        %974 = vmatprep.subr.mxu0 %v558
        %975 = vmatpush1.msra.mxu0 %v557
        %976 = vmatprep.subr.mxu0 %v551
        %977 = vmatpush1.msra.mxu0 %v550
        %978 = vmatprep.subr.mxu0 %v544
        %979 = vmatpush1.msra.mxu0 %v543
        %980 = vmatprep.subr.mxu0 %v537
        %981 = vmatpush1.msra.mxu0 %v536
        %982 = vmatprep.subr.mxu0 %v530
        %983 = vmatpush1.msra.mxu0 %v529
        %984 = vmatprep.subr.mxu0 %v523
        %985 = vmatpush1.msra.mxu0 %v522
        %986 = vmatprep.subr.mxu0 0.0
        %987 = vmatpush2.msra.mxu0 0.0
        %988 = vmatprep.subr.mxu0 0.0
        %989 = vmatpush2.msra.mxu0 0.0
        %990 = vmatprep.subr.mxu0 0.0
        %991 = vmatpush2.msra.mxu0 0.0
        %992 = vmatprep.subr.mxu0 0.0
        %993 = vmatpush2.msra.mxu0 0.0
        %994 = vmatprep.subr.mxu0 0.0
        %995 = vmatpush2.msra.mxu0 0.0
        %996 = vmatprep.subr.mxu0 0.0
        %997 = vmatpush2.msra.mxu0 0.0
        %998 = vmatprep.subr.mxu0 0.0
        %999 = vmatpush2.msra.mxu0 0.0
        %1000 = vmatprep.subr.mxu0 0.0
        %1001 = vmatpush2.msra.mxu0 0.0
        %1002 = vmatprep.subr.mxu0 0.0
        %1003 = vmatpush2.msra.mxu0 0.0
        %1004 = vmatprep.subr.mxu0 0.0
        %1005 = vmatpush2.msra.mxu0 0.0
        %1006 = vmatprep.subr.mxu0 0.0
        %1007 = vmatpush2.msra.mxu0 0.0
        %1008 = vmatprep.subr.mxu0 0.0
        %1009 = vmatpush2.msra.mxu0 0.0
        %1010 = vmatprep.subr.mxu0 0.0
        %1011 = vmatpush2.msra.mxu0 0.0
        %1012 = vmatprep.subr.mxu0 0.0
        %1013 = vmatpush2.msra.mxu0 0.0
        %1014 = vmatprep.subr.mxu0 0.0
        %1015 = vmatpush2.msra.mxu0 0.0
        %1016 = vmatprep.subr.mxu0 0.0
        %1017 = vmatpush2.msra.mxu0 0.0
        %1018 = vmatprep.mubr.f32.mxu0 0.0
        %1019 = vmatmul.mubr.f32.gmra.mxu0 %v636
        %v1020 = vpop.f32.mrf.mxu0
        %v1021 = vadd.f32 %v610, %v1020
        %v1022 = vpop.f32.mrf.mxu0
        %v1023 = vadd.f32 %v614, %v1022
        %1024 = vmatprep.mubr.f32.mxu0 0.0
        %1025 = vmatmul.mubr.f32.gmra.mxu0 %v639
        %v1026 = vpop.f32.mrf.mxu0
        %v1027 = vadd.f32 %v610, %v1026
        %v1028 = vpop.f32.mrf.mxu0
        %v1029 = vadd.f32 %v614, %v1028
        %1030 = vmatprep.mubr.f32.mxu0 0.0
        %1031 = vmatmul.mubr.f32.gmra.mxu0 %v642
        %v1032 = vpop.f32.mrf.mxu0
        %v1033 = vadd.f32 %v610, %v1032
        %v1034 = vpop.f32.mrf.mxu0
        %v1035 = vadd.f32 %v614, %v1034
        %1036 = vmatprep.mubr.f32.mxu0 0.0
        %1037 = vmatmul.mubr.f32.gmra.mxu0 %v645
        %v1038 = vpop.f32.mrf.mxu0
        %v1039 = vadd.f32 %v610, %v1038
        %v1040 = vpop.f32.mrf.mxu0
        %v1041 = vadd.f32 %v614, %v1040
        %1042 = vmatprep.mubr.f32.mxu0 0.0
        %1043 = vmatmul.mubr.f32.gmra.mxu0 %v648
        %v1044 = vpop.f32.mrf.mxu0
        %v1045 = vadd.f32 %v610, %v1044
        %v1046 = vpop.f32.mrf.mxu0
        %v1047 = vadd.f32 %v614, %v1046
        %1048 = vmatprep.mubr.f32.mxu0 0.0
        %1049 = vmatmul.mubr.f32.gmra.mxu0 %v651
        %v1050 = vpop.f32.mrf.mxu0
        %v1051 = vadd.f32 %v610, %v1050
        %v1052 = vpop.f32.mrf.mxu0
        %v1053 = vadd.f32 %v614, %v1052
        %1054 = vmatprep.mubr.f32.mxu0 0.0
        %1055 = vmatmul.mubr.f32.gmra.mxu0 %v654
        %v1056 = vpop.f32.mrf.mxu0
        %v1057 = vadd.f32 %v610, %v1056
        %v1058 = vpop.f32.mrf.mxu0
        %v1059 = vadd.f32 %v614, %v1058
        %1060 = vmatprep.mubr.f32.mxu0 0.0
        %1061 = vmatmul.mubr.f32.gmra.mxu0 %v657
        %v1062 = vpop.f32.mrf.mxu0
        %v1063 = vadd.f32 %v610, %v1062
        %v1064 = vpop.f32.mrf.mxu0
        %v1065 = vadd.f32 %v614, %v1064
        %1066 = vmatprep.mubr.f32.mxu0 0.0
        %1067 = vmatmul.mubr.f32.gmra.mxu0 %v660
        %v1068 = vpop.f32.mrf.mxu0
        %v1069 = vadd.f32 %v610, %v1068
        %v1070 = vpop.f32.mrf.mxu0
        %v1071 = vadd.f32 %v614, %v1070
        %1072 = vmatprep.mubr.f32.mxu0 0.0
        %1073 = vmatmul.mubr.f32.gmra.mxu0 %v663
        %v1074 = vpop.f32.mrf.mxu0
        %v1075 = vadd.f32 %v610, %v1074
        %v1076 = vpop.f32.mrf.mxu0
        %v1077 = vadd.f32 %v614, %v1076
        %1078 = vmatprep.mubr.f32.mxu0 0.0
        %1079 = vmatmul.mubr.f32.gmra.mxu0 %v666
        %v1080 = vpop.f32.mrf.mxu0
        %v1081 = vadd.f32 %v610, %v1080
        %v1082 = vpop.f32.mrf.mxu0
        %v1083 = vadd.f32 %v614, %v1082
        %1084 = vmatprep.mubr.f32.mxu0 0.0
        %1085 = vmatmul.mubr.f32.gmra.mxu0 %v669
        %v1086 = vpop.f32.mrf.mxu0
        %v1087 = vadd.f32 %v610, %v1086
        %v1088 = vpop.f32.mrf.mxu0
        %v1089 = vadd.f32 %v614, %v1088
        %1090 = vmatprep.mubr.f32.mxu0 0.0
        %1091 = vmatmul.mubr.f32.gmra.mxu0 %v672
        %v1092 = vpop.f32.mrf.mxu0
        %v1093 = vadd.f32 %v610, %v1092
        %v1094 = vpop.f32.mrf.mxu0
        %v1095 = vadd.f32 %v614, %v1094
        %1096 = vmatprep.mubr.f32.mxu0 0.0
        %1097 = vmatmul.mubr.f32.gmra.mxu0 %v675
        %v1098 = vpop.f32.mrf.mxu0
        %v1099 = vadd.f32 %v610, %v1098
        %v1100 = vpop.f32.mrf.mxu0
        %v1101 = vadd.f32 %v614, %v1100
        %1102 = vmatprep.mubr.f32.mxu0 0.0
        %1103 = vmatmul.mubr.f32.gmra.mxu0 %v678
        %v1104 = vpop.f32.mrf.mxu0
        %v1105 = vadd.f32 %v610, %v1104
        %v1106 = vpop.f32.mrf.mxu0
        %v1107 = vadd.f32 %v614, %v1106
        %1108 = vmatprep.mubr.f32.mxu0 0.0
        %1109 = vmatmul.mubr.f32.gmra.mxu0 %v681
        %v1110 = vpop.f32.mrf.mxu0
        %v1111 = vadd.f32 %v610, %v1110
        %v1112 = vpop.f32.mrf.mxu0
        %v1113 = vadd.f32 %v614, %v1112
        %1114 = vmatprep.mubr.f32.mxu0 0.0
        %1115 = vmatmul.mubr.f32.gmra.mxu0 %v684
        %v1116 = vpop.f32.mrf.mxu0
        %v1117 = vadd.f32 %v610, %v1116
        %v1118 = vpop.f32.mrf.mxu0
        %v1119 = vadd.f32 %v614, %v1118
        %1120 = vmatprep.mubr.f32.mxu0 0.0
        %1121 = vmatmul.mubr.f32.gmra.mxu0 %v687
        %v1122 = vpop.f32.mrf.mxu0
        %v1123 = vadd.f32 %v610, %v1122
        %v1124 = vpop.f32.mrf.mxu0
        %v1125 = vadd.f32 %v614, %v1124
        %1126 = vmatprep.mubr.f32.mxu0 0.0
        %1127 = vmatmul.mubr.f32.gmra.mxu0 %v690
        %v1128 = vpop.f32.mrf.mxu0
        %v1129 = vadd.f32 %v610, %v1128
        %v1130 = vpop.f32.mrf.mxu0
        %v1131 = vadd.f32 %v614, %v1130
        %1132 = vmatprep.mubr.f32.mxu0 0.0
        %1133 = vmatmul.mubr.f32.gmra.mxu0 %v693
        %v1134 = vpop.f32.mrf.mxu0
        %v1135 = vadd.f32 %v610, %v1134
        %v1136 = vpop.f32.mrf.mxu0
        %v1137 = vadd.f32 %v614, %v1136
        %1138 = vmatprep.mubr.f32.mxu0 0.0
        %1139 = vmatmul.mubr.f32.gmra.mxu0 %v696
        %v1140 = vpop.f32.mrf.mxu0
        %v1141 = vadd.f32 %v610, %v1140
        %v1142 = vpop.f32.mrf.mxu0
        %v1143 = vadd.f32 %v614, %v1142
        %1144 = vmatprep.mubr.f32.mxu0 0.0
        %1145 = vmatmul.mubr.f32.gmra.mxu0 %v699
        %v1146 = vpop.f32.mrf.mxu0
        %v1147 = vadd.f32 %v610, %v1146
        %v1148 = vpop.f32.mrf.mxu0
        %v1149 = vadd.f32 %v614, %v1148
        %1150 = vmatprep.mubr.f32.mxu0 0.0
        %1151 = vmatmul.mubr.f32.gmra.mxu0 %v702
        %v1152 = vpop.f32.mrf.mxu0
        %v1153 = vadd.f32 %v610, %v1152
        %v1154 = vpop.f32.mrf.mxu0
        %v1155 = vadd.f32 %v614, %v1154
        %1156 = vmatprep.mubr.f32.mxu0 0.0
        %1157 = vmatmul.mubr.f32.gmra.mxu0 %v705
        %v1158 = vpop.f32.mrf.mxu0
        %v1159 = vadd.f32 %v610, %v1158
        %v1160 = vpop.f32.mrf.mxu0
        %v1161 = vadd.f32 %v614, %v1160
        %1162 = vmatprep.mubr.f32.mxu0 0.0
        %1163 = vmatmul.mubr.f32.gmra.mxu0 %v708
        %v1164 = vpop.f32.mrf.mxu0
        %v1165 = vadd.f32 %v610, %v1164
        %v1166 = vpop.f32.mrf.mxu0
        %v1167 = vadd.f32 %v614, %v1166
        %1168 = vmatprep.mubr.f32.mxu0 0.0
        %1169 = vmatmul.mubr.f32.gmra.mxu0 %v711
        %v1170 = vpop.f32.mrf.mxu0
        %v1171 = vpop.f32.mrf.mxu0
        %1172 = vdwg.mxu0
        %1173 = vmatprep.subr.mxu0 0.0
        %1174 = vmatpush1.msra.mxu0 0.0
        %1175 = vmatprep.subr.mxu0 0.0
        %1176 = vmatpush1.msra.mxu0 0.0
        %1177 = vmatprep.subr.mxu0 0.0
        %1178 = vmatpush1.msra.mxu0 0.0
        %1179 = vmatprep.subr.mxu0 0.0
        %1180 = vmatpush1.msra.mxu0 0.0
        %1181 = vmatprep.subr.mxu0 0.0
        %1182 = vmatpush1.msra.mxu0 0.0
        %1183 = vmatprep.subr.mxu0 %v730
        %1184 = vmatpush1.msra.mxu0 %v727
        %1185 = vmatprep.subr.mxu0 %v588
        %1186 = vmatpush1.msra.mxu0 %v587
        %1187 = vmatprep.subr.mxu0 %v581
        %1188 = vmatpush1.msra.mxu0 %v580
        %1189 = vmatprep.subr.mxu0 %v574
        %1190 = vmatpush1.msra.mxu0 %v573
        %1191 = vmatprep.subr.mxu0 %v567
        %1192 = vmatpush1.msra.mxu0 %v566
        %1193 = vmatprep.subr.mxu0 %v560
        %1194 = vmatpush1.msra.mxu0 %v559
        %1195 = vmatprep.subr.mxu0 %v553
        %1196 = vmatpush1.msra.mxu0 %v552
        %1197 = vmatprep.subr.mxu0 %v546
        %1198 = vmatpush1.msra.mxu0 %v545
        %1199 = vmatprep.subr.mxu0 %v539
        %1200 = vmatpush1.msra.mxu0 %v538
        %1201 = vmatprep.subr.mxu0 %v532
        %1202 = vmatpush1.msra.mxu0 %v531
        %1203 = vmatprep.subr.mxu0 %v525
        %1204 = vmatpush1.msra.mxu0 %v524
        %1205 = vmatprep.subr.mxu0 0.0
        %1206 = vmatpush2.msra.mxu0 0.0
        %1207 = vmatprep.subr.mxu0 0.0
        %1208 = vmatpush2.msra.mxu0 0.0
        %1209 = vmatprep.subr.mxu0 0.0
        %1210 = vmatpush2.msra.mxu0 0.0
        %1211 = vmatprep.subr.mxu0 0.0
        %1212 = vmatpush2.msra.mxu0 0.0
        %1213 = vmatprep.subr.mxu0 0.0
        %1214 = vmatpush2.msra.mxu0 0.0
        %1215 = vmatprep.subr.mxu0 0.0
        %1216 = vmatpush2.msra.mxu0 0.0
        %1217 = vmatprep.subr.mxu0 0.0
        %1218 = vmatpush2.msra.mxu0 0.0
        %1219 = vmatprep.subr.mxu0 0.0
        %1220 = vmatpush2.msra.mxu0 0.0
        %1221 = vmatprep.subr.mxu0 0.0
        %1222 = vmatpush2.msra.mxu0 0.0
        %1223 = vmatprep.subr.mxu0 0.0
        %1224 = vmatpush2.msra.mxu0 0.0
        %1225 = vmatprep.subr.mxu0 0.0
        %1226 = vmatpush2.msra.mxu0 0.0
        %1227 = vmatprep.subr.mxu0 0.0
        %1228 = vmatpush2.msra.mxu0 0.0
        %1229 = vmatprep.subr.mxu0 0.0
        %1230 = vmatpush2.msra.mxu0 0.0
        %1231 = vmatprep.subr.mxu0 0.0
        %1232 = vmatpush2.msra.mxu0 0.0
        %1233 = vmatprep.subr.mxu0 0.0
        %1234 = vmatpush2.msra.mxu0 0.0
        %1235 = vmatprep.subr.mxu0 0.0
        %1236 = vmatpush2.msra.mxu0 0.0
        %1237 = vmatprep.mubr.f32.mxu0 0.0
        %1238 = vmatmul.mubr.f32.gmra.mxu0 %v636
        %v1239 = vpop.f32.mrf.mxu0
        %v1240 = vadd.f32 %v618, %v1239
        %v1241 = vpop.f32.mrf.mxu0
        %v1242 = vadd.f32 %v622, %v1241
        %1243 = vmatprep.mubr.f32.mxu0 0.0
        %1244 = vmatmul.mubr.f32.gmra.mxu0 %v639
        %v1245 = vpop.f32.mrf.mxu0
        %v1246 = vadd.f32 %v618, %v1245
        %v1247 = vpop.f32.mrf.mxu0
        %v1248 = vadd.f32 %v622, %v1247
        %1249 = vmatprep.mubr.f32.mxu0 0.0
        %1250 = vmatmul.mubr.f32.gmra.mxu0 %v642
        %v1251 = vpop.f32.mrf.mxu0
        %v1252 = vadd.f32 %v618, %v1251
        %v1253 = vpop.f32.mrf.mxu0
        %v1254 = vadd.f32 %v622, %v1253
        %1255 = vmatprep.mubr.f32.mxu0 0.0
        %1256 = vmatmul.mubr.f32.gmra.mxu0 %v645
        %v1257 = vpop.f32.mrf.mxu0
        %v1258 = vadd.f32 %v618, %v1257
        %v1259 = vpop.f32.mrf.mxu0
        %v1260 = vadd.f32 %v622, %v1259
        %1261 = vmatprep.mubr.f32.mxu0 0.0
        %1262 = vmatmul.mubr.f32.gmra.mxu0 %v648
        %v1263 = vpop.f32.mrf.mxu0
        %v1264 = vadd.f32 %v618, %v1263
        %v1265 = vpop.f32.mrf.mxu0
        %v1266 = vadd.f32 %v622, %v1265
        %1267 = vmatprep.mubr.f32.mxu0 0.0
        %1268 = vmatmul.mubr.f32.gmra.mxu0 %v651
        %v1269 = vpop.f32.mrf.mxu0
        %v1270 = vadd.f32 %v618, %v1269
        %v1271 = vpop.f32.mrf.mxu0
        %v1272 = vadd.f32 %v622, %v1271
        %1273 = vmatprep.mubr.f32.mxu0 0.0
        %1274 = vmatmul.mubr.f32.gmra.mxu0 %v654
        %v1275 = vpop.f32.mrf.mxu0
        %v1276 = vadd.f32 %v618, %v1275
        %v1277 = vpop.f32.mrf.mxu0
        %v1278 = vadd.f32 %v622, %v1277
        %1279 = vmatprep.mubr.f32.mxu0 0.0
        %1280 = vmatmul.mubr.f32.gmra.mxu0 %v657
        %v1281 = vpop.f32.mrf.mxu0
        %v1282 = vadd.f32 %v618, %v1281
        %v1283 = vpop.f32.mrf.mxu0
        %v1284 = vadd.f32 %v622, %v1283
        %1285 = vmatprep.mubr.f32.mxu0 0.0
        %1286 = vmatmul.mubr.f32.gmra.mxu0 %v660
        %v1287 = vpop.f32.mrf.mxu0
        %v1288 = vadd.f32 %v618, %v1287
        %v1289 = vpop.f32.mrf.mxu0
        %v1290 = vadd.f32 %v622, %v1289
        %1291 = vmatprep.mubr.f32.mxu0 0.0
        %1292 = vmatmul.mubr.f32.gmra.mxu0 %v663
        %v1293 = vpop.f32.mrf.mxu0
        %v1294 = vadd.f32 %v618, %v1293
        %v1295 = vpop.f32.mrf.mxu0
        %v1296 = vadd.f32 %v622, %v1295
        %1297 = vmatprep.mubr.f32.mxu0 0.0
        %1298 = vmatmul.mubr.f32.gmra.mxu0 %v666
        %v1299 = vpop.f32.mrf.mxu0
        %v1300 = vadd.f32 %v618, %v1299
        %v1301 = vpop.f32.mrf.mxu0
        %v1302 = vadd.f32 %v622, %v1301
        %1303 = vmatprep.mubr.f32.mxu0 0.0
        %1304 = vmatmul.mubr.f32.gmra.mxu0 %v669
        %v1305 = vpop.f32.mrf.mxu0
        %v1306 = vadd.f32 %v618, %v1305
        %v1307 = vpop.f32.mrf.mxu0
        %v1308 = vadd.f32 %v622, %v1307
        %1309 = vmatprep.mubr.f32.mxu0 0.0
        %1310 = vmatmul.mubr.f32.gmra.mxu0 %v672
        %v1311 = vpop.f32.mrf.mxu0
        %v1312 = vadd.f32 %v618, %v1311
        %v1313 = vpop.f32.mrf.mxu0
        %v1314 = vadd.f32 %v622, %v1313
        %1315 = vmatprep.mubr.f32.mxu0 0.0
        %1316 = vmatmul.mubr.f32.gmra.mxu0 %v675
        %v1317 = vpop.f32.mrf.mxu0
        %v1318 = vadd.f32 %v618, %v1317
        %v1319 = vpop.f32.mrf.mxu0
        %v1320 = vadd.f32 %v622, %v1319
        %1321 = vmatprep.mubr.f32.mxu0 0.0
        %1322 = vmatmul.mubr.f32.gmra.mxu0 %v678
        %v1323 = vpop.f32.mrf.mxu0
        %v1324 = vadd.f32 %v618, %v1323
        %v1325 = vpop.f32.mrf.mxu0
        %v1326 = vadd.f32 %v622, %v1325
        %1327 = vmatprep.mubr.f32.mxu0 0.0
        %1328 = vmatmul.mubr.f32.gmra.mxu0 %v681
        %v1329 = vpop.f32.mrf.mxu0
        %v1330 = vadd.f32 %v618, %v1329
        %v1331 = vpop.f32.mrf.mxu0
        %v1332 = vadd.f32 %v622, %v1331
        %1333 = vmatprep.mubr.f32.mxu0 0.0
        %1334 = vmatmul.mubr.f32.gmra.mxu0 %v684
        %v1335 = vpop.f32.mrf.mxu0
        %v1336 = vadd.f32 %v618, %v1335
        %v1337 = vpop.f32.mrf.mxu0
        %v1338 = vadd.f32 %v622, %v1337
        %1339 = vmatprep.mubr.f32.mxu0 0.0
        %1340 = vmatmul.mubr.f32.gmra.mxu0 %v687
        %v1341 = vpop.f32.mrf.mxu0
        %v1342 = vadd.f32 %v618, %v1341
        %v1343 = vpop.f32.mrf.mxu0
        %v1344 = vadd.f32 %v622, %v1343
        %1345 = vmatprep.mubr.f32.mxu0 0.0
        %1346 = vmatmul.mubr.f32.gmra.mxu0 %v690
        %v1347 = vpop.f32.mrf.mxu0
        %v1348 = vadd.f32 %v618, %v1347
        %v1349 = vpop.f32.mrf.mxu0
        %v1350 = vadd.f32 %v622, %v1349
        %1351 = vmatprep.mubr.f32.mxu0 0.0
        %1352 = vmatmul.mubr.f32.gmra.mxu0 %v693
        %v1353 = vpop.f32.mrf.mxu0
        %v1354 = vadd.f32 %v618, %v1353
        %v1355 = vpop.f32.mrf.mxu0
        %v1356 = vadd.f32 %v622, %v1355
        %1357 = vmatprep.mubr.f32.mxu0 0.0
        %1358 = vmatmul.mubr.f32.gmra.mxu0 %v696
        %v1359 = vpop.f32.mrf.mxu0
        %v1360 = vadd.f32 %v618, %v1359
        %v1361 = vpop.f32.mrf.mxu0
        %v1362 = vadd.f32 %v622, %v1361
        %1363 = vmatprep.mubr.f32.mxu0 0.0
        %1364 = vmatmul.mubr.f32.gmra.mxu0 %v699
        %v1365 = vpop.f32.mrf.mxu0
        %v1366 = vadd.f32 %v618, %v1365
        %v1367 = vpop.f32.mrf.mxu0
        %v1368 = vadd.f32 %v622, %v1367
        %1369 = vmatprep.mubr.f32.mxu0 0.0
        %1370 = vmatmul.mubr.f32.gmra.mxu0 %v702
        %v1371 = vpop.f32.mrf.mxu0
        %v1372 = vadd.f32 %v618, %v1371
        %v1373 = vpop.f32.mrf.mxu0
        %v1374 = vadd.f32 %v622, %v1373
        %1375 = vmatprep.mubr.f32.mxu0 0.0
        %1376 = vmatmul.mubr.f32.gmra.mxu0 %v705
        %v1377 = vpop.f32.mrf.mxu0
        %v1378 = vadd.f32 %v618, %v1377
        %v1379 = vpop.f32.mrf.mxu0
        %v1380 = vadd.f32 %v622, %v1379
        %1381 = vmatprep.mubr.f32.mxu0 0.0
        %1382 = vmatmul.mubr.f32.gmra.mxu0 %v708
        %v1383 = vpop.f32.mrf.mxu0
        %v1384 = vadd.f32 %v618, %v1383
        %v1385 = vpop.f32.mrf.mxu0
        %v1386 = vadd.f32 %v622, %v1385
        %1387 = vmatprep.mubr.f32.mxu0 0.0
        %1388 = vmatmul.mubr.f32.gmra.mxu0 %v711
        %v1389 = vpop.f32.mrf.mxu0
        %v1390 = vpop.f32.mrf.mxu0
        %1391 = vdwg.mxu0
        %1392 = vmatprep.subr.mxu0 0.0
        %1393 = vmatpush1.msra.mxu0 0.0
        %1394 = vmatprep.subr.mxu0 0.0
        %1395 = vmatpush1.msra.mxu0 0.0
        %1396 = vmatprep.subr.mxu0 0.0
        %1397 = vmatpush1.msra.mxu0 0.0
        %1398 = vmatprep.subr.mxu0 0.0
        %1399 = vmatpush1.msra.mxu0 0.0
        %1400 = vmatprep.subr.mxu0 0.0
        %1401 = vmatpush1.msra.mxu0 0.0
        %1402 = vmatprep.subr.mxu0 0.0
        %1403 = vmatpush1.msra.mxu0 %v733
        %1404 = vmatprep.subr.mxu0 0.0
        %1405 = vmatpush1.msra.mxu0 %v589
        %1406 = vmatprep.subr.mxu0 0.0
        %1407 = vmatpush1.msra.mxu0 %v582
        %1408 = vmatprep.subr.mxu0 0.0
        %1409 = vmatpush1.msra.mxu0 %v575
        %1410 = vmatprep.subr.mxu0 0.0
        %1411 = vmatpush1.msra.mxu0 %v568
        %1412 = vmatprep.subr.mxu0 0.0
        %1413 = vmatpush1.msra.mxu0 %v561
        %1414 = vmatprep.subr.mxu0 0.0
        %1415 = vmatpush1.msra.mxu0 %v554
        %1416 = vmatprep.subr.mxu0 0.0
        %1417 = vmatpush1.msra.mxu0 %v547
        %1418 = vmatprep.subr.mxu0 0.0
        %1419 = vmatpush1.msra.mxu0 %v540
        %1420 = vmatprep.subr.mxu0 0.0
        %1421 = vmatpush1.msra.mxu0 %v533
        %1422 = vmatprep.subr.mxu0 0.0
        %1423 = vmatpush1.msra.mxu0 %v526
        %1424 = vmatprep.subr.mxu0 0.0
        %1425 = vmatpush2.msra.mxu0 0.0
        %1426 = vmatprep.subr.mxu0 0.0
        %1427 = vmatpush2.msra.mxu0 0.0
        %1428 = vmatprep.subr.mxu0 0.0
        %1429 = vmatpush2.msra.mxu0 0.0
        %1430 = vmatprep.subr.mxu0 0.0
        %1431 = vmatpush2.msra.mxu0 0.0
        %1432 = vmatprep.subr.mxu0 0.0
        %1433 = vmatpush2.msra.mxu0 0.0
        %1434 = vmatprep.subr.mxu0 0.0
        %1435 = vmatpush2.msra.mxu0 0.0
        %1436 = vmatprep.subr.mxu0 0.0
        %1437 = vmatpush2.msra.mxu0 0.0
        %1438 = vmatprep.subr.mxu0 0.0
        %1439 = vmatpush2.msra.mxu0 0.0
        %1440 = vmatprep.subr.mxu0 0.0
        %1441 = vmatpush2.msra.mxu0 0.0
        %1442 = vmatprep.subr.mxu0 0.0
        %1443 = vmatpush2.msra.mxu0 0.0
        %1444 = vmatprep.subr.mxu0 0.0
        %1445 = vmatpush2.msra.mxu0 0.0
        %1446 = vmatprep.subr.mxu0 0.0
        %1447 = vmatpush2.msra.mxu0 0.0
        %1448 = vmatprep.subr.mxu0 0.0
        %1449 = vmatpush2.msra.mxu0 0.0
        %1450 = vmatprep.subr.mxu0 0.0
        %1451 = vmatpush2.msra.mxu0 0.0
        %1452 = vmatprep.subr.mxu0 0.0
        %1453 = vmatpush2.msra.mxu0 0.0
        %1454 = vmatprep.subr.mxu0 0.0
        %1455 = vmatpush2.msra.mxu0 0.0
        %1456 = vmatprep.mubr.f32.mxu0 0.0
        %1457 = vmatmul.mubr.f32.gmra.mxu0 %v636
        %v1458 = vpop.f32.mrf.mxu0
        %v1459 = vadd.f32 %v626, %v1458
        %v1460 = vpop.f32.mrf.mxu0
        %1461 = vmatprep.mubr.f32.mxu0 0.0
        %1462 = vmatmul.mubr.f32.gmra.mxu0 %v639
        %v1463 = vpop.f32.mrf.mxu0
        %v1464 = vadd.f32 %v626, %v1463
        %v1465 = vpop.f32.mrf.mxu0
        %1466 = vmatprep.mubr.f32.mxu0 0.0
        %1467 = vmatmul.mubr.f32.gmra.mxu0 %v642
        %v1468 = vpop.f32.mrf.mxu0
        %v1469 = vadd.f32 %v626, %v1468
        %v1470 = vpop.f32.mrf.mxu0
        %1471 = vmatprep.mubr.f32.mxu0 0.0
        %1472 = vmatmul.mubr.f32.gmra.mxu0 %v645
        %v1473 = vpop.f32.mrf.mxu0
        %v1474 = vadd.f32 %v626, %v1473
        %v1475 = vpop.f32.mrf.mxu0
        %1476 = vmatprep.mubr.f32.mxu0 0.0
        %1477 = vmatmul.mubr.f32.gmra.mxu0 %v648
        %v1478 = vpop.f32.mrf.mxu0
        %v1479 = vadd.f32 %v626, %v1478
        %v1480 = vpop.f32.mrf.mxu0
        %1481 = vmatprep.mubr.f32.mxu0 0.0
        %1482 = vmatmul.mubr.f32.gmra.mxu0 %v651
        %v1483 = vpop.f32.mrf.mxu0
        %v1484 = vadd.f32 %v626, %v1483
        %v1485 = vpop.f32.mrf.mxu0
        %1486 = vmatprep.mubr.f32.mxu0 0.0
        %1487 = vmatmul.mubr.f32.gmra.mxu0 %v654
        %v1488 = vpop.f32.mrf.mxu0
        %v1489 = vadd.f32 %v626, %v1488
        %v1490 = vpop.f32.mrf.mxu0
        %1491 = vmatprep.mubr.f32.mxu0 0.0
        %1492 = vmatmul.mubr.f32.gmra.mxu0 %v657
        %v1493 = vpop.f32.mrf.mxu0
        %v1494 = vadd.f32 %v626, %v1493
        %v1495 = vpop.f32.mrf.mxu0
        %1496 = vmatprep.mubr.f32.mxu0 0.0
        %1497 = vmatmul.mubr.f32.gmra.mxu0 %v660
        %v1498 = vpop.f32.mrf.mxu0
        %v1499 = vadd.f32 %v626, %v1498
        %v1500 = vpop.f32.mrf.mxu0
        %1501 = vmatprep.mubr.f32.mxu0 0.0
        %1502 = vmatmul.mubr.f32.gmra.mxu0 %v663
        %v1503 = vpop.f32.mrf.mxu0
        %v1504 = vadd.f32 %v626, %v1503
        %v1505 = vpop.f32.mrf.mxu0
        %1506 = vmatprep.mubr.f32.mxu0 0.0
        %1507 = vmatmul.mubr.f32.gmra.mxu0 %v666
        %v1508 = vpop.f32.mrf.mxu0
        %v1509 = vadd.f32 %v626, %v1508
        %v1510 = vpop.f32.mrf.mxu0
        %1511 = vmatprep.mubr.f32.mxu0 0.0
        %1512 = vmatmul.mubr.f32.gmra.mxu0 %v669
        %v1513 = vpop.f32.mrf.mxu0
        %v1514 = vadd.f32 %v626, %v1513
        %v1515 = vpop.f32.mrf.mxu0
        %1516 = vmatprep.mubr.f32.mxu0 0.0
        %1517 = vmatmul.mubr.f32.gmra.mxu0 %v672
        %v1518 = vpop.f32.mrf.mxu0
        %v1519 = vadd.f32 %v626, %v1518
        %v1520 = vpop.f32.mrf.mxu0
        %1521 = vmatprep.mubr.f32.mxu0 0.0
        %1522 = vmatmul.mubr.f32.gmra.mxu0 %v675
        %v1523 = vpop.f32.mrf.mxu0
        %v1524 = vadd.f32 %v626, %v1523
        %v1525 = vpop.f32.mrf.mxu0
        %1526 = vmatprep.mubr.f32.mxu0 0.0
        %1527 = vmatmul.mubr.f32.gmra.mxu0 %v678
        %v1528 = vpop.f32.mrf.mxu0
        %v1529 = vadd.f32 %v626, %v1528
        %v1530 = vpop.f32.mrf.mxu0
        %1531 = vmatprep.mubr.f32.mxu0 0.0
        %1532 = vmatmul.mubr.f32.gmra.mxu0 %v681
        %v1533 = vpop.f32.mrf.mxu0
        %v1534 = vadd.f32 %v626, %v1533
        %v1535 = vpop.f32.mrf.mxu0
        %1536 = vmatprep.mubr.f32.mxu0 0.0
        %1537 = vmatmul.mubr.f32.gmra.mxu0 %v684
        %v1538 = vpop.f32.mrf.mxu0
        %v1539 = vadd.f32 %v626, %v1538
        %v1540 = vpop.f32.mrf.mxu0
        %1541 = vmatprep.mubr.f32.mxu0 0.0
        %1542 = vmatmul.mubr.f32.gmra.mxu0 %v687
        %v1543 = vpop.f32.mrf.mxu0
        %v1544 = vadd.f32 %v626, %v1543
        %v1545 = vpop.f32.mrf.mxu0
        %1546 = vmatprep.mubr.f32.mxu0 0.0
        %1547 = vmatmul.mubr.f32.gmra.mxu0 %v690
        %v1548 = vpop.f32.mrf.mxu0
        %v1549 = vadd.f32 %v626, %v1548
        %v1550 = vpop.f32.mrf.mxu0
        %1551 = vmatprep.mubr.f32.mxu0 0.0
        %1552 = vmatmul.mubr.f32.gmra.mxu0 %v693
        %v1553 = vpop.f32.mrf.mxu0
        %v1554 = vadd.f32 %v626, %v1553
        %v1555 = vpop.f32.mrf.mxu0
        %1556 = vmatprep.mubr.f32.mxu0 0.0
        %1557 = vmatmul.mubr.f32.gmra.mxu0 %v696
        %v1558 = vpop.f32.mrf.mxu0
        %v1559 = vadd.f32 %v626, %v1558
        %v1560 = vpop.f32.mrf.mxu0
        %1561 = vmatprep.mubr.f32.mxu0 0.0
        %1562 = vmatmul.mubr.f32.gmra.mxu0 %v699
        %v1563 = vpop.f32.mrf.mxu0
        %v1564 = vadd.f32 %v626, %v1563
        %v1565 = vpop.f32.mrf.mxu0
        %1566 = vmatprep.mubr.f32.mxu0 0.0
        %1567 = vmatmul.mubr.f32.gmra.mxu0 %v702
        %v1568 = vpop.f32.mrf.mxu0
        %v1569 = vadd.f32 %v626, %v1568
        %v1570 = vpop.f32.mrf.mxu0
        %1571 = vmatprep.mubr.f32.mxu0 0.0
        %1572 = vmatmul.mubr.f32.gmra.mxu0 %v705
        %v1573 = vpop.f32.mrf.mxu0
        %v1574 = vadd.f32 %v626, %v1573
        %v1575 = vpop.f32.mrf.mxu0
        %1576 = vmatprep.mubr.f32.mxu0 0.0
        %1577 = vmatmul.mubr.f32.gmra.mxu0 %v708
        %v1578 = vpop.f32.mrf.mxu0
        %v1579 = vadd.f32 %v626, %v1578
        %v1580 = vpop.f32.mrf.mxu0
        %1581 = vmatprep.mubr.f32.mxu0 0.0
        %1582 = vmatmul.mubr.f32.gmra.mxu0 %v711
        %v1583 = vpop.f32.mrf.mxu0
        %v1584 = vpop.f32.mrf.mxu0
        %1585 = vdwg.mxu0
        %v1586 = vmax.f32 %v802, 0.0
        %v1587 = vmax.f32 %v804, 0.0
        %v1588 = vmax.f32 %v1021, 0.0
        %v1589 = vmax.f32 %v1023, 0.0
        %v1590 = vmax.f32 %v1240, 0.0
        %v1591 = vmax.f32 %v1242, 0.0
        %v1592 = vmax.f32 %v1459, 0.0
        %v1593 = vmax.f32 %v808, 0.0
        %v1594 = vmax.f32 %v810, 0.0
        %v1595 = vmax.f32 %v1027, 0.0
        %v1596 = vmax.f32 %v1029, 0.0
        %v1597 = vmax.f32 %v1246, 0.0
        %v1598 = vmax.f32 %v1248, 0.0
        %v1599 = vmax.f32 %v1464, 0.0
        %v1600 = vmax.f32 %v814, 0.0
        %v1601 = vmax.f32 %v816, 0.0
        %v1602 = vmax.f32 %v1033, 0.0
        %v1603 = vmax.f32 %v1035, 0.0
        %v1604 = vmax.f32 %v1252, 0.0
        %v1605 = vmax.f32 %v1254, 0.0
        %v1606 = vmax.f32 %v1469, 0.0
        %v1607 = vmax.f32 %v820, 0.0
        %v1608 = vmax.f32 %v822, 0.0
        %v1609 = vmax.f32 %v1039, 0.0
        %v1610 = vmax.f32 %v1041, 0.0
        %v1611 = vmax.f32 %v1258, 0.0
        %v1612 = vmax.f32 %v1260, 0.0
        %v1613 = vmax.f32 %v1474, 0.0
        %v1614 = vmax.f32 %v826, 0.0
        %v1615 = vmax.f32 %v828, 0.0
        %v1616 = vmax.f32 %v1045, 0.0
        %v1617 = vmax.f32 %v1047, 0.0
        %v1618 = vmax.f32 %v1264, 0.0
        %v1619 = vmax.f32 %v1266, 0.0
        %v1620 = vmax.f32 %v1479, 0.0
        %v1621 = vmax.f32 %v832, 0.0
        %v1622 = vmax.f32 %v834, 0.0
        %v1623 = vmax.f32 %v1051, 0.0
        %v1624 = vmax.f32 %v1053, 0.0
        %v1625 = vmax.f32 %v1270, 0.0
        %v1626 = vmax.f32 %v1272, 0.0
        %v1627 = vmax.f32 %v1484, 0.0
        %v1628 = vmax.f32 %v838, 0.0
        %v1629 = vmax.f32 %v840, 0.0
        %v1630 = vmax.f32 %v1057, 0.0
        %v1631 = vmax.f32 %v1059, 0.0
        %v1632 = vmax.f32 %v1276, 0.0
        %v1633 = vmax.f32 %v1278, 0.0
        %v1634 = vmax.f32 %v1489, 0.0
        %v1635 = vmax.f32 %v844, 0.0
        %v1636 = vmax.f32 %v846, 0.0
        %v1637 = vmax.f32 %v1063, 0.0
        %v1638 = vmax.f32 %v1065, 0.0
        %v1639 = vmax.f32 %v1282, 0.0
        %v1640 = vmax.f32 %v1284, 0.0
        %v1641 = vmax.f32 %v1494, 0.0
        %v1642 = vmax.f32 %v850, 0.0
        %v1643 = vmax.f32 %v852, 0.0
        %v1644 = vmax.f32 %v1069, 0.0
        %v1645 = vmax.f32 %v1071, 0.0
        %v1646 = vmax.f32 %v1288, 0.0
        %v1647 = vmax.f32 %v1290, 0.0
        %v1648 = vmax.f32 %v1499, 0.0
        %v1649 = vmax.f32 %v856, 0.0
        %v1650 = vmax.f32 %v858, 0.0
        %v1651 = vmax.f32 %v1075, 0.0
        %v1652 = vmax.f32 %v1077, 0.0
        %v1653 = vmax.f32 %v1294, 0.0
        %v1654 = vmax.f32 %v1296, 0.0
        %v1655 = vmax.f32 %v1504, 0.0
        %v1656 = vmax.f32 %v862, 0.0
        %v1657 = vmax.f32 %v864, 0.0
        %v1658 = vmax.f32 %v1081, 0.0
        %v1659 = vmax.f32 %v1083, 0.0
        %v1660 = vmax.f32 %v1300, 0.0
        %v1661 = vmax.f32 %v1302, 0.0
        %v1662 = vmax.f32 %v1509, 0.0
        %v1663 = vmax.f32 %v868, 0.0
        %v1664 = vmax.f32 %v870, 0.0
        %v1665 = vmax.f32 %v1087, 0.0
        %v1666 = vmax.f32 %v1089, 0.0
        %v1667 = vmax.f32 %v1306, 0.0
        %v1668 = vmax.f32 %v1308, 0.0
        %v1669 = vmax.f32 %v1514, 0.0
        %v1670 = vmax.f32 %v874, 0.0
        %v1671 = vmax.f32 %v876, 0.0
        %v1672 = vmax.f32 %v1093, 0.0
        %v1673 = vmax.f32 %v1095, 0.0
        %v1674 = vmax.f32 %v1312, 0.0
        %v1675 = vmax.f32 %v1314, 0.0
        %v1676 = vmax.f32 %v1519, 0.0
        %v1677 = vmax.f32 %v880, 0.0
        %v1678 = vmax.f32 %v882, 0.0
        %v1679 = vmax.f32 %v1099, 0.0
        %v1680 = vmax.f32 %v1101, 0.0
        %v1681 = vmax.f32 %v1318, 0.0
        %v1682 = vmax.f32 %v1320, 0.0
        %v1683 = vmax.f32 %v1524, 0.0
        %v1684 = vmax.f32 %v886, 0.0
        %v1685 = vmax.f32 %v888, 0.0
        %v1686 = vmax.f32 %v1105, 0.0
        %v1687 = vmax.f32 %v1107, 0.0
        %v1688 = vmax.f32 %v1324, 0.0
        %v1689 = vmax.f32 %v1326, 0.0
        %v1690 = vmax.f32 %v1529, 0.0
        %v1691 = vmax.f32 %v892, 0.0
        %v1692 = vmax.f32 %v894, 0.0
        %v1693 = vmax.f32 %v1111, 0.0
        %v1694 = vmax.f32 %v1113, 0.0
        %v1695 = vmax.f32 %v1330, 0.0
        %v1696 = vmax.f32 %v1332, 0.0
        %v1697 = vmax.f32 %v1534, 0.0
        %v1698 = vmax.f32 %v898, 0.0
        %v1699 = vmax.f32 %v900, 0.0
        %v1700 = vmax.f32 %v1117, 0.0
        %v1701 = vmax.f32 %v1119, 0.0
        %v1702 = vmax.f32 %v1336, 0.0
        %v1703 = vmax.f32 %v1338, 0.0
        %v1704 = vmax.f32 %v1539, 0.0
        %v1705 = vmax.f32 %v904, 0.0
        %v1706 = vmax.f32 %v906, 0.0
        %v1707 = vmax.f32 %v1123, 0.0
        %v1708 = vmax.f32 %v1125, 0.0
        %v1709 = vmax.f32 %v1342, 0.0
        %v1710 = vmax.f32 %v1344, 0.0
        %v1711 = vmax.f32 %v1544, 0.0
        %v1712 = vmax.f32 %v910, 0.0
        %v1713 = vmax.f32 %v912, 0.0
        %v1714 = vmax.f32 %v1129, 0.0
        %v1715 = vmax.f32 %v1131, 0.0
        %v1716 = vmax.f32 %v1348, 0.0
        %v1717 = vmax.f32 %v1350, 0.0
        %v1718 = vmax.f32 %v1549, 0.0
        %v1719 = vmax.f32 %v916, 0.0
        %v1720 = vmax.f32 %v918, 0.0
        %v1721 = vmax.f32 %v1135, 0.0
        %v1722 = vmax.f32 %v1137, 0.0
        %v1723 = vmax.f32 %v1354, 0.0
        %v1724 = vmax.f32 %v1356, 0.0
        %v1725 = vmax.f32 %v1554, 0.0
        %v1726 = vmax.f32 %v922, 0.0
        %v1727 = vmax.f32 %v924, 0.0
        %v1728 = vmax.f32 %v1141, 0.0
        %v1729 = vmax.f32 %v1143, 0.0
        %v1730 = vmax.f32 %v1360, 0.0
        %v1731 = vmax.f32 %v1362, 0.0
        %v1732 = vmax.f32 %v1559, 0.0
        %v1733 = vmax.f32 %v928, 0.0
        %v1734 = vmax.f32 %v930, 0.0
        %v1735 = vmax.f32 %v1147, 0.0
        %v1736 = vmax.f32 %v1149, 0.0
        %v1737 = vmax.f32 %v1366, 0.0
        %v1738 = vmax.f32 %v1368, 0.0
        %v1739 = vmax.f32 %v1564, 0.0
        %v1740 = vmax.f32 %v934, 0.0
        %v1741 = vmax.f32 %v936, 0.0
        %v1742 = vmax.f32 %v1153, 0.0
        %v1743 = vmax.f32 %v1155, 0.0
        %v1744 = vmax.f32 %v1372, 0.0
        %v1745 = vmax.f32 %v1374, 0.0
        %v1746 = vmax.f32 %v1569, 0.0
        %v1747 = vmax.f32 %v940, 0.0
        %v1748 = vmax.f32 %v942, 0.0
        %v1749 = vmax.f32 %v1159, 0.0
        %v1750 = vmax.f32 %v1161, 0.0
        %v1751 = vmax.f32 %v1378, 0.0
        %v1752 = vmax.f32 %v1380, 0.0
        %v1753 = vmax.f32 %v1574, 0.0
        %v1754 = vmax.f32 %v946, 0.0
        %v1755 = vmax.f32 %v948, 0.0
        %v1756 = vmax.f32 %v1165, 0.0
        %v1757 = vmax.f32 %v1167, 0.0
        %v1758 = vmax.f32 %v1384, 0.0
        %v1759 = vmax.f32 %v1386, 0.0
        %v1760 = vmax.f32 %v1579, 0.0
        %v1761 = vmax.f32 %v1586, %v1593
        %v1762 = vmax.f32 %v1587, %v1594
        %v1763 = vmax.f32 %v1588, %v1595
        %v1764 = vmax.f32 %v1589, %v1596
        %v1765 = vmax.f32 %v1590, %v1597
        %v1766 = vmax.f32 %v1591, %v1598
        %v1767 = vmax.f32 %v1592, %v1599
        %v1768 = vmax.f32 %v1600, %v1607
        %v1769 = vmax.f32 %v1601, %v1608
        %v1770 = vmax.f32 %v1602, %v1609
        %v1771 = vmax.f32 %v1603, %v1610
        %v1772 = vmax.f32 %v1604, %v1611
        %v1773 = vmax.f32 %v1605, %v1612
        %v1774 = vmax.f32 %v1606, %v1613
        %v1775 = vmax.f32 %v1614, %v1621
        %v1776 = vmax.f32 %v1615, %v1622
        %v1777 = vmax.f32 %v1616, %v1623
        %v1778 = vmax.f32 %v1617, %v1624
        %v1779 = vmax.f32 %v1618, %v1625
        %v1780 = vmax.f32 %v1619, %v1626
        %v1781 = vmax.f32 %v1620, %v1627
        %v1782 = vmax.f32 %v1628, %v1635
        %v1783 = vmax.f32 %v1629, %v1636
        %v1784 = vmax.f32 %v1630, %v1637
        %v1785 = vmax.f32 %v1631, %v1638
        %v1786 = vmax.f32 %v1632, %v1639
        %v1787 = vmax.f32 %v1633, %v1640
        %v1788 = vmax.f32 %v1634, %v1641
        %v1789 = vmax.f32 %v1642, %v1649
        %v1790 = vmax.f32 %v1643, %v1650
        %v1791 = vmax.f32 %v1644, %v1651
        %v1792 = vmax.f32 %v1645, %v1652
        %v1793 = vmax.f32 %v1646, %v1653
        %v1794 = vmax.f32 %v1647, %v1654
        %v1795 = vmax.f32 %v1648, %v1655
        %v1796 = vmax.f32 %v1656, %v1663
        %v1797 = vmax.f32 %v1657, %v1664
        %v1798 = vmax.f32 %v1658, %v1665
        %v1799 = vmax.f32 %v1659, %v1666
        %v1800 = vmax.f32 %v1660, %v1667
        %v1801 = vmax.f32 %v1661, %v1668
        %v1802 = vmax.f32 %v1662, %v1669
        %v1803 = vmax.f32 %v1670, %v1677
        %v1804 = vmax.f32 %v1671, %v1678
        %v1805 = vmax.f32 %v1672, %v1679
        %v1806 = vmax.f32 %v1673, %v1680
        %v1807 = vmax.f32 %v1674, %v1681
        %v1808 = vmax.f32 %v1675, %v1682
        %v1809 = vmax.f32 %v1676, %v1683
        %v1810 = vmax.f32 %v1684, %v1691
        %v1811 = vmax.f32 %v1685, %v1692
        %v1812 = vmax.f32 %v1686, %v1693
        %v1813 = vmax.f32 %v1687, %v1694
        %v1814 = vmax.f32 %v1688, %v1695
        %v1815 = vmax.f32 %v1689, %v1696
        %v1816 = vmax.f32 %v1690, %v1697
        %v1817 = vmax.f32 %v1698, %v1705
        %v1818 = vmax.f32 %v1699, %v1706
        %v1819 = vmax.f32 %v1700, %v1707
        %v1820 = vmax.f32 %v1701, %v1708
        %v1821 = vmax.f32 %v1702, %v1709
        %v1822 = vmax.f32 %v1703, %v1710
        %v1823 = vmax.f32 %v1704, %v1711
        %v1824 = vmax.f32 %v1712, %v1719
        %v1825 = vmax.f32 %v1713, %v1720
        %v1826 = vmax.f32 %v1714, %v1721
        %v1827 = vmax.f32 %v1715, %v1722
        %v1828 = vmax.f32 %v1716, %v1723
        %v1829 = vmax.f32 %v1717, %v1724
        %v1830 = vmax.f32 %v1718, %v1725
        %v1831 = vmax.f32 %v1726, %v1733
        %v1832 = vmax.f32 %v1727, %v1734
        %v1833 = vmax.f32 %v1728, %v1735
        %v1834 = vmax.f32 %v1729, %v1736
        %v1835 = vmax.f32 %v1730, %v1737
        %v1836 = vmax.f32 %v1731, %v1738
        %v1837 = vmax.f32 %v1732, %v1739
        %v1838 = vmax.f32 %v1740, %v1747
        %v1839 = vmax.f32 %v1741, %v1748
        %v1840 = vmax.f32 %v1742, %v1749
        %v1841 = vmax.f32 %v1743, %v1750
        %v1842 = vmax.f32 %v1744, %v1751
        %v1843 = vmax.f32 %v1745, %v1752
        %v1844 = vmax.f32 %v1746, %v1753
        %v1845 = vmax.f32 %v1761, %v1600
        %v1846 = vmax.f32 %v1762, %v1601
        %v1847 = vmax.f32 %v1763, %v1602
        %v1848 = vmax.f32 %v1764, %v1603
        %v1849 = vmax.f32 %v1765, %v1604
        %v1850 = vmax.f32 %v1766, %v1605
        %v1851 = vmax.f32 %v1767, %v1606
        %v1852 = vmax.f32 %v1768, %v1614
        %v1853 = vmax.f32 %v1769, %v1615
        %v1854 = vmax.f32 %v1770, %v1616
        %v1855 = vmax.f32 %v1771, %v1617
        %v1856 = vmax.f32 %v1772, %v1618
        %v1857 = vmax.f32 %v1773, %v1619
        %v1858 = vmax.f32 %v1774, %v1620
        %v1859 = vmax.f32 %v1775, %v1628
        %v1860 = vmax.f32 %v1776, %v1629
        %v1861 = vmax.f32 %v1777, %v1630
        %v1862 = vmax.f32 %v1778, %v1631
        %v1863 = vmax.f32 %v1779, %v1632
        %v1864 = vmax.f32 %v1780, %v1633
        %v1865 = vmax.f32 %v1781, %v1634
        %v1866 = vmax.f32 %v1782, %v1642
        %v1867 = vmax.f32 %v1783, %v1643
        %v1868 = vmax.f32 %v1784, %v1644
        %v1869 = vmax.f32 %v1785, %v1645
        %v1870 = vmax.f32 %v1786, %v1646
        %v1871 = vmax.f32 %v1787, %v1647
        %v1872 = vmax.f32 %v1788, %v1648
        %v1873 = vmax.f32 %v1789, %v1656
        %v1874 = vmax.f32 %v1790, %v1657
        %v1875 = vmax.f32 %v1791, %v1658
        %v1876 = vmax.f32 %v1792, %v1659
        %v1877 = vmax.f32 %v1793, %v1660
        %v1878 = vmax.f32 %v1794, %v1661
        %v1879 = vmax.f32 %v1795, %v1662
        %v1880 = vmax.f32 %v1796, %v1670
        %v1881 = vmax.f32 %v1797, %v1671
        %v1882 = vmax.f32 %v1798, %v1672
        %v1883 = vmax.f32 %v1799, %v1673
        %v1884 = vmax.f32 %v1800, %v1674
        %v1885 = vmax.f32 %v1801, %v1675
        %v1886 = vmax.f32 %v1802, %v1676
        %v1887 = vmax.f32 %v1803, %v1684
        %v1888 = vmax.f32 %v1804, %v1685
        %v1889 = vmax.f32 %v1805, %v1686
        %v1890 = vmax.f32 %v1806, %v1687
        %v1891 = vmax.f32 %v1807, %v1688
        %v1892 = vmax.f32 %v1808, %v1689
        %v1893 = vmax.f32 %v1809, %v1690
        %v1894 = vmax.f32 %v1810, %v1698
        %v1895 = vmax.f32 %v1811, %v1699
        %v1896 = vmax.f32 %v1812, %v1700
        %v1897 = vmax.f32 %v1813, %v1701
        %v1898 = vmax.f32 %v1814, %v1702
        %v1899 = vmax.f32 %v1815, %v1703
        %v1900 = vmax.f32 %v1816, %v1704
        %v1901 = vmax.f32 %v1817, %v1712
        %v1902 = vmax.f32 %v1818, %v1713
        %v1903 = vmax.f32 %v1819, %v1714
        %v1904 = vmax.f32 %v1820, %v1715
        %v1905 = vmax.f32 %v1821, %v1716
        %v1906 = vmax.f32 %v1822, %v1717
        %v1907 = vmax.f32 %v1823, %v1718
        %v1908 = vmax.f32 %v1824, %v1726
        %v1909 = vmax.f32 %v1825, %v1727
        %v1910 = vmax.f32 %v1826, %v1728
        %v1911 = vmax.f32 %v1827, %v1729
        %v1912 = vmax.f32 %v1828, %v1730
        %v1913 = vmax.f32 %v1829, %v1731
        %v1914 = vmax.f32 %v1830, %v1732
        %v1915 = vmax.f32 %v1831, %v1740
        %v1916 = vmax.f32 %v1832, %v1741
        %v1917 = vmax.f32 %v1833, %v1742
        %v1918 = vmax.f32 %v1834, %v1743
        %v1919 = vmax.f32 %v1835, %v1744
        %v1920 = vmax.f32 %v1836, %v1745
        %v1921 = vmax.f32 %v1837, %v1746
        %v1922 = vmax.f32 %v1838, %v1754
        %v1923 = vmax.f32 %v1839, %v1755
        %v1924 = vmax.f32 %v1840, %v1756
        %v1925 = vmax.f32 %v1841, %v1757
        %v1926 = vmax.f32 %v1842, %v1758
        %v1927 = vmax.f32 %v1843, %v1759
        %v1928 = vmax.f32 %v1844, %v1760
        %2013 = vrot.lane.b32.xlu0 %v1845, 96
        %v2014 = vpop.permute.xlu0 %2013
        %2015 = vrot.lane.b32.xlu0 %v1846, 96
        %v2016 = vpop.permute.xlu0 %2015
        %2017 = vrot.lane.b32.xlu0 %v1847, 96
        %v2018 = vpop.permute.xlu0 %2017
        %2019 = vrot.lane.b32.xlu0 %v1848, 96
        %v2020 = vpop.permute.xlu0 %2019
        %2021 = vrot.lane.b32.xlu0 %v1849, 96
        %v2022 = vpop.permute.xlu0 %2021
        %2023 = vrot.lane.b32.xlu0 %v1850, 96
        %v2024 = vpop.permute.xlu0 %2023
        %2025 = vrot.lane.b32.xlu0 %v1851, 96
        %v2026 = vpop.permute.xlu0 %2025
        %2027 = vrot.lane.b32.xlu0 %v1852, 96
        %v2028 = vpop.permute.xlu0 %2027
        %2029 = vrot.lane.b32.xlu0 %v1853, 96
        %v2030 = vpop.permute.xlu0 %2029
        %2031 = vrot.lane.b32.xlu0 %v1854, 96
        %v2032 = vpop.permute.xlu0 %2031
        %2033 = vrot.lane.b32.xlu0 %v1855, 96
        %v2034 = vpop.permute.xlu0 %2033
        %2035 = vrot.lane.b32.xlu0 %v1856, 96
        %v2036 = vpop.permute.xlu0 %2035
        %2037 = vrot.lane.b32.xlu0 %v1857, 96
        %v2038 = vpop.permute.xlu0 %2037
        %2039 = vrot.lane.b32.xlu0 %v1858, 96
        %v2040 = vpop.permute.xlu0 %2039
        %2041 = vrot.lane.b32.xlu0 %v1859, 96
        %v2042 = vpop.permute.xlu0 %2041
        %2043 = vrot.lane.b32.xlu0 %v1860, 96
        %v2044 = vpop.permute.xlu0 %2043
        %2045 = vrot.lane.b32.xlu0 %v1861, 96
        %v2046 = vpop.permute.xlu0 %2045
        %2047 = vrot.lane.b32.xlu0 %v1862, 96
        %v2048 = vpop.permute.xlu0 %2047
        %2049 = vrot.lane.b32.xlu0 %v1863, 96
        %v2050 = vpop.permute.xlu0 %2049
        %2051 = vrot.lane.b32.xlu0 %v1864, 96
        %v2052 = vpop.permute.xlu0 %2051
        %2053 = vrot.lane.b32.xlu0 %v1865, 96
        %v2054 = vpop.permute.xlu0 %2053
        %2055 = vrot.lane.b32.xlu0 %v1866, 96
        %v2056 = vpop.permute.xlu0 %2055
        %2057 = vrot.lane.b32.xlu0 %v1867, 96
        %v2058 = vpop.permute.xlu0 %2057
        %2059 = vrot.lane.b32.xlu0 %v1868, 96
        %v2060 = vpop.permute.xlu0 %2059
        %2061 = vrot.lane.b32.xlu0 %v1869, 96
        %v2062 = vpop.permute.xlu0 %2061
        %2063 = vrot.lane.b32.xlu0 %v1870, 96
        %v2064 = vpop.permute.xlu0 %2063
        %2065 = vrot.lane.b32.xlu0 %v1871, 96
        %v2066 = vpop.permute.xlu0 %2065
        %2067 = vrot.lane.b32.xlu0 %v1872, 96
        %v2068 = vpop.permute.xlu0 %2067
        %2069 = vrot.lane.b32.xlu0 %v1873, 96
        %v2070 = vpop.permute.xlu0 %2069
        %2071 = vrot.lane.b32.xlu0 %v1874, 96
        %v2072 = vpop.permute.xlu0 %2071
        %2073 = vrot.lane.b32.xlu0 %v1875, 96
        %v2074 = vpop.permute.xlu0 %2073
        %2075 = vrot.lane.b32.xlu0 %v1876, 96
        %v2076 = vpop.permute.xlu0 %2075
        %2077 = vrot.lane.b32.xlu0 %v1877, 96
        %v2078 = vpop.permute.xlu0 %2077
        %2079 = vrot.lane.b32.xlu0 %v1878, 96
        %v2080 = vpop.permute.xlu0 %2079
        %2081 = vrot.lane.b32.xlu0 %v1879, 96
        %v2082 = vpop.permute.xlu0 %2081
        %2083 = vrot.lane.b32.xlu0 %v1880, 96
        %v2084 = vpop.permute.xlu0 %2083
        %2085 = vrot.lane.b32.xlu0 %v1881, 96
        %v2086 = vpop.permute.xlu0 %2085
        %2087 = vrot.lane.b32.xlu0 %v1882, 96
        %v2088 = vpop.permute.xlu0 %2087
        %2089 = vrot.lane.b32.xlu0 %v1883, 96
        %v2090 = vpop.permute.xlu0 %2089
        %2091 = vrot.lane.b32.xlu0 %v1884, 96
        %v2092 = vpop.permute.xlu0 %2091
        %2093 = vrot.lane.b32.xlu0 %v1885, 96
        %v2094 = vpop.permute.xlu0 %2093
        %2095 = vrot.lane.b32.xlu0 %v1886, 96
        %v2096 = vpop.permute.xlu0 %2095
        %2097 = vrot.lane.b32.xlu0 %v1887, 96
        %v2098 = vpop.permute.xlu0 %2097
        %2099 = vrot.lane.b32.xlu0 %v1888, 96
        %v2100 = vpop.permute.xlu0 %2099
        %2101 = vrot.lane.b32.xlu0 %v1889, 96
        %v2102 = vpop.permute.xlu0 %2101
        %2103 = vrot.lane.b32.xlu0 %v1890, 96
        %v2104 = vpop.permute.xlu0 %2103
        %2105 = vrot.lane.b32.xlu0 %v1891, 96
        %v2106 = vpop.permute.xlu0 %2105
        %2107 = vrot.lane.b32.xlu0 %v1892, 96
        %v2108 = vpop.permute.xlu0 %2107
        %2109 = vrot.lane.b32.xlu0 %v1893, 96
        %v2110 = vpop.permute.xlu0 %2109
        %2111 = vrot.lane.b32.xlu0 %v1894, 96
        %v2112 = vpop.permute.xlu0 %2111
        %2113 = vrot.lane.b32.xlu0 %v1895, 96
        %v2114 = vpop.permute.xlu0 %2113
        %2115 = vrot.lane.b32.xlu0 %v1896, 96
        %v2116 = vpop.permute.xlu0 %2115
        %2117 = vrot.lane.b32.xlu0 %v1897, 96
        %v2118 = vpop.permute.xlu0 %2117
        %2119 = vrot.lane.b32.xlu0 %v1898, 96
        %v2120 = vpop.permute.xlu0 %2119
        %2121 = vrot.lane.b32.xlu0 %v1899, 96
        %v2122 = vpop.permute.xlu0 %2121
        %2123 = vrot.lane.b32.xlu0 %v1900, 96
        %v2124 = vpop.permute.xlu0 %2123
        %2125 = vrot.lane.b32.xlu0 %v1901, 96
        %v2126 = vpop.permute.xlu0 %2125
        %2127 = vrot.lane.b32.xlu0 %v1902, 96
        %v2128 = vpop.permute.xlu0 %2127
        %2129 = vrot.lane.b32.xlu0 %v1903, 96
        %v2130 = vpop.permute.xlu0 %2129
        %2131 = vrot.lane.b32.xlu0 %v1904, 96
        %v2132 = vpop.permute.xlu0 %2131
        %2133 = vrot.lane.b32.xlu0 %v1905, 96
        %v2134 = vpop.permute.xlu0 %2133
        %2135 = vrot.lane.b32.xlu0 %v1906, 96
        %v2136 = vpop.permute.xlu0 %2135
        %2137 = vrot.lane.b32.xlu0 %v1907, 96
        %v2138 = vpop.permute.xlu0 %2137
        %2139 = vrot.lane.b32.xlu0 %v1908, 96
        %v2140 = vpop.permute.xlu0 %2139
        %2141 = vrot.lane.b32.xlu0 %v1909, 96
        %v2142 = vpop.permute.xlu0 %2141
        %2143 = vrot.lane.b32.xlu0 %v1910, 96
        %v2144 = vpop.permute.xlu0 %2143
        %2145 = vrot.lane.b32.xlu0 %v1911, 96
        %v2146 = vpop.permute.xlu0 %2145
        %2147 = vrot.lane.b32.xlu0 %v1912, 96
        %v2148 = vpop.permute.xlu0 %2147
        %2149 = vrot.lane.b32.xlu0 %v1913, 96
        %v2150 = vpop.permute.xlu0 %2149
        %2151 = vrot.lane.b32.xlu0 %v1914, 96
        %v2152 = vpop.permute.xlu0 %2151
        %2153 = vrot.lane.b32.xlu0 %v1915, 96
        %v2154 = vpop.permute.xlu0 %2153
        %2155 = vrot.lane.b32.xlu0 %v1916, 96
        %v2156 = vpop.permute.xlu0 %2155
        %2157 = vrot.lane.b32.xlu0 %v1917, 96
        %v2158 = vpop.permute.xlu0 %2157
        %2159 = vrot.lane.b32.xlu0 %v1918, 96
        %v2160 = vpop.permute.xlu0 %2159
        %2161 = vrot.lane.b32.xlu0 %v1919, 96
        %v2162 = vpop.permute.xlu0 %2161
        %2163 = vrot.lane.b32.xlu0 %v1920, 96
        %v2164 = vpop.permute.xlu0 %2163
        %2165 = vrot.lane.b32.xlu0 %v1921, 96
        %v2166 = vpop.permute.xlu0 %2165
        %2167 = vrot.lane.b32.xlu0 %v1922, 96
        %v2168 = vpop.permute.xlu0 %2167
        %2169 = vrot.lane.b32.xlu0 %v1923, 96
        %v2170 = vpop.permute.xlu0 %2169
        %2171 = vrot.lane.b32.xlu0 %v1924, 96
        %v2172 = vpop.permute.xlu0 %2171
        %2173 = vrot.lane.b32.xlu0 %v1925, 96
        %v2174 = vpop.permute.xlu0 %2173
        %2175 = vrot.lane.b32.xlu0 %v1926, 96
        %v2176 = vpop.permute.xlu0 %2175
        %2177 = vrot.lane.b32.xlu0 %v1927, 96
        %v2178 = vpop.permute.xlu0 %2177
        %2179 = vrot.lane.b32.xlu0 %v1928, 96
        %v2180 = vpop.permute.xlu0 %2179
        %vm2181 = vcmask 785408
        %v2182 = vsel %vm2181, %v2014, %v2016
        %v2183 = vsel %vm2181, %v2016, %v2018
        %v2184 = vsel %vm2181, %v2018, %v2020
        %v2185 = vsel %vm2181, %v2020, %v2022
        %v2186 = vsel %vm2181, %v2022, %v2024
        %v2187 = vsel %vm2181, %v2024, %v2026
        %v2188 = vsel %vm2181, %v2028, %v2030
        %v2189 = vsel %vm2181, %v2030, %v2032
        %v2190 = vsel %vm2181, %v2032, %v2034
        %v2191 = vsel %vm2181, %v2034, %v2036
        %v2192 = vsel %vm2181, %v2036, %v2038
        %v2193 = vsel %vm2181, %v2038, %v2040
        %v2194 = vsel %vm2181, %v2042, %v2044
        %v2195 = vsel %vm2181, %v2044, %v2046
        %v2196 = vsel %vm2181, %v2046, %v2048
        %v2197 = vsel %vm2181, %v2048, %v2050
        %v2198 = vsel %vm2181, %v2050, %v2052
        %v2199 = vsel %vm2181, %v2052, %v2054
        %v2200 = vsel %vm2181, %v2056, %v2058
        %v2201 = vsel %vm2181, %v2058, %v2060
        %v2202 = vsel %vm2181, %v2060, %v2062
        %v2203 = vsel %vm2181, %v2062, %v2064
        %v2204 = vsel %vm2181, %v2064, %v2066
        %v2205 = vsel %vm2181, %v2066, %v2068
        %v2206 = vsel %vm2181, %v2070, %v2072
        %v2207 = vsel %vm2181, %v2072, %v2074
        %v2208 = vsel %vm2181, %v2074, %v2076
        %v2209 = vsel %vm2181, %v2076, %v2078
        %v2210 = vsel %vm2181, %v2078, %v2080
        %v2211 = vsel %vm2181, %v2080, %v2082
        %v2212 = vsel %vm2181, %v2084, %v2086
        %v2213 = vsel %vm2181, %v2086, %v2088
        %v2214 = vsel %vm2181, %v2088, %v2090
        %v2215 = vsel %vm2181, %v2090, %v2092
        %v2216 = vsel %vm2181, %v2092, %v2094
        %v2217 = vsel %vm2181, %v2094, %v2096
        %v2218 = vsel %vm2181, %v2098, %v2100
        %v2219 = vsel %vm2181, %v2100, %v2102
        %v2220 = vsel %vm2181, %v2102, %v2104
        %v2221 = vsel %vm2181, %v2104, %v2106
        %v2222 = vsel %vm2181, %v2106, %v2108
        %v2223 = vsel %vm2181, %v2108, %v2110
        %v2224 = vsel %vm2181, %v2112, %v2114
        %v2225 = vsel %vm2181, %v2114, %v2116
        %v2226 = vsel %vm2181, %v2116, %v2118
        %v2227 = vsel %vm2181, %v2118, %v2120
        %v2228 = vsel %vm2181, %v2120, %v2122
        %v2229 = vsel %vm2181, %v2122, %v2124
        %v2230 = vsel %vm2181, %v2126, %v2128
        %v2231 = vsel %vm2181, %v2128, %v2130
        %v2232 = vsel %vm2181, %v2130, %v2132
        %v2233 = vsel %vm2181, %v2132, %v2134
        %v2234 = vsel %vm2181, %v2134, %v2136
        %v2235 = vsel %vm2181, %v2136, %v2138
        %v2236 = vsel %vm2181, %v2140, %v2142
        %v2237 = vsel %vm2181, %v2142, %v2144
        %v2238 = vsel %vm2181, %v2144, %v2146
        %v2239 = vsel %vm2181, %v2146, %v2148
        %v2240 = vsel %vm2181, %v2148, %v2150
        %v2241 = vsel %vm2181, %v2150, %v2152
        %v2242 = vsel %vm2181, %v2154, %v2156
        %v2243 = vsel %vm2181, %v2156, %v2158
        %v2244 = vsel %vm2181, %v2158, %v2160
        %v2245 = vsel %vm2181, %v2160, %v2162
        %v2246 = vsel %vm2181, %v2162, %v2164
        %v2247 = vsel %vm2181, %v2164, %v2166
        %v2248 = vsel %vm2181, %v2168, %v2170
        %v2249 = vsel %vm2181, %v2170, %v2172
        %v2250 = vsel %vm2181, %v2172, %v2174
        %v2251 = vsel %vm2181, %v2174, %v2176
        %v2252 = vsel %vm2181, %v2176, %v2178
        %v2253 = vsel %vm2181, %v2178, %v2180
        %v2326 = vmax.f32 %v1845, %v2182
        %v2327 = vmax.f32 %v1846, %v2183
        %v2328 = vmax.f32 %v1847, %v2184
        %v2329 = vmax.f32 %v1848, %v2185
        %v2330 = vmax.f32 %v1849, %v2186
        %v2331 = vmax.f32 %v1850, %v2187
        %v2332 = vmax.f32 %v1852, %v2188
        %v2333 = vmax.f32 %v1853, %v2189
        %v2334 = vmax.f32 %v1854, %v2190
        %v2335 = vmax.f32 %v1855, %v2191
        %v2336 = vmax.f32 %v1856, %v2192
        %v2337 = vmax.f32 %v1857, %v2193
        %v2338 = vmax.f32 %v1859, %v2194
        %v2339 = vmax.f32 %v1860, %v2195
        %v2340 = vmax.f32 %v1861, %v2196
        %v2341 = vmax.f32 %v1862, %v2197
        %v2342 = vmax.f32 %v1863, %v2198
        %v2343 = vmax.f32 %v1864, %v2199
        %v2344 = vmax.f32 %v1866, %v2200
        %v2345 = vmax.f32 %v1867, %v2201
        %v2346 = vmax.f32 %v1868, %v2202
        %v2347 = vmax.f32 %v1869, %v2203
        %v2348 = vmax.f32 %v1870, %v2204
        %v2349 = vmax.f32 %v1871, %v2205
        %v2350 = vmax.f32 %v1873, %v2206
        %v2351 = vmax.f32 %v1874, %v2207
        %v2352 = vmax.f32 %v1875, %v2208
        %v2353 = vmax.f32 %v1876, %v2209
        %v2354 = vmax.f32 %v1877, %v2210
        %v2355 = vmax.f32 %v1878, %v2211
        %v2356 = vmax.f32 %v1880, %v2212
        %v2357 = vmax.f32 %v1881, %v2213
        %v2358 = vmax.f32 %v1882, %v2214
        %v2359 = vmax.f32 %v1883, %v2215
        %v2360 = vmax.f32 %v1884, %v2216
        %v2361 = vmax.f32 %v1885, %v2217
        %v2362 = vmax.f32 %v1887, %v2218
        %v2363 = vmax.f32 %v1888, %v2219
        %v2364 = vmax.f32 %v1889, %v2220
        %v2365 = vmax.f32 %v1890, %v2221
        %v2366 = vmax.f32 %v1891, %v2222
        %v2367 = vmax.f32 %v1892, %v2223
        %v2368 = vmax.f32 %v1894, %v2224
        %v2369 = vmax.f32 %v1895, %v2225
        %v2370 = vmax.f32 %v1896, %v2226
        %v2371 = vmax.f32 %v1897, %v2227
        %v2372 = vmax.f32 %v1898, %v2228
        %v2373 = vmax.f32 %v1899, %v2229
        %v2374 = vmax.f32 %v1901, %v2230
        %v2375 = vmax.f32 %v1902, %v2231
        %v2376 = vmax.f32 %v1903, %v2232
        %v2377 = vmax.f32 %v1904, %v2233
        %v2378 = vmax.f32 %v1905, %v2234
        %v2379 = vmax.f32 %v1906, %v2235
        %v2380 = vmax.f32 %v1908, %v2236
        %v2381 = vmax.f32 %v1909, %v2237
        %v2382 = vmax.f32 %v1910, %v2238
        %v2383 = vmax.f32 %v1911, %v2239
        %v2384 = vmax.f32 %v1912, %v2240
        %v2385 = vmax.f32 %v1913, %v2241
        %v2386 = vmax.f32 %v1915, %v2242
        %v2387 = vmax.f32 %v1916, %v2243
        %v2388 = vmax.f32 %v1917, %v2244
        %v2389 = vmax.f32 %v1918, %v2245
        %v2390 = vmax.f32 %v1919, %v2246
        %v2391 = vmax.f32 %v1920, %v2247
        %v2392 = vmax.f32 %v1922, %v2248
        %v2393 = vmax.f32 %v1923, %v2249
        %v2394 = vmax.f32 %v1924, %v2250
        %v2395 = vmax.f32 %v1925, %v2251
        %v2396 = vmax.f32 %v1926, %v2252
        %v2397 = vmax.f32 %v1927, %v2253
        %2398 = vrot.lane.b32.xlu0 %v1845, 64
        %v2399 = vpop.permute.xlu0 %2398
        %2400 = vrot.lane.b32.xlu0 %v1846, 64
        %v2401 = vpop.permute.xlu0 %2400
        %2402 = vrot.lane.b32.xlu0 %v1847, 64
        %v2403 = vpop.permute.xlu0 %2402
        %2404 = vrot.lane.b32.xlu0 %v1848, 64
        %v2405 = vpop.permute.xlu0 %2404
        %2406 = vrot.lane.b32.xlu0 %v1849, 64
        %v2407 = vpop.permute.xlu0 %2406
        %2408 = vrot.lane.b32.xlu0 %v1850, 64
        %v2409 = vpop.permute.xlu0 %2408
        %2410 = vrot.lane.b32.xlu0 %v1851, 64
        %v2411 = vpop.permute.xlu0 %2410
        %2412 = vrot.lane.b32.xlu0 %v1852, 64
        %v2413 = vpop.permute.xlu0 %2412
        %2414 = vrot.lane.b32.xlu0 %v1853, 64
        %v2415 = vpop.permute.xlu0 %2414
        %2416 = vrot.lane.b32.xlu0 %v1854, 64
        %v2417 = vpop.permute.xlu0 %2416
        %2418 = vrot.lane.b32.xlu0 %v1855, 64
        %v2419 = vpop.permute.xlu0 %2418
        %2420 = vrot.lane.b32.xlu0 %v1856, 64
        %v2421 = vpop.permute.xlu0 %2420
        %2422 = vrot.lane.b32.xlu0 %v1857, 64
        %v2423 = vpop.permute.xlu0 %2422
        %2424 = vrot.lane.b32.xlu0 %v1858, 64
        %v2425 = vpop.permute.xlu0 %2424
        %2426 = vrot.lane.b32.xlu0 %v1859, 64
        %v2427 = vpop.permute.xlu0 %2426
        %2428 = vrot.lane.b32.xlu0 %v1860, 64
        %v2429 = vpop.permute.xlu0 %2428
        %2430 = vrot.lane.b32.xlu0 %v1861, 64
        %v2431 = vpop.permute.xlu0 %2430
        %2432 = vrot.lane.b32.xlu0 %v1862, 64
        %v2433 = vpop.permute.xlu0 %2432
        %2434 = vrot.lane.b32.xlu0 %v1863, 64
        %v2435 = vpop.permute.xlu0 %2434
        %2436 = vrot.lane.b32.xlu0 %v1864, 64
        %v2437 = vpop.permute.xlu0 %2436
        %2438 = vrot.lane.b32.xlu0 %v1865, 64
        %v2439 = vpop.permute.xlu0 %2438
        %2440 = vrot.lane.b32.xlu0 %v1866, 64
        %v2441 = vpop.permute.xlu0 %2440
        %2442 = vrot.lane.b32.xlu0 %v1867, 64
        %v2443 = vpop.permute.xlu0 %2442
        %2444 = vrot.lane.b32.xlu0 %v1868, 64
        %v2445 = vpop.permute.xlu0 %2444
        %2446 = vrot.lane.b32.xlu0 %v1869, 64
        %v2447 = vpop.permute.xlu0 %2446
        %2448 = vrot.lane.b32.xlu0 %v1870, 64
        %v2449 = vpop.permute.xlu0 %2448
        %2450 = vrot.lane.b32.xlu0 %v1871, 64
        %v2451 = vpop.permute.xlu0 %2450
        %2452 = vrot.lane.b32.xlu0 %v1872, 64
        %v2453 = vpop.permute.xlu0 %2452
        %2454 = vrot.lane.b32.xlu0 %v1873, 64
        %v2455 = vpop.permute.xlu0 %2454
        %2456 = vrot.lane.b32.xlu0 %v1874, 64
        %v2457 = vpop.permute.xlu0 %2456
        %2458 = vrot.lane.b32.xlu0 %v1875, 64
        %v2459 = vpop.permute.xlu0 %2458
        %2460 = vrot.lane.b32.xlu0 %v1876, 64
        %v2461 = vpop.permute.xlu0 %2460
        %2462 = vrot.lane.b32.xlu0 %v1877, 64
        %v2463 = vpop.permute.xlu0 %2462
        %2464 = vrot.lane.b32.xlu0 %v1878, 64
        %v2465 = vpop.permute.xlu0 %2464
        %2466 = vrot.lane.b32.xlu0 %v1879, 64
        %v2467 = vpop.permute.xlu0 %2466
        %2468 = vrot.lane.b32.xlu0 %v1880, 64
        %v2469 = vpop.permute.xlu0 %2468
        %2470 = vrot.lane.b32.xlu0 %v1881, 64
        %v2471 = vpop.permute.xlu0 %2470
        %2472 = vrot.lane.b32.xlu0 %v1882, 64
        %v2473 = vpop.permute.xlu0 %2472
        %2474 = vrot.lane.b32.xlu0 %v1883, 64
        %v2475 = vpop.permute.xlu0 %2474
        %2476 = vrot.lane.b32.xlu0 %v1884, 64
        %v2477 = vpop.permute.xlu0 %2476
        %2478 = vrot.lane.b32.xlu0 %v1885, 64
        %v2479 = vpop.permute.xlu0 %2478
        %2480 = vrot.lane.b32.xlu0 %v1886, 64
        %v2481 = vpop.permute.xlu0 %2480
        %2482 = vrot.lane.b32.xlu0 %v1887, 64
        %v2483 = vpop.permute.xlu0 %2482
        %2484 = vrot.lane.b32.xlu0 %v1888, 64
        %v2485 = vpop.permute.xlu0 %2484
        %2486 = vrot.lane.b32.xlu0 %v1889, 64
        %v2487 = vpop.permute.xlu0 %2486
        %2488 = vrot.lane.b32.xlu0 %v1890, 64
        %v2489 = vpop.permute.xlu0 %2488
        %2490 = vrot.lane.b32.xlu0 %v1891, 64
        %v2491 = vpop.permute.xlu0 %2490
        %2492 = vrot.lane.b32.xlu0 %v1892, 64
        %v2493 = vpop.permute.xlu0 %2492
        %2494 = vrot.lane.b32.xlu0 %v1893, 64
        %v2495 = vpop.permute.xlu0 %2494
        %2496 = vrot.lane.b32.xlu0 %v1894, 64
        %v2497 = vpop.permute.xlu0 %2496
        %2498 = vrot.lane.b32.xlu0 %v1895, 64
        %v2499 = vpop.permute.xlu0 %2498
        %2500 = vrot.lane.b32.xlu0 %v1896, 64
        %v2501 = vpop.permute.xlu0 %2500
        %2502 = vrot.lane.b32.xlu0 %v1897, 64
        %v2503 = vpop.permute.xlu0 %2502
        %2504 = vrot.lane.b32.xlu0 %v1898, 64
        %v2505 = vpop.permute.xlu0 %2504
        %2506 = vrot.lane.b32.xlu0 %v1899, 64
        %v2507 = vpop.permute.xlu0 %2506
        %2508 = vrot.lane.b32.xlu0 %v1900, 64
        %v2509 = vpop.permute.xlu0 %2508
        %2510 = vrot.lane.b32.xlu0 %v1901, 64
        %v2511 = vpop.permute.xlu0 %2510
        %2512 = vrot.lane.b32.xlu0 %v1902, 64
        %v2513 = vpop.permute.xlu0 %2512
        %2514 = vrot.lane.b32.xlu0 %v1903, 64
        %v2515 = vpop.permute.xlu0 %2514
        %2516 = vrot.lane.b32.xlu0 %v1904, 64
        %v2517 = vpop.permute.xlu0 %2516
        %2518 = vrot.lane.b32.xlu0 %v1905, 64
        %v2519 = vpop.permute.xlu0 %2518
        %2520 = vrot.lane.b32.xlu0 %v1906, 64
        %v2521 = vpop.permute.xlu0 %2520
        %2522 = vrot.lane.b32.xlu0 %v1907, 64
        %v2523 = vpop.permute.xlu0 %2522
        %2524 = vrot.lane.b32.xlu0 %v1908, 64
        %v2525 = vpop.permute.xlu0 %2524
        %2526 = vrot.lane.b32.xlu0 %v1909, 64
        %v2527 = vpop.permute.xlu0 %2526
        %2528 = vrot.lane.b32.xlu0 %v1910, 64
        %v2529 = vpop.permute.xlu0 %2528
        %2530 = vrot.lane.b32.xlu0 %v1911, 64
        %v2531 = vpop.permute.xlu0 %2530
        %2532 = vrot.lane.b32.xlu0 %v1912, 64
        %v2533 = vpop.permute.xlu0 %2532
        %2534 = vrot.lane.b32.xlu0 %v1913, 64
        %v2535 = vpop.permute.xlu0 %2534
        %2536 = vrot.lane.b32.xlu0 %v1914, 64
        %v2537 = vpop.permute.xlu0 %2536
        %2538 = vrot.lane.b32.xlu0 %v1915, 64
        %v2539 = vpop.permute.xlu0 %2538
        %2540 = vrot.lane.b32.xlu0 %v1916, 64
        %v2541 = vpop.permute.xlu0 %2540
        %2542 = vrot.lane.b32.xlu0 %v1917, 64
        %v2543 = vpop.permute.xlu0 %2542
        %2544 = vrot.lane.b32.xlu0 %v1918, 64
        %v2545 = vpop.permute.xlu0 %2544
        %2546 = vrot.lane.b32.xlu0 %v1919, 64
        %v2547 = vpop.permute.xlu0 %2546
        %2548 = vrot.lane.b32.xlu0 %v1920, 64
        %v2549 = vpop.permute.xlu0 %2548
        %2550 = vrot.lane.b32.xlu0 %v1921, 64
        %v2551 = vpop.permute.xlu0 %2550
        %2552 = vrot.lane.b32.xlu0 %v1922, 64
        %v2553 = vpop.permute.xlu0 %2552
        %2554 = vrot.lane.b32.xlu0 %v1923, 64
        %v2555 = vpop.permute.xlu0 %2554
        %2556 = vrot.lane.b32.xlu0 %v1924, 64
        %v2557 = vpop.permute.xlu0 %2556
        %2558 = vrot.lane.b32.xlu0 %v1925, 64
        %v2559 = vpop.permute.xlu0 %2558
        %2560 = vrot.lane.b32.xlu0 %v1926, 64
        %v2561 = vpop.permute.xlu0 %2560
        %2562 = vrot.lane.b32.xlu0 %v1927, 64
        %v2563 = vpop.permute.xlu0 %2562
        %2564 = vrot.lane.b32.xlu0 %v1928, 64
        %v2565 = vpop.permute.xlu0 %2564
        %vm2566 = vcmask 523264
        %v2567 = vsel %vm2566, %v2399, %v2401
        %v2568 = vsel %vm2566, %v2401, %v2403
        %v2569 = vsel %vm2566, %v2403, %v2405
        %v2570 = vsel %vm2566, %v2405, %v2407
        %v2571 = vsel %vm2566, %v2407, %v2409
        %v2572 = vsel %vm2566, %v2409, %v2411
        %v2573 = vsel %vm2566, %v2413, %v2415
        %v2574 = vsel %vm2566, %v2415, %v2417
        %v2575 = vsel %vm2566, %v2417, %v2419
        %v2576 = vsel %vm2566, %v2419, %v2421
        %v2577 = vsel %vm2566, %v2421, %v2423
        %v2578 = vsel %vm2566, %v2423, %v2425
        %v2579 = vsel %vm2566, %v2427, %v2429
        %v2580 = vsel %vm2566, %v2429, %v2431
        %v2581 = vsel %vm2566, %v2431, %v2433
        %v2582 = vsel %vm2566, %v2433, %v2435
        %v2583 = vsel %vm2566, %v2435, %v2437
        %v2584 = vsel %vm2566, %v2437, %v2439
        %v2585 = vsel %vm2566, %v2441, %v2443
        %v2586 = vsel %vm2566, %v2443, %v2445
        %v2587 = vsel %vm2566, %v2445, %v2447
        %v2588 = vsel %vm2566, %v2447, %v2449
        %v2589 = vsel %vm2566, %v2449, %v2451
        %v2590 = vsel %vm2566, %v2451, %v2453
        %v2591 = vsel %vm2566, %v2455, %v2457
        %v2592 = vsel %vm2566, %v2457, %v2459
        %v2593 = vsel %vm2566, %v2459, %v2461
        %v2594 = vsel %vm2566, %v2461, %v2463
        %v2595 = vsel %vm2566, %v2463, %v2465
        %v2596 = vsel %vm2566, %v2465, %v2467
        %v2597 = vsel %vm2566, %v2469, %v2471
        %v2598 = vsel %vm2566, %v2471, %v2473
        %v2599 = vsel %vm2566, %v2473, %v2475
        %v2600 = vsel %vm2566, %v2475, %v2477
        %v2601 = vsel %vm2566, %v2477, %v2479
        %v2602 = vsel %vm2566, %v2479, %v2481
        %v2603 = vsel %vm2566, %v2483, %v2485
        %v2604 = vsel %vm2566, %v2485, %v2487
        %v2605 = vsel %vm2566, %v2487, %v2489
        %v2606 = vsel %vm2566, %v2489, %v2491
        %v2607 = vsel %vm2566, %v2491, %v2493
        %v2608 = vsel %vm2566, %v2493, %v2495
        %v2609 = vsel %vm2566, %v2497, %v2499
        %v2610 = vsel %vm2566, %v2499, %v2501
        %v2611 = vsel %vm2566, %v2501, %v2503
        %v2612 = vsel %vm2566, %v2503, %v2505
        %v2613 = vsel %vm2566, %v2505, %v2507
        %v2614 = vsel %vm2566, %v2507, %v2509
        %v2615 = vsel %vm2566, %v2511, %v2513
        %v2616 = vsel %vm2566, %v2513, %v2515
        %v2617 = vsel %vm2566, %v2515, %v2517
        %v2618 = vsel %vm2566, %v2517, %v2519
        %v2619 = vsel %vm2566, %v2519, %v2521
        %v2620 = vsel %vm2566, %v2521, %v2523
        %v2621 = vsel %vm2566, %v2525, %v2527
        %v2622 = vsel %vm2566, %v2527, %v2529
        %v2623 = vsel %vm2566, %v2529, %v2531
        %v2624 = vsel %vm2566, %v2531, %v2533
        %v2625 = vsel %vm2566, %v2533, %v2535
        %v2626 = vsel %vm2566, %v2535, %v2537
        %v2627 = vsel %vm2566, %v2539, %v2541
        %v2628 = vsel %vm2566, %v2541, %v2543
        %v2629 = vsel %vm2566, %v2543, %v2545
        %v2630 = vsel %vm2566, %v2545, %v2547
        %v2631 = vsel %vm2566, %v2547, %v2549
        %v2632 = vsel %vm2566, %v2549, %v2551
        %v2633 = vsel %vm2566, %v2553, %v2555
        %v2634 = vsel %vm2566, %v2555, %v2557
        %v2635 = vsel %vm2566, %v2557, %v2559
        %v2636 = vsel %vm2566, %v2559, %v2561
        %v2637 = vsel %vm2566, %v2561, %v2563
        %v2638 = vsel %vm2566, %v2563, %v2565
        %v2711 = vmax.f32 %v2326, %v2567
        %v2712 = vmax.f32 %v2327, %v2568
        %v2713 = vmax.f32 %v2328, %v2569
        %v2714 = vmax.f32 %v2329, %v2570
        %v2715 = vmax.f32 %v2330, %v2571
        %v2716 = vmax.f32 %v2331, %v2572
        %v2717 = vmax.f32 %v2332, %v2573
        %v2718 = vmax.f32 %v2333, %v2574
        %v2719 = vmax.f32 %v2334, %v2575
        %v2720 = vmax.f32 %v2335, %v2576
        %v2721 = vmax.f32 %v2336, %v2577
        %v2722 = vmax.f32 %v2337, %v2578
        %v2723 = vmax.f32 %v2338, %v2579
        %v2724 = vmax.f32 %v2339, %v2580
        %v2725 = vmax.f32 %v2340, %v2581
        %v2726 = vmax.f32 %v2341, %v2582
        %v2727 = vmax.f32 %v2342, %v2583
        %v2728 = vmax.f32 %v2343, %v2584
        %v2729 = vmax.f32 %v2344, %v2585
        %v2730 = vmax.f32 %v2345, %v2586
        %v2731 = vmax.f32 %v2346, %v2587
        %v2732 = vmax.f32 %v2347, %v2588
        %v2733 = vmax.f32 %v2348, %v2589
        %v2734 = vmax.f32 %v2349, %v2590
        %v2735 = vmax.f32 %v2350, %v2591
        %v2736 = vmax.f32 %v2351, %v2592
        %v2737 = vmax.f32 %v2352, %v2593
        %v2738 = vmax.f32 %v2353, %v2594
        %v2739 = vmax.f32 %v2354, %v2595
        %v2740 = vmax.f32 %v2355, %v2596
        %v2741 = vmax.f32 %v2356, %v2597
        %v2742 = vmax.f32 %v2357, %v2598
        %v2743 = vmax.f32 %v2358, %v2599
        %v2744 = vmax.f32 %v2359, %v2600
        %v2745 = vmax.f32 %v2360, %v2601
        %v2746 = vmax.f32 %v2361, %v2602
        %v2747 = vmax.f32 %v2362, %v2603
        %v2748 = vmax.f32 %v2363, %v2604
        %v2749 = vmax.f32 %v2364, %v2605
        %v2750 = vmax.f32 %v2365, %v2606
        %v2751 = vmax.f32 %v2366, %v2607
        %v2752 = vmax.f32 %v2367, %v2608
        %v2753 = vmax.f32 %v2368, %v2609
        %v2754 = vmax.f32 %v2369, %v2610
        %v2755 = vmax.f32 %v2370, %v2611
        %v2756 = vmax.f32 %v2371, %v2612
        %v2757 = vmax.f32 %v2372, %v2613
        %v2758 = vmax.f32 %v2373, %v2614
        %v2759 = vmax.f32 %v2374, %v2615
        %v2760 = vmax.f32 %v2375, %v2616
        %v2761 = vmax.f32 %v2376, %v2617
        %v2762 = vmax.f32 %v2377, %v2618
        %v2763 = vmax.f32 %v2378, %v2619
        %v2764 = vmax.f32 %v2379, %v2620
        %v2765 = vmax.f32 %v2380, %v2621
        %v2766 = vmax.f32 %v2381, %v2622
        %v2767 = vmax.f32 %v2382, %v2623
        %v2768 = vmax.f32 %v2383, %v2624
        %v2769 = vmax.f32 %v2384, %v2625
        %v2770 = vmax.f32 %v2385, %v2626
        %v2771 = vmax.f32 %v2386, %v2627
        %v2772 = vmax.f32 %v2387, %v2628
        %v2773 = vmax.f32 %v2388, %v2629
        %v2774 = vmax.f32 %v2389, %v2630
        %v2775 = vmax.f32 %v2390, %v2631
        %v2776 = vmax.f32 %v2391, %v2632
        %v2777 = vmax.f32 %v2392, %v2633
        %v2778 = vmax.f32 %v2393, %v2634
        %v2779 = vmax.f32 %v2394, %v2635
        %v2780 = vmax.f32 %v2395, %v2636
        %v2781 = vmax.f32 %v2396, %v2637
        %v2782 = vmax.f32 %v2397, %v2638
        %v2783 = vld [vmem:[#allocation8] sm:$0xff]
        %v2784 = vld [vmem:[#allocation8 + $0x8] sm:$0xff]
        %v2785 = vld [vmem:[#allocation8 + $0x10] sm:$0xff]
        %v2786 = vld [vmem:[#allocation8 + $0x18] sm:$0xff]
        %v2787 = vld [vmem:[#allocation8 + $0x20] sm:$0xff]
        %v2788 = vld [vmem:[#allocation8 + $0x28] sm:$0xff]
        %v2789 = vld [vmem:[#allocation8 + $0x30] sm:$0xff]
        %v2790 = vld [vmem:[#allocation8 + $0x38] sm:$0xff]
        %v2791 = vld [vmem:[#allocation8 + $0x40] sm:$0xff]
        %v2792 = vld [vmem:[#allocation8 + $0x48] sm:$0xff]
        %v2793 = vld [vmem:[#allocation8 + $0x50] sm:$0xff]
        %v2794 = vld [vmem:[#allocation8 + $0x58] sm:$0xff]
        %v2795 = vld [vmem:[#allocation8 + $0x60] sm:$0xff]
        %v2796 = vld [vmem:[#allocation8 + $0x68] sm:$0xff]
        %v2797 = vld [vmem:[#allocation8 + $0x70] sm:$0xff]
        %v2798 = vld [vmem:[#allocation8 + $0x78] sm:$0xff]
        %v2799 = vld [vmem:[#allocation8 + $0x80] sm:$0xff]
        %v2800 = vld [vmem:[#allocation8 + $0x88] sm:$0xff]
        %v2801 = vld [vmem:[#allocation8 + $0x90] sm:$0xff]
        %v2802 = vld [vmem:[#allocation8 + $0x98] sm:$0xff]
        %v2803 = vld [vmem:[#allocation8 + $0xa0] sm:$0xff]
        %v2804 = vld [vmem:[#allocation8 + $0xa8] sm:$0xff]
        %v2805 = vld [vmem:[#allocation8 + $0xb0] sm:$0xff]
        %v2806 = vld [vmem:[#allocation8 + $0xb8] sm:$0xff]
        %v2807 = vld [vmem:[#allocation8 + $0xc0] sm:$0xff]
        %v2808 = vld [vmem:[#allocation8 + $0xc8] sm:$0xff]
        %v2809 = vld [vmem:[#allocation8 + $0xd0] sm:$0xff]
        %v2810 = vld [vmem:[#allocation8 + $0xd8] sm:$0xff]
        %v2811 = vld [vmem:[#allocation8 + $0xe0] sm:$0xff]
        %v2812 = vld [vmem:[#allocation8 + $0xe8] sm:$0xff]
        %v2813 = vld [vmem:[#allocation8 + $0xf0] sm:$0xff]
        %v2814 = vld [vmem:[#allocation8 + $0xf8] sm:$0xff]
        %v2815 = vld [vmem:[#allocation8 + $0x100] sm:$0xff]
        %v2816 = vld [vmem:[#allocation8 + $0x108] sm:$0xff]
        %v2817 = vld [vmem:[#allocation8 + $0x110] sm:$0xff]
        %v2818 = vld [vmem:[#allocation8 + $0x118] sm:$0xff]
        %v2819 = vld [vmem:[#allocation8 + $0x120] sm:$0xff]
        %v2820 = vld [vmem:[#allocation8 + $0x128] sm:$0xff]
        %v2821 = vld [vmem:[#allocation8 + $0x130] sm:$0xff]
        %v2822 = vld [vmem:[#allocation8 + $0x138] sm:$0xff]
        %v2823 = vld [vmem:[#allocation8 + $0x140] sm:$0xff]
        %v2824 = vld [vmem:[#allocation8 + $0x148] sm:$0xff]
        %v2825 = vld [vmem:[#allocation8 + $0x150] sm:$0xff]
        %v2826 = vld [vmem:[#allocation8 + $0x158] sm:$0xff]
        %v2827 = vld [vmem:[#allocation8 + $0x160] sm:$0xff]
        %v2828 = vld [vmem:[#allocation8 + $0x168] sm:$0xff]
        %v2829 = vld [vmem:[#allocation8 + $0x170] sm:$0xff]
        %v2830 = vld [vmem:[#allocation8 + $0x178] sm:$0xff]
        %v2831 = vld [vmem:[#allocation8 + $0x180] sm:$0xff]
        %v2832 = vld [vmem:[#allocation8 + $0x188] sm:$0xff]
        %v2833 = vld [vmem:[#allocation8 + $0x190] sm:$0xff]
        %v2834 = vld [vmem:[#allocation8 + $0x198] sm:$0xff]
        %v2835 = vld [vmem:[#allocation8 + $0x1a0] sm:$0xff]
        %v2836 = vld [vmem:[#allocation8 + $0x1a8] sm:$0xff]
        %v2837 = vld [vmem:[#allocation8 + $0x1b0] sm:$0xff]
        %v2838 = vld [vmem:[#allocation8 + $0x1b8] sm:$0xff]
        %v2839 = vld [vmem:[#allocation8 + $0x1c0] sm:$0xff]
        %v2840 = vld [vmem:[#allocation8 + $0x1c8] sm:$0xff]
        %v2841 = vld [vmem:[#allocation8 + $0x1d0] sm:$0xff]
        %v2842 = vld [vmem:[#allocation8 + $0x1d8] sm:$0xff]
        %v2843 = vld [vmem:[#allocation8 + $0x1e0] sm:$0xff]
        %v2844 = vld [vmem:[#allocation8 + $0x1e8] sm:$0xff]
        %v2845 = vld [vmem:[#allocation8 + $0x1f0] sm:$0xff]
        %v2846 = vld [vmem:[#allocation8 + $0x1f8] sm:$0xff]
        %v2847 = vld [vmem:[#allocation8 + $0x200] sm:$0xff]
        %v2848 = vld [vmem:[#allocation8 + $0x208] sm:$0xff]
        %v2849 = vld [vmem:[#allocation8 + $0x210] sm:$0xff]
        %v2850 = vld [vmem:[#allocation8 + $0x218] sm:$0xff]
        %v2851 = vld [vmem:[#allocation8 + $0x220] sm:$0xff]
        %v2852 = vld [vmem:[#allocation8 + $0x228] sm:$0xff]
        %v2853 = vld [vmem:[#allocation8 + $0x230] sm:$0xff]
        %v2854 = vld [vmem:[#allocation8 + $0x238] sm:$0xff]
        %v2855 = vld [vmem:[#allocation8 + $0x240] sm:$0xff]
        %v2856 = vld [vmem:[#allocation8 + $0x248] sm:$0xff]
        %v2857 = vld [vmem:[#allocation8 + $0x250] sm:$0xff]
        %v2858 = vld [vmem:[#allocation8 + $0x258] sm:$0xff]
        %v2859 = vld [vmem:[#allocation8 + $0x260] sm:$0xff]
        %v2860 = vld [vmem:[#allocation8 + $0x268] sm:$0xff]
        %v2861 = vld [vmem:[#allocation8 + $0x270] sm:$0xff]
        %v2862 = vld [vmem:[#allocation8 + $0x278] sm:$0xff]
        %v2863 = vld [vmem:[#allocation8 + $0x280] sm:$0xff]
        %v2864 = vld [vmem:[#allocation8 + $0x288] sm:$0xff]
        %v2865 = vld [vmem:[#allocation8 + $0x290] sm:$0xff]
        %v2866 = vld [vmem:[#allocation8 + $0x298] sm:$0xff]
        %v2867 = vld [vmem:[#allocation8 + $0x2a0] sm:$0xff]
        %v2868 = vld [vmem:[#allocation8 + $0x2a8] sm:$0xff]
        %v2869 = vld [vmem:[#allocation8 + $0x2b0] sm:$0xff]
        %v2870 = vld [vmem:[#allocation8 + $0x2b8] sm:$0xff]
        %v2871 = vld [vmem:[#allocation8 + $0x2c0] sm:$0xff]
        %v2872 = vld [vmem:[#allocation8 + $0x2c8] sm:$0xff]
        %v2873 = vld [vmem:[#allocation8 + $0x2d0] sm:$0xff]
        %v2874 = vld [vmem:[#allocation8 + $0x2d8] sm:$0xff]
        %v2875 = vld [vmem:[#allocation8 + $0x2e0] sm:$0xff]
        %v2876 = vld [vmem:[#allocation8 + $0x2e8] sm:$0xff]
        %v2877 = vld [vmem:[#allocation8 + $0x2f0] sm:$0xff]
        %v2878 = vld [vmem:[#allocation8 + $0x2f8] sm:$0xff]
        %v2879 = vld [vmem:[#allocation8 + $0x300] sm:$0xff]
        %v2880 = vld [vmem:[#allocation8 + $0x308] sm:$0xff]
        %v2881 = vld [vmem:[#allocation8 + $0x310] sm:$0xff]
        %v2882 = vld [vmem:[#allocation8 + $0x318] sm:$0xff]
        %v2883 = vld [vmem:[#allocation8 + $0x320] sm:$0xff]
        %v2884 = vld [vmem:[#allocation8 + $0x328] sm:$0xff]
        %v2885 = vld [vmem:[#allocation8 + $0x330] sm:$0xff]
        %v2886 = vld [vmem:[#allocation8 + $0x338] sm:$0xff]
        %v2887 = vld [vmem:[#allocation8 + $0x340] sm:$0xff]
        %v2888 = vld [vmem:[#allocation8 + $0x348] sm:$0xff]
        %v2889 = vld [vmem:[#allocation8 + $0x350] sm:$0xff]
        %v2890 = vld [vmem:[#allocation8 + $0x358] sm:$0xff]
        %v2891 = vld [vmem:[#allocation8 + $0x360] sm:$0xff]
        %v2892 = vld [vmem:[#allocation8 + $0x368] sm:$0xff]
        %v2893 = vld [vmem:[#allocation8 + $0x370] sm:$0xff]
        %v2894 = vld [vmem:[#allocation8 + $0x378] sm:$0xff]
        %v2895 = vld [vmem:[#allocation8 + $0x380] sm:$0xff]
        %v2896 = vld [vmem:[#allocation8 + $0x388] sm:$0xff]
        %v2897 = vld [vmem:[#allocation8 + $0x390] sm:$0xff]
        %v2898 = vld [vmem:[#allocation8 + $0x398] sm:$0xff]
        %v2899 = vld [vmem:[#allocation8 + $0x3a0] sm:$0xff]
        %v2900 = vld [vmem:[#allocation8 + $0x3a8] sm:$0xff]
        %v2901 = vld [vmem:[#allocation8 + $0x3b0] sm:$0xff]
        %v2902 = vld [vmem:[#allocation8 + $0x3b8] sm:$0xff]
        %v2903 = vld [vmem:[#allocation8 + $0x3c0] sm:$0xff]
        %v2904 = vld [vmem:[#allocation8 + $0x3c8] sm:$0xff]
        %v2905 = vld [vmem:[#allocation8 + $0x3d0] sm:$0xff]
        %v2906 = vld [vmem:[#allocation8 + $0x3d8] sm:$0xff]
        %v2907 = vld [vmem:[#allocation8 + $0x3e0] sm:$0xff]
        %v2908 = vld [vmem:[#allocation8 + $0x3e8] sm:$0xff]
        %v2909 = vld [vmem:[#allocation8 + $0x3f0] sm:$0xff]
        %v2910 = vld [vmem:[#allocation8 + $0x3f8] sm:$0xff]
        %v2911 = vld [vmem:[#allocation8 + $0x400] sm:$0xff]
        %v2912 = vld [vmem:[#allocation8 + $0x408] sm:$0xff]
        %v2913 = vld [vmem:[#allocation8 + $0x410] sm:$0xff]
        %v2914 = vld [vmem:[#allocation8 + $0x418] sm:$0xff]
        %v2915 = vld [vmem:[#allocation8 + $0x420] sm:$0xff]
        %v2916 = vld [vmem:[#allocation8 + $0x428] sm:$0xff]
        %v2917 = vld [vmem:[#allocation8 + $0x430] sm:$0xff]
        %v2918 = vld [vmem:[#allocation8 + $0x438] sm:$0xff]
        %v2919 = vld [vmem:[#allocation8 + $0x440] sm:$0xff]
        %v2920 = vld [vmem:[#allocation8 + $0x448] sm:$0xff]
        %v2921 = vld [vmem:[#allocation8 + $0x450] sm:$0xff]
        %v2922 = vld [vmem:[#allocation8 + $0x458] sm:$0xff]
        %v2923 = vld [vmem:[#allocation8 + $0x460] sm:$0xff]
        %v2924 = vld [vmem:[#allocation8 + $0x468] sm:$0xff]
        %v2925 = vld [vmem:[#allocation8 + $0x470] sm:$0xff]
        %v2926 = vld [vmem:[#allocation8 + $0x478] sm:$0xff]
        %v2927 = vld [vmem:[#allocation8 + $0x480] sm:$0xff]
        %v2928 = vld [vmem:[#allocation8 + $0x488] sm:$0xff]
        %v2929 = vld [vmem:[#allocation8 + $0x490] sm:$0xff]
        %v2930 = vld [vmem:[#allocation8 + $0x498] sm:$0xff]
        %v2931 = vld [vmem:[#allocation8 + $0x4a0] sm:$0xff]
        %v2932 = vld [vmem:[#allocation8 + $0x4a8] sm:$0xff]
        %v2933 = vld [vmem:[#allocation8 + $0x4b0] sm:$0xff]
        %v2934 = vld [vmem:[#allocation8 + $0x4b8] sm:$0xff]
        %v2935 = vld [vmem:[#allocation8 + $0x4c0] sm:$0xff]
        %v2936 = vld [vmem:[#allocation8 + $0x4c8] sm:$0xff]
        %v2937 = vld [vmem:[#allocation8 + $0x4d0] sm:$0xff]
        %v2938 = vld [vmem:[#allocation8 + $0x4d8] sm:$0xff]
        %v2939 = vld [vmem:[#allocation8 + $0x4e0] sm:$0xff]
        %v2940 = vld [vmem:[#allocation8 + $0x4e8] sm:$0xff]
        %v2941 = vld [vmem:[#allocation8 + $0x4f0] sm:$0xff]
        %v2942 = vld [vmem:[#allocation8 + $0x4f8] sm:$0xff]
        %v2943 = vld [vmem:[#allocation8 + $0x500] sm:$0xff]
        %v2944 = vld [vmem:[#allocation8 + $0x508] sm:$0xff]
        %v2945 = vld [vmem:[#allocation8 + $0x510] sm:$0xff]
        %v2946 = vld [vmem:[#allocation8 + $0x518] sm:$0xff]
        %v2947 = vld [vmem:[#allocation8 + $0x520] sm:$0xff]
        %v2948 = vld [vmem:[#allocation8 + $0x528] sm:$0xff]
        %v2949 = vld [vmem:[#allocation8 + $0x530] sm:$0xff]
        %v2950 = vld [vmem:[#allocation8 + $0x538] sm:$0xff]
        %v2951 = vld [vmem:[#allocation8 + $0x540] sm:$0xff]
        %v2952 = vld [vmem:[#allocation8 + $0x548] sm:$0xff]
        %v2953 = vld [vmem:[#allocation8 + $0x550] sm:$0xff]
        %v2954 = vld [vmem:[#allocation8 + $0x558] sm:$0xff]
        %v2955 = vld [vmem:[#allocation8 + $0x560] sm:$0xff]
        %v2956 = vld [vmem:[#allocation8 + $0x568] sm:$0xff]
        %v2957 = vld [vmem:[#allocation8 + $0x570] sm:$0xff]
        %v2958 = vld [vmem:[#allocation8 + $0x578] sm:$0xff]
        %v2959 = vld [vmem:[#allocation8 + $0x580] sm:$0xff]
        %v2960 = vld [vmem:[#allocation8 + $0x588] sm:$0xff]
        %v2961 = vld [vmem:[#allocation8 + $0x590] sm:$0xff]
        %v2962 = vld [vmem:[#allocation8 + $0x598] sm:$0xff]
        %v2963 = vld [vmem:[#allocation8 + $0x5a0] sm:$0xff]
        %v2964 = vld [vmem:[#allocation8 + $0x5a8] sm:$0xff]
        %v2965 = vld [vmem:[#allocation8 + $0x5b0] sm:$0xff]
        %v2966 = vld [vmem:[#allocation8 + $0x5b8] sm:$0xff]
        %v2967 = vld [vmem:[#allocation8 + $0x5c0] sm:$0xff]
        %v2968 = vld [vmem:[#allocation8 + $0x5c8] sm:$0xff]
        %v2969 = vld [vmem:[#allocation8 + $0x5d0] sm:$0xff]
        %v2970 = vld [vmem:[#allocation8 + $0x5d8] sm:$0xff]
        %v2971 = vld [vmem:[#allocation8 + $0x5e0] sm:$0xff]
        %v2972 = vld [vmem:[#allocation8 + $0x5e8] sm:$0xff]
        %v2973 = vld [vmem:[#allocation8 + $0x5f0] sm:$0xff]
        %v2974 = vld [vmem:[#allocation8 + $0x5f8] sm:$0xff]
        %v2975 = vld [vmem:[#allocation8 + $0x600] sm:$0xff]
        %v2976 = vld [vmem:[#allocation8 + $0x608] sm:$0xff]
        %v2977 = vld [vmem:[#allocation8 + $0x610] sm:$0xff]
        %v2978 = vld [vmem:[#allocation8 + $0x618] sm:$0xff]
        %v2979 = vld [vmem:[#allocation8 + $0x620] sm:$0xff]
        %v2980 = vld [vmem:[#allocation8 + $0x628] sm:$0xff]
        %v2981 = vld [vmem:[#allocation8 + $0x630] sm:$0xff]
        %v2982 = vld [vmem:[#allocation8 + $0x638] sm:$0xff]
        %v2983 = vld [vmem:[#allocation8 + $0x640] sm:$0xff]
        %v2984 = vld [vmem:[#allocation8 + $0x648] sm:$0xff]
        %v2985 = vld [vmem:[#allocation8 + $0x650] sm:$0xff]
        %v2986 = vld [vmem:[#allocation8 + $0x658] sm:$0xff]
        %v2987 = vld [vmem:[#allocation8 + $0x660] sm:$0xff]
        %v2988 = vld [vmem:[#allocation8 + $0x668] sm:$0xff]
        %v2989 = vld [vmem:[#allocation8 + $0x670] sm:$0xff]
        %v2990 = vld [vmem:[#allocation8 + $0x678] sm:$0xff]
        %v2991 = vld [vmem:[#allocation8 + $0x680] sm:$0xff]
        %v2992 = vld [vmem:[#allocation8 + $0x688] sm:$0xff]
        %v2993 = vld [vmem:[#allocation8 + $0x690] sm:$0xff]
        %v2994 = vld [vmem:[#allocation8 + $0x698] sm:$0xff]
        %v2995 = vld [vmem:[#allocation8 + $0x6a0] sm:$0xff]
        %v2996 = vld [vmem:[#allocation8 + $0x6a8] sm:$0xff]
        %v2997 = vld [vmem:[#allocation8 + $0x6b0] sm:$0xff]
        %v2998 = vld [vmem:[#allocation8 + $0x6b8] sm:$0xff]
        %v2999 = vld [vmem:[#allocation8 + $0x6c0] sm:$0xff]
        %v3000 = vld [vmem:[#allocation8 + $0x6c8] sm:$0xff]
        %v3001 = vld [vmem:[#allocation8 + $0x6d0] sm:$0xff]
        %v3002 = vld [vmem:[#allocation8 + $0x6d8] sm:$0xff]
        %v3003 = vld [vmem:[#allocation8 + $0x6e0] sm:$0xff]
        %v3004 = vld [vmem:[#allocation8 + $0x6e8] sm:$0xff]
        %v3005 = vld [vmem:[#allocation8 + $0x6f0] sm:$0xff]
        %v3006 = vld [vmem:[#allocation8 + $0x6f8] sm:$0xff]
        %v3007 = vld [vmem:[#allocation8 + $0x700] sm:$0xff]
        %v3008 = vld [vmem:[#allocation8 + $0x708] sm:$0xff]
        %v3009 = vld [vmem:[#allocation8 + $0x710] sm:$0xff]
        %v3010 = vld [vmem:[#allocation8 + $0x718] sm:$0xff]
        %v3011 = vld [vmem:[#allocation8 + $0x720] sm:$0xff]
        %v3012 = vld [vmem:[#allocation8 + $0x728] sm:$0xff]
        %v3013 = vld [vmem:[#allocation8 + $0x730] sm:$0xff]
        %v3014 = vld [vmem:[#allocation8 + $0x738] sm:$0xff]
        %v3015 = vld [vmem:[#allocation8 + $0x740] sm:$0xff]
        %v3016 = vld [vmem:[#allocation8 + $0x748] sm:$0xff]
        %v3017 = vld [vmem:[#allocation8 + $0x750] sm:$0xff]
        %v3018 = vld [vmem:[#allocation8 + $0x758] sm:$0xff]
        %v3019 = vld [vmem:[#allocation8 + $0x760] sm:$0xff]
        %v3020 = vld [vmem:[#allocation8 + $0x768] sm:$0xff]
        %v3021 = vld [vmem:[#allocation8 + $0x770] sm:$0xff]
        %v3022 = vld [vmem:[#allocation8 + $0x778] sm:$0xff]
        %v3023 = vld [vmem:[#allocation8 + $0x780] sm:$0xff]
        %v3024 = vld [vmem:[#allocation8 + $0x788] sm:$0xff]
        %v3025 = vld [vmem:[#allocation8 + $0x790] sm:$0xff]
        %v3026 = vld [vmem:[#allocation8 + $0x798] sm:$0xff]
        %v3027 = vld [vmem:[#allocation8 + $0x7a0] sm:$0xff]
        %v3028 = vld [vmem:[#allocation8 + $0x7a8] sm:$0xff]
        %v3029 = vld [vmem:[#allocation8 + $0x7b0] sm:$0xff]
        %v3030 = vld [vmem:[#allocation8 + $0x7b8] sm:$0xff]
        %v3031 = vld [vmem:[#allocation8 + $0x7c0] sm:$0xff]
        %v3032 = vld [vmem:[#allocation8 + $0x7c8] sm:$0xff]
        %v3033 = vld [vmem:[#allocation8 + $0x7d0] sm:$0xff]
        %v3034 = vld [vmem:[#allocation8 + $0x7d8] sm:$0xff]
        %v3035 = vld [vmem:[#allocation8 + $0x7e0] sm:$0xff]
        %v3036 = vld [vmem:[#allocation8 + $0x7e8] sm:$0xff]
        %v3037 = vld [vmem:[#allocation8 + $0x7f0] sm:$0xff]
        %v3038 = vld [vmem:[#allocation8 + $0x7f8] sm:$0xff]
        %v3039 = vld [vmem:[#allocation8 + $0x800] sm:$0xff]
        %v3040 = vld [vmem:[#allocation8 + $0x808] sm:$0xff]
        %v3041 = vld [vmem:[#allocation8 + $0x810] sm:$0xff]
        %v3042 = vld [vmem:[#allocation8 + $0x818] sm:$0xff]
        %v3043 = vld [vmem:[#allocation8 + $0x820] sm:$0xff]
        %v3044 = vld [vmem:[#allocation8 + $0x828] sm:$0xff]
        %v3045 = vld [vmem:[#allocation8 + $0x830] sm:$0xff]
        %v3046 = vld [vmem:[#allocation8 + $0x838] sm:$0xff]
        %v3047 = vld [vmem:[#allocation8 + $0x840] sm:$0xff]
        %v3048 = vld [vmem:[#allocation8 + $0x848] sm:$0xff]
        %v3049 = vld [vmem:[#allocation8 + $0x850] sm:$0xff]
        %v3050 = vld [vmem:[#allocation8 + $0x858] sm:$0xff]
        %v3051 = vld [vmem:[#allocation8 + $0x860] sm:$0xff]
        %v3052 = vld [vmem:[#allocation8 + $0x868] sm:$0xff]
        %v3053 = vld [vmem:[#allocation8 + $0x870] sm:$0xff]
        %v3054 = vld [vmem:[#allocation8 + $0x878] sm:$0xff]
        %v3055 = vld [vmem:[#allocation8 + $0x880] sm:$0xff]
        %v3056 = vld [vmem:[#allocation8 + $0x888] sm:$0xff]
        %v3057 = vld [vmem:[#allocation8 + $0x890] sm:$0xff]
        %v3058 = vld [vmem:[#allocation8 + $0x898] sm:$0xff]
        %v3059 = vld [vmem:[#allocation8 + $0x8a0] sm:$0xff]
        %v3060 = vld [vmem:[#allocation8 + $0x8a8] sm:$0xff]
        %v3061 = vld [vmem:[#allocation8 + $0x8b0] sm:$0xff]
        %v3062 = vld [vmem:[#allocation8 + $0x8b8] sm:$0xff]
        %v3063 = vld [vmem:[#allocation8 + $0x8c0] sm:$0xff]
        %v3064 = vld [vmem:[#allocation8 + $0x8c8] sm:$0xff]
        %v3065 = vld [vmem:[#allocation8 + $0x8d0] sm:$0xff]
        %v3066 = vld [vmem:[#allocation8 + $0x8d8] sm:$0xff]
        %v3067 = vld [vmem:[#allocation8 + $0x8e0] sm:$0xff]
        %v3068 = vld [vmem:[#allocation8 + $0x8e8] sm:$0xff]
        %v3069 = vld [vmem:[#allocation8 + $0x8f0] sm:$0xff]
        %v3070 = vld [vmem:[#allocation8 + $0x8f8] sm:$0xff]
        %v3071 = vld [vmem:[#allocation8 + $0x900] sm:$0xff]
        %v3072 = vld [vmem:[#allocation8 + $0x908] sm:$0xff]
        %v3073 = vld [vmem:[#allocation8 + $0x910] sm:$0xff]
        %v3074 = vld [vmem:[#allocation8 + $0x918] sm:$0xff]
        %v3075 = vld [vmem:[#allocation8 + $0x920] sm:$0xff]
        %v3076 = vld [vmem:[#allocation8 + $0x928] sm:$0xff]
        %v3077 = vld [vmem:[#allocation8 + $0x930] sm:$0xff]
        %v3078 = vld [vmem:[#allocation8 + $0x938] sm:$0xff]
        %v3079 = vld [vmem:[#allocation8 + $0x940] sm:$0xff]
        %v3080 = vld [vmem:[#allocation8 + $0x948] sm:$0xff]
        %v3081 = vld [vmem:[#allocation8 + $0x950] sm:$0xff]
        %v3082 = vld [vmem:[#allocation8 + $0x958] sm:$0xff]
        %v3083 = vld [vmem:[#allocation8 + $0x960] sm:$0xff]
        %v3084 = vld [vmem:[#allocation8 + $0x968] sm:$0xff]
        %v3085 = vld [vmem:[#allocation8 + $0x970] sm:$0xff]
        %v3086 = vld [vmem:[#allocation8 + $0x978] sm:$0xff]
        %v3087 = vld [vmem:[#allocation8 + $0x980] sm:$0xff]
        %v3088 = vld [vmem:[#allocation8 + $0x988] sm:$0xff]
        %v3089 = vld [vmem:[#allocation8 + $0x990] sm:$0xff]
        %v3090 = vld [vmem:[#allocation8 + $0x998] sm:$0xff]
        %v3091 = vld [vmem:[#allocation8 + $0x9a0] sm:$0xff]
        %v3092 = vld [vmem:[#allocation8 + $0x9a8] sm:$0xff]
        %v3093 = vld [vmem:[#allocation8 + $0x9b0] sm:$0xff]
        %v3094 = vld [vmem:[#allocation8 + $0x9b8] sm:$0xff]
        %v3095 = vld [vmem:[#allocation8 + $0x9c0] sm:$0xff]
        %v3096 = vld [vmem:[#allocation8 + $0x9c8] sm:$0xff]
        %v3097 = vld [vmem:[#allocation8 + $0x9d0] sm:$0xff]
        %v3098 = vld [vmem:[#allocation8 + $0x9d8] sm:$0xff]
        %v3099 = vld [vmem:[#allocation8 + $0x9e0] sm:$0xff]
        %v3100 = vld [vmem:[#allocation8 + $0x9e8] sm:$0xff]
        %v3101 = vld [vmem:[#allocation8 + $0x9f0] sm:$0xff]
        %v3102 = vld [vmem:[#allocation8 + $0x9f8] sm:$0xff]
        %v3103 = vld [vmem:[#allocation8 + $0xa00] sm:$0xff]
        %v3104 = vld [vmem:[#allocation8 + $0xa08] sm:$0xff]
        %v3105 = vld [vmem:[#allocation8 + $0xa10] sm:$0xff]
        %v3106 = vld [vmem:[#allocation8 + $0xa18] sm:$0xff]
        %v3107 = vld [vmem:[#allocation8 + $0xa20] sm:$0xff]
        %v3108 = vld [vmem:[#allocation8 + $0xa28] sm:$0xff]
        %v3109 = vld [vmem:[#allocation8 + $0xa30] sm:$0xff]
        %v3110 = vld [vmem:[#allocation8 + $0xa38] sm:$0xff]
        %v3111 = vld [vmem:[#allocation8 + $0xa40] sm:$0xff]
        %v3112 = vld [vmem:[#allocation8 + $0xa48] sm:$0xff]
        %v3113 = vld [vmem:[#allocation8 + $0xa50] sm:$0xff]
        %v3114 = vld [vmem:[#allocation8 + $0xa58] sm:$0xff]
        %v3115 = vld [vmem:[#allocation8 + $0xa60] sm:$0xff]
        %v3116 = vld [vmem:[#allocation8 + $0xa68] sm:$0xff]
        %v3117 = vld [vmem:[#allocation8 + $0xa70] sm:$0xff]
        %v3118 = vld [vmem:[#allocation8 + $0xa78] sm:$0xff]
        %v3119 = vld [vmem:[#allocation8 + $0xa80] sm:$0xff]
        %v3120 = vld [vmem:[#allocation8 + $0xa88] sm:$0xff]
        %v3121 = vld [vmem:[#allocation8 + $0xa90] sm:$0xff]
        %v3122 = vld [vmem:[#allocation8 + $0xa98] sm:$0xff]
        %v3123 = vld [vmem:[#allocation8 + $0xaa0] sm:$0xff]
        %v3124 = vld [vmem:[#allocation8 + $0xaa8] sm:$0xff]
        %v3125 = vld [vmem:[#allocation8 + $0xab0] sm:$0xff]
        %v3126 = vld [vmem:[#allocation8 + $0xab8] sm:$0xff]
        %v3127 = vld [vmem:[#allocation8 + $0xac0] sm:$0xff]
        %v3128 = vld [vmem:[#allocation8 + $0xac8] sm:$0xff]
        %v3129 = vld [vmem:[#allocation8 + $0xad0] sm:$0xff]
        %v3130 = vld [vmem:[#allocation8 + $0xad8] sm:$0xff]
        %v3131 = vld [vmem:[#allocation8 + $0xae0] sm:$0xff]
        %v3132 = vld [vmem:[#allocation8 + $0xae8] sm:$0xff]
        %v3133 = vld [vmem:[#allocation8 + $0xaf0] sm:$0xff]
        %v3134 = vld [vmem:[#allocation8 + $0xaf8] sm:$0xff]
        %v3135 = vld [vmem:[#allocation8 + $0xb00] sm:$0xff]
        %v3136 = vld [vmem:[#allocation8 + $0xb08] sm:$0xff]
        %v3137 = vld [vmem:[#allocation8 + $0xb10] sm:$0xff]
        %v3138 = vld [vmem:[#allocation8 + $0xb18] sm:$0xff]
        %v3139 = vld [vmem:[#allocation8 + $0xb20] sm:$0xff]
        %v3140 = vld [vmem:[#allocation8 + $0xb28] sm:$0xff]
        %v3141 = vld [vmem:[#allocation8 + $0xb30] sm:$0xff]
        %v3142 = vld [vmem:[#allocation8 + $0xb38] sm:$0xff]
        %v3143 = vld [vmem:[#allocation8 + $0xb40] sm:$0xff]
        %v3144 = vld [vmem:[#allocation8 + $0xb48] sm:$0xff]
        %v3145 = vld [vmem:[#allocation8 + $0xb50] sm:$0xff]
        %v3146 = vld [vmem:[#allocation8 + $0xb58] sm:$0xff]
        %v3147 = vld [vmem:[#allocation8 + $0xb60] sm:$0xff]
        %v3148 = vld [vmem:[#allocation8 + $0xb68] sm:$0xff]
        %v3149 = vld [vmem:[#allocation8 + $0xb70] sm:$0xff]
        %v3150 = vld [vmem:[#allocation8 + $0xb78] sm:$0xff]
        %v3151 = vld [vmem:[#allocation8 + $0xb80] sm:$0xff]
        %v3152 = vld [vmem:[#allocation8 + $0xb88] sm:$0xff]
        %v3153 = vld [vmem:[#allocation8 + $0xb90] sm:$0xff]
        %v3154 = vld [vmem:[#allocation8 + $0xb98] sm:$0xff]
        %v3155 = vld [vmem:[#allocation8 + $0xba0] sm:$0xff]
        %v3156 = vld [vmem:[#allocation8 + $0xba8] sm:$0xff]
        %v3157 = vld [vmem:[#allocation8 + $0xbb0] sm:$0xff]
        %v3158 = vld [vmem:[#allocation8 + $0xbb8] sm:$0xff]
        %v3159 = vld [vmem:[#allocation8 + $0xbc0] sm:$0xff]
        %v3160 = vld [vmem:[#allocation8 + $0xbc8] sm:$0xff]
        %v3161 = vld [vmem:[#allocation8 + $0xbd0] sm:$0xff]
        %v3162 = vld [vmem:[#allocation8 + $0xbd8] sm:$0xff]
        %v3163 = vld [vmem:[#allocation8 + $0xbe0] sm:$0xff]
        %v3164 = vld [vmem:[#allocation8 + $0xbe8] sm:$0xff]
        %v3165 = vld [vmem:[#allocation8 + $0xbf0] sm:$0xff]
        %v3166 = vld [vmem:[#allocation8 + $0xbf8] sm:$0xff]
        %v3167 = vld [vmem:[#allocation8 + $0xc00] sm:$0xff]
        %v3168 = vld [vmem:[#allocation8 + $0xc08] sm:$0xff]
        %v3169 = vld [vmem:[#allocation8 + $0xc10] sm:$0xff]
        %v3170 = vld [vmem:[#allocation8 + $0xc18] sm:$0xff]
        %v3171 = vld [vmem:[#allocation8 + $0xc20] sm:$0xff]
        %v3172 = vld [vmem:[#allocation8 + $0xc28] sm:$0xff]
        %v3173 = vld [vmem:[#allocation8 + $0xc30] sm:$0xff]
        %v3174 = vld [vmem:[#allocation8 + $0xc38] sm:$0xff]
        %v3175 = vld [vmem:[#allocation8 + $0xc40] sm:$0xff]
        %v3176 = vld [vmem:[#allocation8 + $0xc48] sm:$0xff]
        %v3177 = vld [vmem:[#allocation8 + $0xc50] sm:$0xff]
        %v3178 = vld [vmem:[#allocation8 + $0xc58] sm:$0xff]
        %v3179 = vld [vmem:[#allocation8 + $0xc60] sm:$0xff]
        %v3180 = vld [vmem:[#allocation8 + $0xc68] sm:$0xff]
        %v3181 = vld [vmem:[#allocation8 + $0xc70] sm:$0xff]
        %v3182 = vld [vmem:[#allocation8 + $0xc78] sm:$0xff]
        %v3183 = vld [vmem:[#allocation8 + $0xc80] sm:$0xff]
        %v3184 = vld [vmem:[#allocation8 + $0xc88] sm:$0xff]
        %v3185 = vld [vmem:[#allocation8 + $0xc90] sm:$0xff]
        %v3186 = vld [vmem:[#allocation8 + $0xc98] sm:$0xff]
        %v3187 = vld [vmem:[#allocation8 + $0xca0] sm:$0xff]
        %v3188 = vld [vmem:[#allocation8 + $0xca8] sm:$0xff]
        %v3189 = vld [vmem:[#allocation8 + $0xcb0] sm:$0xff]
        %v3190 = vld [vmem:[#allocation8 + $0xcb8] sm:$0xff]
        %v3191 = vld [vmem:[#allocation8 + $0xcc0] sm:$0xff]
        %v3192 = vld [vmem:[#allocation8 + $0xcc8] sm:$0xff]
        %v3193 = vld [vmem:[#allocation8 + $0xcd0] sm:$0xff]
        %v3194 = vld [vmem:[#allocation8 + $0xcd8] sm:$0xff]
        %v3195 = vld [vmem:[#allocation8 + $0xce0] sm:$0xff]
        %v3196 = vld [vmem:[#allocation8 + $0xce8] sm:$0xff]
        %v3197 = vld [vmem:[#allocation8 + $0xcf0] sm:$0xff]
        %v3198 = vld [vmem:[#allocation8 + $0xcf8] sm:$0xff]
        %v3199 = vld [vmem:[#allocation8 + $0xd00] sm:$0xff]
        %v3200 = vld [vmem:[#allocation8 + $0xd08] sm:$0xff]
        %v3201 = vld [vmem:[#allocation8 + $0xd10] sm:$0xff]
        %v3202 = vld [vmem:[#allocation8 + $0xd18] sm:$0xff]
        %v3203 = vld [vmem:[#allocation8 + $0xd20] sm:$0xff]
        %v3204 = vld [vmem:[#allocation8 + $0xd28] sm:$0xff]
        %v3205 = vld [vmem:[#allocation8 + $0xd30] sm:$0xff]
        %v3206 = vld [vmem:[#allocation8 + $0xd38] sm:$0xff]
        %v3207 = vld [vmem:[#allocation8 + $0xd40] sm:$0xff]
        %v3208 = vld [vmem:[#allocation8 + $0xd48] sm:$0xff]
        %v3209 = vld [vmem:[#allocation8 + $0xd50] sm:$0xff]
        %v3210 = vld [vmem:[#allocation8 + $0xd58] sm:$0xff]
        %v3211 = vld [vmem:[#allocation8 + $0xd60] sm:$0xff]
        %v3212 = vld [vmem:[#allocation8 + $0xd68] sm:$0xff]
        %v3213 = vld [vmem:[#allocation8 + $0xd70] sm:$0xff]
        %v3214 = vld [vmem:[#allocation8 + $0xd78] sm:$0xff]
        %v3215 = vld [vmem:[#allocation8 + $0xd80] sm:$0xff]
        %v3216 = vld [vmem:[#allocation8 + $0xd88] sm:$0xff]
        %v3217 = vld [vmem:[#allocation8 + $0xd90] sm:$0xff]
        %v3218 = vld [vmem:[#allocation8 + $0xd98] sm:$0xff]
        %v3219 = vld [vmem:[#allocation8 + $0xda0] sm:$0xff]
        %v3220 = vld [vmem:[#allocation8 + $0xda8] sm:$0xff]
        %v3221 = vld [vmem:[#allocation8 + $0xdb0] sm:$0xff]
        %v3222 = vld [vmem:[#allocation8 + $0xdb8] sm:$0xff]
        %v3223 = vld [vmem:[#allocation8 + $0xdc0] sm:$0xff]
        %v3224 = vld [vmem:[#allocation8 + $0xdc8] sm:$0xff]
        %v3225 = vld [vmem:[#allocation8 + $0xdd0] sm:$0xff]
        %v3226 = vld [vmem:[#allocation8 + $0xdd8] sm:$0xff]
        %v3227 = vld [vmem:[#allocation8 + $0xde0] sm:$0xff]
        %v3228 = vld [vmem:[#allocation8 + $0xde8] sm:$0xff]
        %v3229 = vld [vmem:[#allocation8 + $0xdf0] sm:$0xff]
        %v3230 = vld [vmem:[#allocation8 + $0xdf8] sm:$0xff]
        %v3231 = vld [vmem:[#allocation8 + $0xe00] sm:$0xff]
        %v3232 = vld [vmem:[#allocation8 + $0xe08] sm:$0xff]
        %v3233 = vld [vmem:[#allocation8 + $0xe10] sm:$0xff]
        %v3234 = vld [vmem:[#allocation8 + $0xe18] sm:$0xff]
        %v3235 = vld [vmem:[#allocation8 + $0xe20] sm:$0xff]
        %v3236 = vld [vmem:[#allocation8 + $0xe28] sm:$0xff]
        %v3237 = vld [vmem:[#allocation8 + $0xe30] sm:$0xff]
        %v3238 = vld [vmem:[#allocation8 + $0xe38] sm:$0xff]
        %v3239 = vld [vmem:[#allocation8 + $0xe40] sm:$0xff]
        %v3240 = vld [vmem:[#allocation8 + $0xe48] sm:$0xff]
        %v3241 = vld [vmem:[#allocation8 + $0xe50] sm:$0xff]
        %v3242 = vld [vmem:[#allocation8 + $0xe58] sm:$0xff]
        %v3243 = vld [vmem:[#allocation8 + $0xe60] sm:$0xff]
        %v3244 = vld [vmem:[#allocation8 + $0xe68] sm:$0xff]
        %v3245 = vld [vmem:[#allocation8 + $0xe70] sm:$0xff]
        %v3246 = vld [vmem:[#allocation8 + $0xe78] sm:$0xff]
        %v3247 = vld [vmem:[#allocation8 + $0xe80] sm:$0xff]
        %v3248 = vld [vmem:[#allocation8 + $0xe88] sm:$0xff]
        %v3249 = vld [vmem:[#allocation8 + $0xe90] sm:$0xff]
        %v3250 = vld [vmem:[#allocation8 + $0xe98] sm:$0xff]
        %v3251 = vld [vmem:[#allocation8 + $0xea0] sm:$0xff]
        %v3252 = vld [vmem:[#allocation8 + $0xea8] sm:$0xff]
        %v3253 = vld [vmem:[#allocation8 + $0xeb0] sm:$0xff]
        %v3254 = vld [vmem:[#allocation8 + $0xeb8] sm:$0xff]
        %v3255 = vld [vmem:[#allocation8 + $0xec0] sm:$0xff]
        %v3256 = vld [vmem:[#allocation8 + $0xec8] sm:$0xff]
        %v3257 = vld [vmem:[#allocation8 + $0xed0] sm:$0xff]
        %v3258 = vld [vmem:[#allocation8 + $0xed8] sm:$0xff]
        %v3259 = vld [vmem:[#allocation8 + $0xee0] sm:$0xff]
        %v3260 = vld [vmem:[#allocation8 + $0xee8] sm:$0xff]
        %v3261 = vld [vmem:[#allocation8 + $0xef0] sm:$0xff]
        %v3262 = vld [vmem:[#allocation8 + $0xef8] sm:$0xff]
        %s3263 = scalar_lea.vmem [#allocation8], 3840
        %v3264 = vld [vmem:[%s3263] sm:$0xff]
        %v3265 = vld [vmem:[%s3263 + $0x8] sm:$0xff]
        %v3266 = vld [vmem:[%s3263 + $0x10] sm:$0xff]
        %v3267 = vld [vmem:[%s3263 + $0x18] sm:$0xff]
        %v3268 = vld [vmem:[%s3263 + $0x20] sm:$0xff]
        %v3269 = vld [vmem:[%s3263 + $0x28] sm:$0xff]
        %v3270 = vld [vmem:[%s3263 + $0x30] sm:$0xff]
        %v3271 = vld [vmem:[%s3263 + $0x38] sm:$0xff]
        %v3272 = vld [vmem:[%s3263 + $0x40] sm:$0xff]
        %v3273 = vld [vmem:[%s3263 + $0x48] sm:$0xff]
        %v3274 = vld [vmem:[%s3263 + $0x50] sm:$0xff]
        %v3275 = vld [vmem:[%s3263 + $0x58] sm:$0xff]
        %v3276 = vld [vmem:[%s3263 + $0x60] sm:$0xff]
        %v3277 = vld [vmem:[%s3263 + $0x68] sm:$0xff]
        %v3278 = vld [vmem:[%s3263 + $0x70] sm:$0xff]
        %v3279 = vld [vmem:[%s3263 + $0x78] sm:$0xff]
        %v3280 = vld [vmem:[%s3263 + $0x80] sm:$0xff]
        %v3281 = vld [vmem:[%s3263 + $0x88] sm:$0xff]
        %v3282 = vld [vmem:[%s3263 + $0x90] sm:$0xff]
        %v3283 = vld [vmem:[%s3263 + $0x98] sm:$0xff]
        %v3284 = vld [vmem:[%s3263 + $0xa0] sm:$0xff]
        %v3285 = vld [vmem:[%s3263 + $0xa8] sm:$0xff]
        %v3286 = vld [vmem:[%s3263 + $0xb0] sm:$0xff]
        %v3287 = vld [vmem:[%s3263 + $0xb8] sm:$0xff]
        %v3288 = vld [vmem:[%s3263 + $0xc0] sm:$0xff]
        %v3289 = vld [vmem:[%s3263 + $0xc8] sm:$0xff]
        %v3290 = vld [vmem:[%s3263 + $0xd0] sm:$0xff]
        %v3291 = vld [vmem:[%s3263 + $0xd8] sm:$0xff]
        %v3292 = vld [vmem:[%s3263 + $0xe0] sm:$0xff]
        %v3293 = vld [vmem:[%s3263 + $0xe8] sm:$0xff]
        %v3294 = vld [vmem:[%s3263 + $0xf0] sm:$0xff]
        %v3295 = vld [vmem:[%s3263 + $0xf8] sm:$0xff]
        %v3296 = vld [vmem:[%s3263 + $0x100] sm:$0xff]
        %v3297 = vld [vmem:[%s3263 + $0x108] sm:$0xff]
        %v3298 = vld [vmem:[%s3263 + $0x110] sm:$0xff]
        %v3299 = vld [vmem:[%s3263 + $0x118] sm:$0xff]
        %v3300 = vld [vmem:[%s3263 + $0x120] sm:$0xff]
        %v3301 = vld [vmem:[%s3263 + $0x128] sm:$0xff]
        %v3302 = vld [vmem:[%s3263 + $0x130] sm:$0xff]
        %v3303 = vld [vmem:[%s3263 + $0x138] sm:$0xff]
        %v3304 = vld [vmem:[%s3263 + $0x140] sm:$0xff]
        %v3305 = vld [vmem:[%s3263 + $0x148] sm:$0xff]
        %v3306 = vld [vmem:[%s3263 + $0x150] sm:$0xff]
        %v3307 = vld [vmem:[%s3263 + $0x158] sm:$0xff]
        %v3308 = vld [vmem:[%s3263 + $0x160] sm:$0xff]
        %v3309 = vld [vmem:[%s3263 + $0x168] sm:$0xff]
        %v3310 = vld [vmem:[%s3263 + $0x170] sm:$0xff]
        %v3311 = vld [vmem:[%s3263 + $0x178] sm:$0xff]
        %v3312 = vld [vmem:[%s3263 + $0x180] sm:$0xff]
        %v3313 = vld [vmem:[%s3263 + $0x188] sm:$0xff]
        %v3314 = vld [vmem:[%s3263 + $0x190] sm:$0xff]
        %v3315 = vld [vmem:[%s3263 + $0x198] sm:$0xff]
        %v3316 = vld [vmem:[%s3263 + $0x1a0] sm:$0xff]
        %v3317 = vld [vmem:[%s3263 + $0x1a8] sm:$0xff]
        %v3318 = vld [vmem:[%s3263 + $0x1b0] sm:$0xff]
        %v3319 = vld [vmem:[%s3263 + $0x1b8] sm:$0xff]
        %v3320 = vld [vmem:[%s3263 + $0x1c0] sm:$0xff]
        %v3321 = vld [vmem:[%s3263 + $0x1c8] sm:$0xff]
        %v3322 = vld [vmem:[%s3263 + $0x1d0] sm:$0xff]
        %v3323 = vld [vmem:[%s3263 + $0x1d8] sm:$0xff]
        %v3324 = vld [vmem:[%s3263 + $0x1e0] sm:$0xff]
        %v3325 = vld [vmem:[%s3263 + $0x1e8] sm:$0xff]
        %v3326 = vld [vmem:[%s3263 + $0x1f0] sm:$0xff]
        %v3327 = vld [vmem:[%s3263 + $0x1f8] sm:$0xff]
        %v3328 = vld [vmem:[%s3263 + $0x200] sm:$0xff]
        %v3329 = vld [vmem:[%s3263 + $0x208] sm:$0xff]
        %v3330 = vld [vmem:[%s3263 + $0x210] sm:$0xff]
        %v3331 = vld [vmem:[%s3263 + $0x218] sm:$0xff]
        %v3332 = vld [vmem:[%s3263 + $0x220] sm:$0xff]
        %v3333 = vld [vmem:[%s3263 + $0x228] sm:$0xff]
        %v3334 = vld [vmem:[%s3263 + $0x230] sm:$0xff]
        %v3335 = vld [vmem:[%s3263 + $0x238] sm:$0xff]
        %v3336 = vld [vmem:[%s3263 + $0x240] sm:$0xff]
        %v3337 = vld [vmem:[%s3263 + $0x248] sm:$0xff]
        %v3338 = vld [vmem:[%s3263 + $0x250] sm:$0xff]
        %v3339 = vld [vmem:[%s3263 + $0x258] sm:$0xff]
        %v3340 = vld [vmem:[%s3263 + $0x260] sm:$0xff]
        %v3341 = vld [vmem:[%s3263 + $0x268] sm:$0xff]
        %v3342 = vld [vmem:[%s3263 + $0x270] sm:$0xff]
        %v3343 = vld [vmem:[%s3263 + $0x278] sm:$0xff]
        %v3344 = vld [vmem:[%s3263 + $0x280] sm:$0xff]
        %v3345 = vld [vmem:[%s3263 + $0x288] sm:$0xff]
        %v3346 = vld [vmem:[%s3263 + $0x290] sm:$0xff]
        %v3347 = vld [vmem:[%s3263 + $0x298] sm:$0xff]
        %v3348 = vld [vmem:[%s3263 + $0x2a0] sm:$0xff]
        %v3349 = vld [vmem:[%s3263 + $0x2a8] sm:$0xff]
        %v3350 = vld [vmem:[%s3263 + $0x2b0] sm:$0xff]
        %v3351 = vld [vmem:[%s3263 + $0x2b8] sm:$0xff]
        %v3352 = vld [vmem:[%s3263 + $0x2c0] sm:$0xff]
        %v3353 = vld [vmem:[%s3263 + $0x2c8] sm:$0xff]
        %v3354 = vld [vmem:[%s3263 + $0x2d0] sm:$0xff]
        %v3355 = vld [vmem:[%s3263 + $0x2d8] sm:$0xff]
        %v3356 = vld [vmem:[%s3263 + $0x2e0] sm:$0xff]
        %v3357 = vld [vmem:[%s3263 + $0x2e8] sm:$0xff]
        %v3358 = vld [vmem:[%s3263 + $0x2f0] sm:$0xff]
        %v3359 = vld [vmem:[%s3263 + $0x2f8] sm:$0xff]
        %v3360 = vld [vmem:[%s3263 + $0x300] sm:$0xff]
        %v3361 = vld [vmem:[%s3263 + $0x308] sm:$0xff]
        %v3362 = vld [vmem:[%s3263 + $0x310] sm:$0xff]
        %v3363 = vld [vmem:[%s3263 + $0x318] sm:$0xff]
        %v3364 = vld [vmem:[%s3263 + $0x320] sm:$0xff]
        %v3365 = vld [vmem:[%s3263 + $0x328] sm:$0xff]
        %v3366 = vld [vmem:[%s3263 + $0x330] sm:$0xff]
        %v3367 = vld [vmem:[%s3263 + $0x338] sm:$0xff]
        %v3368 = vld [vmem:[%s3263 + $0x340] sm:$0xff]
        %v3369 = vld [vmem:[%s3263 + $0x348] sm:$0xff]
        %v3370 = vld [vmem:[%s3263 + $0x350] sm:$0xff]
        %v3371 = vld [vmem:[%s3263 + $0x358] sm:$0xff]
        %v3372 = vld [vmem:[%s3263 + $0x360] sm:$0xff]
        %v3373 = vld [vmem:[%s3263 + $0x368] sm:$0xff]
        %v3374 = vld [vmem:[%s3263 + $0x370] sm:$0xff]
        %v3375 = vld [vmem:[%s3263 + $0x378] sm:$0xff]
        %v3376 = vld [vmem:[%s3263 + $0x380] sm:$0xff]
        %v3377 = vld [vmem:[%s3263 + $0x388] sm:$0xff]
        %v3378 = vld [vmem:[%s3263 + $0x390] sm:$0xff]
        %v3379 = vld [vmem:[%s3263 + $0x398] sm:$0xff]
        %v3380 = vld [vmem:[%s3263 + $0x3a0] sm:$0xff]
        %v3381 = vld [vmem:[%s3263 + $0x3a8] sm:$0xff]
        %v3382 = vld [vmem:[%s3263 + $0x3b0] sm:$0xff]
        %v3383 = vld [vmem:[%s3263 + $0x3b8] sm:$0xff]
        %v3384 = vld [vmem:[%s3263 + $0x3c0] sm:$0xff]
        %v3385 = vld [vmem:[%s3263 + $0x3c8] sm:$0xff]
        %v3386 = vld [vmem:[%s3263 + $0x3d0] sm:$0xff]
        %v3387 = vld [vmem:[%s3263 + $0x3d8] sm:$0xff]
        %v3388 = vld [vmem:[%s3263 + $0x3e0] sm:$0xff]
        %v3389 = vld [vmem:[%s3263 + $0x3e8] sm:$0xff]
        %v3390 = vld [vmem:[%s3263 + $0x3f0] sm:$0xff]
        %v3391 = vld [vmem:[%s3263 + $0x3f8] sm:$0xff]
        %v3392 = vld [vmem:[%s3263 + $0x400] sm:$0xff]
        %v3393 = vld [vmem:[%s3263 + $0x408] sm:$0xff]
        %v3394 = vld [vmem:[%s3263 + $0x410] sm:$0xff]
        %v3395 = vld [vmem:[%s3263 + $0x418] sm:$0xff]
        %v3396 = vld [vmem:[%s3263 + $0x420] sm:$0xff]
        %v3397 = vld [vmem:[%s3263 + $0x428] sm:$0xff]
        %v3398 = vld [vmem:[%s3263 + $0x430] sm:$0xff]
        %v3399 = vld [vmem:[%s3263 + $0x438] sm:$0xff]
        %v3400 = vld [vmem:[%s3263 + $0x440] sm:$0xff]
        %v3401 = vld [vmem:[%s3263 + $0x448] sm:$0xff]
        %v3402 = vld [vmem:[%s3263 + $0x450] sm:$0xff]
        %v3403 = vld [vmem:[%s3263 + $0x458] sm:$0xff]
        %v3404 = vld [vmem:[%s3263 + $0x460] sm:$0xff]
        %v3405 = vld [vmem:[%s3263 + $0x468] sm:$0xff]
        %v3406 = vld [vmem:[%s3263 + $0x470] sm:$0xff]
        %v3407 = vld [vmem:[%s3263 + $0x478] sm:$0xff]
        %v3408 = vld [vmem:[%s3263 + $0x480] sm:$0xff]
        %v3409 = vld [vmem:[%s3263 + $0x488] sm:$0xff]
        %v3410 = vld [vmem:[%s3263 + $0x490] sm:$0xff]
        %v3411 = vld [vmem:[%s3263 + $0x498] sm:$0xff]
        %v3412 = vld [vmem:[%s3263 + $0x4a0] sm:$0xff]
        %v3413 = vld [vmem:[%s3263 + $0x4a8] sm:$0xff]
        %v3414 = vld [vmem:[%s3263 + $0x4b0] sm:$0xff]
        %v3415 = vld [vmem:[%s3263 + $0x4b8] sm:$0xff]
        %v3416 = vld [vmem:[%s3263 + $0x4c0] sm:$0xff]
        %v3417 = vld [vmem:[%s3263 + $0x4c8] sm:$0xff]
        %v3418 = vld [vmem:[%s3263 + $0x4d0] sm:$0xff]
        %v3419 = vld [vmem:[%s3263 + $0x4d8] sm:$0xff]
        %v3420 = vld [vmem:[%s3263 + $0x4e0] sm:$0xff]
        %v3421 = vld [vmem:[%s3263 + $0x4e8] sm:$0xff]
        %v3422 = vld [vmem:[%s3263 + $0x4f0] sm:$0xff]
        %v3423 = vld [vmem:[%s3263 + $0x4f8] sm:$0xff]
        %v3424 = vld [vmem:[%s3263 + $0x500] sm:$0xff]
        %v3425 = vld [vmem:[%s3263 + $0x508] sm:$0xff]
        %v3426 = vld [vmem:[%s3263 + $0x510] sm:$0xff]
        %v3427 = vld [vmem:[%s3263 + $0x518] sm:$0xff]
        %v3428 = vld [vmem:[%s3263 + $0x520] sm:$0xff]
        %v3429 = vld [vmem:[%s3263 + $0x528] sm:$0xff]
        %v3430 = vld [vmem:[%s3263 + $0x530] sm:$0xff]
        %v3431 = vld [vmem:[%s3263 + $0x538] sm:$0xff]
        %v3432 = vld [vmem:[%s3263 + $0x540] sm:$0xff]
        %v3433 = vld [vmem:[%s3263 + $0x548] sm:$0xff]
        %v3434 = vld [vmem:[%s3263 + $0x550] sm:$0xff]
        %v3435 = vld [vmem:[%s3263 + $0x558] sm:$0xff]
        %v3436 = vld [vmem:[%s3263 + $0x560] sm:$0xff]
        %v3437 = vld [vmem:[%s3263 + $0x568] sm:$0xff]
        %v3438 = vld [vmem:[%s3263 + $0x570] sm:$0xff]
        %v3439 = vld [vmem:[%s3263 + $0x578] sm:$0xff]
        %v3440 = vld [vmem:[%s3263 + $0x580] sm:$0xff]
        %v3441 = vld [vmem:[%s3263 + $0x588] sm:$0xff]
        %v3442 = vld [vmem:[%s3263 + $0x590] sm:$0xff]
        %v3443 = vld [vmem:[%s3263 + $0x598] sm:$0xff]
        %v3444 = vld [vmem:[%s3263 + $0x5a0] sm:$0xff]
        %v3445 = vld [vmem:[%s3263 + $0x5a8] sm:$0xff]
        %v3446 = vld [vmem:[%s3263 + $0x5b0] sm:$0xff]
        %v3447 = vld [vmem:[%s3263 + $0x5b8] sm:$0xff]
        %v3448 = vld [vmem:[%s3263 + $0x5c0] sm:$0xff]
        %v3449 = vld [vmem:[%s3263 + $0x5c8] sm:$0xff]
        %v3450 = vld [vmem:[%s3263 + $0x5d0] sm:$0xff]
        %v3451 = vld [vmem:[%s3263 + $0x5d8] sm:$0xff]
        %v3452 = vld [vmem:[%s3263 + $0x5e0] sm:$0xff]
        %v3453 = vld [vmem:[%s3263 + $0x5e8] sm:$0xff]
        %v3454 = vld [vmem:[%s3263 + $0x5f0] sm:$0xff]
        %v3455 = vld [vmem:[%s3263 + $0x5f8] sm:$0xff]
        %v3456 = vld [vmem:[%s3263 + $0x600] sm:$0xff]
        %v3457 = vld [vmem:[%s3263 + $0x608] sm:$0xff]
        %v3458 = vld [vmem:[%s3263 + $0x610] sm:$0xff]
        %v3459 = vld [vmem:[%s3263 + $0x618] sm:$0xff]
        %v3460 = vld [vmem:[%s3263 + $0x620] sm:$0xff]
        %v3461 = vld [vmem:[%s3263 + $0x628] sm:$0xff]
        %v3462 = vld [vmem:[%s3263 + $0x630] sm:$0xff]
        %v3463 = vld [vmem:[%s3263 + $0x638] sm:$0xff]
        %v3464 = vld [vmem:[%s3263 + $0x640] sm:$0xff]
        %v3465 = vld [vmem:[%s3263 + $0x648] sm:$0xff]
        %v3466 = vld [vmem:[%s3263 + $0x650] sm:$0xff]
        %v3467 = vld [vmem:[%s3263 + $0x658] sm:$0xff]
        %v3468 = vld [vmem:[%s3263 + $0x660] sm:$0xff]
        %v3469 = vld [vmem:[%s3263 + $0x668] sm:$0xff]
        %v3470 = vld [vmem:[%s3263 + $0x670] sm:$0xff]
        %v3471 = vld [vmem:[%s3263 + $0x678] sm:$0xff]
        %v3472 = vld [vmem:[%s3263 + $0x680] sm:$0xff]
        %v3473 = vld [vmem:[%s3263 + $0x688] sm:$0xff]
        %v3474 = vld [vmem:[%s3263 + $0x690] sm:$0xff]
        %v3475 = vld [vmem:[%s3263 + $0x698] sm:$0xff]
        %v3476 = vld [vmem:[%s3263 + $0x6a0] sm:$0xff]
        %v3477 = vld [vmem:[%s3263 + $0x6a8] sm:$0xff]
        %v3478 = vld [vmem:[%s3263 + $0x6b0] sm:$0xff]
        %v3479 = vld [vmem:[%s3263 + $0x6b8] sm:$0xff]
        %v3480 = vld [vmem:[%s3263 + $0x6c0] sm:$0xff]
        %v3481 = vld [vmem:[%s3263 + $0x6c8] sm:$0xff]
        %v3482 = vld [vmem:[%s3263 + $0x6d0] sm:$0xff]
        %v3483 = vld [vmem:[%s3263 + $0x6d8] sm:$0xff]
        %v3484 = vld [vmem:[%s3263 + $0x6e0] sm:$0xff]
        %v3485 = vld [vmem:[%s3263 + $0x6e8] sm:$0xff]
        %v3486 = vld [vmem:[%s3263 + $0x6f0] sm:$0xff]
        %v3487 = vld [vmem:[%s3263 + $0x6f8] sm:$0xff]
        %v3488 = vld [vmem:[%s3263 + $0x700] sm:$0xff]
        %v3489 = vld [vmem:[%s3263 + $0x708] sm:$0xff]
        %v3490 = vld [vmem:[%s3263 + $0x710] sm:$0xff]
        %v3491 = vld [vmem:[%s3263 + $0x718] sm:$0xff]
        %v3492 = vld [vmem:[%s3263 + $0x720] sm:$0xff]
        %v3493 = vld [vmem:[%s3263 + $0x728] sm:$0xff]
        %v3494 = vld [vmem:[%s3263 + $0x730] sm:$0xff]
        %v3495 = vld [vmem:[%s3263 + $0x738] sm:$0xff]
        %v3496 = vld [vmem:[%s3263 + $0x740] sm:$0xff]
        %v3497 = vld [vmem:[%s3263 + $0x748] sm:$0xff]
        %v3498 = vld [vmem:[%s3263 + $0x750] sm:$0xff]
        %v3499 = vld [vmem:[%s3263 + $0x758] sm:$0xff]
        %v3500 = vld [vmem:[%s3263 + $0x760] sm:$0xff]
        %v3501 = vld [vmem:[%s3263 + $0x768] sm:$0xff]
        %v3502 = vld [vmem:[%s3263 + $0x770] sm:$0xff]
        %v3503 = vld [vmem:[%s3263 + $0x778] sm:$0xff]
        %v3504 = vld [vmem:[%s3263 + $0x780] sm:$0xff]
        %v3505 = vld [vmem:[%s3263 + $0x788] sm:$0xff]
        %v3506 = vld [vmem:[%s3263 + $0x790] sm:$0xff]
        %v3507 = vld [vmem:[%s3263 + $0x798] sm:$0xff]
        %v3508 = vld [vmem:[%s3263 + $0x7a0] sm:$0xff]
        %v3509 = vld [vmem:[%s3263 + $0x7a8] sm:$0xff]
        %v3510 = vld [vmem:[%s3263 + $0x7b0] sm:$0xff]
        %v3511 = vld [vmem:[%s3263 + $0x7b8] sm:$0xff]
        %v3512 = vld [vmem:[%s3263 + $0x7c0] sm:$0xff]
        %v3513 = vld [vmem:[%s3263 + $0x7c8] sm:$0xff]
        %v3514 = vld [vmem:[%s3263 + $0x7d0] sm:$0xff]
        %v3515 = vld [vmem:[%s3263 + $0x7d8] sm:$0xff]
        %v3516 = vld [vmem:[%s3263 + $0x7e0] sm:$0xff]
        %v3517 = vld [vmem:[%s3263 + $0x7e8] sm:$0xff]
        %v3518 = vld [vmem:[%s3263 + $0x7f0] sm:$0xff]
        %v3519 = vld [vmem:[%s3263 + $0x7f8] sm:$0xff]
        %v3520 = vld [vmem:[%s3263 + $0x800] sm:$0xff]
        %v3521 = vld [vmem:[%s3263 + $0x808] sm:$0xff]
        %v3522 = vld [vmem:[%s3263 + $0x810] sm:$0xff]
        %v3523 = vld [vmem:[%s3263 + $0x818] sm:$0xff]
        %v3524 = vld [vmem:[%s3263 + $0x820] sm:$0xff]
        %v3525 = vld [vmem:[%s3263 + $0x828] sm:$0xff]
        %v3526 = vld [vmem:[%s3263 + $0x830] sm:$0xff]
        %v3527 = vld [vmem:[%s3263 + $0x838] sm:$0xff]
        %v3528 = vld [vmem:[%s3263 + $0x840] sm:$0xff]
        %v3529 = vld [vmem:[%s3263 + $0x848] sm:$0xff]
        %v3530 = vld [vmem:[%s3263 + $0x850] sm:$0xff]
        %v3531 = vld [vmem:[%s3263 + $0x858] sm:$0xff]
        %v3532 = vld [vmem:[%s3263 + $0x860] sm:$0xff]
        %v3533 = vld [vmem:[%s3263 + $0x868] sm:$0xff]
        %v3534 = vld [vmem:[%s3263 + $0x870] sm:$0xff]
        %v3535 = vld [vmem:[%s3263 + $0x878] sm:$0xff]
        %v3536 = vld [vmem:[%s3263 + $0x880] sm:$0xff]
        %v3537 = vld [vmem:[%s3263 + $0x888] sm:$0xff]
        %v3538 = vld [vmem:[%s3263 + $0x890] sm:$0xff]
        %v3539 = vld [vmem:[%s3263 + $0x898] sm:$0xff]
        %v3540 = vld [vmem:[%s3263 + $0x8a0] sm:$0xff]
        %v3541 = vld [vmem:[%s3263 + $0x8a8] sm:$0xff]
        %v3542 = vld [vmem:[%s3263 + $0x8b0] sm:$0xff]
        %v3543 = vld [vmem:[%s3263 + $0x8b8] sm:$0xff]
        %v3544 = vld [vmem:[%s3263 + $0x8c0] sm:$0xff]
        %v3545 = vld [vmem:[%s3263 + $0x8c8] sm:$0xff]
        %v3546 = vld [vmem:[%s3263 + $0x8d0] sm:$0xff]
        %v3547 = vld [vmem:[%s3263 + $0x8d8] sm:$0xff]
        %v3548 = vld [vmem:[%s3263 + $0x8e0] sm:$0xff]
        %v3549 = vld [vmem:[%s3263 + $0x8e8] sm:$0xff]
        %v3550 = vld [vmem:[%s3263 + $0x8f0] sm:$0xff]
        %v3551 = vld [vmem:[%s3263 + $0x8f8] sm:$0xff]
        %v3552 = vld [vmem:[%s3263 + $0x900] sm:$0xff]
        %v3553 = vld [vmem:[%s3263 + $0x908] sm:$0xff]
        %v3554 = vld [vmem:[%s3263 + $0x910] sm:$0xff]
        %v3555 = vld [vmem:[%s3263 + $0x918] sm:$0xff]
        %v3556 = vld [vmem:[%s3263 + $0x920] sm:$0xff]
        %v3557 = vld [vmem:[%s3263 + $0x928] sm:$0xff]
        %v3558 = vld [vmem:[%s3263 + $0x930] sm:$0xff]
        %v3559 = vld [vmem:[%s3263 + $0x938] sm:$0xff]
        %v3560 = vld [vmem:[%s3263 + $0x940] sm:$0xff]
        %v3561 = vld [vmem:[%s3263 + $0x948] sm:$0xff]
        %v3562 = vld [vmem:[%s3263 + $0x950] sm:$0xff]
        %v3563 = vld [vmem:[%s3263 + $0x958] sm:$0xff]
        %v3564 = vld [vmem:[%s3263 + $0x960] sm:$0xff]
        %v3565 = vld [vmem:[%s3263 + $0x968] sm:$0xff]
        %v3566 = vld [vmem:[%s3263 + $0x970] sm:$0xff]
        %v3567 = vld [vmem:[%s3263 + $0x978] sm:$0xff]
        %v3568 = vld [vmem:[%s3263 + $0x980] sm:$0xff]
        %v3569 = vld [vmem:[%s3263 + $0x988] sm:$0xff]
        %v3570 = vld [vmem:[%s3263 + $0x990] sm:$0xff]
        %v3571 = vld [vmem:[%s3263 + $0x998] sm:$0xff]
        %v3572 = vld [vmem:[%s3263 + $0x9a0] sm:$0xff]
        %v3573 = vld [vmem:[%s3263 + $0x9a8] sm:$0xff]
        %v3574 = vld [vmem:[%s3263 + $0x9b0] sm:$0xff]
        %v3575 = vld [vmem:[%s3263 + $0x9b8] sm:$0xff]
        %v3576 = vld [vmem:[%s3263 + $0x9c0] sm:$0xff]
        %v3577 = vld [vmem:[%s3263 + $0x9c8] sm:$0xff]
        %v3578 = vld [vmem:[%s3263 + $0x9d0] sm:$0xff]
        %v3579 = vld [vmem:[%s3263 + $0x9d8] sm:$0xff]
        %v3580 = vld [vmem:[%s3263 + $0x9e0] sm:$0xff]
        %v3581 = vld [vmem:[%s3263 + $0x9e8] sm:$0xff]
        %v3582 = vld [vmem:[%s3263 + $0x9f0] sm:$0xff]
        %v3583 = vld [vmem:[%s3263 + $0x9f8] sm:$0xff]
        %v3584 = vld [vmem:[%s3263 + $0xa00] sm:$0xff]
        %v3585 = vld [vmem:[%s3263 + $0xa08] sm:$0xff]
        %v3586 = vld [vmem:[%s3263 + $0xa10] sm:$0xff]
        %v3587 = vld [vmem:[%s3263 + $0xa18] sm:$0xff]
        %v3588 = vld [vmem:[%s3263 + $0xa20] sm:$0xff]
        %v3589 = vld [vmem:[%s3263 + $0xa28] sm:$0xff]
        %v3590 = vld [vmem:[%s3263 + $0xa30] sm:$0xff]
        %v3591 = vld [vmem:[%s3263 + $0xa38] sm:$0xff]
        %v3592 = vld [vmem:[%s3263 + $0xa40] sm:$0xff]
        %v3593 = vld [vmem:[%s3263 + $0xa48] sm:$0xff]
        %v3594 = vld [vmem:[%s3263 + $0xa50] sm:$0xff]
        %v3595 = vld [vmem:[%s3263 + $0xa58] sm:$0xff]
        %v3596 = vld [vmem:[%s3263 + $0xa60] sm:$0xff]
        %v3597 = vld [vmem:[%s3263 + $0xa68] sm:$0xff]
        %v3598 = vld [vmem:[%s3263 + $0xa70] sm:$0xff]
        %v3599 = vld [vmem:[%s3263 + $0xa78] sm:$0xff]
        %v3600 = vld [vmem:[%s3263 + $0xa80] sm:$0xff]
        %v3601 = vld [vmem:[%s3263 + $0xa88] sm:$0xff]
        %v3602 = vld [vmem:[%s3263 + $0xa90] sm:$0xff]
        %v3603 = vld [vmem:[%s3263 + $0xa98] sm:$0xff]
        %v3604 = vld [vmem:[%s3263 + $0xaa0] sm:$0xff]
        %v3605 = vld [vmem:[%s3263 + $0xaa8] sm:$0xff]
        %v3606 = vld [vmem:[%s3263 + $0xab0] sm:$0xff]
        %v3607 = vld [vmem:[%s3263 + $0xab8] sm:$0xff]
        %v3608 = vld [vmem:[%s3263 + $0xac0] sm:$0xff]
        %v3609 = vld [vmem:[%s3263 + $0xac8] sm:$0xff]
        %v3610 = vld [vmem:[%s3263 + $0xad0] sm:$0xff]
        %v3611 = vld [vmem:[%s3263 + $0xad8] sm:$0xff]
        %v3612 = vld [vmem:[%s3263 + $0xae0] sm:$0xff]
        %v3613 = vld [vmem:[%s3263 + $0xae8] sm:$0xff]
        %v3614 = vld [vmem:[%s3263 + $0xaf0] sm:$0xff]
        %v3615 = vld [vmem:[%s3263 + $0xaf8] sm:$0xff]
        %v3616 = vld [vmem:[%s3263 + $0xb00] sm:$0xff]
        %v3617 = vld [vmem:[%s3263 + $0xb08] sm:$0xff]
        %v3618 = vld [vmem:[%s3263 + $0xb10] sm:$0xff]
        %v3619 = vld [vmem:[%s3263 + $0xb18] sm:$0xff]
        %v3620 = vld [vmem:[%s3263 + $0xb20] sm:$0xff]
        %v3621 = vld [vmem:[%s3263 + $0xb28] sm:$0xff]
        %v3622 = vld [vmem:[%s3263 + $0xb30] sm:$0xff]
        %v3623 = vld [vmem:[%s3263 + $0xb38] sm:$0xff]
        %v3624 = vld [vmem:[%s3263 + $0xb40] sm:$0xff]
        %v3625 = vld [vmem:[%s3263 + $0xb48] sm:$0xff]
        %v3626 = vld [vmem:[%s3263 + $0xb50] sm:$0xff]
        %v3627 = vld [vmem:[%s3263 + $0xb58] sm:$0xff]
        %v3628 = vld [vmem:[%s3263 + $0xb60] sm:$0xff]
        %v3629 = vld [vmem:[%s3263 + $0xb68] sm:$0xff]
        %v3630 = vld [vmem:[%s3263 + $0xb70] sm:$0xff]
        %v3631 = vld [vmem:[%s3263 + $0xb78] sm:$0xff]
        %v3632 = vld [vmem:[%s3263 + $0xb80] sm:$0xff]
        %v3633 = vld [vmem:[%s3263 + $0xb88] sm:$0xff]
        %v3634 = vld [vmem:[%s3263 + $0xb90] sm:$0xff]
        %v3635 = vld [vmem:[%s3263 + $0xb98] sm:$0xff]
        %v3636 = vld [vmem:[%s3263 + $0xba0] sm:$0xff]
        %v3637 = vld [vmem:[%s3263 + $0xba8] sm:$0xff]
        %v3638 = vld [vmem:[%s3263 + $0xbb0] sm:$0xff]
        %v3639 = vld [vmem:[%s3263 + $0xbb8] sm:$0xff]
        %v3640 = vld [vmem:[%s3263 + $0xbc0] sm:$0xff]
        %v3641 = vld [vmem:[%s3263 + $0xbc8] sm:$0xff]
        %v3642 = vld [vmem:[%s3263 + $0xbd0] sm:$0xff]
        %v3643 = vld [vmem:[%s3263 + $0xbd8] sm:$0xff]
        %v3644 = vld [vmem:[%s3263 + $0xbe0] sm:$0xff]
        %v3645 = vld [vmem:[%s3263 + $0xbe8] sm:$0xff]
        %v3646 = vld [vmem:[%s3263 + $0xbf0] sm:$0xff]
        %v3647 = vld [vmem:[%s3263 + $0xbf8] sm:$0xff]
        %v3648 = vld [vmem:[%s3263 + $0xc00] sm:$0xff]
        %v3649 = vld [vmem:[%s3263 + $0xc08] sm:$0xff]
        %v3650 = vld [vmem:[%s3263 + $0xc10] sm:$0xff]
        %v3651 = vld [vmem:[%s3263 + $0xc18] sm:$0xff]
        %v3652 = vld [vmem:[%s3263 + $0xc20] sm:$0xff]
        %v3653 = vld [vmem:[%s3263 + $0xc28] sm:$0xff]
        %v3654 = vld [vmem:[%s3263 + $0xc30] sm:$0xff]
        %v3655 = vld [vmem:[%s3263 + $0xc38] sm:$0xff]
        %v3656 = vld [vmem:[%s3263 + $0xc40] sm:$0xff]
        %v3657 = vld [vmem:[%s3263 + $0xc48] sm:$0xff]
        %v3658 = vld [vmem:[%s3263 + $0xc50] sm:$0xff]
        %v3659 = vld [vmem:[%s3263 + $0xc58] sm:$0xff]
        %v3660 = vld [vmem:[%s3263 + $0xc60] sm:$0xff]
        %v3661 = vld [vmem:[%s3263 + $0xc68] sm:$0xff]
        %v3662 = vld [vmem:[%s3263 + $0xc70] sm:$0xff]
        %v3663 = vld [vmem:[%s3263 + $0xc78] sm:$0xff]
        %v3664 = vld [vmem:[%s3263 + $0xc80] sm:$0xff]
        %v3665 = vld [vmem:[%s3263 + $0xc88] sm:$0xff]
        %v3666 = vld [vmem:[%s3263 + $0xc90] sm:$0xff]
        %v3667 = vld [vmem:[%s3263 + $0xc98] sm:$0xff]
        %v3668 = vld [vmem:[%s3263 + $0xca0] sm:$0xff]
        %v3669 = vld [vmem:[%s3263 + $0xca8] sm:$0xff]
        %v3670 = vld [vmem:[%s3263 + $0xcb0] sm:$0xff]
        %v3671 = vld [vmem:[%s3263 + $0xcb8] sm:$0xff]
        %v3672 = vld [vmem:[%s3263 + $0xcc0] sm:$0xff]
        %v3673 = vld [vmem:[%s3263 + $0xcc8] sm:$0xff]
        %v3674 = vld [vmem:[%s3263 + $0xcd0] sm:$0xff]
        %v3675 = vld [vmem:[%s3263 + $0xcd8] sm:$0xff]
        %v3676 = vld [vmem:[%s3263 + $0xce0] sm:$0xff]
        %v3677 = vld [vmem:[%s3263 + $0xce8] sm:$0xff]
        %v3678 = vld [vmem:[%s3263 + $0xcf0] sm:$0xff]
        %v3679 = vld [vmem:[%s3263 + $0xcf8] sm:$0xff]
        %v3680 = vld [vmem:[%s3263 + $0xd00] sm:$0xff]
        %v3681 = vld [vmem:[%s3263 + $0xd08] sm:$0xff]
        %v3682 = vld [vmem:[%s3263 + $0xd10] sm:$0xff]
        %v3683 = vld [vmem:[%s3263 + $0xd18] sm:$0xff]
        %v3684 = vld [vmem:[%s3263 + $0xd20] sm:$0xff]
        %v3685 = vld [vmem:[%s3263 + $0xd28] sm:$0xff]
        %v3686 = vld [vmem:[%s3263 + $0xd30] sm:$0xff]
        %v3687 = vld [vmem:[%s3263 + $0xd38] sm:$0xff]
        %v3688 = vld [vmem:[%s3263 + $0xd40] sm:$0xff]
        %v3689 = vld [vmem:[%s3263 + $0xd48] sm:$0xff]
        %v3690 = vld [vmem:[%s3263 + $0xd50] sm:$0xff]
        %v3691 = vld [vmem:[%s3263 + $0xd58] sm:$0xff]
        %v3692 = vld [vmem:[%s3263 + $0xd60] sm:$0xff]
        %v3693 = vld [vmem:[%s3263 + $0xd68] sm:$0xff]
        %v3694 = vld [vmem:[%s3263 + $0xd70] sm:$0xff]
        %v3695 = vld [vmem:[%s3263 + $0xd78] sm:$0xff]
        %v3696 = vld [vmem:[%s3263 + $0xd80] sm:$0xff]
        %v3697 = vld [vmem:[%s3263 + $0xd88] sm:$0xff]
        %v3698 = vld [vmem:[%s3263 + $0xd90] sm:$0xff]
        %v3699 = vld [vmem:[%s3263 + $0xd98] sm:$0xff]
        %v3700 = vld [vmem:[%s3263 + $0xda0] sm:$0xff]
        %v3701 = vld [vmem:[%s3263 + $0xda8] sm:$0xff]
        %v3702 = vld [vmem:[%s3263 + $0xdb0] sm:$0xff]
        %v3703 = vld [vmem:[%s3263 + $0xdb8] sm:$0xff]
        %v3704 = vld [vmem:[%s3263 + $0xdc0] sm:$0xff]
        %v3705 = vld [vmem:[%s3263 + $0xdc8] sm:$0xff]
        %v3706 = vld [vmem:[%s3263 + $0xdd0] sm:$0xff]
        %v3707 = vld [vmem:[%s3263 + $0xdd8] sm:$0xff]
        %v3708 = vld [vmem:[%s3263 + $0xde0] sm:$0xff]
        %v3709 = vld [vmem:[%s3263 + $0xde8] sm:$0xff]
        %v3710 = vld [vmem:[%s3263 + $0xdf0] sm:$0xff]
        %v3711 = vld [vmem:[%s3263 + $0xdf8] sm:$0xff]
        %v3712 = vld [vmem:[%s3263 + $0xe00] sm:$0xff]
        %v3713 = vld [vmem:[%s3263 + $0xe08] sm:$0xff]
        %v3714 = vld [vmem:[%s3263 + $0xe10] sm:$0xff]
        %v3715 = vld [vmem:[%s3263 + $0xe18] sm:$0xff]
        %v3716 = vld [vmem:[%s3263 + $0xe20] sm:$0xff]
        %v3717 = vld [vmem:[%s3263 + $0xe28] sm:$0xff]
        %v3718 = vld [vmem:[%s3263 + $0xe30] sm:$0xff]
        %v3719 = vld [vmem:[%s3263 + $0xe38] sm:$0xff]
        %v3720 = vld [vmem:[%s3263 + $0xe40] sm:$0xff]
        %v3721 = vld [vmem:[%s3263 + $0xe48] sm:$0xff]
        %v3722 = vld [vmem:[%s3263 + $0xe50] sm:$0xff]
        %v3723 = vld [vmem:[%s3263 + $0xe58] sm:$0xff]
        %v3724 = vld [vmem:[%s3263 + $0xe60] sm:$0xff]
        %v3725 = vld [vmem:[%s3263 + $0xe68] sm:$0xff]
        %v3726 = vld [vmem:[%s3263 + $0xe70] sm:$0xff]
        %v3727 = vld [vmem:[%s3263 + $0xe78] sm:$0xff]
        %v3728 = vld [vmem:[%s3263 + $0xe80] sm:$0xff]
        %v3729 = vld [vmem:[%s3263 + $0xe88] sm:$0xff]
        %v3730 = vld [vmem:[%s3263 + $0xe90] sm:$0xff]
        %v3731 = vld [vmem:[%s3263 + $0xe98] sm:$0xff]
        %v3732 = vld [vmem:[%s3263 + $0xea0] sm:$0xff]
        %v3733 = vld [vmem:[%s3263 + $0xea8] sm:$0xff]
        %v3734 = vld [vmem:[%s3263 + $0xeb0] sm:$0xff]
        %v3735 = vld [vmem:[%s3263 + $0xeb8] sm:$0xff]
        %v3736 = vld [vmem:[%s3263 + $0xec0] sm:$0xff]
        %v3737 = vld [vmem:[%s3263 + $0xec8] sm:$0xff]
        %v3738 = vld [vmem:[%s3263 + $0xed0] sm:$0xff]
        %v3739 = vld [vmem:[%s3263 + $0xed8] sm:$0xff]
        %v3740 = vld [vmem:[%s3263 + $0xee0] sm:$0xff]
        %v3741 = vld [vmem:[%s3263 + $0xee8] sm:$0xff]
        %v3742 = vld [vmem:[%s3263 + $0xef0] sm:$0xff]
        %v3743 = vld [vmem:[%s3263 + $0xef8] sm:$0xff]
        %3744 = vmatprep.subr.mxu0 %v3340
        %3745 = vmatpush1.msra.mxu0 %v3339
        %3746 = vmatprep.subr.mxu0 %v3335
        %3747 = vmatpush1.msra.mxu0 %v3334
        %3748 = vmatprep.subr.mxu0 %v3330
        %3749 = vmatpush1.msra.mxu0 %v3329
        %3750 = vmatprep.subr.mxu0 %v3325
        %3751 = vmatpush1.msra.mxu0 %v3324
        %3752 = vmatprep.subr.mxu0 %v3320
        %3753 = vmatpush1.msra.mxu0 %v3319
        %3754 = vmatprep.subr.mxu0 %v3315
        %3755 = vmatpush1.msra.mxu0 %v3314
        %3756 = vmatprep.subr.mxu0 %v3310
        %3757 = vmatpush1.msra.mxu0 %v3309
        %3758 = vmatprep.subr.mxu0 %v3305
        %3759 = vmatpush1.msra.mxu0 %v3304
        %3760 = vmatprep.subr.mxu0 %v3300
        %3761 = vmatpush1.msra.mxu0 %v3299
        %3762 = vmatprep.subr.mxu0 %v3295
        %3763 = vmatpush1.msra.mxu0 %v3294
        %3764 = vmatprep.subr.mxu0 %v3290
        %3765 = vmatpush1.msra.mxu0 %v3289
        %3766 = vmatprep.subr.mxu0 %v3285
        %3767 = vmatpush1.msra.mxu0 %v3284
        %3768 = vmatprep.subr.mxu0 %v3280
        %3769 = vmatpush1.msra.mxu0 %v3279
        %3770 = vmatprep.subr.mxu0 %v3275
        %3771 = vmatpush1.msra.mxu0 %v3274
        %3772 = vmatprep.subr.mxu0 %v3270
        %3773 = vmatpush1.msra.mxu0 %v3269
        %3774 = vmatprep.subr.mxu0 %v3265
        %3775 = vmatpush1.msra.mxu0 %v3264
        %3776 = vmatprep.subr.mxu0 %v3420
        %3777 = vmatpush2.msra.mxu0 %v3419
        %3778 = vmatprep.subr.mxu0 %v3415
        %3779 = vmatpush2.msra.mxu0 %v3414
        %3780 = vmatprep.subr.mxu0 %v3410
        %3781 = vmatpush2.msra.mxu0 %v3409
        %3782 = vmatprep.subr.mxu0 %v3405
        %3783 = vmatpush2.msra.mxu0 %v3404
        %3784 = vmatprep.subr.mxu0 %v3400
        %3785 = vmatpush2.msra.mxu0 %v3399
        %3786 = vmatprep.subr.mxu0 %v3395
        %3787 = vmatpush2.msra.mxu0 %v3394
        %3788 = vmatprep.subr.mxu0 %v3390
        %3789 = vmatpush2.msra.mxu0 %v3389
        %3790 = vmatprep.subr.mxu0 %v3385
        %3791 = vmatpush2.msra.mxu0 %v3384
        %3792 = vmatprep.subr.mxu0 %v3380
        %3793 = vmatpush2.msra.mxu0 %v3379
        %3794 = vmatprep.subr.mxu0 %v3375
        %3795 = vmatpush2.msra.mxu0 %v3374
        %3796 = vmatprep.subr.mxu0 %v3370
        %3797 = vmatpush2.msra.mxu0 %v3369
        %3798 = vmatprep.subr.mxu0 %v3365
        %3799 = vmatpush2.msra.mxu0 %v3364
        %3800 = vmatprep.subr.mxu0 %v3360
        %3801 = vmatpush2.msra.mxu0 %v3359
        %3802 = vmatprep.subr.mxu0 %v3355
        %3803 = vmatpush2.msra.mxu0 %v3354
        %3804 = vmatprep.subr.mxu0 %v3350
        %3805 = vmatpush2.msra.mxu0 %v3349
        %3806 = vmatprep.subr.mxu0 %v3345
        %3807 = vmatpush2.msra.mxu0 %v3344
        %3808 = vmatprep.mubr.f32.mxu0 %v2718
        %3809 = vmatmul.mubr.f32.gmra.mxu0 %v2717
        %v3810 = vpop.f32.mrf.mxu0
        %v3811 = vadd.f32 0.0, %v3810
        %v3812 = vpop.f32.mrf.mxu0
        %v3813 = vadd.f32 0.0, %v3812
        %3814 = vmatprep.mubr.f32.mxu0 %v2724
        %3815 = vmatmul.mubr.f32.gmra.mxu0 %v2723
        %v3816 = vpop.f32.mrf.mxu0
        %v3817 = vadd.f32 0.0, %v3816
        %v3818 = vpop.f32.mrf.mxu0
        %v3819 = vadd.f32 0.0, %v3818
        %3820 = vmatprep.mubr.f32.mxu0 %v2730
        %3821 = vmatmul.mubr.f32.gmra.mxu0 %v2729
        %v3822 = vpop.f32.mrf.mxu0
        %v3823 = vadd.f32 0.0, %v3822
        %v3824 = vpop.f32.mrf.mxu0
        %v3825 = vadd.f32 0.0, %v3824
        %3826 = vmatprep.mubr.f32.mxu0 %v2736
        %3827 = vmatmul.mubr.f32.gmra.mxu0 %v2735
        %v3828 = vpop.f32.mrf.mxu0
        %v3829 = vadd.f32 0.0, %v3828
        %v3830 = vpop.f32.mrf.mxu0
        %v3831 = vadd.f32 0.0, %v3830
        %3832 = vmatprep.mubr.f32.mxu0 %v2742
        %3833 = vmatmul.mubr.f32.gmra.mxu0 %v2741
        %v3834 = vpop.f32.mrf.mxu0
        %v3835 = vadd.f32 0.0, %v3834
        %v3836 = vpop.f32.mrf.mxu0
        %v3837 = vadd.f32 0.0, %v3836
        %3838 = vmatprep.mubr.f32.mxu0 %v2748
        %3839 = vmatmul.mubr.f32.gmra.mxu0 %v2747
        %v3840 = vpop.f32.mrf.mxu0
        %v3841 = vadd.f32 0.0, %v3840
        %v3842 = vpop.f32.mrf.mxu0
        %v3843 = vadd.f32 0.0, %v3842
        %3844 = vmatprep.mubr.f32.mxu0 %v2754
        %3845 = vmatmul.mubr.f32.gmra.mxu0 %v2753
        %v3846 = vpop.f32.mrf.mxu0
        %v3847 = vadd.f32 0.0, %v3846
        %v3848 = vpop.f32.mrf.mxu0
        %v3849 = vadd.f32 0.0, %v3848
        %3850 = vmatprep.mubr.f32.mxu0 %v2760
        %3851 = vmatmul.mubr.f32.gmra.mxu0 %v2759
        %v3852 = vpop.f32.mrf.mxu0
        %v3853 = vadd.f32 0.0, %v3852
        %v3854 = vpop.f32.mrf.mxu0
        %v3855 = vadd.f32 0.0, %v3854
        %3856 = vmatprep.mubr.f32.mxu0 %v2766
        %3857 = vmatmul.mubr.f32.gmra.mxu0 %v2765
        %v3858 = vpop.f32.mrf.mxu0
        %v3859 = vadd.f32 0.0, %v3858
        %v3860 = vpop.f32.mrf.mxu0
        %v3861 = vadd.f32 0.0, %v3860
        %3862 = vmatprep.mubr.f32.mxu0 %v2772
        %3863 = vmatmul.mubr.f32.gmra.mxu0 %v2771
        %v3864 = vpop.f32.mrf.mxu0
        %v3865 = vadd.f32 0.0, %v3864
        %v3866 = vpop.f32.mrf.mxu0
        %v3867 = vadd.f32 0.0, %v3866
        %3868 = vdwg.mxu0
        %3869 = vmatprep.subr.mxu0 %v3500
        %3870 = vmatpush1.msra.mxu0 %v3499
        %3871 = vmatprep.subr.mxu0 %v3495
        %3872 = vmatpush1.msra.mxu0 %v3494
        %3873 = vmatprep.subr.mxu0 %v3490
        %3874 = vmatpush1.msra.mxu0 %v3489
        %3875 = vmatprep.subr.mxu0 %v3485
        %3876 = vmatpush1.msra.mxu0 %v3484
        %3877 = vmatprep.subr.mxu0 %v3480
        %3878 = vmatpush1.msra.mxu0 %v3479
        %3879 = vmatprep.subr.mxu0 %v3475
        %3880 = vmatpush1.msra.mxu0 %v3474
        %3881 = vmatprep.subr.mxu0 %v3470
        %3882 = vmatpush1.msra.mxu0 %v3469
        %3883 = vmatprep.subr.mxu0 %v3465
        %3884 = vmatpush1.msra.mxu0 %v3464
        %3885 = vmatprep.subr.mxu0 %v3460
        %3886 = vmatpush1.msra.mxu0 %v3459
        %3887 = vmatprep.subr.mxu0 %v3455
        %3888 = vmatpush1.msra.mxu0 %v3454
        %3889 = vmatprep.subr.mxu0 %v3450
        %3890 = vmatpush1.msra.mxu0 %v3449
        %3891 = vmatprep.subr.mxu0 %v3445
        %3892 = vmatpush1.msra.mxu0 %v3444
        %3893 = vmatprep.subr.mxu0 %v3440
        %3894 = vmatpush1.msra.mxu0 %v3439
        %3895 = vmatprep.subr.mxu0 %v3435
        %3896 = vmatpush1.msra.mxu0 %v3434
        %3897 = vmatprep.subr.mxu0 %v3430
        %3898 = vmatpush1.msra.mxu0 %v3429
        %3899 = vmatprep.subr.mxu0 %v3425
        %3900 = vmatpush1.msra.mxu0 %v3424
        %3901 = vmatprep.subr.mxu0 %v3580
        %3902 = vmatpush2.msra.mxu0 %v3579
        %3903 = vmatprep.subr.mxu0 %v3575
        %3904 = vmatpush2.msra.mxu0 %v3574
        %3905 = vmatprep.subr.mxu0 %v3570
        %3906 = vmatpush2.msra.mxu0 %v3569
        %3907 = vmatprep.subr.mxu0 %v3565
        %3908 = vmatpush2.msra.mxu0 %v3564
        %3909 = vmatprep.subr.mxu0 %v3560
        %3910 = vmatpush2.msra.mxu0 %v3559
        %3911 = vmatprep.subr.mxu0 %v3555
        %3912 = vmatpush2.msra.mxu0 %v3554
        %3913 = vmatprep.subr.mxu0 %v3550
        %3914 = vmatpush2.msra.mxu0 %v3549
        %3915 = vmatprep.subr.mxu0 %v3545
        %3916 = vmatpush2.msra.mxu0 %v3544
        %3917 = vmatprep.subr.mxu0 %v3540
        %3918 = vmatpush2.msra.mxu0 %v3539
        %3919 = vmatprep.subr.mxu0 %v3535
        %3920 = vmatpush2.msra.mxu0 %v3534
        %3921 = vmatprep.subr.mxu0 %v3530
        %3922 = vmatpush2.msra.mxu0 %v3529
        %3923 = vmatprep.subr.mxu0 %v3525
        %3924 = vmatpush2.msra.mxu0 %v3524
        %3925 = vmatprep.subr.mxu0 %v3520
        %3926 = vmatpush2.msra.mxu0 %v3519
        %3927 = vmatprep.subr.mxu0 %v3515
        %3928 = vmatpush2.msra.mxu0 %v3514
        %3929 = vmatprep.subr.mxu0 %v3510
        %3930 = vmatpush2.msra.mxu0 %v3509
        %3931 = vmatprep.subr.mxu0 %v3505
        %3932 = vmatpush2.msra.mxu0 %v3504
        %3933 = vmatprep.mubr.f32.mxu0 %v2720
        %3934 = vmatmul.mubr.f32.gmra.mxu0 %v2719
        %v3935 = vpop.f32.mrf.mxu0
        %v3936 = vadd.f32 %v3811, %v3935
        %v3937 = vpop.f32.mrf.mxu0
        %v3938 = vadd.f32 %v3813, %v3937
        %3939 = vmatprep.mubr.f32.mxu0 %v2726
        %3940 = vmatmul.mubr.f32.gmra.mxu0 %v2725
        %v3941 = vpop.f32.mrf.mxu0
        %v3942 = vadd.f32 %v3817, %v3941
        %v3943 = vpop.f32.mrf.mxu0
        %v3944 = vadd.f32 %v3819, %v3943
        %3945 = vmatprep.mubr.f32.mxu0 %v2732
        %3946 = vmatmul.mubr.f32.gmra.mxu0 %v2731
        %v3947 = vpop.f32.mrf.mxu0
        %v3948 = vadd.f32 %v3823, %v3947
        %v3949 = vpop.f32.mrf.mxu0
        %v3950 = vadd.f32 %v3825, %v3949
        %3951 = vmatprep.mubr.f32.mxu0 %v2738
        %3952 = vmatmul.mubr.f32.gmra.mxu0 %v2737
        %v3953 = vpop.f32.mrf.mxu0
        %v3954 = vadd.f32 %v3829, %v3953
        %v3955 = vpop.f32.mrf.mxu0
        %v3956 = vadd.f32 %v3831, %v3955
        %3957 = vmatprep.mubr.f32.mxu0 %v2744
        %3958 = vmatmul.mubr.f32.gmra.mxu0 %v2743
        %v3959 = vpop.f32.mrf.mxu0
        %v3960 = vadd.f32 %v3835, %v3959
        %v3961 = vpop.f32.mrf.mxu0
        %v3962 = vadd.f32 %v3837, %v3961
        %3963 = vmatprep.mubr.f32.mxu0 %v2750
        %3964 = vmatmul.mubr.f32.gmra.mxu0 %v2749
        %v3965 = vpop.f32.mrf.mxu0
        %v3966 = vadd.f32 %v3841, %v3965
        %v3967 = vpop.f32.mrf.mxu0
        %v3968 = vadd.f32 %v3843, %v3967
        %3969 = vmatprep.mubr.f32.mxu0 %v2756
        %3970 = vmatmul.mubr.f32.gmra.mxu0 %v2755
        %v3971 = vpop.f32.mrf.mxu0
        %v3972 = vadd.f32 %v3847, %v3971
        %v3973 = vpop.f32.mrf.mxu0
        %v3974 = vadd.f32 %v3849, %v3973
        %3975 = vmatprep.mubr.f32.mxu0 %v2762
        %3976 = vmatmul.mubr.f32.gmra.mxu0 %v2761
        %v3977 = vpop.f32.mrf.mxu0
        %v3978 = vadd.f32 %v3853, %v3977
        %v3979 = vpop.f32.mrf.mxu0
        %v3980 = vadd.f32 %v3855, %v3979
        %3981 = vmatprep.mubr.f32.mxu0 %v2768
        %3982 = vmatmul.mubr.f32.gmra.mxu0 %v2767
        %v3983 = vpop.f32.mrf.mxu0
        %v3984 = vadd.f32 %v3859, %v3983
        %v3985 = vpop.f32.mrf.mxu0
        %v3986 = vadd.f32 %v3861, %v3985
        %3987 = vmatprep.mubr.f32.mxu0 %v2774
        %3988 = vmatmul.mubr.f32.gmra.mxu0 %v2773
        %v3989 = vpop.f32.mrf.mxu0
        %v3990 = vadd.f32 %v3865, %v3989
        %v3991 = vpop.f32.mrf.mxu0
        %v3992 = vadd.f32 %v3867, %v3991
        %3993 = vdwg.mxu0
        %3994 = vmatprep.subr.mxu0 %v3660
        %3995 = vmatpush1.msra.mxu0 %v3659
        %3996 = vmatprep.subr.mxu0 %v3655
        %3997 = vmatpush1.msra.mxu0 %v3654
        %3998 = vmatprep.subr.mxu0 %v3650
        %3999 = vmatpush1.msra.mxu0 %v3649
        %4000 = vmatprep.subr.mxu0 %v3645
        %4001 = vmatpush1.msra.mxu0 %v3644
        %4002 = vmatprep.subr.mxu0 %v3640
        %4003 = vmatpush1.msra.mxu0 %v3639
        %4004 = vmatprep.subr.mxu0 %v3635
        %4005 = vmatpush1.msra.mxu0 %v3634
        %4006 = vmatprep.subr.mxu0 %v3630
        %4007 = vmatpush1.msra.mxu0 %v3629
        %4008 = vmatprep.subr.mxu0 %v3625
        %4009 = vmatpush1.msra.mxu0 %v3624
        %4010 = vmatprep.subr.mxu0 %v3620
        %4011 = vmatpush1.msra.mxu0 %v3619
        %4012 = vmatprep.subr.mxu0 %v3615
        %4013 = vmatpush1.msra.mxu0 %v3614
        %4014 = vmatprep.subr.mxu0 %v3610
        %4015 = vmatpush1.msra.mxu0 %v3609
        %4016 = vmatprep.subr.mxu0 %v3605
        %4017 = vmatpush1.msra.mxu0 %v3604
        %4018 = vmatprep.subr.mxu0 %v3600
        %4019 = vmatpush1.msra.mxu0 %v3599
        %4020 = vmatprep.subr.mxu0 %v3595
        %4021 = vmatpush1.msra.mxu0 %v3594
        %4022 = vmatprep.subr.mxu0 %v3590
        %4023 = vmatpush1.msra.mxu0 %v3589
        %4024 = vmatprep.subr.mxu0 %v3585
        %4025 = vmatpush1.msra.mxu0 %v3584
        %4026 = vmatprep.subr.mxu0 %v3740
        %4027 = vmatpush2.msra.mxu0 %v3739
        %4028 = vmatprep.subr.mxu0 %v3735
        %4029 = vmatpush2.msra.mxu0 %v3734
        %4030 = vmatprep.subr.mxu0 %v3730
        %4031 = vmatpush2.msra.mxu0 %v3729
        %4032 = vmatprep.subr.mxu0 %v3725
        %4033 = vmatpush2.msra.mxu0 %v3724
        %4034 = vmatprep.subr.mxu0 %v3720
        %4035 = vmatpush2.msra.mxu0 %v3719
        %4036 = vmatprep.subr.mxu0 %v3715
        %4037 = vmatpush2.msra.mxu0 %v3714
        %4038 = vmatprep.subr.mxu0 %v3710
        %4039 = vmatpush2.msra.mxu0 %v3709
        %4040 = vmatprep.subr.mxu0 %v3705
        %4041 = vmatpush2.msra.mxu0 %v3704
        %4042 = vmatprep.subr.mxu0 %v3700
        %4043 = vmatpush2.msra.mxu0 %v3699
        %4044 = vmatprep.subr.mxu0 %v3695
        %4045 = vmatpush2.msra.mxu0 %v3694
        %4046 = vmatprep.subr.mxu0 %v3690
        %4047 = vmatpush2.msra.mxu0 %v3689
        %4048 = vmatprep.subr.mxu0 %v3685
        %4049 = vmatpush2.msra.mxu0 %v3684
        %4050 = vmatprep.subr.mxu0 %v3680
        %4051 = vmatpush2.msra.mxu0 %v3679
        %4052 = vmatprep.subr.mxu0 %v3675
        %4053 = vmatpush2.msra.mxu0 %v3674
        %4054 = vmatprep.subr.mxu0 %v3670
        %4055 = vmatpush2.msra.mxu0 %v3669
        %4056 = vmatprep.subr.mxu0 %v3665
        %4057 = vmatpush2.msra.mxu0 %v3664
        %4058 = vmatprep.mubr.f32.mxu0 %v2722
        %4059 = vmatmul.mubr.f32.gmra.mxu0 %v2721
        %v4060 = vpop.f32.mrf.mxu0
        %v4061 = vadd.f32 %v3936, %v4060
        %v4062 = vpop.f32.mrf.mxu0
        %v4063 = vadd.f32 %v3938, %v4062
        %4064 = vmatprep.mubr.f32.mxu0 %v2728
        %4065 = vmatmul.mubr.f32.gmra.mxu0 %v2727
        %v4066 = vpop.f32.mrf.mxu0
        %v4067 = vadd.f32 %v3942, %v4066
        %v4068 = vpop.f32.mrf.mxu0
        %v4069 = vadd.f32 %v3944, %v4068
        %4070 = vmatprep.mubr.f32.mxu0 %v2734
        %4071 = vmatmul.mubr.f32.gmra.mxu0 %v2733
        %v4072 = vpop.f32.mrf.mxu0
        %v4073 = vadd.f32 %v3948, %v4072
        %v4074 = vpop.f32.mrf.mxu0
        %v4075 = vadd.f32 %v3950, %v4074
        %4076 = vmatprep.mubr.f32.mxu0 %v2740
        %4077 = vmatmul.mubr.f32.gmra.mxu0 %v2739
        %v4078 = vpop.f32.mrf.mxu0
        %v4079 = vadd.f32 %v3954, %v4078
        %v4080 = vpop.f32.mrf.mxu0
        %v4081 = vadd.f32 %v3956, %v4080
        %4082 = vmatprep.mubr.f32.mxu0 %v2746
        %4083 = vmatmul.mubr.f32.gmra.mxu0 %v2745
        %v4084 = vpop.f32.mrf.mxu0
        %v4085 = vadd.f32 %v3960, %v4084
        %v4086 = vpop.f32.mrf.mxu0
        %v4087 = vadd.f32 %v3962, %v4086
        %4088 = vmatprep.mubr.f32.mxu0 %v2752
        %4089 = vmatmul.mubr.f32.gmra.mxu0 %v2751
        %v4090 = vpop.f32.mrf.mxu0
        %v4091 = vadd.f32 %v3966, %v4090
        %v4092 = vpop.f32.mrf.mxu0
        %v4093 = vadd.f32 %v3968, %v4092
        %4094 = vmatprep.mubr.f32.mxu0 %v2758
        %4095 = vmatmul.mubr.f32.gmra.mxu0 %v2757
        %v4096 = vpop.f32.mrf.mxu0
        %v4097 = vadd.f32 %v3972, %v4096
        %v4098 = vpop.f32.mrf.mxu0
        %v4099 = vadd.f32 %v3974, %v4098
        %4100 = vmatprep.mubr.f32.mxu0 %v2764
        %4101 = vmatmul.mubr.f32.gmra.mxu0 %v2763
        %v4102 = vpop.f32.mrf.mxu0
        %v4103 = vadd.f32 %v3978, %v4102
        %v4104 = vpop.f32.mrf.mxu0
        %v4105 = vadd.f32 %v3980, %v4104
        %4106 = vmatprep.mubr.f32.mxu0 %v2770
        %4107 = vmatmul.mubr.f32.gmra.mxu0 %v2769
        %v4108 = vpop.f32.mrf.mxu0
        %v4109 = vadd.f32 %v3984, %v4108
        %v4110 = vpop.f32.mrf.mxu0
        %v4111 = vadd.f32 %v3986, %v4110
        %4112 = vmatprep.mubr.f32.mxu0 %v2776
        %4113 = vmatmul.mubr.f32.gmra.mxu0 %v2775
        %v4114 = vpop.f32.mrf.mxu0
        %v4115 = vadd.f32 %v3990, %v4114
        %v4116 = vpop.f32.mrf.mxu0
        %v4117 = vadd.f32 %v3992, %v4116
        %4118 = vdwg.mxu0
        %4119 = vmatprep.subr.mxu0 %v3342
        %4120 = vmatpush1.msra.mxu0 %v3341
        %4121 = vmatprep.subr.mxu0 %v3337
        %4122 = vmatpush1.msra.mxu0 %v3336
        %4123 = vmatprep.subr.mxu0 %v3332
        %4124 = vmatpush1.msra.mxu0 %v3331
        %4125 = vmatprep.subr.mxu0 %v3327
        %4126 = vmatpush1.msra.mxu0 %v3326
        %4127 = vmatprep.subr.mxu0 %v3322
        %4128 = vmatpush1.msra.mxu0 %v3321
        %4129 = vmatprep.subr.mxu0 %v3317
        %4130 = vmatpush1.msra.mxu0 %v3316
        %4131 = vmatprep.subr.mxu0 %v3312
        %4132 = vmatpush1.msra.mxu0 %v3311
        %4133 = vmatprep.subr.mxu0 %v3307
        %4134 = vmatpush1.msra.mxu0 %v3306
        %4135 = vmatprep.subr.mxu0 %v3302
        %4136 = vmatpush1.msra.mxu0 %v3301
        %4137 = vmatprep.subr.mxu0 %v3297
        %4138 = vmatpush1.msra.mxu0 %v3296
        %4139 = vmatprep.subr.mxu0 %v3292
        %4140 = vmatpush1.msra.mxu0 %v3291
        %4141 = vmatprep.subr.mxu0 %v3287
        %4142 = vmatpush1.msra.mxu0 %v3286
        %4143 = vmatprep.subr.mxu0 %v3282
        %4144 = vmatpush1.msra.mxu0 %v3281
        %4145 = vmatprep.subr.mxu0 %v3277
        %4146 = vmatpush1.msra.mxu0 %v3276
        %4147 = vmatprep.subr.mxu0 %v3272
        %4148 = vmatpush1.msra.mxu0 %v3271
        %4149 = vmatprep.subr.mxu0 %v3267
        %4150 = vmatpush1.msra.mxu0 %v3266
        %4151 = vmatprep.subr.mxu0 %v3422
        %4152 = vmatpush2.msra.mxu0 %v3421
        %4153 = vmatprep.subr.mxu0 %v3417
        %4154 = vmatpush2.msra.mxu0 %v3416
        %4155 = vmatprep.subr.mxu0 %v3412
        %4156 = vmatpush2.msra.mxu0 %v3411
        %4157 = vmatprep.subr.mxu0 %v3407
        %4158 = vmatpush2.msra.mxu0 %v3406
        %4159 = vmatprep.subr.mxu0 %v3402
        %4160 = vmatpush2.msra.mxu0 %v3401
        %4161 = vmatprep.subr.mxu0 %v3397
        %4162 = vmatpush2.msra.mxu0 %v3396
        %4163 = vmatprep.subr.mxu0 %v3392
        %4164 = vmatpush2.msra.mxu0 %v3391
        %4165 = vmatprep.subr.mxu0 %v3387
        %4166 = vmatpush2.msra.mxu0 %v3386
        %4167 = vmatprep.subr.mxu0 %v3382
        %4168 = vmatpush2.msra.mxu0 %v3381
        %4169 = vmatprep.subr.mxu0 %v3377
        %4170 = vmatpush2.msra.mxu0 %v3376
        %4171 = vmatprep.subr.mxu0 %v3372
        %4172 = vmatpush2.msra.mxu0 %v3371
        %4173 = vmatprep.subr.mxu0 %v3367
        %4174 = vmatpush2.msra.mxu0 %v3366
        %4175 = vmatprep.subr.mxu0 %v3362
        %4176 = vmatpush2.msra.mxu0 %v3361
        %4177 = vmatprep.subr.mxu0 %v3357
        %4178 = vmatpush2.msra.mxu0 %v3356
        %4179 = vmatprep.subr.mxu0 %v3352
        %4180 = vmatpush2.msra.mxu0 %v3351
        %4181 = vmatprep.subr.mxu0 %v3347
        %4182 = vmatpush2.msra.mxu0 %v3346
        %4183 = vmatprep.mubr.f32.mxu0 %v2718
        %4184 = vmatmul.mubr.f32.gmra.mxu0 %v2717
        %v4185 = vpop.f32.mrf.mxu0
        %v4186 = vadd.f32 0.0, %v4185
        %v4187 = vpop.f32.mrf.mxu0
        %v4188 = vadd.f32 0.0, %v4187
        %4189 = vmatprep.mubr.f32.mxu0 %v2724
        %4190 = vmatmul.mubr.f32.gmra.mxu0 %v2723
        %v4191 = vpop.f32.mrf.mxu0
        %v4192 = vadd.f32 0.0, %v4191
        %v4193 = vpop.f32.mrf.mxu0
        %v4194 = vadd.f32 0.0, %v4193
        %4195 = vmatprep.mubr.f32.mxu0 %v2730
        %4196 = vmatmul.mubr.f32.gmra.mxu0 %v2729
        %v4197 = vpop.f32.mrf.mxu0
        %v4198 = vadd.f32 0.0, %v4197
        %v4199 = vpop.f32.mrf.mxu0
        %v4200 = vadd.f32 0.0, %v4199
        %4201 = vmatprep.mubr.f32.mxu0 %v2736
        %4202 = vmatmul.mubr.f32.gmra.mxu0 %v2735
        %v4203 = vpop.f32.mrf.mxu0
        %v4204 = vadd.f32 0.0, %v4203
        %v4205 = vpop.f32.mrf.mxu0
        %v4206 = vadd.f32 0.0, %v4205
        %4207 = vmatprep.mubr.f32.mxu0 %v2742
        %4208 = vmatmul.mubr.f32.gmra.mxu0 %v2741
        %v4209 = vpop.f32.mrf.mxu0
        %v4210 = vadd.f32 0.0, %v4209
        %v4211 = vpop.f32.mrf.mxu0
        %v4212 = vadd.f32 0.0, %v4211
        %4213 = vmatprep.mubr.f32.mxu0 %v2748
        %4214 = vmatmul.mubr.f32.gmra.mxu0 %v2747
        %v4215 = vpop.f32.mrf.mxu0
        %v4216 = vadd.f32 0.0, %v4215
        %v4217 = vpop.f32.mrf.mxu0
        %v4218 = vadd.f32 0.0, %v4217
        %4219 = vmatprep.mubr.f32.mxu0 %v2754
        %4220 = vmatmul.mubr.f32.gmra.mxu0 %v2753
        %v4221 = vpop.f32.mrf.mxu0
        %v4222 = vadd.f32 0.0, %v4221
        %v4223 = vpop.f32.mrf.mxu0
        %v4224 = vadd.f32 0.0, %v4223
        %4225 = vmatprep.mubr.f32.mxu0 %v2760
        %4226 = vmatmul.mubr.f32.gmra.mxu0 %v2759
        %v4227 = vpop.f32.mrf.mxu0
        %v4228 = vadd.f32 0.0, %v4227
        %v4229 = vpop.f32.mrf.mxu0
        %v4230 = vadd.f32 0.0, %v4229
        %4231 = vmatprep.mubr.f32.mxu0 %v2766
        %4232 = vmatmul.mubr.f32.gmra.mxu0 %v2765
        %v4233 = vpop.f32.mrf.mxu0
        %v4234 = vadd.f32 0.0, %v4233
        %v4235 = vpop.f32.mrf.mxu0
        %v4236 = vadd.f32 0.0, %v4235
        %4237 = vmatprep.mubr.f32.mxu0 %v2772
        %4238 = vmatmul.mubr.f32.gmra.mxu0 %v2771
        %v4239 = vpop.f32.mrf.mxu0
        %v4240 = vadd.f32 0.0, %v4239
        %v4241 = vpop.f32.mrf.mxu0
        %v4242 = vadd.f32 0.0, %v4241
        %4243 = vdwg.mxu0
        %4244 = vmatprep.subr.mxu0 %v3502
        %4245 = vmatpush1.msra.mxu0 %v3501
        %4246 = vmatprep.subr.mxu0 %v3497
        %4247 = vmatpush1.msra.mxu0 %v3496
        %4248 = vmatprep.subr.mxu0 %v3492
        %4249 = vmatpush1.msra.mxu0 %v3491
        %4250 = vmatprep.subr.mxu0 %v3487
        %4251 = vmatpush1.msra.mxu0 %v3486
        %4252 = vmatprep.subr.mxu0 %v3482
        %4253 = vmatpush1.msra.mxu0 %v3481
        %4254 = vmatprep.subr.mxu0 %v3477
        %4255 = vmatpush1.msra.mxu0 %v3476
        %4256 = vmatprep.subr.mxu0 %v3472
        %4257 = vmatpush1.msra.mxu0 %v3471
        %4258 = vmatprep.subr.mxu0 %v3467
        %4259 = vmatpush1.msra.mxu0 %v3466
        %4260 = vmatprep.subr.mxu0 %v3462
        %4261 = vmatpush1.msra.mxu0 %v3461
        %4262 = vmatprep.subr.mxu0 %v3457
        %4263 = vmatpush1.msra.mxu0 %v3456
        %4264 = vmatprep.subr.mxu0 %v3452
        %4265 = vmatpush1.msra.mxu0 %v3451
        %4266 = vmatprep.subr.mxu0 %v3447
        %4267 = vmatpush1.msra.mxu0 %v3446
        %4268 = vmatprep.subr.mxu0 %v3442
        %4269 = vmatpush1.msra.mxu0 %v3441
        %4270 = vmatprep.subr.mxu0 %v3437
        %4271 = vmatpush1.msra.mxu0 %v3436
        %4272 = vmatprep.subr.mxu0 %v3432
        %4273 = vmatpush1.msra.mxu0 %v3431
        %4274 = vmatprep.subr.mxu0 %v3427
        %4275 = vmatpush1.msra.mxu0 %v3426
        %4276 = vmatprep.subr.mxu0 %v3582
        %4277 = vmatpush2.msra.mxu0 %v3581
        %4278 = vmatprep.subr.mxu0 %v3577
        %4279 = vmatpush2.msra.mxu0 %v3576
        %4280 = vmatprep.subr.mxu0 %v3572
        %4281 = vmatpush2.msra.mxu0 %v3571
        %4282 = vmatprep.subr.mxu0 %v3567
        %4283 = vmatpush2.msra.mxu0 %v3566
        %4284 = vmatprep.subr.mxu0 %v3562
        %4285 = vmatpush2.msra.mxu0 %v3561
        %4286 = vmatprep.subr.mxu0 %v3557
        %4287 = vmatpush2.msra.mxu0 %v3556
        %4288 = vmatprep.subr.mxu0 %v3552
        %4289 = vmatpush2.msra.mxu0 %v3551
        %4290 = vmatprep.subr.mxu0 %v3547
        %4291 = vmatpush2.msra.mxu0 %v3546
        %4292 = vmatprep.subr.mxu0 %v3542
        %4293 = vmatpush2.msra.mxu0 %v3541
        %4294 = vmatprep.subr.mxu0 %v3537
        %4295 = vmatpush2.msra.mxu0 %v3536
        %4296 = vmatprep.subr.mxu0 %v3532
        %4297 = vmatpush2.msra.mxu0 %v3531
        %4298 = vmatprep.subr.mxu0 %v3527
        %4299 = vmatpush2.msra.mxu0 %v3526
        %4300 = vmatprep.subr.mxu0 %v3522
        %4301 = vmatpush2.msra.mxu0 %v3521
        %4302 = vmatprep.subr.mxu0 %v3517
        %4303 = vmatpush2.msra.mxu0 %v3516
        %4304 = vmatprep.subr.mxu0 %v3512
        %4305 = vmatpush2.msra.mxu0 %v3511
        %4306 = vmatprep.subr.mxu0 %v3507
        %4307 = vmatpush2.msra.mxu0 %v3506
        %4308 = vmatprep.mubr.f32.mxu0 %v2720
        %4309 = vmatmul.mubr.f32.gmra.mxu0 %v2719
        %v4310 = vpop.f32.mrf.mxu0
        %v4311 = vadd.f32 %v4186, %v4310
        %v4312 = vpop.f32.mrf.mxu0
        %v4313 = vadd.f32 %v4188, %v4312
        %4314 = vmatprep.mubr.f32.mxu0 %v2726
        %4315 = vmatmul.mubr.f32.gmra.mxu0 %v2725
        %v4316 = vpop.f32.mrf.mxu0
        %v4317 = vadd.f32 %v4192, %v4316
        %v4318 = vpop.f32.mrf.mxu0
        %v4319 = vadd.f32 %v4194, %v4318
        %4320 = vmatprep.mubr.f32.mxu0 %v2732
        %4321 = vmatmul.mubr.f32.gmra.mxu0 %v2731
        %v4322 = vpop.f32.mrf.mxu0
        %v4323 = vadd.f32 %v4198, %v4322
        %v4324 = vpop.f32.mrf.mxu0
        %v4325 = vadd.f32 %v4200, %v4324
        %4326 = vmatprep.mubr.f32.mxu0 %v2738
        %4327 = vmatmul.mubr.f32.gmra.mxu0 %v2737
        %v4328 = vpop.f32.mrf.mxu0
        %v4329 = vadd.f32 %v4204, %v4328
        %v4330 = vpop.f32.mrf.mxu0
        %v4331 = vadd.f32 %v4206, %v4330
        %4332 = vmatprep.mubr.f32.mxu0 %v2744
        %4333 = vmatmul.mubr.f32.gmra.mxu0 %v2743
        %v4334 = vpop.f32.mrf.mxu0
        %v4335 = vadd.f32 %v4210, %v4334
        %v4336 = vpop.f32.mrf.mxu0
        %v4337 = vadd.f32 %v4212, %v4336
        %4338 = vmatprep.mubr.f32.mxu0 %v2750
        %4339 = vmatmul.mubr.f32.gmra.mxu0 %v2749
        %v4340 = vpop.f32.mrf.mxu0
        %v4341 = vadd.f32 %v4216, %v4340
        %v4342 = vpop.f32.mrf.mxu0
        %v4343 = vadd.f32 %v4218, %v4342
        %4344 = vmatprep.mubr.f32.mxu0 %v2756
        %4345 = vmatmul.mubr.f32.gmra.mxu0 %v2755
        %v4346 = vpop.f32.mrf.mxu0
        %v4347 = vadd.f32 %v4222, %v4346
        %v4348 = vpop.f32.mrf.mxu0
        %v4349 = vadd.f32 %v4224, %v4348
        %4350 = vmatprep.mubr.f32.mxu0 %v2762
        %4351 = vmatmul.mubr.f32.gmra.mxu0 %v2761
        %v4352 = vpop.f32.mrf.mxu0
        %v4353 = vadd.f32 %v4228, %v4352
        %v4354 = vpop.f32.mrf.mxu0
        %v4355 = vadd.f32 %v4230, %v4354
        %4356 = vmatprep.mubr.f32.mxu0 %v2768
        %4357 = vmatmul.mubr.f32.gmra.mxu0 %v2767
        %v4358 = vpop.f32.mrf.mxu0
        %v4359 = vadd.f32 %v4234, %v4358
        %v4360 = vpop.f32.mrf.mxu0
        %v4361 = vadd.f32 %v4236, %v4360
        %4362 = vmatprep.mubr.f32.mxu0 %v2774
        %4363 = vmatmul.mubr.f32.gmra.mxu0 %v2773
        %v4364 = vpop.f32.mrf.mxu0
        %v4365 = vadd.f32 %v4240, %v4364
        %v4366 = vpop.f32.mrf.mxu0
        %v4367 = vadd.f32 %v4242, %v4366
        %4368 = vdwg.mxu0
        %4369 = vmatprep.subr.mxu0 %v3662
        %4370 = vmatpush1.msra.mxu0 %v3661
        %4371 = vmatprep.subr.mxu0 %v3657
        %4372 = vmatpush1.msra.mxu0 %v3656
        %4373 = vmatprep.subr.mxu0 %v3652
        %4374 = vmatpush1.msra.mxu0 %v3651
        %4375 = vmatprep.subr.mxu0 %v3647
        %4376 = vmatpush1.msra.mxu0 %v3646
        %4377 = vmatprep.subr.mxu0 %v3642
        %4378 = vmatpush1.msra.mxu0 %v3641
        %4379 = vmatprep.subr.mxu0 %v3637
        %4380 = vmatpush1.msra.mxu0 %v3636
        %4381 = vmatprep.subr.mxu0 %v3632
        %4382 = vmatpush1.msra.mxu0 %v3631
        %4383 = vmatprep.subr.mxu0 %v3627
        %4384 = vmatpush1.msra.mxu0 %v3626
        %4385 = vmatprep.subr.mxu0 %v3622
        %4386 = vmatpush1.msra.mxu0 %v3621
        %4387 = vmatprep.subr.mxu0 %v3617
        %4388 = vmatpush1.msra.mxu0 %v3616
        %4389 = vmatprep.subr.mxu0 %v3612
        %4390 = vmatpush1.msra.mxu0 %v3611
        %4391 = vmatprep.subr.mxu0 %v3607
        %4392 = vmatpush1.msra.mxu0 %v3606
        %4393 = vmatprep.subr.mxu0 %v3602
        %4394 = vmatpush1.msra.mxu0 %v3601
        %4395 = vmatprep.subr.mxu0 %v3597
        %4396 = vmatpush1.msra.mxu0 %v3596
        %4397 = vmatprep.subr.mxu0 %v3592
        %4398 = vmatpush1.msra.mxu0 %v3591
        %4399 = vmatprep.subr.mxu0 %v3587
        %4400 = vmatpush1.msra.mxu0 %v3586
        %4401 = vmatprep.subr.mxu0 %v3742
        %4402 = vmatpush2.msra.mxu0 %v3741
        %4403 = vmatprep.subr.mxu0 %v3737
        %4404 = vmatpush2.msra.mxu0 %v3736
        %4405 = vmatprep.subr.mxu0 %v3732
        %4406 = vmatpush2.msra.mxu0 %v3731
        %4407 = vmatprep.subr.mxu0 %v3727
        %4408 = vmatpush2.msra.mxu0 %v3726
        %4409 = vmatprep.subr.mxu0 %v3722
        %4410 = vmatpush2.msra.mxu0 %v3721
        %4411 = vmatprep.subr.mxu0 %v3717
        %4412 = vmatpush2.msra.mxu0 %v3716
        %4413 = vmatprep.subr.mxu0 %v3712
        %4414 = vmatpush2.msra.mxu0 %v3711
        %4415 = vmatprep.subr.mxu0 %v3707
        %4416 = vmatpush2.msra.mxu0 %v3706
        %4417 = vmatprep.subr.mxu0 %v3702
        %4418 = vmatpush2.msra.mxu0 %v3701
        %4419 = vmatprep.subr.mxu0 %v3697
        %4420 = vmatpush2.msra.mxu0 %v3696
        %4421 = vmatprep.subr.mxu0 %v3692
        %4422 = vmatpush2.msra.mxu0 %v3691
        %4423 = vmatprep.subr.mxu0 %v3687
        %4424 = vmatpush2.msra.mxu0 %v3686
        %4425 = vmatprep.subr.mxu0 %v3682
        %4426 = vmatpush2.msra.mxu0 %v3681
        %4427 = vmatprep.subr.mxu0 %v3677
        %4428 = vmatpush2.msra.mxu0 %v3676
        %4429 = vmatprep.subr.mxu0 %v3672
        %4430 = vmatpush2.msra.mxu0 %v3671
        %4431 = vmatprep.subr.mxu0 %v3667
        %4432 = vmatpush2.msra.mxu0 %v3666
        %4433 = vmatprep.mubr.f32.mxu0 %v2722
        %4434 = vmatmul.mubr.f32.gmra.mxu0 %v2721
        %v4435 = vpop.f32.mrf.mxu0
        %v4436 = vadd.f32 %v4311, %v4435
        %v4437 = vpop.f32.mrf.mxu0
        %v4438 = vadd.f32 %v4313, %v4437
        %4439 = vmatprep.mubr.f32.mxu0 %v2728
        %4440 = vmatmul.mubr.f32.gmra.mxu0 %v2727
        %v4441 = vpop.f32.mrf.mxu0
        %v4442 = vadd.f32 %v4317, %v4441
        %v4443 = vpop.f32.mrf.mxu0
        %v4444 = vadd.f32 %v4319, %v4443
        %4445 = vmatprep.mubr.f32.mxu0 %v2734
        %4446 = vmatmul.mubr.f32.gmra.mxu0 %v2733
        %v4447 = vpop.f32.mrf.mxu0
        %v4448 = vadd.f32 %v4323, %v4447
        %v4449 = vpop.f32.mrf.mxu0
        %v4450 = vadd.f32 %v4325, %v4449
        %4451 = vmatprep.mubr.f32.mxu0 %v2740
        %4452 = vmatmul.mubr.f32.gmra.mxu0 %v2739
        %v4453 = vpop.f32.mrf.mxu0
        %v4454 = vadd.f32 %v4329, %v4453
        %v4455 = vpop.f32.mrf.mxu0
        %v4456 = vadd.f32 %v4331, %v4455
        %4457 = vmatprep.mubr.f32.mxu0 %v2746
        %4458 = vmatmul.mubr.f32.gmra.mxu0 %v2745
        %v4459 = vpop.f32.mrf.mxu0
        %v4460 = vadd.f32 %v4335, %v4459
        %v4461 = vpop.f32.mrf.mxu0
        %v4462 = vadd.f32 %v4337, %v4461
        %4463 = vmatprep.mubr.f32.mxu0 %v2752
        %4464 = vmatmul.mubr.f32.gmra.mxu0 %v2751
        %v4465 = vpop.f32.mrf.mxu0
        %v4466 = vadd.f32 %v4341, %v4465
        %v4467 = vpop.f32.mrf.mxu0
        %v4468 = vadd.f32 %v4343, %v4467
        %4469 = vmatprep.mubr.f32.mxu0 %v2758
        %4470 = vmatmul.mubr.f32.gmra.mxu0 %v2757
        %v4471 = vpop.f32.mrf.mxu0
        %v4472 = vadd.f32 %v4347, %v4471
        %v4473 = vpop.f32.mrf.mxu0
        %v4474 = vadd.f32 %v4349, %v4473
        %4475 = vmatprep.mubr.f32.mxu0 %v2764
        %4476 = vmatmul.mubr.f32.gmra.mxu0 %v2763
        %v4477 = vpop.f32.mrf.mxu0
        %v4478 = vadd.f32 %v4353, %v4477
        %v4479 = vpop.f32.mrf.mxu0
        %v4480 = vadd.f32 %v4355, %v4479
        %4481 = vmatprep.mubr.f32.mxu0 %v2770
        %4482 = vmatmul.mubr.f32.gmra.mxu0 %v2769
        %v4483 = vpop.f32.mrf.mxu0
        %v4484 = vadd.f32 %v4359, %v4483
        %v4485 = vpop.f32.mrf.mxu0
        %v4486 = vadd.f32 %v4361, %v4485
        %4487 = vmatprep.mubr.f32.mxu0 %v2776
        %4488 = vmatmul.mubr.f32.gmra.mxu0 %v2775
        %v4489 = vpop.f32.mrf.mxu0
        %v4490 = vadd.f32 %v4365, %v4489
        %v4491 = vpop.f32.mrf.mxu0
        %v4492 = vadd.f32 %v4367, %v4491
        %4493 = vdwg.mxu0
        %4494 = vmatprep.subr.mxu0 0.0
        %4495 = vmatpush1.msra.mxu0 %v3343
        %4496 = vmatprep.subr.mxu0 0.0
        %4497 = vmatpush1.msra.mxu0 %v3338
        %4498 = vmatprep.subr.mxu0 0.0
        %4499 = vmatpush1.msra.mxu0 %v3333
        %4500 = vmatprep.subr.mxu0 0.0
        %4501 = vmatpush1.msra.mxu0 %v3328
        %4502 = vmatprep.subr.mxu0 0.0
        %4503 = vmatpush1.msra.mxu0 %v3323
        %4504 = vmatprep.subr.mxu0 0.0
        %4505 = vmatpush1.msra.mxu0 %v3318
        %4506 = vmatprep.subr.mxu0 0.0
        %4507 = vmatpush1.msra.mxu0 %v3313
        %4508 = vmatprep.subr.mxu0 0.0
        %4509 = vmatpush1.msra.mxu0 %v3308
        %4510 = vmatprep.subr.mxu0 0.0
        %4511 = vmatpush1.msra.mxu0 %v3303
        %4512 = vmatprep.subr.mxu0 0.0
        %4513 = vmatpush1.msra.mxu0 %v3298
        %4514 = vmatprep.subr.mxu0 0.0
        %4515 = vmatpush1.msra.mxu0 %v3293
        %4516 = vmatprep.subr.mxu0 0.0
        %4517 = vmatpush1.msra.mxu0 %v3288
        %4518 = vmatprep.subr.mxu0 0.0
        %4519 = vmatpush1.msra.mxu0 %v3283
        %4520 = vmatprep.subr.mxu0 0.0
        %4521 = vmatpush1.msra.mxu0 %v3278
        %4522 = vmatprep.subr.mxu0 0.0
        %4523 = vmatpush1.msra.mxu0 %v3273
        %4524 = vmatprep.subr.mxu0 0.0
        %4525 = vmatpush1.msra.mxu0 %v3268
        %4526 = vmatprep.subr.mxu0 0.0
        %4527 = vmatpush2.msra.mxu0 %v3423
        %4528 = vmatprep.subr.mxu0 0.0
        %4529 = vmatpush2.msra.mxu0 %v3418
        %4530 = vmatprep.subr.mxu0 0.0
        %4531 = vmatpush2.msra.mxu0 %v3413
        %4532 = vmatprep.subr.mxu0 0.0
        %4533 = vmatpush2.msra.mxu0 %v3408
        %4534 = vmatprep.subr.mxu0 0.0
        %4535 = vmatpush2.msra.mxu0 %v3403
        %4536 = vmatprep.subr.mxu0 0.0
        %4537 = vmatpush2.msra.mxu0 %v3398
        %4538 = vmatprep.subr.mxu0 0.0
        %4539 = vmatpush2.msra.mxu0 %v3393
        %4540 = vmatprep.subr.mxu0 0.0
        %4541 = vmatpush2.msra.mxu0 %v3388
        %4542 = vmatprep.subr.mxu0 0.0
        %4543 = vmatpush2.msra.mxu0 %v3383
        %4544 = vmatprep.subr.mxu0 0.0
        %4545 = vmatpush2.msra.mxu0 %v3378
        %4546 = vmatprep.subr.mxu0 0.0
        %4547 = vmatpush2.msra.mxu0 %v3373
        %4548 = vmatprep.subr.mxu0 0.0
        %4549 = vmatpush2.msra.mxu0 %v3368
        %4550 = vmatprep.subr.mxu0 0.0
        %4551 = vmatpush2.msra.mxu0 %v3363
        %4552 = vmatprep.subr.mxu0 0.0
        %4553 = vmatpush2.msra.mxu0 %v3358
        %4554 = vmatprep.subr.mxu0 0.0
        %4555 = vmatpush2.msra.mxu0 %v3353
        %4556 = vmatprep.subr.mxu0 0.0
        %4557 = vmatpush2.msra.mxu0 %v3348
        %4558 = vmatprep.mubr.f32.mxu0 %v2718
        %4559 = vmatmul.mubr.f32.gmra.mxu0 %v2717
        %v4560 = vpop.f32.mrf.mxu0
        %v4561 = vadd.f32 0.0, %v4560
        %v4562 = vpop.f32.mrf.mxu0
        %4563 = vmatprep.mubr.f32.mxu0 %v2724
        %4564 = vmatmul.mubr.f32.gmra.mxu0 %v2723
        %v4565 = vpop.f32.mrf.mxu0
        %v4566 = vadd.f32 0.0, %v4565
        %v4567 = vpop.f32.mrf.mxu0
        %4568 = vmatprep.mubr.f32.mxu0 %v2730
        %4569 = vmatmul.mubr.f32.gmra.mxu0 %v2729
        %v4570 = vpop.f32.mrf.mxu0
        %v4571 = vadd.f32 0.0, %v4570
        %v4572 = vpop.f32.mrf.mxu0
        %4573 = vmatprep.mubr.f32.mxu0 %v2736
        %4574 = vmatmul.mubr.f32.gmra.mxu0 %v2735
        %v4575 = vpop.f32.mrf.mxu0
        %v4576 = vadd.f32 0.0, %v4575
        %v4577 = vpop.f32.mrf.mxu0
        %4578 = vmatprep.mubr.f32.mxu0 %v2742
        %4579 = vmatmul.mubr.f32.gmra.mxu0 %v2741
        %v4580 = vpop.f32.mrf.mxu0
        %v4581 = vadd.f32 0.0, %v4580
        %v4582 = vpop.f32.mrf.mxu0
        %4583 = vmatprep.mubr.f32.mxu0 %v2748
        %4584 = vmatmul.mubr.f32.gmra.mxu0 %v2747
        %v4585 = vpop.f32.mrf.mxu0
        %v4586 = vadd.f32 0.0, %v4585
        %v4587 = vpop.f32.mrf.mxu0
        %4588 = vmatprep.mubr.f32.mxu0 %v2754
        %4589 = vmatmul.mubr.f32.gmra.mxu0 %v2753
        %v4590 = vpop.f32.mrf.mxu0
        %v4591 = vadd.f32 0.0, %v4590
        %v4592 = vpop.f32.mrf.mxu0
        %4593 = vmatprep.mubr.f32.mxu0 %v2760
        %4594 = vmatmul.mubr.f32.gmra.mxu0 %v2759
        %v4595 = vpop.f32.mrf.mxu0
        %v4596 = vadd.f32 0.0, %v4595
        %v4597 = vpop.f32.mrf.mxu0
        %4598 = vmatprep.mubr.f32.mxu0 %v2766
        %4599 = vmatmul.mubr.f32.gmra.mxu0 %v2765
        %v4600 = vpop.f32.mrf.mxu0
        %v4601 = vadd.f32 0.0, %v4600
        %v4602 = vpop.f32.mrf.mxu0
        %4603 = vmatprep.mubr.f32.mxu0 %v2772
        %4604 = vmatmul.mubr.f32.gmra.mxu0 %v2771
        %v4605 = vpop.f32.mrf.mxu0
        %v4606 = vadd.f32 0.0, %v4605
        %v4607 = vpop.f32.mrf.mxu0
        %4608 = vdwg.mxu0
        %4609 = vmatprep.subr.mxu0 0.0
        %4610 = vmatpush1.msra.mxu0 %v3503
        %4611 = vmatprep.subr.mxu0 0.0
        %4612 = vmatpush1.msra.mxu0 %v3498
        %4613 = vmatprep.subr.mxu0 0.0
        %4614 = vmatpush1.msra.mxu0 %v3493
        %4615 = vmatprep.subr.mxu0 0.0
        %4616 = vmatpush1.msra.mxu0 %v3488
        %4617 = vmatprep.subr.mxu0 0.0
        %4618 = vmatpush1.msra.mxu0 %v3483
        %4619 = vmatprep.subr.mxu0 0.0
        %4620 = vmatpush1.msra.mxu0 %v3478
        %4621 = vmatprep.subr.mxu0 0.0
        %4622 = vmatpush1.msra.mxu0 %v3473
        %4623 = vmatprep.subr.mxu0 0.0
        %4624 = vmatpush1.msra.mxu0 %v3468
        %4625 = vmatprep.subr.mxu0 0.0
        %4626 = vmatpush1.msra.mxu0 %v3463
        %4627 = vmatprep.subr.mxu0 0.0
        %4628 = vmatpush1.msra.mxu0 %v3458
        %4629 = vmatprep.subr.mxu0 0.0
        %4630 = vmatpush1.msra.mxu0 %v3453
        %4631 = vmatprep.subr.mxu0 0.0
        %4632 = vmatpush1.msra.mxu0 %v3448
        %4633 = vmatprep.subr.mxu0 0.0
        %4634 = vmatpush1.msra.mxu0 %v3443
        %4635 = vmatprep.subr.mxu0 0.0
        %4636 = vmatpush1.msra.mxu0 %v3438
        %4637 = vmatprep.subr.mxu0 0.0
        %4638 = vmatpush1.msra.mxu0 %v3433
        %4639 = vmatprep.subr.mxu0 0.0
        %4640 = vmatpush1.msra.mxu0 %v3428
        %4641 = vmatprep.subr.mxu0 0.0
        %4642 = vmatpush2.msra.mxu0 %v3583
        %4643 = vmatprep.subr.mxu0 0.0
        %4644 = vmatpush2.msra.mxu0 %v3578
        %4645 = vmatprep.subr.mxu0 0.0
        %4646 = vmatpush2.msra.mxu0 %v3573
        %4647 = vmatprep.subr.mxu0 0.0
        %4648 = vmatpush2.msra.mxu0 %v3568
        %4649 = vmatprep.subr.mxu0 0.0
        %4650 = vmatpush2.msra.mxu0 %v3563
        %4651 = vmatprep.subr.mxu0 0.0
        %4652 = vmatpush2.msra.mxu0 %v3558
        %4653 = vmatprep.subr.mxu0 0.0
        %4654 = vmatpush2.msra.mxu0 %v3553
        %4655 = vmatprep.subr.mxu0 0.0
        %4656 = vmatpush2.msra.mxu0 %v3548
        %4657 = vmatprep.subr.mxu0 0.0
        %4658 = vmatpush2.msra.mxu0 %v3543
        %4659 = vmatprep.subr.mxu0 0.0
        %4660 = vmatpush2.msra.mxu0 %v3538
        %4661 = vmatprep.subr.mxu0 0.0
        %4662 = vmatpush2.msra.mxu0 %v3533
        %4663 = vmatprep.subr.mxu0 0.0
        %4664 = vmatpush2.msra.mxu0 %v3528
        %4665 = vmatprep.subr.mxu0 0.0
        %4666 = vmatpush2.msra.mxu0 %v3523
        %4667 = vmatprep.subr.mxu0 0.0
        %4668 = vmatpush2.msra.mxu0 %v3518
        %4669 = vmatprep.subr.mxu0 0.0
        %4670 = vmatpush2.msra.mxu0 %v3513
        %4671 = vmatprep.subr.mxu0 0.0
        %4672 = vmatpush2.msra.mxu0 %v3508
        %4673 = vmatprep.mubr.f32.mxu0 %v2720
        %4674 = vmatmul.mubr.f32.gmra.mxu0 %v2719
        %v4675 = vpop.f32.mrf.mxu0
        %v4676 = vadd.f32 %v4561, %v4675
        %v4677 = vpop.f32.mrf.mxu0
        %4678 = vmatprep.mubr.f32.mxu0 %v2726
        %4679 = vmatmul.mubr.f32.gmra.mxu0 %v2725
        %v4680 = vpop.f32.mrf.mxu0
        %v4681 = vadd.f32 %v4566, %v4680
        %v4682 = vpop.f32.mrf.mxu0
        %4683 = vmatprep.mubr.f32.mxu0 %v2732
        %4684 = vmatmul.mubr.f32.gmra.mxu0 %v2731
        %v4685 = vpop.f32.mrf.mxu0
        %v4686 = vadd.f32 %v4571, %v4685
        %v4687 = vpop.f32.mrf.mxu0
        %4688 = vmatprep.mubr.f32.mxu0 %v2738
        %4689 = vmatmul.mubr.f32.gmra.mxu0 %v2737
        %v4690 = vpop.f32.mrf.mxu0
        %v4691 = vadd.f32 %v4576, %v4690
        %v4692 = vpop.f32.mrf.mxu0
        %4693 = vmatprep.mubr.f32.mxu0 %v2744
        %4694 = vmatmul.mubr.f32.gmra.mxu0 %v2743
        %v4695 = vpop.f32.mrf.mxu0
        %v4696 = vadd.f32 %v4581, %v4695
        %v4697 = vpop.f32.mrf.mxu0
        %4698 = vmatprep.mubr.f32.mxu0 %v2750
        %4699 = vmatmul.mubr.f32.gmra.mxu0 %v2749
        %v4700 = vpop.f32.mrf.mxu0
        %v4701 = vadd.f32 %v4586, %v4700
        %v4702 = vpop.f32.mrf.mxu0
        %4703 = vmatprep.mubr.f32.mxu0 %v2756
        %4704 = vmatmul.mubr.f32.gmra.mxu0 %v2755
        %v4705 = vpop.f32.mrf.mxu0
        %v4706 = vadd.f32 %v4591, %v4705
        %v4707 = vpop.f32.mrf.mxu0
        %4708 = vmatprep.mubr.f32.mxu0 %v2762
        %4709 = vmatmul.mubr.f32.gmra.mxu0 %v2761
        %v4710 = vpop.f32.mrf.mxu0
        %v4711 = vadd.f32 %v4596, %v4710
        %v4712 = vpop.f32.mrf.mxu0
        %4713 = vmatprep.mubr.f32.mxu0 %v2768
        %4714 = vmatmul.mubr.f32.gmra.mxu0 %v2767
        %v4715 = vpop.f32.mrf.mxu0
        %v4716 = vadd.f32 %v4601, %v4715
        %v4717 = vpop.f32.mrf.mxu0
        %4718 = vmatprep.mubr.f32.mxu0 %v2774
        %4719 = vmatmul.mubr.f32.gmra.mxu0 %v2773
        %v4720 = vpop.f32.mrf.mxu0
        %v4721 = vadd.f32 %v4606, %v4720
        %v4722 = vpop.f32.mrf.mxu0
        %4723 = vdwg.mxu0
        %4724 = vmatprep.subr.mxu0 0.0
        %4725 = vmatpush1.msra.mxu0 %v3663
        %4726 = vmatprep.subr.mxu0 0.0
        %4727 = vmatpush1.msra.mxu0 %v3658
        %4728 = vmatprep.subr.mxu0 0.0
        %4729 = vmatpush1.msra.mxu0 %v3653
        %4730 = vmatprep.subr.mxu0 0.0
        %4731 = vmatpush1.msra.mxu0 %v3648
        %4732 = vmatprep.subr.mxu0 0.0
        %4733 = vmatpush1.msra.mxu0 %v3643
        %4734 = vmatprep.subr.mxu0 0.0
        %4735 = vmatpush1.msra.mxu0 %v3638
        %4736 = vmatprep.subr.mxu0 0.0
        %4737 = vmatpush1.msra.mxu0 %v3633
        %4738 = vmatprep.subr.mxu0 0.0
        %4739 = vmatpush1.msra.mxu0 %v3628
        %4740 = vmatprep.subr.mxu0 0.0
        %4741 = vmatpush1.msra.mxu0 %v3623
        %4742 = vmatprep.subr.mxu0 0.0
        %4743 = vmatpush1.msra.mxu0 %v3618
        %4744 = vmatprep.subr.mxu0 0.0
        %4745 = vmatpush1.msra.mxu0 %v3613
        %4746 = vmatprep.subr.mxu0 0.0
        %4747 = vmatpush1.msra.mxu0 %v3608
        %4748 = vmatprep.subr.mxu0 0.0
        %4749 = vmatpush1.msra.mxu0 %v3603
        %4750 = vmatprep.subr.mxu0 0.0
        %4751 = vmatpush1.msra.mxu0 %v3598
        %4752 = vmatprep.subr.mxu0 0.0
        %4753 = vmatpush1.msra.mxu0 %v3593
        %4754 = vmatprep.subr.mxu0 0.0
        %4755 = vmatpush1.msra.mxu0 %v3588
        %4756 = vmatprep.subr.mxu0 0.0
        %4757 = vmatpush2.msra.mxu0 %v3743
        %4758 = vmatprep.subr.mxu0 0.0
        %4759 = vmatpush2.msra.mxu0 %v3738
        %4760 = vmatprep.subr.mxu0 0.0
        %4761 = vmatpush2.msra.mxu0 %v3733
        %4762 = vmatprep.subr.mxu0 0.0
        %4763 = vmatpush2.msra.mxu0 %v3728
        %4764 = vmatprep.subr.mxu0 0.0
        %4765 = vmatpush2.msra.mxu0 %v3723
        %4766 = vmatprep.subr.mxu0 0.0
        %4767 = vmatpush2.msra.mxu0 %v3718
        %4768 = vmatprep.subr.mxu0 0.0
        %4769 = vmatpush2.msra.mxu0 %v3713
        %4770 = vmatprep.subr.mxu0 0.0
        %4771 = vmatpush2.msra.mxu0 %v3708
        %4772 = vmatprep.subr.mxu0 0.0
        %4773 = vmatpush2.msra.mxu0 %v3703
        %4774 = vmatprep.subr.mxu0 0.0
        %4775 = vmatpush2.msra.mxu0 %v3698
        %4776 = vmatprep.subr.mxu0 0.0
        %4777 = vmatpush2.msra.mxu0 %v3693
        %4778 = vmatprep.subr.mxu0 0.0
        %4779 = vmatpush2.msra.mxu0 %v3688
        %4780 = vmatprep.subr.mxu0 0.0
        %4781 = vmatpush2.msra.mxu0 %v3683
        %4782 = vmatprep.subr.mxu0 0.0
        %4783 = vmatpush2.msra.mxu0 %v3678
        %4784 = vmatprep.subr.mxu0 0.0
        %4785 = vmatpush2.msra.mxu0 %v3673
        %4786 = vmatprep.subr.mxu0 0.0
        %4787 = vmatpush2.msra.mxu0 %v3668
        %4788 = vmatprep.mubr.f32.mxu0 %v2722
        %4789 = vmatmul.mubr.f32.gmra.mxu0 %v2721
        %v4790 = vpop.f32.mrf.mxu0
        %v4791 = vadd.f32 %v4676, %v4790
        %v4792 = vpop.f32.mrf.mxu0
        %4793 = vmatprep.mubr.f32.mxu0 %v2728
        %4794 = vmatmul.mubr.f32.gmra.mxu0 %v2727
        %v4795 = vpop.f32.mrf.mxu0
        %v4796 = vadd.f32 %v4681, %v4795
        %v4797 = vpop.f32.mrf.mxu0
        %4798 = vmatprep.mubr.f32.mxu0 %v2734
        %4799 = vmatmul.mubr.f32.gmra.mxu0 %v2733
        %v4800 = vpop.f32.mrf.mxu0
        %v4801 = vadd.f32 %v4686, %v4800
        %v4802 = vpop.f32.mrf.mxu0
        %4803 = vmatprep.mubr.f32.mxu0 %v2740
        %4804 = vmatmul.mubr.f32.gmra.mxu0 %v2739
        %v4805 = vpop.f32.mrf.mxu0
        %v4806 = vadd.f32 %v4691, %v4805
        %v4807 = vpop.f32.mrf.mxu0
        %4808 = vmatprep.mubr.f32.mxu0 %v2746
        %4809 = vmatmul.mubr.f32.gmra.mxu0 %v2745
        %v4810 = vpop.f32.mrf.mxu0
        %v4811 = vadd.f32 %v4696, %v4810
        %v4812 = vpop.f32.mrf.mxu0
        %4813 = vmatprep.mubr.f32.mxu0 %v2752
        %4814 = vmatmul.mubr.f32.gmra.mxu0 %v2751
        %v4815 = vpop.f32.mrf.mxu0
        %v4816 = vadd.f32 %v4701, %v4815
        %v4817 = vpop.f32.mrf.mxu0
        %4818 = vmatprep.mubr.f32.mxu0 %v2758
        %4819 = vmatmul.mubr.f32.gmra.mxu0 %v2757
        %v4820 = vpop.f32.mrf.mxu0
        %v4821 = vadd.f32 %v4706, %v4820
        %v4822 = vpop.f32.mrf.mxu0
        %4823 = vmatprep.mubr.f32.mxu0 %v2764
        %4824 = vmatmul.mubr.f32.gmra.mxu0 %v2763
        %v4825 = vpop.f32.mrf.mxu0
        %v4826 = vadd.f32 %v4711, %v4825
        %v4827 = vpop.f32.mrf.mxu0
        %4828 = vmatprep.mubr.f32.mxu0 %v2770
        %4829 = vmatmul.mubr.f32.gmra.mxu0 %v2769
        %v4830 = vpop.f32.mrf.mxu0
        %v4831 = vadd.f32 %v4716, %v4830
        %v4832 = vpop.f32.mrf.mxu0
        %4833 = vmatprep.mubr.f32.mxu0 %v2776
        %4834 = vmatmul.mubr.f32.gmra.mxu0 %v2775
        %v4835 = vpop.f32.mrf.mxu0
        %v4836 = vadd.f32 %v4721, %v4835
        %v4837 = vpop.f32.mrf.mxu0
        %4838 = vdwg.mxu0
        %4839 = vmatprep.subr.mxu0 %v2859
        %4840 = vmatpush1.msra.mxu0 %v2858
        %4841 = vmatprep.subr.mxu0 %v2854
        %4842 = vmatpush1.msra.mxu0 %v2853
        %4843 = vmatprep.subr.mxu0 %v2849
        %4844 = vmatpush1.msra.mxu0 %v2848
        %4845 = vmatprep.subr.mxu0 %v2844
        %4846 = vmatpush1.msra.mxu0 %v2843
        %4847 = vmatprep.subr.mxu0 %v2839
        %4848 = vmatpush1.msra.mxu0 %v2838
        %4849 = vmatprep.subr.mxu0 %v2834
        %4850 = vmatpush1.msra.mxu0 %v2833
        %4851 = vmatprep.subr.mxu0 %v2829
        %4852 = vmatpush1.msra.mxu0 %v2828
        %4853 = vmatprep.subr.mxu0 %v2824
        %4854 = vmatpush1.msra.mxu0 %v2823
        %4855 = vmatprep.subr.mxu0 %v2819
        %4856 = vmatpush1.msra.mxu0 %v2818
        %4857 = vmatprep.subr.mxu0 %v2814
        %4858 = vmatpush1.msra.mxu0 %v2813
        %4859 = vmatprep.subr.mxu0 %v2809
        %4860 = vmatpush1.msra.mxu0 %v2808
        %4861 = vmatprep.subr.mxu0 %v2804
        %4862 = vmatpush1.msra.mxu0 %v2803
        %4863 = vmatprep.subr.mxu0 %v2799
        %4864 = vmatpush1.msra.mxu0 %v2798
        %4865 = vmatprep.subr.mxu0 %v2794
        %4866 = vmatpush1.msra.mxu0 %v2793
        %4867 = vmatprep.subr.mxu0 %v2789
        %4868 = vmatpush1.msra.mxu0 %v2788
        %4869 = vmatprep.subr.mxu0 %v2784
        %4870 = vmatpush1.msra.mxu0 %v2783
        %4871 = vmatprep.subr.mxu0 %v2939
        %4872 = vmatpush2.msra.mxu0 %v2938
        %4873 = vmatprep.subr.mxu0 %v2934
        %4874 = vmatpush2.msra.mxu0 %v2933
        %4875 = vmatprep.subr.mxu0 %v2929
        %4876 = vmatpush2.msra.mxu0 %v2928
        %4877 = vmatprep.subr.mxu0 %v2924
        %4878 = vmatpush2.msra.mxu0 %v2923
        %4879 = vmatprep.subr.mxu0 %v2919
        %4880 = vmatpush2.msra.mxu0 %v2918
        %4881 = vmatprep.subr.mxu0 %v2914
        %4882 = vmatpush2.msra.mxu0 %v2913
        %4883 = vmatprep.subr.mxu0 %v2909
        %4884 = vmatpush2.msra.mxu0 %v2908
        %4885 = vmatprep.subr.mxu0 %v2904
        %4886 = vmatpush2.msra.mxu0 %v2903
        %4887 = vmatprep.subr.mxu0 %v2899
        %4888 = vmatpush2.msra.mxu0 %v2898
        %4889 = vmatprep.subr.mxu0 %v2894
        %4890 = vmatpush2.msra.mxu0 %v2893
        %4891 = vmatprep.subr.mxu0 %v2889
        %4892 = vmatpush2.msra.mxu0 %v2888
        %4893 = vmatprep.subr.mxu0 %v2884
        %4894 = vmatpush2.msra.mxu0 %v2883
        %4895 = vmatprep.subr.mxu0 %v2879
        %4896 = vmatpush2.msra.mxu0 %v2878
        %4897 = vmatprep.subr.mxu0 %v2874
        %4898 = vmatpush2.msra.mxu0 %v2873
        %4899 = vmatprep.subr.mxu0 %v2869
        %4900 = vmatpush2.msra.mxu0 %v2868
        %4901 = vmatprep.subr.mxu0 %v2864
        %4902 = vmatpush2.msra.mxu0 %v2863
        %4903 = vmatprep.mubr.f32.mxu0 %v2712
        %4904 = vmatmul.mubr.f32.gmra.mxu0 %v2711
        %v4905 = vpop.f32.mrf.mxu0
        %v4906 = vadd.f32 %v4061, %v4905
        %v4907 = vpop.f32.mrf.mxu0
        %v4908 = vadd.f32 %v4063, %v4907
        %4909 = vmatprep.mubr.f32.mxu0 %v2718
        %4910 = vmatmul.mubr.f32.gmra.mxu0 %v2717
        %v4911 = vpop.f32.mrf.mxu0
        %v4912 = vadd.f32 %v4067, %v4911
        %v4913 = vpop.f32.mrf.mxu0
        %v4914 = vadd.f32 %v4069, %v4913
        %4915 = vmatprep.mubr.f32.mxu0 %v2724
        %4916 = vmatmul.mubr.f32.gmra.mxu0 %v2723
        %v4917 = vpop.f32.mrf.mxu0
        %v4918 = vadd.f32 %v4073, %v4917
        %v4919 = vpop.f32.mrf.mxu0
        %v4920 = vadd.f32 %v4075, %v4919
        %4921 = vmatprep.mubr.f32.mxu0 %v2730
        %4922 = vmatmul.mubr.f32.gmra.mxu0 %v2729
        %v4923 = vpop.f32.mrf.mxu0
        %v4924 = vadd.f32 %v4079, %v4923
        %v4925 = vpop.f32.mrf.mxu0
        %v4926 = vadd.f32 %v4081, %v4925
        %4927 = vmatprep.mubr.f32.mxu0 %v2736
        %4928 = vmatmul.mubr.f32.gmra.mxu0 %v2735
        %v4929 = vpop.f32.mrf.mxu0
        %v4930 = vadd.f32 %v4085, %v4929
        %v4931 = vpop.f32.mrf.mxu0
        %v4932 = vadd.f32 %v4087, %v4931
        %4933 = vmatprep.mubr.f32.mxu0 %v2742
        %4934 = vmatmul.mubr.f32.gmra.mxu0 %v2741
        %v4935 = vpop.f32.mrf.mxu0
        %v4936 = vadd.f32 %v4091, %v4935
        %v4937 = vpop.f32.mrf.mxu0
        %v4938 = vadd.f32 %v4093, %v4937
        %4939 = vmatprep.mubr.f32.mxu0 %v2748
        %4940 = vmatmul.mubr.f32.gmra.mxu0 %v2747
        %v4941 = vpop.f32.mrf.mxu0
        %v4942 = vadd.f32 %v4097, %v4941
        %v4943 = vpop.f32.mrf.mxu0
        %v4944 = vadd.f32 %v4099, %v4943
        %4945 = vmatprep.mubr.f32.mxu0 %v2754
        %4946 = vmatmul.mubr.f32.gmra.mxu0 %v2753
        %v4947 = vpop.f32.mrf.mxu0
        %v4948 = vadd.f32 %v4103, %v4947
        %v4949 = vpop.f32.mrf.mxu0
        %v4950 = vadd.f32 %v4105, %v4949
        %4951 = vmatprep.mubr.f32.mxu0 %v2760
        %4952 = vmatmul.mubr.f32.gmra.mxu0 %v2759
        %v4953 = vpop.f32.mrf.mxu0
        %v4954 = vadd.f32 %v4109, %v4953
        %v4955 = vpop.f32.mrf.mxu0
        %v4956 = vadd.f32 %v4111, %v4955
        %4957 = vmatprep.mubr.f32.mxu0 %v2766
        %4958 = vmatmul.mubr.f32.gmra.mxu0 %v2765
        %v4959 = vpop.f32.mrf.mxu0
        %v4960 = vadd.f32 %v4115, %v4959
        %v4961 = vpop.f32.mrf.mxu0
        %v4962 = vadd.f32 %v4117, %v4961
        %4963 = vdwg.mxu0
        %4964 = vmatprep.subr.mxu0 %v3019
        %4965 = vmatpush1.msra.mxu0 %v3018
        %4966 = vmatprep.subr.mxu0 %v3014
        %4967 = vmatpush1.msra.mxu0 %v3013
        %4968 = vmatprep.subr.mxu0 %v3009
        %4969 = vmatpush1.msra.mxu0 %v3008
        %4970 = vmatprep.subr.mxu0 %v3004
        %4971 = vmatpush1.msra.mxu0 %v3003
        %4972 = vmatprep.subr.mxu0 %v2999
        %4973 = vmatpush1.msra.mxu0 %v2998
        %4974 = vmatprep.subr.mxu0 %v2994
        %4975 = vmatpush1.msra.mxu0 %v2993
        %4976 = vmatprep.subr.mxu0 %v2989
        %4977 = vmatpush1.msra.mxu0 %v2988
        %4978 = vmatprep.subr.mxu0 %v2984
        %4979 = vmatpush1.msra.mxu0 %v2983
        %4980 = vmatprep.subr.mxu0 %v2979
        %4981 = vmatpush1.msra.mxu0 %v2978
        %4982 = vmatprep.subr.mxu0 %v2974
        %4983 = vmatpush1.msra.mxu0 %v2973
        %4984 = vmatprep.subr.mxu0 %v2969
        %4985 = vmatpush1.msra.mxu0 %v2968
        %4986 = vmatprep.subr.mxu0 %v2964
        %4987 = vmatpush1.msra.mxu0 %v2963
        %4988 = vmatprep.subr.mxu0 %v2959
        %4989 = vmatpush1.msra.mxu0 %v2958
        %4990 = vmatprep.subr.mxu0 %v2954
        %4991 = vmatpush1.msra.mxu0 %v2953
        %4992 = vmatprep.subr.mxu0 %v2949
        %4993 = vmatpush1.msra.mxu0 %v2948
        %4994 = vmatprep.subr.mxu0 %v2944
        %4995 = vmatpush1.msra.mxu0 %v2943
        %4996 = vmatprep.subr.mxu0 %v3099
        %4997 = vmatpush2.msra.mxu0 %v3098
        %4998 = vmatprep.subr.mxu0 %v3094
        %4999 = vmatpush2.msra.mxu0 %v3093
        %5000 = vmatprep.subr.mxu0 %v3089
        %5001 = vmatpush2.msra.mxu0 %v3088
        %5002 = vmatprep.subr.mxu0 %v3084
        %5003 = vmatpush2.msra.mxu0 %v3083
        %5004 = vmatprep.subr.mxu0 %v3079
        %5005 = vmatpush2.msra.mxu0 %v3078
        %5006 = vmatprep.subr.mxu0 %v3074
        %5007 = vmatpush2.msra.mxu0 %v3073
        %5008 = vmatprep.subr.mxu0 %v3069
        %5009 = vmatpush2.msra.mxu0 %v3068
        %5010 = vmatprep.subr.mxu0 %v3064
        %5011 = vmatpush2.msra.mxu0 %v3063
        %5012 = vmatprep.subr.mxu0 %v3059
        %5013 = vmatpush2.msra.mxu0 %v3058
        %5014 = vmatprep.subr.mxu0 %v3054
        %5015 = vmatpush2.msra.mxu0 %v3053
        %5016 = vmatprep.subr.mxu0 %v3049
        %5017 = vmatpush2.msra.mxu0 %v3048
        %5018 = vmatprep.subr.mxu0 %v3044
        %5019 = vmatpush2.msra.mxu0 %v3043
        %5020 = vmatprep.subr.mxu0 %v3039
        %5021 = vmatpush2.msra.mxu0 %v3038
        %5022 = vmatprep.subr.mxu0 %v3034
        %5023 = vmatpush2.msra.mxu0 %v3033
        %5024 = vmatprep.subr.mxu0 %v3029
        %5025 = vmatpush2.msra.mxu0 %v3028
        %5026 = vmatprep.subr.mxu0 %v3024
        %5027 = vmatpush2.msra.mxu0 %v3023
        %5028 = vmatprep.mubr.f32.mxu0 %v2714
        %5029 = vmatmul.mubr.f32.gmra.mxu0 %v2713
        %v5030 = vpop.f32.mrf.mxu0
        %v5031 = vadd.f32 %v4906, %v5030
        %v5032 = vpop.f32.mrf.mxu0
        %v5033 = vadd.f32 %v4908, %v5032
        %5034 = vmatprep.mubr.f32.mxu0 %v2720
        %5035 = vmatmul.mubr.f32.gmra.mxu0 %v2719
        %v5036 = vpop.f32.mrf.mxu0
        %v5037 = vadd.f32 %v4912, %v5036
        %v5038 = vpop.f32.mrf.mxu0
        %v5039 = vadd.f32 %v4914, %v5038
        %5040 = vmatprep.mubr.f32.mxu0 %v2726
        %5041 = vmatmul.mubr.f32.gmra.mxu0 %v2725
        %v5042 = vpop.f32.mrf.mxu0
        %v5043 = vadd.f32 %v4918, %v5042
        %v5044 = vpop.f32.mrf.mxu0
        %v5045 = vadd.f32 %v4920, %v5044
        %5046 = vmatprep.mubr.f32.mxu0 %v2732
        %5047 = vmatmul.mubr.f32.gmra.mxu0 %v2731
        %v5048 = vpop.f32.mrf.mxu0
        %v5049 = vadd.f32 %v4924, %v5048
        %v5050 = vpop.f32.mrf.mxu0
        %v5051 = vadd.f32 %v4926, %v5050
        %5052 = vmatprep.mubr.f32.mxu0 %v2738
        %5053 = vmatmul.mubr.f32.gmra.mxu0 %v2737
        %v5054 = vpop.f32.mrf.mxu0
        %v5055 = vadd.f32 %v4930, %v5054
        %v5056 = vpop.f32.mrf.mxu0
        %v5057 = vadd.f32 %v4932, %v5056
        %5058 = vmatprep.mubr.f32.mxu0 %v2744
        %5059 = vmatmul.mubr.f32.gmra.mxu0 %v2743
        %v5060 = vpop.f32.mrf.mxu0
        %v5061 = vadd.f32 %v4936, %v5060
        %v5062 = vpop.f32.mrf.mxu0
        %v5063 = vadd.f32 %v4938, %v5062
        %5064 = vmatprep.mubr.f32.mxu0 %v2750
        %5065 = vmatmul.mubr.f32.gmra.mxu0 %v2749
        %v5066 = vpop.f32.mrf.mxu0
        %v5067 = vadd.f32 %v4942, %v5066
        %v5068 = vpop.f32.mrf.mxu0
        %v5069 = vadd.f32 %v4944, %v5068
        %5070 = vmatprep.mubr.f32.mxu0 %v2756
        %5071 = vmatmul.mubr.f32.gmra.mxu0 %v2755
        %v5072 = vpop.f32.mrf.mxu0
        %v5073 = vadd.f32 %v4948, %v5072
        %v5074 = vpop.f32.mrf.mxu0
        %v5075 = vadd.f32 %v4950, %v5074
        %5076 = vmatprep.mubr.f32.mxu0 %v2762
        %5077 = vmatmul.mubr.f32.gmra.mxu0 %v2761
        %v5078 = vpop.f32.mrf.mxu0
        %v5079 = vadd.f32 %v4954, %v5078
        %v5080 = vpop.f32.mrf.mxu0
        %v5081 = vadd.f32 %v4956, %v5080
        %5082 = vmatprep.mubr.f32.mxu0 %v2768
        %5083 = vmatmul.mubr.f32.gmra.mxu0 %v2767
        %v5084 = vpop.f32.mrf.mxu0
        %v5085 = vadd.f32 %v4960, %v5084
        %v5086 = vpop.f32.mrf.mxu0
        %v5087 = vadd.f32 %v4962, %v5086
        %5088 = vdwg.mxu0
        %5089 = vmatprep.subr.mxu0 %v3179
        %5090 = vmatpush1.msra.mxu0 %v3178
        %5091 = vmatprep.subr.mxu0 %v3174
        %5092 = vmatpush1.msra.mxu0 %v3173
        %5093 = vmatprep.subr.mxu0 %v3169
        %5094 = vmatpush1.msra.mxu0 %v3168
        %5095 = vmatprep.subr.mxu0 %v3164
        %5096 = vmatpush1.msra.mxu0 %v3163
        %5097 = vmatprep.subr.mxu0 %v3159
        %5098 = vmatpush1.msra.mxu0 %v3158
        %5099 = vmatprep.subr.mxu0 %v3154
        %5100 = vmatpush1.msra.mxu0 %v3153
        %5101 = vmatprep.subr.mxu0 %v3149
        %5102 = vmatpush1.msra.mxu0 %v3148
        %5103 = vmatprep.subr.mxu0 %v3144
        %5104 = vmatpush1.msra.mxu0 %v3143
        %5105 = vmatprep.subr.mxu0 %v3139
        %5106 = vmatpush1.msra.mxu0 %v3138
        %5107 = vmatprep.subr.mxu0 %v3134
        %5108 = vmatpush1.msra.mxu0 %v3133
        %5109 = vmatprep.subr.mxu0 %v3129
        %5110 = vmatpush1.msra.mxu0 %v3128
        %5111 = vmatprep.subr.mxu0 %v3124
        %5112 = vmatpush1.msra.mxu0 %v3123
        %5113 = vmatprep.subr.mxu0 %v3119
        %5114 = vmatpush1.msra.mxu0 %v3118
        %5115 = vmatprep.subr.mxu0 %v3114
        %5116 = vmatpush1.msra.mxu0 %v3113
        %5117 = vmatprep.subr.mxu0 %v3109
        %5118 = vmatpush1.msra.mxu0 %v3108
        %5119 = vmatprep.subr.mxu0 %v3104
        %5120 = vmatpush1.msra.mxu0 %v3103
        %5121 = vmatprep.subr.mxu0 %v3259
        %5122 = vmatpush2.msra.mxu0 %v3258
        %5123 = vmatprep.subr.mxu0 %v3254
        %5124 = vmatpush2.msra.mxu0 %v3253
        %5125 = vmatprep.subr.mxu0 %v3249
        %5126 = vmatpush2.msra.mxu0 %v3248
        %5127 = vmatprep.subr.mxu0 %v3244
        %5128 = vmatpush2.msra.mxu0 %v3243
        %5129 = vmatprep.subr.mxu0 %v3239
        %5130 = vmatpush2.msra.mxu0 %v3238
        %5131 = vmatprep.subr.mxu0 %v3234
        %5132 = vmatpush2.msra.mxu0 %v3233
        %5133 = vmatprep.subr.mxu0 %v3229
        %5134 = vmatpush2.msra.mxu0 %v3228
        %5135 = vmatprep.subr.mxu0 %v3224
        %5136 = vmatpush2.msra.mxu0 %v3223
        %5137 = vmatprep.subr.mxu0 %v3219
        %5138 = vmatpush2.msra.mxu0 %v3218
        %5139 = vmatprep.subr.mxu0 %v3214
        %5140 = vmatpush2.msra.mxu0 %v3213
        %5141 = vmatprep.subr.mxu0 %v3209
        %5142 = vmatpush2.msra.mxu0 %v3208
        %5143 = vmatprep.subr.mxu0 %v3204
        %5144 = vmatpush2.msra.mxu0 %v3203
        %5145 = vmatprep.subr.mxu0 %v3199
        %5146 = vmatpush2.msra.mxu0 %v3198
        %5147 = vmatprep.subr.mxu0 %v3194
        %5148 = vmatpush2.msra.mxu0 %v3193
        %5149 = vmatprep.subr.mxu0 %v3189
        %5150 = vmatpush2.msra.mxu0 %v3188
        %5151 = vmatprep.subr.mxu0 %v3184
        %5152 = vmatpush2.msra.mxu0 %v3183
        %5153 = vmatprep.mubr.f32.mxu0 %v2716
        %5154 = vmatmul.mubr.f32.gmra.mxu0 %v2715
        %v5155 = vpop.f32.mrf.mxu0
        %v5156 = vadd.f32 %v5031, %v5155
        %v5157 = vpop.f32.mrf.mxu0
        %v5158 = vadd.f32 %v5033, %v5157
        %5159 = vmatprep.mubr.f32.mxu0 %v2722
        %5160 = vmatmul.mubr.f32.gmra.mxu0 %v2721
        %v5161 = vpop.f32.mrf.mxu0
        %v5162 = vadd.f32 %v5037, %v5161
        %v5163 = vpop.f32.mrf.mxu0
        %v5164 = vadd.f32 %v5039, %v5163
        %5165 = vmatprep.mubr.f32.mxu0 %v2728
        %5166 = vmatmul.mubr.f32.gmra.mxu0 %v2727
        %v5167 = vpop.f32.mrf.mxu0
        %v5168 = vadd.f32 %v5043, %v5167
        %v5169 = vpop.f32.mrf.mxu0
        %v5170 = vadd.f32 %v5045, %v5169
        %5171 = vmatprep.mubr.f32.mxu0 %v2734
        %5172 = vmatmul.mubr.f32.gmra.mxu0 %v2733
        %v5173 = vpop.f32.mrf.mxu0
        %v5174 = vadd.f32 %v5049, %v5173
        %v5175 = vpop.f32.mrf.mxu0
        %v5176 = vadd.f32 %v5051, %v5175
        %5177 = vmatprep.mubr.f32.mxu0 %v2740
        %5178 = vmatmul.mubr.f32.gmra.mxu0 %v2739
        %v5179 = vpop.f32.mrf.mxu0
        %v5180 = vadd.f32 %v5055, %v5179
        %v5181 = vpop.f32.mrf.mxu0
        %v5182 = vadd.f32 %v5057, %v5181
        %5183 = vmatprep.mubr.f32.mxu0 %v2746
        %5184 = vmatmul.mubr.f32.gmra.mxu0 %v2745
        %v5185 = vpop.f32.mrf.mxu0
        %v5186 = vadd.f32 %v5061, %v5185
        %v5187 = vpop.f32.mrf.mxu0
        %v5188 = vadd.f32 %v5063, %v5187
        %5189 = vmatprep.mubr.f32.mxu0 %v2752
        %5190 = vmatmul.mubr.f32.gmra.mxu0 %v2751
        %v5191 = vpop.f32.mrf.mxu0
        %v5192 = vadd.f32 %v5067, %v5191
        %v5193 = vpop.f32.mrf.mxu0
        %v5194 = vadd.f32 %v5069, %v5193
        %5195 = vmatprep.mubr.f32.mxu0 %v2758
        %5196 = vmatmul.mubr.f32.gmra.mxu0 %v2757
        %v5197 = vpop.f32.mrf.mxu0
        %v5198 = vadd.f32 %v5073, %v5197
        %v5199 = vpop.f32.mrf.mxu0
        %v5200 = vadd.f32 %v5075, %v5199
        %5201 = vmatprep.mubr.f32.mxu0 %v2764
        %5202 = vmatmul.mubr.f32.gmra.mxu0 %v2763
        %v5203 = vpop.f32.mrf.mxu0
        %v5204 = vadd.f32 %v5079, %v5203
        %v5205 = vpop.f32.mrf.mxu0
        %v5206 = vadd.f32 %v5081, %v5205
        %5207 = vmatprep.mubr.f32.mxu0 %v2770
        %5208 = vmatmul.mubr.f32.gmra.mxu0 %v2769
        %v5209 = vpop.f32.mrf.mxu0
        %v5210 = vadd.f32 %v5085, %v5209
        %v5211 = vpop.f32.mrf.mxu0
        %v5212 = vadd.f32 %v5087, %v5211
        %5213 = vdwg.mxu0
        %5214 = vmatprep.subr.mxu0 %v2861
        %5215 = vmatpush1.msra.mxu0 %v2860
        %5216 = vmatprep.subr.mxu0 %v2856
        %5217 = vmatpush1.msra.mxu0 %v2855
        %5218 = vmatprep.subr.mxu0 %v2851
        %5219 = vmatpush1.msra.mxu0 %v2850
        %5220 = vmatprep.subr.mxu0 %v2846
        %5221 = vmatpush1.msra.mxu0 %v2845
        %5222 = vmatprep.subr.mxu0 %v2841
        %5223 = vmatpush1.msra.mxu0 %v2840
        %5224 = vmatprep.subr.mxu0 %v2836
        %5225 = vmatpush1.msra.mxu0 %v2835
        %5226 = vmatprep.subr.mxu0 %v2831
        %5227 = vmatpush1.msra.mxu0 %v2830
        %5228 = vmatprep.subr.mxu0 %v2826
        %5229 = vmatpush1.msra.mxu0 %v2825
        %5230 = vmatprep.subr.mxu0 %v2821
        %5231 = vmatpush1.msra.mxu0 %v2820
        %5232 = vmatprep.subr.mxu0 %v2816
        %5233 = vmatpush1.msra.mxu0 %v2815
        %5234 = vmatprep.subr.mxu0 %v2811
        %5235 = vmatpush1.msra.mxu0 %v2810
        %5236 = vmatprep.subr.mxu0 %v2806
        %5237 = vmatpush1.msra.mxu0 %v2805
        %5238 = vmatprep.subr.mxu0 %v2801
        %5239 = vmatpush1.msra.mxu0 %v2800
        %5240 = vmatprep.subr.mxu0 %v2796
        %5241 = vmatpush1.msra.mxu0 %v2795
        %5242 = vmatprep.subr.mxu0 %v2791
        %5243 = vmatpush1.msra.mxu0 %v2790
        %5244 = vmatprep.subr.mxu0 %v2786
        %5245 = vmatpush1.msra.mxu0 %v2785
        %5246 = vmatprep.subr.mxu0 %v2941
        %5247 = vmatpush2.msra.mxu0 %v2940
        %5248 = vmatprep.subr.mxu0 %v2936
        %5249 = vmatpush2.msra.mxu0 %v2935
        %5250 = vmatprep.subr.mxu0 %v2931
        %5251 = vmatpush2.msra.mxu0 %v2930
        %5252 = vmatprep.subr.mxu0 %v2926
        %5253 = vmatpush2.msra.mxu0 %v2925
        %5254 = vmatprep.subr.mxu0 %v2921
        %5255 = vmatpush2.msra.mxu0 %v2920
        %5256 = vmatprep.subr.mxu0 %v2916
        %5257 = vmatpush2.msra.mxu0 %v2915
        %5258 = vmatprep.subr.mxu0 %v2911
        %5259 = vmatpush2.msra.mxu0 %v2910
        %5260 = vmatprep.subr.mxu0 %v2906
        %5261 = vmatpush2.msra.mxu0 %v2905
        %5262 = vmatprep.subr.mxu0 %v2901
        %5263 = vmatpush2.msra.mxu0 %v2900
        %5264 = vmatprep.subr.mxu0 %v2896
        %5265 = vmatpush2.msra.mxu0 %v2895
        %5266 = vmatprep.subr.mxu0 %v2891
        %5267 = vmatpush2.msra.mxu0 %v2890
        %5268 = vmatprep.subr.mxu0 %v2886
        %5269 = vmatpush2.msra.mxu0 %v2885
        %5270 = vmatprep.subr.mxu0 %v2881
        %5271 = vmatpush2.msra.mxu0 %v2880
        %5272 = vmatprep.subr.mxu0 %v2876
        %5273 = vmatpush2.msra.mxu0 %v2875
        %5274 = vmatprep.subr.mxu0 %v2871
        %5275 = vmatpush2.msra.mxu0 %v2870
        %5276 = vmatprep.subr.mxu0 %v2866
        %5277 = vmatpush2.msra.mxu0 %v2865
        %5278 = vmatprep.mubr.f32.mxu0 %v2712
        %5279 = vmatmul.mubr.f32.gmra.mxu0 %v2711
        %v5280 = vpop.f32.mrf.mxu0
        %v5281 = vadd.f32 %v4436, %v5280
        %v5282 = vpop.f32.mrf.mxu0
        %v5283 = vadd.f32 %v4438, %v5282
        %5284 = vmatprep.mubr.f32.mxu0 %v2718
        %5285 = vmatmul.mubr.f32.gmra.mxu0 %v2717
        %v5286 = vpop.f32.mrf.mxu0
        %v5287 = vadd.f32 %v4442, %v5286
        %v5288 = vpop.f32.mrf.mxu0
        %v5289 = vadd.f32 %v4444, %v5288
        %5290 = vmatprep.mubr.f32.mxu0 %v2724
        %5291 = vmatmul.mubr.f32.gmra.mxu0 %v2723
        %v5292 = vpop.f32.mrf.mxu0
        %v5293 = vadd.f32 %v4448, %v5292
        %v5294 = vpop.f32.mrf.mxu0
        %v5295 = vadd.f32 %v4450, %v5294
        %5296 = vmatprep.mubr.f32.mxu0 %v2730
        %5297 = vmatmul.mubr.f32.gmra.mxu0 %v2729
        %v5298 = vpop.f32.mrf.mxu0
        %v5299 = vadd.f32 %v4454, %v5298
        %v5300 = vpop.f32.mrf.mxu0
        %v5301 = vadd.f32 %v4456, %v5300
        %5302 = vmatprep.mubr.f32.mxu0 %v2736
        %5303 = vmatmul.mubr.f32.gmra.mxu0 %v2735
        %v5304 = vpop.f32.mrf.mxu0
        %v5305 = vadd.f32 %v4460, %v5304
        %v5306 = vpop.f32.mrf.mxu0
        %v5307 = vadd.f32 %v4462, %v5306
        %5308 = vmatprep.mubr.f32.mxu0 %v2742
        %5309 = vmatmul.mubr.f32.gmra.mxu0 %v2741
        %v5310 = vpop.f32.mrf.mxu0
        %v5311 = vadd.f32 %v4466, %v5310
        %v5312 = vpop.f32.mrf.mxu0
        %v5313 = vadd.f32 %v4468, %v5312
        %5314 = vmatprep.mubr.f32.mxu0 %v2748
        %5315 = vmatmul.mubr.f32.gmra.mxu0 %v2747
        %v5316 = vpop.f32.mrf.mxu0
        %v5317 = vadd.f32 %v4472, %v5316
        %v5318 = vpop.f32.mrf.mxu0
        %v5319 = vadd.f32 %v4474, %v5318
        %5320 = vmatprep.mubr.f32.mxu0 %v2754
        %5321 = vmatmul.mubr.f32.gmra.mxu0 %v2753
        %v5322 = vpop.f32.mrf.mxu0
        %v5323 = vadd.f32 %v4478, %v5322
        %v5324 = vpop.f32.mrf.mxu0
        %v5325 = vadd.f32 %v4480, %v5324
        %5326 = vmatprep.mubr.f32.mxu0 %v2760
        %5327 = vmatmul.mubr.f32.gmra.mxu0 %v2759
        %v5328 = vpop.f32.mrf.mxu0
        %v5329 = vadd.f32 %v4484, %v5328
        %v5330 = vpop.f32.mrf.mxu0
        %v5331 = vadd.f32 %v4486, %v5330
        %5332 = vmatprep.mubr.f32.mxu0 %v2766
        %5333 = vmatmul.mubr.f32.gmra.mxu0 %v2765
        %v5334 = vpop.f32.mrf.mxu0
        %v5335 = vadd.f32 %v4490, %v5334
        %v5336 = vpop.f32.mrf.mxu0
        %v5337 = vadd.f32 %v4492, %v5336
        %5338 = vdwg.mxu0
        %5339 = vmatprep.subr.mxu0 %v3021
        %5340 = vmatpush1.msra.mxu0 %v3020
        %5341 = vmatprep.subr.mxu0 %v3016
        %5342 = vmatpush1.msra.mxu0 %v3015
        %5343 = vmatprep.subr.mxu0 %v3011
        %5344 = vmatpush1.msra.mxu0 %v3010
        %5345 = vmatprep.subr.mxu0 %v3006
        %5346 = vmatpush1.msra.mxu0 %v3005
        %5347 = vmatprep.subr.mxu0 %v3001
        %5348 = vmatpush1.msra.mxu0 %v3000
        %5349 = vmatprep.subr.mxu0 %v2996
        %5350 = vmatpush1.msra.mxu0 %v2995
        %5351 = vmatprep.subr.mxu0 %v2991
        %5352 = vmatpush1.msra.mxu0 %v2990
        %5353 = vmatprep.subr.mxu0 %v2986
        %5354 = vmatpush1.msra.mxu0 %v2985
        %5355 = vmatprep.subr.mxu0 %v2981
        %5356 = vmatpush1.msra.mxu0 %v2980
        %5357 = vmatprep.subr.mxu0 %v2976
        %5358 = vmatpush1.msra.mxu0 %v2975
        %5359 = vmatprep.subr.mxu0 %v2971
        %5360 = vmatpush1.msra.mxu0 %v2970
        %5361 = vmatprep.subr.mxu0 %v2966
        %5362 = vmatpush1.msra.mxu0 %v2965
        %5363 = vmatprep.subr.mxu0 %v2961
        %5364 = vmatpush1.msra.mxu0 %v2960
        %5365 = vmatprep.subr.mxu0 %v2956
        %5366 = vmatpush1.msra.mxu0 %v2955
        %5367 = vmatprep.subr.mxu0 %v2951
        %5368 = vmatpush1.msra.mxu0 %v2950
        %5369 = vmatprep.subr.mxu0 %v2946
        %5370 = vmatpush1.msra.mxu0 %v2945
        %5371 = vmatprep.subr.mxu0 %v3101
        %5372 = vmatpush2.msra.mxu0 %v3100
        %5373 = vmatprep.subr.mxu0 %v3096
        %5374 = vmatpush2.msra.mxu0 %v3095
        %5375 = vmatprep.subr.mxu0 %v3091
        %5376 = vmatpush2.msra.mxu0 %v3090
        %5377 = vmatprep.subr.mxu0 %v3086
        %5378 = vmatpush2.msra.mxu0 %v3085
        %5379 = vmatprep.subr.mxu0 %v3081
        %5380 = vmatpush2.msra.mxu0 %v3080
        %5381 = vmatprep.subr.mxu0 %v3076
        %5382 = vmatpush2.msra.mxu0 %v3075
        %5383 = vmatprep.subr.mxu0 %v3071
        %5384 = vmatpush2.msra.mxu0 %v3070
        %5385 = vmatprep.subr.mxu0 %v3066
        %5386 = vmatpush2.msra.mxu0 %v3065
        %5387 = vmatprep.subr.mxu0 %v3061
        %5388 = vmatpush2.msra.mxu0 %v3060
        %5389 = vmatprep.subr.mxu0 %v3056
        %5390 = vmatpush2.msra.mxu0 %v3055
        %5391 = vmatprep.subr.mxu0 %v3051
        %5392 = vmatpush2.msra.mxu0 %v3050
        %5393 = vmatprep.subr.mxu0 %v3046
        %5394 = vmatpush2.msra.mxu0 %v3045
        %5395 = vmatprep.subr.mxu0 %v3041
        %5396 = vmatpush2.msra.mxu0 %v3040
        %5397 = vmatprep.subr.mxu0 %v3036
        %5398 = vmatpush2.msra.mxu0 %v3035
        %5399 = vmatprep.subr.mxu0 %v3031
        %5400 = vmatpush2.msra.mxu0 %v3030
        %5401 = vmatprep.subr.mxu0 %v3026
        %5402 = vmatpush2.msra.mxu0 %v3025
        %5403 = vmatprep.mubr.f32.mxu0 %v2714
        %5404 = vmatmul.mubr.f32.gmra.mxu0 %v2713
        %v5405 = vpop.f32.mrf.mxu0
        %v5406 = vadd.f32 %v5281, %v5405
        %v5407 = vpop.f32.mrf.mxu0
        %v5408 = vadd.f32 %v5283, %v5407
        %5409 = vmatprep.mubr.f32.mxu0 %v2720
        %5410 = vmatmul.mubr.f32.gmra.mxu0 %v2719
        %v5411 = vpop.f32.mrf.mxu0
        %v5412 = vadd.f32 %v5287, %v5411
        %v5413 = vpop.f32.mrf.mxu0
        %v5414 = vadd.f32 %v5289, %v5413
        %5415 = vmatprep.mubr.f32.mxu0 %v2726
        %5416 = vmatmul.mubr.f32.gmra.mxu0 %v2725
        %v5417 = vpop.f32.mrf.mxu0
        %v5418 = vadd.f32 %v5293, %v5417
        %v5419 = vpop.f32.mrf.mxu0
        %v5420 = vadd.f32 %v5295, %v5419
        %5421 = vmatprep.mubr.f32.mxu0 %v2732
        %5422 = vmatmul.mubr.f32.gmra.mxu0 %v2731
        %v5423 = vpop.f32.mrf.mxu0
        %v5424 = vadd.f32 %v5299, %v5423
        %v5425 = vpop.f32.mrf.mxu0
        %v5426 = vadd.f32 %v5301, %v5425
        %5427 = vmatprep.mubr.f32.mxu0 %v2738
        %5428 = vmatmul.mubr.f32.gmra.mxu0 %v2737
        %v5429 = vpop.f32.mrf.mxu0
        %v5430 = vadd.f32 %v5305, %v5429
        %v5431 = vpop.f32.mrf.mxu0
        %v5432 = vadd.f32 %v5307, %v5431
        %5433 = vmatprep.mubr.f32.mxu0 %v2744
        %5434 = vmatmul.mubr.f32.gmra.mxu0 %v2743
        %v5435 = vpop.f32.mrf.mxu0
        %v5436 = vadd.f32 %v5311, %v5435
        %v5437 = vpop.f32.mrf.mxu0
        %v5438 = vadd.f32 %v5313, %v5437
        %5439 = vmatprep.mubr.f32.mxu0 %v2750
        %5440 = vmatmul.mubr.f32.gmra.mxu0 %v2749
        %v5441 = vpop.f32.mrf.mxu0
        %v5442 = vadd.f32 %v5317, %v5441
        %v5443 = vpop.f32.mrf.mxu0
        %v5444 = vadd.f32 %v5319, %v5443
        %5445 = vmatprep.mubr.f32.mxu0 %v2756
        %5446 = vmatmul.mubr.f32.gmra.mxu0 %v2755
        %v5447 = vpop.f32.mrf.mxu0
        %v5448 = vadd.f32 %v5323, %v5447
        %v5449 = vpop.f32.mrf.mxu0
        %v5450 = vadd.f32 %v5325, %v5449
        %5451 = vmatprep.mubr.f32.mxu0 %v2762
        %5452 = vmatmul.mubr.f32.gmra.mxu0 %v2761
        %v5453 = vpop.f32.mrf.mxu0
        %v5454 = vadd.f32 %v5329, %v5453
        %v5455 = vpop.f32.mrf.mxu0
        %v5456 = vadd.f32 %v5331, %v5455
        %5457 = vmatprep.mubr.f32.mxu0 %v2768
        %5458 = vmatmul.mubr.f32.gmra.mxu0 %v2767
        %v5459 = vpop.f32.mrf.mxu0
        %v5460 = vadd.f32 %v5335, %v5459
        %v5461 = vpop.f32.mrf.mxu0
        %v5462 = vadd.f32 %v5337, %v5461
        %5463 = vdwg.mxu0
        %5464 = vmatprep.subr.mxu0 %v3181
        %5465 = vmatpush1.msra.mxu0 %v3180
        %5466 = vmatprep.subr.mxu0 %v3176
        %5467 = vmatpush1.msra.mxu0 %v3175
        %5468 = vmatprep.subr.mxu0 %v3171
        %5469 = vmatpush1.msra.mxu0 %v3170
        %5470 = vmatprep.subr.mxu0 %v3166
        %5471 = vmatpush1.msra.mxu0 %v3165
        %5472 = vmatprep.subr.mxu0 %v3161
        %5473 = vmatpush1.msra.mxu0 %v3160
        %5474 = vmatprep.subr.mxu0 %v3156
        %5475 = vmatpush1.msra.mxu0 %v3155
        %5476 = vmatprep.subr.mxu0 %v3151
        %5477 = vmatpush1.msra.mxu0 %v3150
        %5478 = vmatprep.subr.mxu0 %v3146
        %5479 = vmatpush1.msra.mxu0 %v3145
        %5480 = vmatprep.subr.mxu0 %v3141
        %5481 = vmatpush1.msra.mxu0 %v3140
        %5482 = vmatprep.subr.mxu0 %v3136
        %5483 = vmatpush1.msra.mxu0 %v3135
        %5484 = vmatprep.subr.mxu0 %v3131
        %5485 = vmatpush1.msra.mxu0 %v3130
        %5486 = vmatprep.subr.mxu0 %v3126
        %5487 = vmatpush1.msra.mxu0 %v3125
        %5488 = vmatprep.subr.mxu0 %v3121
        %5489 = vmatpush1.msra.mxu0 %v3120
        %5490 = vmatprep.subr.mxu0 %v3116
        %5491 = vmatpush1.msra.mxu0 %v3115
        %5492 = vmatprep.subr.mxu0 %v3111
        %5493 = vmatpush1.msra.mxu0 %v3110
        %5494 = vmatprep.subr.mxu0 %v3106
        %5495 = vmatpush1.msra.mxu0 %v3105
        %5496 = vmatprep.subr.mxu0 %v3261
        %5497 = vmatpush2.msra.mxu0 %v3260
        %5498 = vmatprep.subr.mxu0 %v3256
        %5499 = vmatpush2.msra.mxu0 %v3255
        %5500 = vmatprep.subr.mxu0 %v3251
        %5501 = vmatpush2.msra.mxu0 %v3250
        %5502 = vmatprep.subr.mxu0 %v3246
        %5503 = vmatpush2.msra.mxu0 %v3245
        %5504 = vmatprep.subr.mxu0 %v3241
        %5505 = vmatpush2.msra.mxu0 %v3240
        %5506 = vmatprep.subr.mxu0 %v3236
        %5507 = vmatpush2.msra.mxu0 %v3235
        %5508 = vmatprep.subr.mxu0 %v3231
        %5509 = vmatpush2.msra.mxu0 %v3230
        %5510 = vmatprep.subr.mxu0 %v3226
        %5511 = vmatpush2.msra.mxu0 %v3225
        %5512 = vmatprep.subr.mxu0 %v3221
        %5513 = vmatpush2.msra.mxu0 %v3220
        %5514 = vmatprep.subr.mxu0 %v3216
        %5515 = vmatpush2.msra.mxu0 %v3215
        %5516 = vmatprep.subr.mxu0 %v3211
        %5517 = vmatpush2.msra.mxu0 %v3210
        %5518 = vmatprep.subr.mxu0 %v3206
        %5519 = vmatpush2.msra.mxu0 %v3205
        %5520 = vmatprep.subr.mxu0 %v3201
        %5521 = vmatpush2.msra.mxu0 %v3200
        %5522 = vmatprep.subr.mxu0 %v3196
        %5523 = vmatpush2.msra.mxu0 %v3195
        %5524 = vmatprep.subr.mxu0 %v3191
        %5525 = vmatpush2.msra.mxu0 %v3190
        %5526 = vmatprep.subr.mxu0 %v3186
        %5527 = vmatpush2.msra.mxu0 %v3185
        %5528 = vmatprep.mubr.f32.mxu0 %v2716
        %5529 = vmatmul.mubr.f32.gmra.mxu0 %v2715
        %v5530 = vpop.f32.mrf.mxu0
        %v5531 = vadd.f32 %v5406, %v5530
        %v5532 = vpop.f32.mrf.mxu0
        %v5533 = vadd.f32 %v5408, %v5532
        %5534 = vmatprep.mubr.f32.mxu0 %v2722
        %5535 = vmatmul.mubr.f32.gmra.mxu0 %v2721
        %v5536 = vpop.f32.mrf.mxu0
        %v5537 = vadd.f32 %v5412, %v5536
        %v5538 = vpop.f32.mrf.mxu0
        %v5539 = vadd.f32 %v5414, %v5538
        %5540 = vmatprep.mubr.f32.mxu0 %v2728
        %5541 = vmatmul.mubr.f32.gmra.mxu0 %v2727
        %v5542 = vpop.f32.mrf.mxu0
        %v5543 = vadd.f32 %v5418, %v5542
        %v5544 = vpop.f32.mrf.mxu0
        %v5545 = vadd.f32 %v5420, %v5544
        %5546 = vmatprep.mubr.f32.mxu0 %v2734
        %5547 = vmatmul.mubr.f32.gmra.mxu0 %v2733
        %v5548 = vpop.f32.mrf.mxu0
        %v5549 = vadd.f32 %v5424, %v5548
        %v5550 = vpop.f32.mrf.mxu0
        %v5551 = vadd.f32 %v5426, %v5550
        %5552 = vmatprep.mubr.f32.mxu0 %v2740
        %5553 = vmatmul.mubr.f32.gmra.mxu0 %v2739
        %v5554 = vpop.f32.mrf.mxu0
        %v5555 = vadd.f32 %v5430, %v5554
        %v5556 = vpop.f32.mrf.mxu0
        %v5557 = vadd.f32 %v5432, %v5556
        %5558 = vmatprep.mubr.f32.mxu0 %v2746
        %5559 = vmatmul.mubr.f32.gmra.mxu0 %v2745
        %v5560 = vpop.f32.mrf.mxu0
        %v5561 = vadd.f32 %v5436, %v5560
        %v5562 = vpop.f32.mrf.mxu0
        %v5563 = vadd.f32 %v5438, %v5562
        %5564 = vmatprep.mubr.f32.mxu0 %v2752
        %5565 = vmatmul.mubr.f32.gmra.mxu0 %v2751
        %v5566 = vpop.f32.mrf.mxu0
        %v5567 = vadd.f32 %v5442, %v5566
        %v5568 = vpop.f32.mrf.mxu0
        %v5569 = vadd.f32 %v5444, %v5568
        %5570 = vmatprep.mubr.f32.mxu0 %v2758
        %5571 = vmatmul.mubr.f32.gmra.mxu0 %v2757
        %v5572 = vpop.f32.mrf.mxu0
        %v5573 = vadd.f32 %v5448, %v5572
        %v5574 = vpop.f32.mrf.mxu0
        %v5575 = vadd.f32 %v5450, %v5574
        %5576 = vmatprep.mubr.f32.mxu0 %v2764
        %5577 = vmatmul.mubr.f32.gmra.mxu0 %v2763
        %v5578 = vpop.f32.mrf.mxu0
        %v5579 = vadd.f32 %v5454, %v5578
        %v5580 = vpop.f32.mrf.mxu0
        %v5581 = vadd.f32 %v5456, %v5580
        %5582 = vmatprep.mubr.f32.mxu0 %v2770
        %5583 = vmatmul.mubr.f32.gmra.mxu0 %v2769
        %v5584 = vpop.f32.mrf.mxu0
        %v5585 = vadd.f32 %v5460, %v5584
        %v5586 = vpop.f32.mrf.mxu0
        %v5587 = vadd.f32 %v5462, %v5586
        %5588 = vdwg.mxu0
        %5589 = vmatprep.subr.mxu0 0.0
        %5590 = vmatpush1.msra.mxu0 %v2862
        %5591 = vmatprep.subr.mxu0 0.0
        %5592 = vmatpush1.msra.mxu0 %v2857
        %5593 = vmatprep.subr.mxu0 0.0
        %5594 = vmatpush1.msra.mxu0 %v2852
        %5595 = vmatprep.subr.mxu0 0.0
        %5596 = vmatpush1.msra.mxu0 %v2847
        %5597 = vmatprep.subr.mxu0 0.0
        %5598 = vmatpush1.msra.mxu0 %v2842
        %5599 = vmatprep.subr.mxu0 0.0
        %5600 = vmatpush1.msra.mxu0 %v2837
        %5601 = vmatprep.subr.mxu0 0.0
        %5602 = vmatpush1.msra.mxu0 %v2832
        %5603 = vmatprep.subr.mxu0 0.0
        %5604 = vmatpush1.msra.mxu0 %v2827
        %5605 = vmatprep.subr.mxu0 0.0
        %5606 = vmatpush1.msra.mxu0 %v2822
        %5607 = vmatprep.subr.mxu0 0.0
        %5608 = vmatpush1.msra.mxu0 %v2817
        %5609 = vmatprep.subr.mxu0 0.0
        %5610 = vmatpush1.msra.mxu0 %v2812
        %5611 = vmatprep.subr.mxu0 0.0
        %5612 = vmatpush1.msra.mxu0 %v2807
        %5613 = vmatprep.subr.mxu0 0.0
        %5614 = vmatpush1.msra.mxu0 %v2802
        %5615 = vmatprep.subr.mxu0 0.0
        %5616 = vmatpush1.msra.mxu0 %v2797
        %5617 = vmatprep.subr.mxu0 0.0
        %5618 = vmatpush1.msra.mxu0 %v2792
        %5619 = vmatprep.subr.mxu0 0.0
        %5620 = vmatpush1.msra.mxu0 %v2787
        %5621 = vmatprep.subr.mxu0 0.0
        %5622 = vmatpush2.msra.mxu0 %v2942
        %5623 = vmatprep.subr.mxu0 0.0
        %5624 = vmatpush2.msra.mxu0 %v2937
        %5625 = vmatprep.subr.mxu0 0.0
        %5626 = vmatpush2.msra.mxu0 %v2932
        %5627 = vmatprep.subr.mxu0 0.0
        %5628 = vmatpush2.msra.mxu0 %v2927
        %5629 = vmatprep.subr.mxu0 0.0
        %5630 = vmatpush2.msra.mxu0 %v2922
        %5631 = vmatprep.subr.mxu0 0.0
        %5632 = vmatpush2.msra.mxu0 %v2917
        %5633 = vmatprep.subr.mxu0 0.0
        %5634 = vmatpush2.msra.mxu0 %v2912
        %5635 = vmatprep.subr.mxu0 0.0
        %5636 = vmatpush2.msra.mxu0 %v2907
        %5637 = vmatprep.subr.mxu0 0.0
        %5638 = vmatpush2.msra.mxu0 %v2902
        %5639 = vmatprep.subr.mxu0 0.0
        %5640 = vmatpush2.msra.mxu0 %v2897
        %5641 = vmatprep.subr.mxu0 0.0
        %5642 = vmatpush2.msra.mxu0 %v2892
        %5643 = vmatprep.subr.mxu0 0.0
        %5644 = vmatpush2.msra.mxu0 %v2887
        %5645 = vmatprep.subr.mxu0 0.0
        %5646 = vmatpush2.msra.mxu0 %v2882
        %5647 = vmatprep.subr.mxu0 0.0
        %5648 = vmatpush2.msra.mxu0 %v2877
        %5649 = vmatprep.subr.mxu0 0.0
        %5650 = vmatpush2.msra.mxu0 %v2872
        %5651 = vmatprep.subr.mxu0 0.0
        %5652 = vmatpush2.msra.mxu0 %v2867
        %5653 = vmatprep.mubr.f32.mxu0 %v2712
        %5654 = vmatmul.mubr.f32.gmra.mxu0 %v2711
        %v5655 = vpop.f32.mrf.mxu0
        %v5656 = vadd.f32 %v4791, %v5655
        %v5657 = vpop.f32.mrf.mxu0
        %5658 = vmatprep.mubr.f32.mxu0 %v2718
        %5659 = vmatmul.mubr.f32.gmra.mxu0 %v2717
        %v5660 = vpop.f32.mrf.mxu0
        %v5661 = vadd.f32 %v4796, %v5660
        %v5662 = vpop.f32.mrf.mxu0
        %5663 = vmatprep.mubr.f32.mxu0 %v2724
        %5664 = vmatmul.mubr.f32.gmra.mxu0 %v2723
        %v5665 = vpop.f32.mrf.mxu0
        %v5666 = vadd.f32 %v4801, %v5665
        %v5667 = vpop.f32.mrf.mxu0
        %5668 = vmatprep.mubr.f32.mxu0 %v2730
        %5669 = vmatmul.mubr.f32.gmra.mxu0 %v2729
        %v5670 = vpop.f32.mrf.mxu0
        %v5671 = vadd.f32 %v4806, %v5670
        %v5672 = vpop.f32.mrf.mxu0
        %5673 = vmatprep.mubr.f32.mxu0 %v2736
        %5674 = vmatmul.mubr.f32.gmra.mxu0 %v2735
        %v5675 = vpop.f32.mrf.mxu0
        %v5676 = vadd.f32 %v4811, %v5675
        %v5677 = vpop.f32.mrf.mxu0
        %5678 = vmatprep.mubr.f32.mxu0 %v2742
        %5679 = vmatmul.mubr.f32.gmra.mxu0 %v2741
        %v5680 = vpop.f32.mrf.mxu0
        %v5681 = vadd.f32 %v4816, %v5680
        %v5682 = vpop.f32.mrf.mxu0
        %5683 = vmatprep.mubr.f32.mxu0 %v2748
        %5684 = vmatmul.mubr.f32.gmra.mxu0 %v2747
        %v5685 = vpop.f32.mrf.mxu0
        %v5686 = vadd.f32 %v4821, %v5685
        %v5687 = vpop.f32.mrf.mxu0
        %5688 = vmatprep.mubr.f32.mxu0 %v2754
        %5689 = vmatmul.mubr.f32.gmra.mxu0 %v2753
        %v5690 = vpop.f32.mrf.mxu0
        %v5691 = vadd.f32 %v4826, %v5690
        %v5692 = vpop.f32.mrf.mxu0
        %5693 = vmatprep.mubr.f32.mxu0 %v2760
        %5694 = vmatmul.mubr.f32.gmra.mxu0 %v2759
        %v5695 = vpop.f32.mrf.mxu0
        %v5696 = vadd.f32 %v4831, %v5695
        %v5697 = vpop.f32.mrf.mxu0
        %5698 = vmatprep.mubr.f32.mxu0 %v2766
        %5699 = vmatmul.mubr.f32.gmra.mxu0 %v2765
        %v5700 = vpop.f32.mrf.mxu0
        %v5701 = vadd.f32 %v4836, %v5700
        %v5702 = vpop.f32.mrf.mxu0
        %5703 = vdwg.mxu0
        %5704 = vmatprep.subr.mxu0 0.0
        %5705 = vmatpush1.msra.mxu0 %v3022
        %5706 = vmatprep.subr.mxu0 0.0
        %5707 = vmatpush1.msra.mxu0 %v3017
        %5708 = vmatprep.subr.mxu0 0.0
        %5709 = vmatpush1.msra.mxu0 %v3012
        %5710 = vmatprep.subr.mxu0 0.0
        %5711 = vmatpush1.msra.mxu0 %v3007
        %5712 = vmatprep.subr.mxu0 0.0
        %5713 = vmatpush1.msra.mxu0 %v3002
        %5714 = vmatprep.subr.mxu0 0.0
        %5715 = vmatpush1.msra.mxu0 %v2997
        %5716 = vmatprep.subr.mxu0 0.0
        %5717 = vmatpush1.msra.mxu0 %v2992
        %5718 = vmatprep.subr.mxu0 0.0
        %5719 = vmatpush1.msra.mxu0 %v2987
        %5720 = vmatprep.subr.mxu0 0.0
        %5721 = vmatpush1.msra.mxu0 %v2982
        %5722 = vmatprep.subr.mxu0 0.0
        %5723 = vmatpush1.msra.mxu0 %v2977
        %5724 = vmatprep.subr.mxu0 0.0
        %5725 = vmatpush1.msra.mxu0 %v2972
        %5726 = vmatprep.subr.mxu0 0.0
        %5727 = vmatpush1.msra.mxu0 %v2967
        %5728 = vmatprep.subr.mxu0 0.0
        %5729 = vmatpush1.msra.mxu0 %v2962
        %5730 = vmatprep.subr.mxu0 0.0
        %5731 = vmatpush1.msra.mxu0 %v2957
        %5732 = vmatprep.subr.mxu0 0.0
        %5733 = vmatpush1.msra.mxu0 %v2952
        %5734 = vmatprep.subr.mxu0 0.0
        %5735 = vmatpush1.msra.mxu0 %v2947
        %5736 = vmatprep.subr.mxu0 0.0
        %5737 = vmatpush2.msra.mxu0 %v3102
        %5738 = vmatprep.subr.mxu0 0.0
        %5739 = vmatpush2.msra.mxu0 %v3097
        %5740 = vmatprep.subr.mxu0 0.0
        %5741 = vmatpush2.msra.mxu0 %v3092
        %5742 = vmatprep.subr.mxu0 0.0
        %5743 = vmatpush2.msra.mxu0 %v3087
        %5744 = vmatprep.subr.mxu0 0.0
        %5745 = vmatpush2.msra.mxu0 %v3082
        %5746 = vmatprep.subr.mxu0 0.0
        %5747 = vmatpush2.msra.mxu0 %v3077
        %5748 = vmatprep.subr.mxu0 0.0
        %5749 = vmatpush2.msra.mxu0 %v3072
        %5750 = vmatprep.subr.mxu0 0.0
        %5751 = vmatpush2.msra.mxu0 %v3067
        %5752 = vmatprep.subr.mxu0 0.0
        %5753 = vmatpush2.msra.mxu0 %v3062
        %5754 = vmatprep.subr.mxu0 0.0
        %5755 = vmatpush2.msra.mxu0 %v3057
        %5756 = vmatprep.subr.mxu0 0.0
        %5757 = vmatpush2.msra.mxu0 %v3052
        %5758 = vmatprep.subr.mxu0 0.0
        %5759 = vmatpush2.msra.mxu0 %v3047
        %5760 = vmatprep.subr.mxu0 0.0
        %5761 = vmatpush2.msra.mxu0 %v3042
        %5762 = vmatprep.subr.mxu0 0.0
        %5763 = vmatpush2.msra.mxu0 %v3037
        %5764 = vmatprep.subr.mxu0 0.0
        %5765 = vmatpush2.msra.mxu0 %v3032
        %5766 = vmatprep.subr.mxu0 0.0
        %5767 = vmatpush2.msra.mxu0 %v3027
        %5768 = vmatprep.mubr.f32.mxu0 %v2714
        %5769 = vmatmul.mubr.f32.gmra.mxu0 %v2713
        %v5770 = vpop.f32.mrf.mxu0
        %v5771 = vadd.f32 %v5656, %v5770
        %v5772 = vpop.f32.mrf.mxu0
        %5773 = vmatprep.mubr.f32.mxu0 %v2720
        %5774 = vmatmul.mubr.f32.gmra.mxu0 %v2719
        %v5775 = vpop.f32.mrf.mxu0
        %v5776 = vadd.f32 %v5661, %v5775
        %v5777 = vpop.f32.mrf.mxu0
        %5778 = vmatprep.mubr.f32.mxu0 %v2726
        %5779 = vmatmul.mubr.f32.gmra.mxu0 %v2725
        %v5780 = vpop.f32.mrf.mxu0
        %v5781 = vadd.f32 %v5666, %v5780
        %v5782 = vpop.f32.mrf.mxu0
        %5783 = vmatprep.mubr.f32.mxu0 %v2732
        %5784 = vmatmul.mubr.f32.gmra.mxu0 %v2731
        %v5785 = vpop.f32.mrf.mxu0
        %v5786 = vadd.f32 %v5671, %v5785
        %v5787 = vpop.f32.mrf.mxu0
        %5788 = vmatprep.mubr.f32.mxu0 %v2738
        %5789 = vmatmul.mubr.f32.gmra.mxu0 %v2737
        %v5790 = vpop.f32.mrf.mxu0
        %v5791 = vadd.f32 %v5676, %v5790
        %v5792 = vpop.f32.mrf.mxu0
        %5793 = vmatprep.mubr.f32.mxu0 %v2744
        %5794 = vmatmul.mubr.f32.gmra.mxu0 %v2743
        %v5795 = vpop.f32.mrf.mxu0
        %v5796 = vadd.f32 %v5681, %v5795
        %v5797 = vpop.f32.mrf.mxu0
        %5798 = vmatprep.mubr.f32.mxu0 %v2750
        %5799 = vmatmul.mubr.f32.gmra.mxu0 %v2749
        %v5800 = vpop.f32.mrf.mxu0
        %v5801 = vadd.f32 %v5686, %v5800
        %v5802 = vpop.f32.mrf.mxu0
        %5803 = vmatprep.mubr.f32.mxu0 %v2756
        %5804 = vmatmul.mubr.f32.gmra.mxu0 %v2755
        %v5805 = vpop.f32.mrf.mxu0
        %v5806 = vadd.f32 %v5691, %v5805
        %v5807 = vpop.f32.mrf.mxu0
        %5808 = vmatprep.mubr.f32.mxu0 %v2762
        %5809 = vmatmul.mubr.f32.gmra.mxu0 %v2761
        %v5810 = vpop.f32.mrf.mxu0
        %v5811 = vadd.f32 %v5696, %v5810
        %v5812 = vpop.f32.mrf.mxu0
        %5813 = vmatprep.mubr.f32.mxu0 %v2768
        %5814 = vmatmul.mubr.f32.gmra.mxu0 %v2767
        %v5815 = vpop.f32.mrf.mxu0
        %v5816 = vadd.f32 %v5701, %v5815
        %v5817 = vpop.f32.mrf.mxu0
        %5818 = vdwg.mxu0
        %5819 = vmatprep.subr.mxu0 0.0
        %5820 = vmatpush1.msra.mxu0 %v3182
        %5821 = vmatprep.subr.mxu0 0.0
        %5822 = vmatpush1.msra.mxu0 %v3177
        %5823 = vmatprep.subr.mxu0 0.0
        %5824 = vmatpush1.msra.mxu0 %v3172
        %5825 = vmatprep.subr.mxu0 0.0
        %5826 = vmatpush1.msra.mxu0 %v3167
        %5827 = vmatprep.subr.mxu0 0.0
        %5828 = vmatpush1.msra.mxu0 %v3162
        %5829 = vmatprep.subr.mxu0 0.0
        %5830 = vmatpush1.msra.mxu0 %v3157
        %5831 = vmatprep.subr.mxu0 0.0
        %5832 = vmatpush1.msra.mxu0 %v3152
        %5833 = vmatprep.subr.mxu0 0.0
        %5834 = vmatpush1.msra.mxu0 %v3147
        %5835 = vmatprep.subr.mxu0 0.0
        %5836 = vmatpush1.msra.mxu0 %v3142
        %5837 = vmatprep.subr.mxu0 0.0
        %5838 = vmatpush1.msra.mxu0 %v3137
        %5839 = vmatprep.subr.mxu0 0.0
        %5840 = vmatpush1.msra.mxu0 %v3132
        %5841 = vmatprep.subr.mxu0 0.0
        %5842 = vmatpush1.msra.mxu0 %v3127
        %5843 = vmatprep.subr.mxu0 0.0
        %5844 = vmatpush1.msra.mxu0 %v3122
        %5845 = vmatprep.subr.mxu0 0.0
        %5846 = vmatpush1.msra.mxu0 %v3117
        %5847 = vmatprep.subr.mxu0 0.0
        %5848 = vmatpush1.msra.mxu0 %v3112
        %5849 = vmatprep.subr.mxu0 0.0
        %5850 = vmatpush1.msra.mxu0 %v3107
        %5851 = vmatprep.subr.mxu0 0.0
        %5852 = vmatpush2.msra.mxu0 %v3262
        %5853 = vmatprep.subr.mxu0 0.0
        %5854 = vmatpush2.msra.mxu0 %v3257
        %5855 = vmatprep.subr.mxu0 0.0
        %5856 = vmatpush2.msra.mxu0 %v3252
        %5857 = vmatprep.subr.mxu0 0.0
        %5858 = vmatpush2.msra.mxu0 %v3247
        %5859 = vmatprep.subr.mxu0 0.0
        %5860 = vmatpush2.msra.mxu0 %v3242
        %5861 = vmatprep.subr.mxu0 0.0
        %5862 = vmatpush2.msra.mxu0 %v3237
        %5863 = vmatprep.subr.mxu0 0.0
        %5864 = vmatpush2.msra.mxu0 %v3232
        %5865 = vmatprep.subr.mxu0 0.0
        %5866 = vmatpush2.msra.mxu0 %v3227
        %5867 = vmatprep.subr.mxu0 0.0
        %5868 = vmatpush2.msra.mxu0 %v3222
        %5869 = vmatprep.subr.mxu0 0.0
        %5870 = vmatpush2.msra.mxu0 %v3217
        %5871 = vmatprep.subr.mxu0 0.0
        %5872 = vmatpush2.msra.mxu0 %v3212
        %5873 = vmatprep.subr.mxu0 0.0
        %5874 = vmatpush2.msra.mxu0 %v3207
        %5875 = vmatprep.subr.mxu0 0.0
        %5876 = vmatpush2.msra.mxu0 %v3202
        %5877 = vmatprep.subr.mxu0 0.0
        %5878 = vmatpush2.msra.mxu0 %v3197
        %5879 = vmatprep.subr.mxu0 0.0
        %5880 = vmatpush2.msra.mxu0 %v3192
        %5881 = vmatprep.subr.mxu0 0.0
        %5882 = vmatpush2.msra.mxu0 %v3187
        %5883 = vmatprep.mubr.f32.mxu0 %v2716
        %5884 = vmatmul.mubr.f32.gmra.mxu0 %v2715
        %v5885 = vpop.f32.mrf.mxu0
        %v5886 = vadd.f32 %v5771, %v5885
        %v5887 = vpop.f32.mrf.mxu0
        %5888 = vmatprep.mubr.f32.mxu0 %v2722
        %5889 = vmatmul.mubr.f32.gmra.mxu0 %v2721
        %v5890 = vpop.f32.mrf.mxu0
        %v5891 = vadd.f32 %v5776, %v5890
        %v5892 = vpop.f32.mrf.mxu0
        %5893 = vmatprep.mubr.f32.mxu0 %v2728
        %5894 = vmatmul.mubr.f32.gmra.mxu0 %v2727
        %v5895 = vpop.f32.mrf.mxu0
        %v5896 = vadd.f32 %v5781, %v5895
        %v5897 = vpop.f32.mrf.mxu0
        %5898 = vmatprep.mubr.f32.mxu0 %v2734
        %5899 = vmatmul.mubr.f32.gmra.mxu0 %v2733
        %v5900 = vpop.f32.mrf.mxu0
        %v5901 = vadd.f32 %v5786, %v5900
        %v5902 = vpop.f32.mrf.mxu0
        %5903 = vmatprep.mubr.f32.mxu0 %v2740
        %5904 = vmatmul.mubr.f32.gmra.mxu0 %v2739
        %v5905 = vpop.f32.mrf.mxu0
        %v5906 = vadd.f32 %v5791, %v5905
        %v5907 = vpop.f32.mrf.mxu0
        %5908 = vmatprep.mubr.f32.mxu0 %v2746
        %5909 = vmatmul.mubr.f32.gmra.mxu0 %v2745
        %v5910 = vpop.f32.mrf.mxu0
        %v5911 = vadd.f32 %v5796, %v5910
        %v5912 = vpop.f32.mrf.mxu0
        %5913 = vmatprep.mubr.f32.mxu0 %v2752
        %5914 = vmatmul.mubr.f32.gmra.mxu0 %v2751
        %v5915 = vpop.f32.mrf.mxu0
        %v5916 = vadd.f32 %v5801, %v5915
        %v5917 = vpop.f32.mrf.mxu0
        %5918 = vmatprep.mubr.f32.mxu0 %v2758
        %5919 = vmatmul.mubr.f32.gmra.mxu0 %v2757
        %v5920 = vpop.f32.mrf.mxu0
        %v5921 = vadd.f32 %v5806, %v5920
        %v5922 = vpop.f32.mrf.mxu0
        %5923 = vmatprep.mubr.f32.mxu0 %v2764
        %5924 = vmatmul.mubr.f32.gmra.mxu0 %v2763
        %v5925 = vpop.f32.mrf.mxu0
        %v5926 = vadd.f32 %v5811, %v5925
        %v5927 = vpop.f32.mrf.mxu0
        %5928 = vmatprep.mubr.f32.mxu0 %v2770
        %5929 = vmatmul.mubr.f32.gmra.mxu0 %v2769
        %v5930 = vpop.f32.mrf.mxu0
        %v5931 = vadd.f32 %v5816, %v5930
        %v5932 = vpop.f32.mrf.mxu0
        %5933 = vdwg.mxu0
        %s5934 = scalar_lea.vmem [#allocation8], 7680
        %v5935 = vld [vmem:[%s5934] sm:$0xff]
        %v5936 = vld [vmem:[%s5934 + $0x8] sm:$0xff]
        %v5937 = vld [vmem:[%s5934 + $0x10] sm:$0xff]
        %v5938 = vld [vmem:[%s5934 + $0x18] sm:$0xff]
        %v5939 = vld [vmem:[%s5934 + $0x20] sm:$0xff]
        %v5940 = vld [vmem:[%s5934 + $0x28] sm:$0xff]
        %v5941 = vld [vmem:[%s5934 + $0x30] sm:$0xff]
        %v5942 = vld [vmem:[%s5934 + $0x38] sm:$0xff]
        %v5943 = vld [vmem:[%s5934 + $0x40] sm:$0xff]
        %v5944 = vld [vmem:[%s5934 + $0x48] sm:$0xff]
        %v5945 = vld [vmem:[%s5934 + $0x50] sm:$0xff]
        %v5946 = vld [vmem:[%s5934 + $0x58] sm:$0xff]
        %v5947 = vld [vmem:[%s5934 + $0x60] sm:$0xff]
        %v5948 = vld [vmem:[%s5934 + $0x68] sm:$0xff]
        %v5949 = vld [vmem:[%s5934 + $0x70] sm:$0xff]
        %v5950 = vld [vmem:[%s5934 + $0x78] sm:$0xff]
        %v5951 = vld [vmem:[%s5934 + $0x80] sm:$0xff]
        %v5952 = vld [vmem:[%s5934 + $0x88] sm:$0xff]
        %v5953 = vld [vmem:[%s5934 + $0x90] sm:$0xff]
        %v5954 = vld [vmem:[%s5934 + $0x98] sm:$0xff]
        %v5955 = vld [vmem:[%s5934 + $0xa0] sm:$0xff]
        %v5956 = vld [vmem:[%s5934 + $0xa8] sm:$0xff]
        %v5957 = vld [vmem:[%s5934 + $0xb0] sm:$0xff]
        %v5958 = vld [vmem:[%s5934 + $0xb8] sm:$0xff]
        %v5959 = vld [vmem:[%s5934 + $0xc0] sm:$0xff]
        %v5960 = vld [vmem:[%s5934 + $0xc8] sm:$0xff]
        %v5961 = vld [vmem:[%s5934 + $0xd0] sm:$0xff]
        %v5962 = vld [vmem:[%s5934 + $0xd8] sm:$0xff]
        %v5963 = vld [vmem:[%s5934 + $0xe0] sm:$0xff]
        %v5964 = vld [vmem:[%s5934 + $0xe8] sm:$0xff]
        %v5965 = vld [vmem:[%s5934 + $0xf0] sm:$0xff]
        %v5966 = vld [vmem:[%s5934 + $0xf8] sm:$0xff]
        %v5967 = vld [vmem:[%s5934 + $0x100] sm:$0xff]
        %v5968 = vld [vmem:[%s5934 + $0x108] sm:$0xff]
        %v5969 = vld [vmem:[%s5934 + $0x110] sm:$0xff]
        %v5970 = vld [vmem:[%s5934 + $0x118] sm:$0xff]
        %v5971 = vld [vmem:[%s5934 + $0x120] sm:$0xff]
        %v5972 = vld [vmem:[%s5934 + $0x128] sm:$0xff]
        %v5973 = vld [vmem:[%s5934 + $0x130] sm:$0xff]
        %v5974 = vld [vmem:[%s5934 + $0x138] sm:$0xff]
        %v5975 = vld [vmem:[%s5934 + $0x140] sm:$0xff]
        %v5976 = vld [vmem:[%s5934 + $0x148] sm:$0xff]
        %v5977 = vld [vmem:[%s5934 + $0x150] sm:$0xff]
        %v5978 = vld [vmem:[%s5934 + $0x158] sm:$0xff]
        %v5979 = vld [vmem:[%s5934 + $0x160] sm:$0xff]
        %v5980 = vld [vmem:[%s5934 + $0x168] sm:$0xff]
        %v5981 = vld [vmem:[%s5934 + $0x170] sm:$0xff]
        %v5982 = vld [vmem:[%s5934 + $0x178] sm:$0xff]
        %v5983 = vld [vmem:[%s5934 + $0x180] sm:$0xff]
        %v5984 = vld [vmem:[%s5934 + $0x188] sm:$0xff]
        %v5985 = vld [vmem:[%s5934 + $0x190] sm:$0xff]
        %v5986 = vld [vmem:[%s5934 + $0x198] sm:$0xff]
        %v5987 = vld [vmem:[%s5934 + $0x1a0] sm:$0xff]
        %v5988 = vld [vmem:[%s5934 + $0x1a8] sm:$0xff]
        %v5989 = vld [vmem:[%s5934 + $0x1b0] sm:$0xff]
        %v5990 = vld [vmem:[%s5934 + $0x1b8] sm:$0xff]
        %v5991 = vld [vmem:[%s5934 + $0x1c0] sm:$0xff]
        %v5992 = vld [vmem:[%s5934 + $0x1c8] sm:$0xff]
        %v5993 = vld [vmem:[%s5934 + $0x1d0] sm:$0xff]
        %v5994 = vld [vmem:[%s5934 + $0x1d8] sm:$0xff]
        %v5995 = vld [vmem:[%s5934 + $0x1e0] sm:$0xff]
        %v5996 = vld [vmem:[%s5934 + $0x1e8] sm:$0xff]
        %v5997 = vld [vmem:[%s5934 + $0x1f0] sm:$0xff]
        %v5998 = vld [vmem:[%s5934 + $0x1f8] sm:$0xff]
        %v5999 = vld [vmem:[%s5934 + $0x200] sm:$0xff]
        %v6000 = vld [vmem:[%s5934 + $0x208] sm:$0xff]
        %v6001 = vld [vmem:[%s5934 + $0x210] sm:$0xff]
        %v6002 = vld [vmem:[%s5934 + $0x218] sm:$0xff]
        %v6003 = vld [vmem:[%s5934 + $0x220] sm:$0xff]
        %v6004 = vld [vmem:[%s5934 + $0x228] sm:$0xff]
        %v6005 = vld [vmem:[%s5934 + $0x230] sm:$0xff]
        %v6006 = vld [vmem:[%s5934 + $0x238] sm:$0xff]
        %v6007 = vld [vmem:[%s5934 + $0x240] sm:$0xff]
        %v6008 = vld [vmem:[%s5934 + $0x248] sm:$0xff]
        %v6009 = vld [vmem:[%s5934 + $0x250] sm:$0xff]
        %v6010 = vld [vmem:[%s5934 + $0x258] sm:$0xff]
        %v6011 = vld [vmem:[%s5934 + $0x260] sm:$0xff]
        %v6012 = vld [vmem:[%s5934 + $0x268] sm:$0xff]
        %v6013 = vld [vmem:[%s5934 + $0x270] sm:$0xff]
        %v6014 = vld [vmem:[%s5934 + $0x278] sm:$0xff]
        %v6015 = vld [vmem:[%s5934 + $0x280] sm:$0xff]
        %v6016 = vld [vmem:[%s5934 + $0x288] sm:$0xff]
        %v6017 = vld [vmem:[%s5934 + $0x290] sm:$0xff]
        %v6018 = vld [vmem:[%s5934 + $0x298] sm:$0xff]
        %v6019 = vld [vmem:[%s5934 + $0x2a0] sm:$0xff]
        %v6020 = vld [vmem:[%s5934 + $0x2a8] sm:$0xff]
        %v6021 = vld [vmem:[%s5934 + $0x2b0] sm:$0xff]
        %v6022 = vld [vmem:[%s5934 + $0x2b8] sm:$0xff]
        %v6023 = vld [vmem:[%s5934 + $0x2c0] sm:$0xff]
        %v6024 = vld [vmem:[%s5934 + $0x2c8] sm:$0xff]
        %v6025 = vld [vmem:[%s5934 + $0x2d0] sm:$0xff]
        %v6026 = vld [vmem:[%s5934 + $0x2d8] sm:$0xff]
        %v6027 = vld [vmem:[%s5934 + $0x2e0] sm:$0xff]
        %v6028 = vld [vmem:[%s5934 + $0x2e8] sm:$0xff]
        %v6029 = vld [vmem:[%s5934 + $0x2f0] sm:$0xff]
        %v6030 = vld [vmem:[%s5934 + $0x2f8] sm:$0xff]
        %v6031 = vld [vmem:[%s5934 + $0x300] sm:$0xff]
        %v6032 = vld [vmem:[%s5934 + $0x308] sm:$0xff]
        %v6033 = vld [vmem:[%s5934 + $0x310] sm:$0xff]
        %v6034 = vld [vmem:[%s5934 + $0x318] sm:$0xff]
        %v6035 = vld [vmem:[%s5934 + $0x320] sm:$0xff]
        %v6036 = vld [vmem:[%s5934 + $0x328] sm:$0xff]
        %v6037 = vld [vmem:[%s5934 + $0x330] sm:$0xff]
        %v6038 = vld [vmem:[%s5934 + $0x338] sm:$0xff]
        %v6039 = vld [vmem:[%s5934 + $0x340] sm:$0xff]
        %v6040 = vld [vmem:[%s5934 + $0x348] sm:$0xff]
        %v6041 = vld [vmem:[%s5934 + $0x350] sm:$0xff]
        %v6042 = vld [vmem:[%s5934 + $0x358] sm:$0xff]
        %v6043 = vld [vmem:[%s5934 + $0x360] sm:$0xff]
        %v6044 = vld [vmem:[%s5934 + $0x368] sm:$0xff]
        %v6045 = vld [vmem:[%s5934 + $0x370] sm:$0xff]
        %v6046 = vld [vmem:[%s5934 + $0x378] sm:$0xff]
        %v6047 = vld [vmem:[%s5934 + $0x380] sm:$0xff]
        %v6048 = vld [vmem:[%s5934 + $0x388] sm:$0xff]
        %v6049 = vld [vmem:[%s5934 + $0x390] sm:$0xff]
        %v6050 = vld [vmem:[%s5934 + $0x398] sm:$0xff]
        %v6051 = vld [vmem:[%s5934 + $0x3a0] sm:$0xff]
        %v6052 = vld [vmem:[%s5934 + $0x3a8] sm:$0xff]
        %v6053 = vld [vmem:[%s5934 + $0x3b0] sm:$0xff]
        %v6054 = vld [vmem:[%s5934 + $0x3b8] sm:$0xff]
        %v6055 = vld [vmem:[%s5934 + $0x3c0] sm:$0xff]
        %v6056 = vld [vmem:[%s5934 + $0x3c8] sm:$0xff]
        %v6057 = vld [vmem:[%s5934 + $0x3d0] sm:$0xff]
        %v6058 = vld [vmem:[%s5934 + $0x3d8] sm:$0xff]
        %v6059 = vld [vmem:[%s5934 + $0x3e0] sm:$0xff]
        %v6060 = vld [vmem:[%s5934 + $0x3e8] sm:$0xff]
        %v6061 = vld [vmem:[%s5934 + $0x3f0] sm:$0xff]
        %v6062 = vld [vmem:[%s5934 + $0x3f8] sm:$0xff]
        %v6063 = vld [vmem:[%s5934 + $0x400] sm:$0xff]
        %v6064 = vld [vmem:[%s5934 + $0x408] sm:$0xff]
        %v6065 = vld [vmem:[%s5934 + $0x410] sm:$0xff]
        %v6066 = vld [vmem:[%s5934 + $0x418] sm:$0xff]
        %v6067 = vld [vmem:[%s5934 + $0x420] sm:$0xff]
        %v6068 = vld [vmem:[%s5934 + $0x428] sm:$0xff]
        %v6069 = vld [vmem:[%s5934 + $0x430] sm:$0xff]
        %v6070 = vld [vmem:[%s5934 + $0x438] sm:$0xff]
        %v6071 = vld [vmem:[%s5934 + $0x440] sm:$0xff]
        %v6072 = vld [vmem:[%s5934 + $0x448] sm:$0xff]
        %v6073 = vld [vmem:[%s5934 + $0x450] sm:$0xff]
        %v6074 = vld [vmem:[%s5934 + $0x458] sm:$0xff]
        %v6075 = vld [vmem:[%s5934 + $0x460] sm:$0xff]
        %v6076 = vld [vmem:[%s5934 + $0x468] sm:$0xff]
        %v6077 = vld [vmem:[%s5934 + $0x470] sm:$0xff]
        %v6078 = vld [vmem:[%s5934 + $0x478] sm:$0xff]
        %v6079 = vld [vmem:[%s5934 + $0x480] sm:$0xff]
        %v6080 = vld [vmem:[%s5934 + $0x488] sm:$0xff]
        %v6081 = vld [vmem:[%s5934 + $0x490] sm:$0xff]
        %v6082 = vld [vmem:[%s5934 + $0x498] sm:$0xff]
        %v6083 = vld [vmem:[%s5934 + $0x4a0] sm:$0xff]
        %v6084 = vld [vmem:[%s5934 + $0x4a8] sm:$0xff]
        %v6085 = vld [vmem:[%s5934 + $0x4b0] sm:$0xff]
        %v6086 = vld [vmem:[%s5934 + $0x4b8] sm:$0xff]
        %v6087 = vld [vmem:[%s5934 + $0x4c0] sm:$0xff]
        %v6088 = vld [vmem:[%s5934 + $0x4c8] sm:$0xff]
        %v6089 = vld [vmem:[%s5934 + $0x4d0] sm:$0xff]
        %v6090 = vld [vmem:[%s5934 + $0x4d8] sm:$0xff]
        %v6091 = vld [vmem:[%s5934 + $0x4e0] sm:$0xff]
        %v6092 = vld [vmem:[%s5934 + $0x4e8] sm:$0xff]
        %v6093 = vld [vmem:[%s5934 + $0x4f0] sm:$0xff]
        %v6094 = vld [vmem:[%s5934 + $0x4f8] sm:$0xff]
        %v6095 = vld [vmem:[%s5934 + $0x500] sm:$0xff]
        %v6096 = vld [vmem:[%s5934 + $0x508] sm:$0xff]
        %v6097 = vld [vmem:[%s5934 + $0x510] sm:$0xff]
        %v6098 = vld [vmem:[%s5934 + $0x518] sm:$0xff]
        %v6099 = vld [vmem:[%s5934 + $0x520] sm:$0xff]
        %v6100 = vld [vmem:[%s5934 + $0x528] sm:$0xff]
        %v6101 = vld [vmem:[%s5934 + $0x530] sm:$0xff]
        %v6102 = vld [vmem:[%s5934 + $0x538] sm:$0xff]
        %v6103 = vld [vmem:[%s5934 + $0x540] sm:$0xff]
        %v6104 = vld [vmem:[%s5934 + $0x548] sm:$0xff]
        %v6105 = vld [vmem:[%s5934 + $0x550] sm:$0xff]
        %v6106 = vld [vmem:[%s5934 + $0x558] sm:$0xff]
        %v6107 = vld [vmem:[%s5934 + $0x560] sm:$0xff]
        %v6108 = vld [vmem:[%s5934 + $0x568] sm:$0xff]
        %v6109 = vld [vmem:[%s5934 + $0x570] sm:$0xff]
        %v6110 = vld [vmem:[%s5934 + $0x578] sm:$0xff]
        %v6111 = vld [vmem:[%s5934 + $0x580] sm:$0xff]
        %v6112 = vld [vmem:[%s5934 + $0x588] sm:$0xff]
        %v6113 = vld [vmem:[%s5934 + $0x590] sm:$0xff]
        %v6114 = vld [vmem:[%s5934 + $0x598] sm:$0xff]
        %v6115 = vld [vmem:[%s5934 + $0x5a0] sm:$0xff]
        %v6116 = vld [vmem:[%s5934 + $0x5a8] sm:$0xff]
        %v6117 = vld [vmem:[%s5934 + $0x5b0] sm:$0xff]
        %v6118 = vld [vmem:[%s5934 + $0x5b8] sm:$0xff]
        %v6119 = vld [vmem:[%s5934 + $0x5c0] sm:$0xff]
        %v6120 = vld [vmem:[%s5934 + $0x5c8] sm:$0xff]
        %v6121 = vld [vmem:[%s5934 + $0x5d0] sm:$0xff]
        %v6122 = vld [vmem:[%s5934 + $0x5d8] sm:$0xff]
        %v6123 = vld [vmem:[%s5934 + $0x5e0] sm:$0xff]
        %v6124 = vld [vmem:[%s5934 + $0x5e8] sm:$0xff]
        %v6125 = vld [vmem:[%s5934 + $0x5f0] sm:$0xff]
        %v6126 = vld [vmem:[%s5934 + $0x5f8] sm:$0xff]
        %v6127 = vld [vmem:[%s5934 + $0x600] sm:$0xff]
        %v6128 = vld [vmem:[%s5934 + $0x608] sm:$0xff]
        %v6129 = vld [vmem:[%s5934 + $0x610] sm:$0xff]
        %v6130 = vld [vmem:[%s5934 + $0x618] sm:$0xff]
        %v6131 = vld [vmem:[%s5934 + $0x620] sm:$0xff]
        %v6132 = vld [vmem:[%s5934 + $0x628] sm:$0xff]
        %v6133 = vld [vmem:[%s5934 + $0x630] sm:$0xff]
        %v6134 = vld [vmem:[%s5934 + $0x638] sm:$0xff]
        %v6135 = vld [vmem:[%s5934 + $0x640] sm:$0xff]
        %v6136 = vld [vmem:[%s5934 + $0x648] sm:$0xff]
        %v6137 = vld [vmem:[%s5934 + $0x650] sm:$0xff]
        %v6138 = vld [vmem:[%s5934 + $0x658] sm:$0xff]
        %v6139 = vld [vmem:[%s5934 + $0x660] sm:$0xff]
        %v6140 = vld [vmem:[%s5934 + $0x668] sm:$0xff]
        %v6141 = vld [vmem:[%s5934 + $0x670] sm:$0xff]
        %v6142 = vld [vmem:[%s5934 + $0x678] sm:$0xff]
        %v6143 = vld [vmem:[%s5934 + $0x680] sm:$0xff]
        %v6144 = vld [vmem:[%s5934 + $0x688] sm:$0xff]
        %v6145 = vld [vmem:[%s5934 + $0x690] sm:$0xff]
        %v6146 = vld [vmem:[%s5934 + $0x698] sm:$0xff]
        %v6147 = vld [vmem:[%s5934 + $0x6a0] sm:$0xff]
        %v6148 = vld [vmem:[%s5934 + $0x6a8] sm:$0xff]
        %v6149 = vld [vmem:[%s5934 + $0x6b0] sm:$0xff]
        %v6150 = vld [vmem:[%s5934 + $0x6b8] sm:$0xff]
        %v6151 = vld [vmem:[%s5934 + $0x6c0] sm:$0xff]
        %v6152 = vld [vmem:[%s5934 + $0x6c8] sm:$0xff]
        %v6153 = vld [vmem:[%s5934 + $0x6d0] sm:$0xff]
        %v6154 = vld [vmem:[%s5934 + $0x6d8] sm:$0xff]
        %v6155 = vld [vmem:[%s5934 + $0x6e0] sm:$0xff]
        %v6156 = vld [vmem:[%s5934 + $0x6e8] sm:$0xff]
        %v6157 = vld [vmem:[%s5934 + $0x6f0] sm:$0xff]
        %v6158 = vld [vmem:[%s5934 + $0x6f8] sm:$0xff]
        %v6159 = vld [vmem:[%s5934 + $0x700] sm:$0xff]
        %v6160 = vld [vmem:[%s5934 + $0x708] sm:$0xff]
        %v6161 = vld [vmem:[%s5934 + $0x710] sm:$0xff]
        %v6162 = vld [vmem:[%s5934 + $0x718] sm:$0xff]
        %v6163 = vld [vmem:[%s5934 + $0x720] sm:$0xff]
        %v6164 = vld [vmem:[%s5934 + $0x728] sm:$0xff]
        %v6165 = vld [vmem:[%s5934 + $0x730] sm:$0xff]
        %v6166 = vld [vmem:[%s5934 + $0x738] sm:$0xff]
        %v6167 = vld [vmem:[%s5934 + $0x740] sm:$0xff]
        %v6168 = vld [vmem:[%s5934 + $0x748] sm:$0xff]
        %v6169 = vld [vmem:[%s5934 + $0x750] sm:$0xff]
        %v6170 = vld [vmem:[%s5934 + $0x758] sm:$0xff]
        %v6171 = vld [vmem:[%s5934 + $0x760] sm:$0xff]
        %v6172 = vld [vmem:[%s5934 + $0x768] sm:$0xff]
        %v6173 = vld [vmem:[%s5934 + $0x770] sm:$0xff]
        %v6174 = vld [vmem:[%s5934 + $0x778] sm:$0xff]
        %v6175 = vld [vmem:[%s5934 + $0x780] sm:$0xff]
        %v6176 = vld [vmem:[%s5934 + $0x788] sm:$0xff]
        %v6177 = vld [vmem:[%s5934 + $0x790] sm:$0xff]
        %v6178 = vld [vmem:[%s5934 + $0x798] sm:$0xff]
        %v6179 = vld [vmem:[%s5934 + $0x7a0] sm:$0xff]
        %v6180 = vld [vmem:[%s5934 + $0x7a8] sm:$0xff]
        %v6181 = vld [vmem:[%s5934 + $0x7b0] sm:$0xff]
        %v6182 = vld [vmem:[%s5934 + $0x7b8] sm:$0xff]
        %v6183 = vld [vmem:[%s5934 + $0x7c0] sm:$0xff]
        %v6184 = vld [vmem:[%s5934 + $0x7c8] sm:$0xff]
        %v6185 = vld [vmem:[%s5934 + $0x7d0] sm:$0xff]
        %v6186 = vld [vmem:[%s5934 + $0x7d8] sm:$0xff]
        %v6187 = vld [vmem:[%s5934 + $0x7e0] sm:$0xff]
        %v6188 = vld [vmem:[%s5934 + $0x7e8] sm:$0xff]
        %v6189 = vld [vmem:[%s5934 + $0x7f0] sm:$0xff]
        %v6190 = vld [vmem:[%s5934 + $0x7f8] sm:$0xff]
        %v6191 = vld [vmem:[%s5934 + $0x800] sm:$0xff]
        %v6192 = vld [vmem:[%s5934 + $0x808] sm:$0xff]
        %v6193 = vld [vmem:[%s5934 + $0x810] sm:$0xff]
        %v6194 = vld [vmem:[%s5934 + $0x818] sm:$0xff]
        %v6195 = vld [vmem:[%s5934 + $0x820] sm:$0xff]
        %v6196 = vld [vmem:[%s5934 + $0x828] sm:$0xff]
        %v6197 = vld [vmem:[%s5934 + $0x830] sm:$0xff]
        %v6198 = vld [vmem:[%s5934 + $0x838] sm:$0xff]
        %v6199 = vld [vmem:[%s5934 + $0x840] sm:$0xff]
        %v6200 = vld [vmem:[%s5934 + $0x848] sm:$0xff]
        %v6201 = vld [vmem:[%s5934 + $0x850] sm:$0xff]
        %v6202 = vld [vmem:[%s5934 + $0x858] sm:$0xff]
        %v6203 = vld [vmem:[%s5934 + $0x860] sm:$0xff]
        %v6204 = vld [vmem:[%s5934 + $0x868] sm:$0xff]
        %v6205 = vld [vmem:[%s5934 + $0x870] sm:$0xff]
        %v6206 = vld [vmem:[%s5934 + $0x878] sm:$0xff]
        %v6207 = vld [vmem:[%s5934 + $0x880] sm:$0xff]
        %v6208 = vld [vmem:[%s5934 + $0x888] sm:$0xff]
        %v6209 = vld [vmem:[%s5934 + $0x890] sm:$0xff]
        %v6210 = vld [vmem:[%s5934 + $0x898] sm:$0xff]
        %v6211 = vld [vmem:[%s5934 + $0x8a0] sm:$0xff]
        %v6212 = vld [vmem:[%s5934 + $0x8a8] sm:$0xff]
        %v6213 = vld [vmem:[%s5934 + $0x8b0] sm:$0xff]
        %v6214 = vld [vmem:[%s5934 + $0x8b8] sm:$0xff]
        %v6215 = vld [vmem:[%s5934 + $0x8c0] sm:$0xff]
        %v6216 = vld [vmem:[%s5934 + $0x8c8] sm:$0xff]
        %v6217 = vld [vmem:[%s5934 + $0x8d0] sm:$0xff]
        %v6218 = vld [vmem:[%s5934 + $0x8d8] sm:$0xff]
        %v6219 = vld [vmem:[%s5934 + $0x8e0] sm:$0xff]
        %v6220 = vld [vmem:[%s5934 + $0x8e8] sm:$0xff]
        %v6221 = vld [vmem:[%s5934 + $0x8f0] sm:$0xff]
        %v6222 = vld [vmem:[%s5934 + $0x8f8] sm:$0xff]
        %v6223 = vld [vmem:[%s5934 + $0x900] sm:$0xff]
        %v6224 = vld [vmem:[%s5934 + $0x908] sm:$0xff]
        %v6225 = vld [vmem:[%s5934 + $0x910] sm:$0xff]
        %v6226 = vld [vmem:[%s5934 + $0x918] sm:$0xff]
        %v6227 = vld [vmem:[%s5934 + $0x920] sm:$0xff]
        %v6228 = vld [vmem:[%s5934 + $0x928] sm:$0xff]
        %v6229 = vld [vmem:[%s5934 + $0x930] sm:$0xff]
        %v6230 = vld [vmem:[%s5934 + $0x938] sm:$0xff]
        %v6231 = vld [vmem:[%s5934 + $0x940] sm:$0xff]
        %v6232 = vld [vmem:[%s5934 + $0x948] sm:$0xff]
        %v6233 = vld [vmem:[%s5934 + $0x950] sm:$0xff]
        %v6234 = vld [vmem:[%s5934 + $0x958] sm:$0xff]
        %v6235 = vld [vmem:[%s5934 + $0x960] sm:$0xff]
        %v6236 = vld [vmem:[%s5934 + $0x968] sm:$0xff]
        %v6237 = vld [vmem:[%s5934 + $0x970] sm:$0xff]
        %v6238 = vld [vmem:[%s5934 + $0x978] sm:$0xff]
        %v6239 = vld [vmem:[%s5934 + $0x980] sm:$0xff]
        %v6240 = vld [vmem:[%s5934 + $0x988] sm:$0xff]
        %v6241 = vld [vmem:[%s5934 + $0x990] sm:$0xff]
        %v6242 = vld [vmem:[%s5934 + $0x998] sm:$0xff]
        %v6243 = vld [vmem:[%s5934 + $0x9a0] sm:$0xff]
        %v6244 = vld [vmem:[%s5934 + $0x9a8] sm:$0xff]
        %v6245 = vld [vmem:[%s5934 + $0x9b0] sm:$0xff]
        %v6246 = vld [vmem:[%s5934 + $0x9b8] sm:$0xff]
        %v6247 = vld [vmem:[%s5934 + $0x9c0] sm:$0xff]
        %v6248 = vld [vmem:[%s5934 + $0x9c8] sm:$0xff]
        %v6249 = vld [vmem:[%s5934 + $0x9d0] sm:$0xff]
        %v6250 = vld [vmem:[%s5934 + $0x9d8] sm:$0xff]
        %v6251 = vld [vmem:[%s5934 + $0x9e0] sm:$0xff]
        %v6252 = vld [vmem:[%s5934 + $0x9e8] sm:$0xff]
        %v6253 = vld [vmem:[%s5934 + $0x9f0] sm:$0xff]
        %v6254 = vld [vmem:[%s5934 + $0x9f8] sm:$0xff]
        %v6255 = vld [vmem:[%s5934 + $0xa00] sm:$0xff]
        %v6256 = vld [vmem:[%s5934 + $0xa08] sm:$0xff]
        %v6257 = vld [vmem:[%s5934 + $0xa10] sm:$0xff]
        %v6258 = vld [vmem:[%s5934 + $0xa18] sm:$0xff]
        %v6259 = vld [vmem:[%s5934 + $0xa20] sm:$0xff]
        %v6260 = vld [vmem:[%s5934 + $0xa28] sm:$0xff]
        %v6261 = vld [vmem:[%s5934 + $0xa30] sm:$0xff]
        %v6262 = vld [vmem:[%s5934 + $0xa38] sm:$0xff]
        %v6263 = vld [vmem:[%s5934 + $0xa40] sm:$0xff]
        %v6264 = vld [vmem:[%s5934 + $0xa48] sm:$0xff]
        %v6265 = vld [vmem:[%s5934 + $0xa50] sm:$0xff]
        %v6266 = vld [vmem:[%s5934 + $0xa58] sm:$0xff]
        %v6267 = vld [vmem:[%s5934 + $0xa60] sm:$0xff]
        %v6268 = vld [vmem:[%s5934 + $0xa68] sm:$0xff]
        %v6269 = vld [vmem:[%s5934 + $0xa70] sm:$0xff]
        %v6270 = vld [vmem:[%s5934 + $0xa78] sm:$0xff]
        %v6271 = vld [vmem:[%s5934 + $0xa80] sm:$0xff]
        %v6272 = vld [vmem:[%s5934 + $0xa88] sm:$0xff]
        %v6273 = vld [vmem:[%s5934 + $0xa90] sm:$0xff]
        %v6274 = vld [vmem:[%s5934 + $0xa98] sm:$0xff]
        %v6275 = vld [vmem:[%s5934 + $0xaa0] sm:$0xff]
        %v6276 = vld [vmem:[%s5934 + $0xaa8] sm:$0xff]
        %v6277 = vld [vmem:[%s5934 + $0xab0] sm:$0xff]
        %v6278 = vld [vmem:[%s5934 + $0xab8] sm:$0xff]
        %v6279 = vld [vmem:[%s5934 + $0xac0] sm:$0xff]
        %v6280 = vld [vmem:[%s5934 + $0xac8] sm:$0xff]
        %v6281 = vld [vmem:[%s5934 + $0xad0] sm:$0xff]
        %v6282 = vld [vmem:[%s5934 + $0xad8] sm:$0xff]
        %v6283 = vld [vmem:[%s5934 + $0xae0] sm:$0xff]
        %v6284 = vld [vmem:[%s5934 + $0xae8] sm:$0xff]
        %v6285 = vld [vmem:[%s5934 + $0xaf0] sm:$0xff]
        %v6286 = vld [vmem:[%s5934 + $0xaf8] sm:$0xff]
        %v6287 = vld [vmem:[%s5934 + $0xb00] sm:$0xff]
        %v6288 = vld [vmem:[%s5934 + $0xb08] sm:$0xff]
        %v6289 = vld [vmem:[%s5934 + $0xb10] sm:$0xff]
        %v6290 = vld [vmem:[%s5934 + $0xb18] sm:$0xff]
        %v6291 = vld [vmem:[%s5934 + $0xb20] sm:$0xff]
        %v6292 = vld [vmem:[%s5934 + $0xb28] sm:$0xff]
        %v6293 = vld [vmem:[%s5934 + $0xb30] sm:$0xff]
        %v6294 = vld [vmem:[%s5934 + $0xb38] sm:$0xff]
        %v6295 = vld [vmem:[%s5934 + $0xb40] sm:$0xff]
        %v6296 = vld [vmem:[%s5934 + $0xb48] sm:$0xff]
        %v6297 = vld [vmem:[%s5934 + $0xb50] sm:$0xff]
        %v6298 = vld [vmem:[%s5934 + $0xb58] sm:$0xff]
        %v6299 = vld [vmem:[%s5934 + $0xb60] sm:$0xff]
        %v6300 = vld [vmem:[%s5934 + $0xb68] sm:$0xff]
        %v6301 = vld [vmem:[%s5934 + $0xb70] sm:$0xff]
        %v6302 = vld [vmem:[%s5934 + $0xb78] sm:$0xff]
        %v6303 = vld [vmem:[%s5934 + $0xb80] sm:$0xff]
        %v6304 = vld [vmem:[%s5934 + $0xb88] sm:$0xff]
        %v6305 = vld [vmem:[%s5934 + $0xb90] sm:$0xff]
        %v6306 = vld [vmem:[%s5934 + $0xb98] sm:$0xff]
        %v6307 = vld [vmem:[%s5934 + $0xba0] sm:$0xff]
        %v6308 = vld [vmem:[%s5934 + $0xba8] sm:$0xff]
        %v6309 = vld [vmem:[%s5934 + $0xbb0] sm:$0xff]
        %v6310 = vld [vmem:[%s5934 + $0xbb8] sm:$0xff]
        %v6311 = vld [vmem:[%s5934 + $0xbc0] sm:$0xff]
        %v6312 = vld [vmem:[%s5934 + $0xbc8] sm:$0xff]
        %v6313 = vld [vmem:[%s5934 + $0xbd0] sm:$0xff]
        %v6314 = vld [vmem:[%s5934 + $0xbd8] sm:$0xff]
        %v6315 = vld [vmem:[%s5934 + $0xbe0] sm:$0xff]
        %v6316 = vld [vmem:[%s5934 + $0xbe8] sm:$0xff]
        %v6317 = vld [vmem:[%s5934 + $0xbf0] sm:$0xff]
        %v6318 = vld [vmem:[%s5934 + $0xbf8] sm:$0xff]
        %v6319 = vld [vmem:[%s5934 + $0xc00] sm:$0xff]
        %v6320 = vld [vmem:[%s5934 + $0xc08] sm:$0xff]
        %v6321 = vld [vmem:[%s5934 + $0xc10] sm:$0xff]
        %v6322 = vld [vmem:[%s5934 + $0xc18] sm:$0xff]
        %v6323 = vld [vmem:[%s5934 + $0xc20] sm:$0xff]
        %v6324 = vld [vmem:[%s5934 + $0xc28] sm:$0xff]
        %v6325 = vld [vmem:[%s5934 + $0xc30] sm:$0xff]
        %v6326 = vld [vmem:[%s5934 + $0xc38] sm:$0xff]
        %v6327 = vld [vmem:[%s5934 + $0xc40] sm:$0xff]
        %v6328 = vld [vmem:[%s5934 + $0xc48] sm:$0xff]
        %v6329 = vld [vmem:[%s5934 + $0xc50] sm:$0xff]
        %v6330 = vld [vmem:[%s5934 + $0xc58] sm:$0xff]
        %v6331 = vld [vmem:[%s5934 + $0xc60] sm:$0xff]
        %v6332 = vld [vmem:[%s5934 + $0xc68] sm:$0xff]
        %v6333 = vld [vmem:[%s5934 + $0xc70] sm:$0xff]
        %v6334 = vld [vmem:[%s5934 + $0xc78] sm:$0xff]
        %v6335 = vld [vmem:[%s5934 + $0xc80] sm:$0xff]
        %v6336 = vld [vmem:[%s5934 + $0xc88] sm:$0xff]
        %v6337 = vld [vmem:[%s5934 + $0xc90] sm:$0xff]
        %v6338 = vld [vmem:[%s5934 + $0xc98] sm:$0xff]
        %v6339 = vld [vmem:[%s5934 + $0xca0] sm:$0xff]
        %v6340 = vld [vmem:[%s5934 + $0xca8] sm:$0xff]
        %v6341 = vld [vmem:[%s5934 + $0xcb0] sm:$0xff]
        %v6342 = vld [vmem:[%s5934 + $0xcb8] sm:$0xff]
        %v6343 = vld [vmem:[%s5934 + $0xcc0] sm:$0xff]
        %v6344 = vld [vmem:[%s5934 + $0xcc8] sm:$0xff]
        %v6345 = vld [vmem:[%s5934 + $0xcd0] sm:$0xff]
        %v6346 = vld [vmem:[%s5934 + $0xcd8] sm:$0xff]
        %v6347 = vld [vmem:[%s5934 + $0xce0] sm:$0xff]
        %v6348 = vld [vmem:[%s5934 + $0xce8] sm:$0xff]
        %v6349 = vld [vmem:[%s5934 + $0xcf0] sm:$0xff]
        %v6350 = vld [vmem:[%s5934 + $0xcf8] sm:$0xff]
        %v6351 = vld [vmem:[%s5934 + $0xd00] sm:$0xff]
        %v6352 = vld [vmem:[%s5934 + $0xd08] sm:$0xff]
        %v6353 = vld [vmem:[%s5934 + $0xd10] sm:$0xff]
        %v6354 = vld [vmem:[%s5934 + $0xd18] sm:$0xff]
        %v6355 = vld [vmem:[%s5934 + $0xd20] sm:$0xff]
        %v6356 = vld [vmem:[%s5934 + $0xd28] sm:$0xff]
        %v6357 = vld [vmem:[%s5934 + $0xd30] sm:$0xff]
        %v6358 = vld [vmem:[%s5934 + $0xd38] sm:$0xff]
        %v6359 = vld [vmem:[%s5934 + $0xd40] sm:$0xff]
        %v6360 = vld [vmem:[%s5934 + $0xd48] sm:$0xff]
        %v6361 = vld [vmem:[%s5934 + $0xd50] sm:$0xff]
        %v6362 = vld [vmem:[%s5934 + $0xd58] sm:$0xff]
        %v6363 = vld [vmem:[%s5934 + $0xd60] sm:$0xff]
        %v6364 = vld [vmem:[%s5934 + $0xd68] sm:$0xff]
        %v6365 = vld [vmem:[%s5934 + $0xd70] sm:$0xff]
        %v6366 = vld [vmem:[%s5934 + $0xd78] sm:$0xff]
        %v6367 = vld [vmem:[%s5934 + $0xd80] sm:$0xff]
        %v6368 = vld [vmem:[%s5934 + $0xd88] sm:$0xff]
        %v6369 = vld [vmem:[%s5934 + $0xd90] sm:$0xff]
        %v6370 = vld [vmem:[%s5934 + $0xd98] sm:$0xff]
        %v6371 = vld [vmem:[%s5934 + $0xda0] sm:$0xff]
        %v6372 = vld [vmem:[%s5934 + $0xda8] sm:$0xff]
        %v6373 = vld [vmem:[%s5934 + $0xdb0] sm:$0xff]
        %v6374 = vld [vmem:[%s5934 + $0xdb8] sm:$0xff]
        %v6375 = vld [vmem:[%s5934 + $0xdc0] sm:$0xff]
        %v6376 = vld [vmem:[%s5934 + $0xdc8] sm:$0xff]
        %v6377 = vld [vmem:[%s5934 + $0xdd0] sm:$0xff]
        %v6378 = vld [vmem:[%s5934 + $0xdd8] sm:$0xff]
        %v6379 = vld [vmem:[%s5934 + $0xde0] sm:$0xff]
        %v6380 = vld [vmem:[%s5934 + $0xde8] sm:$0xff]
        %v6381 = vld [vmem:[%s5934 + $0xdf0] sm:$0xff]
        %v6382 = vld [vmem:[%s5934 + $0xdf8] sm:$0xff]
        %v6383 = vld [vmem:[%s5934 + $0xe00] sm:$0xff]
        %v6384 = vld [vmem:[%s5934 + $0xe08] sm:$0xff]
        %v6385 = vld [vmem:[%s5934 + $0xe10] sm:$0xff]
        %v6386 = vld [vmem:[%s5934 + $0xe18] sm:$0xff]
        %v6387 = vld [vmem:[%s5934 + $0xe20] sm:$0xff]
        %v6388 = vld [vmem:[%s5934 + $0xe28] sm:$0xff]
        %v6389 = vld [vmem:[%s5934 + $0xe30] sm:$0xff]
        %v6390 = vld [vmem:[%s5934 + $0xe38] sm:$0xff]
        %v6391 = vld [vmem:[%s5934 + $0xe40] sm:$0xff]
        %v6392 = vld [vmem:[%s5934 + $0xe48] sm:$0xff]
        %v6393 = vld [vmem:[%s5934 + $0xe50] sm:$0xff]
        %v6394 = vld [vmem:[%s5934 + $0xe58] sm:$0xff]
        %v6395 = vld [vmem:[%s5934 + $0xe60] sm:$0xff]
        %v6396 = vld [vmem:[%s5934 + $0xe68] sm:$0xff]
        %v6397 = vld [vmem:[%s5934 + $0xe70] sm:$0xff]
        %v6398 = vld [vmem:[%s5934 + $0xe78] sm:$0xff]
        %v6399 = vld [vmem:[%s5934 + $0xe80] sm:$0xff]
        %v6400 = vld [vmem:[%s5934 + $0xe88] sm:$0xff]
        %v6401 = vld [vmem:[%s5934 + $0xe90] sm:$0xff]
        %v6402 = vld [vmem:[%s5934 + $0xe98] sm:$0xff]
        %v6403 = vld [vmem:[%s5934 + $0xea0] sm:$0xff]
        %v6404 = vld [vmem:[%s5934 + $0xea8] sm:$0xff]
        %v6405 = vld [vmem:[%s5934 + $0xeb0] sm:$0xff]
        %v6406 = vld [vmem:[%s5934 + $0xeb8] sm:$0xff]
        %v6407 = vld [vmem:[%s5934 + $0xec0] sm:$0xff]
        %v6408 = vld [vmem:[%s5934 + $0xec8] sm:$0xff]
        %v6409 = vld [vmem:[%s5934 + $0xed0] sm:$0xff]
        %v6410 = vld [vmem:[%s5934 + $0xed8] sm:$0xff]
        %v6411 = vld [vmem:[%s5934 + $0xee0] sm:$0xff]
        %v6412 = vld [vmem:[%s5934 + $0xee8] sm:$0xff]
        %v6413 = vld [vmem:[%s5934 + $0xef0] sm:$0xff]
        %v6414 = vld [vmem:[%s5934 + $0xef8] sm:$0xff]
        %6415 = vmatprep.subr.mxu0 %v6011
        %6416 = vmatpush1.msra.mxu0 %v6010
        %6417 = vmatprep.subr.mxu0 %v6006
        %6418 = vmatpush1.msra.mxu0 %v6005
        %6419 = vmatprep.subr.mxu0 %v6001
        %6420 = vmatpush1.msra.mxu0 %v6000
        %6421 = vmatprep.subr.mxu0 %v5996
        %6422 = vmatpush1.msra.mxu0 %v5995
        %6423 = vmatprep.subr.mxu0 %v5991
        %6424 = vmatpush1.msra.mxu0 %v5990
        %6425 = vmatprep.subr.mxu0 %v5986
        %6426 = vmatpush1.msra.mxu0 %v5985
        %6427 = vmatprep.subr.mxu0 %v5981
        %6428 = vmatpush1.msra.mxu0 %v5980
        %6429 = vmatprep.subr.mxu0 %v5976
        %6430 = vmatpush1.msra.mxu0 %v5975
        %6431 = vmatprep.subr.mxu0 %v5971
        %6432 = vmatpush1.msra.mxu0 %v5970
        %6433 = vmatprep.subr.mxu0 %v5966
        %6434 = vmatpush1.msra.mxu0 %v5965
        %6435 = vmatprep.subr.mxu0 %v5961
        %6436 = vmatpush1.msra.mxu0 %v5960
        %6437 = vmatprep.subr.mxu0 %v5956
        %6438 = vmatpush1.msra.mxu0 %v5955
        %6439 = vmatprep.subr.mxu0 %v5951
        %6440 = vmatpush1.msra.mxu0 %v5950
        %6441 = vmatprep.subr.mxu0 %v5946
        %6442 = vmatpush1.msra.mxu0 %v5945
        %6443 = vmatprep.subr.mxu0 %v5941
        %6444 = vmatpush1.msra.mxu0 %v5940
        %6445 = vmatprep.subr.mxu0 %v5936
        %6446 = vmatpush1.msra.mxu0 %v5935
        %6447 = vmatprep.subr.mxu0 %v6091
        %6448 = vmatpush2.msra.mxu0 %v6090
        %6449 = vmatprep.subr.mxu0 %v6086
        %6450 = vmatpush2.msra.mxu0 %v6085
        %6451 = vmatprep.subr.mxu0 %v6081
        %6452 = vmatpush2.msra.mxu0 %v6080
        %6453 = vmatprep.subr.mxu0 %v6076
        %6454 = vmatpush2.msra.mxu0 %v6075
        %6455 = vmatprep.subr.mxu0 %v6071
        %6456 = vmatpush2.msra.mxu0 %v6070
        %6457 = vmatprep.subr.mxu0 %v6066
        %6458 = vmatpush2.msra.mxu0 %v6065
        %6459 = vmatprep.subr.mxu0 %v6061
        %6460 = vmatpush2.msra.mxu0 %v6060
        %6461 = vmatprep.subr.mxu0 %v6056
        %6462 = vmatpush2.msra.mxu0 %v6055
        %6463 = vmatprep.subr.mxu0 %v6051
        %6464 = vmatpush2.msra.mxu0 %v6050
        %6465 = vmatprep.subr.mxu0 %v6046
        %6466 = vmatpush2.msra.mxu0 %v6045
        %6467 = vmatprep.subr.mxu0 %v6041
        %6468 = vmatpush2.msra.mxu0 %v6040
        %6469 = vmatprep.subr.mxu0 %v6036
        %6470 = vmatpush2.msra.mxu0 %v6035
        %6471 = vmatprep.subr.mxu0 %v6031
        %6472 = vmatpush2.msra.mxu0 %v6030
        %6473 = vmatprep.subr.mxu0 %v6026
        %6474 = vmatpush2.msra.mxu0 %v6025
        %6475 = vmatprep.subr.mxu0 %v6021
        %6476 = vmatpush2.msra.mxu0 %v6020
        %6477 = vmatprep.subr.mxu0 %v6016
        %6478 = vmatpush2.msra.mxu0 %v6015
        %6479 = vmatprep.mubr.f32.mxu0 %v2724
        %6480 = vmatmul.mubr.f32.gmra.mxu0 %v2723
        %v6481 = vpop.f32.mrf.mxu0
        %v6482 = vadd.f32 0.0, %v6481
        %v6483 = vpop.f32.mrf.mxu0
        %v6484 = vadd.f32 0.0, %v6483
        %6485 = vmatprep.mubr.f32.mxu0 %v2730
        %6486 = vmatmul.mubr.f32.gmra.mxu0 %v2729
        %v6487 = vpop.f32.mrf.mxu0
        %v6488 = vadd.f32 0.0, %v6487
        %v6489 = vpop.f32.mrf.mxu0
        %v6490 = vadd.f32 0.0, %v6489
        %6491 = vmatprep.mubr.f32.mxu0 %v2736
        %6492 = vmatmul.mubr.f32.gmra.mxu0 %v2735
        %v6493 = vpop.f32.mrf.mxu0
        %v6494 = vadd.f32 0.0, %v6493
        %v6495 = vpop.f32.mrf.mxu0
        %v6496 = vadd.f32 0.0, %v6495
        %6497 = vmatprep.mubr.f32.mxu0 %v2742
        %6498 = vmatmul.mubr.f32.gmra.mxu0 %v2741
        %v6499 = vpop.f32.mrf.mxu0
        %v6500 = vadd.f32 0.0, %v6499
        %v6501 = vpop.f32.mrf.mxu0
        %v6502 = vadd.f32 0.0, %v6501
        %6503 = vmatprep.mubr.f32.mxu0 %v2748
        %6504 = vmatmul.mubr.f32.gmra.mxu0 %v2747
        %v6505 = vpop.f32.mrf.mxu0
        %v6506 = vadd.f32 0.0, %v6505
        %v6507 = vpop.f32.mrf.mxu0
        %v6508 = vadd.f32 0.0, %v6507
        %6509 = vmatprep.mubr.f32.mxu0 %v2754
        %6510 = vmatmul.mubr.f32.gmra.mxu0 %v2753
        %v6511 = vpop.f32.mrf.mxu0
        %v6512 = vadd.f32 0.0, %v6511
        %v6513 = vpop.f32.mrf.mxu0
        %v6514 = vadd.f32 0.0, %v6513
        %6515 = vmatprep.mubr.f32.mxu0 %v2760
        %6516 = vmatmul.mubr.f32.gmra.mxu0 %v2759
        %v6517 = vpop.f32.mrf.mxu0
        %v6518 = vadd.f32 0.0, %v6517
        %v6519 = vpop.f32.mrf.mxu0
        %v6520 = vadd.f32 0.0, %v6519
        %6521 = vmatprep.mubr.f32.mxu0 %v2766
        %6522 = vmatmul.mubr.f32.gmra.mxu0 %v2765
        %v6523 = vpop.f32.mrf.mxu0
        %v6524 = vadd.f32 0.0, %v6523
        %v6525 = vpop.f32.mrf.mxu0
        %v6526 = vadd.f32 0.0, %v6525
        %6527 = vmatprep.mubr.f32.mxu0 %v2772
        %6528 = vmatmul.mubr.f32.gmra.mxu0 %v2771
        %v6529 = vpop.f32.mrf.mxu0
        %v6530 = vadd.f32 0.0, %v6529
        %v6531 = vpop.f32.mrf.mxu0
        %v6532 = vadd.f32 0.0, %v6531
        %6533 = vmatprep.mubr.f32.mxu0 %v2778
        %6534 = vmatmul.mubr.f32.gmra.mxu0 %v2777
        %v6535 = vpop.f32.mrf.mxu0
        %v6536 = vadd.f32 0.0, %v6535
        %v6537 = vpop.f32.mrf.mxu0
        %v6538 = vadd.f32 0.0, %v6537
        %6539 = vdwg.mxu0
        %6540 = vmatprep.subr.mxu0 %v6171
        %6541 = vmatpush1.msra.mxu0 %v6170
        %6542 = vmatprep.subr.mxu0 %v6166
        %6543 = vmatpush1.msra.mxu0 %v6165
        %6544 = vmatprep.subr.mxu0 %v6161
        %6545 = vmatpush1.msra.mxu0 %v6160
        %6546 = vmatprep.subr.mxu0 %v6156
        %6547 = vmatpush1.msra.mxu0 %v6155
        %6548 = vmatprep.subr.mxu0 %v6151
        %6549 = vmatpush1.msra.mxu0 %v6150
        %6550 = vmatprep.subr.mxu0 %v6146
        %6551 = vmatpush1.msra.mxu0 %v6145
        %6552 = vmatprep.subr.mxu0 %v6141
        %6553 = vmatpush1.msra.mxu0 %v6140
        %6554 = vmatprep.subr.mxu0 %v6136
        %6555 = vmatpush1.msra.mxu0 %v6135
        %6556 = vmatprep.subr.mxu0 %v6131
        %6557 = vmatpush1.msra.mxu0 %v6130
        %6558 = vmatprep.subr.mxu0 %v6126
        %6559 = vmatpush1.msra.mxu0 %v6125
        %6560 = vmatprep.subr.mxu0 %v6121
        %6561 = vmatpush1.msra.mxu0 %v6120
        %6562 = vmatprep.subr.mxu0 %v6116
        %6563 = vmatpush1.msra.mxu0 %v6115
        %6564 = vmatprep.subr.mxu0 %v6111
        %6565 = vmatpush1.msra.mxu0 %v6110
        %6566 = vmatprep.subr.mxu0 %v6106
        %6567 = vmatpush1.msra.mxu0 %v6105
        %6568 = vmatprep.subr.mxu0 %v6101
        %6569 = vmatpush1.msra.mxu0 %v6100
        %6570 = vmatprep.subr.mxu0 %v6096
        %6571 = vmatpush1.msra.mxu0 %v6095
        %6572 = vmatprep.subr.mxu0 %v6251
        %6573 = vmatpush2.msra.mxu0 %v6250
        %6574 = vmatprep.subr.mxu0 %v6246
        %6575 = vmatpush2.msra.mxu0 %v6245
        %6576 = vmatprep.subr.mxu0 %v6241
        %6577 = vmatpush2.msra.mxu0 %v6240
        %6578 = vmatprep.subr.mxu0 %v6236
        %6579 = vmatpush2.msra.mxu0 %v6235
        %6580 = vmatprep.subr.mxu0 %v6231
        %6581 = vmatpush2.msra.mxu0 %v6230
        %6582 = vmatprep.subr.mxu0 %v6226
        %6583 = vmatpush2.msra.mxu0 %v6225
        %6584 = vmatprep.subr.mxu0 %v6221
        %6585 = vmatpush2.msra.mxu0 %v6220
        %6586 = vmatprep.subr.mxu0 %v6216
        %6587 = vmatpush2.msra.mxu0 %v6215
        %6588 = vmatprep.subr.mxu0 %v6211
        %6589 = vmatpush2.msra.mxu0 %v6210
        %6590 = vmatprep.subr.mxu0 %v6206
        %6591 = vmatpush2.msra.mxu0 %v6205
        %6592 = vmatprep.subr.mxu0 %v6201
        %6593 = vmatpush2.msra.mxu0 %v6200
        %6594 = vmatprep.subr.mxu0 %v6196
        %6595 = vmatpush2.msra.mxu0 %v6195
        %6596 = vmatprep.subr.mxu0 %v6191
        %6597 = vmatpush2.msra.mxu0 %v6190
        %6598 = vmatprep.subr.mxu0 %v6186
        %6599 = vmatpush2.msra.mxu0 %v6185
        %6600 = vmatprep.subr.mxu0 %v6181
        %6601 = vmatpush2.msra.mxu0 %v6180
        %6602 = vmatprep.subr.mxu0 %v6176
        %6603 = vmatpush2.msra.mxu0 %v6175
        %6604 = vmatprep.mubr.f32.mxu0 %v2726
        %6605 = vmatmul.mubr.f32.gmra.mxu0 %v2725
        %v6606 = vpop.f32.mrf.mxu0
        %v6607 = vadd.f32 %v6482, %v6606
        %v6608 = vpop.f32.mrf.mxu0
        %v6609 = vadd.f32 %v6484, %v6608
        %6610 = vmatprep.mubr.f32.mxu0 %v2732
        %6611 = vmatmul.mubr.f32.gmra.mxu0 %v2731
        %v6612 = vpop.f32.mrf.mxu0
        %v6613 = vadd.f32 %v6488, %v6612
        %v6614 = vpop.f32.mrf.mxu0
        %v6615 = vadd.f32 %v6490, %v6614
        %6616 = vmatprep.mubr.f32.mxu0 %v2738
        %6617 = vmatmul.mubr.f32.gmra.mxu0 %v2737
        %v6618 = vpop.f32.mrf.mxu0
        %v6619 = vadd.f32 %v6494, %v6618
        %v6620 = vpop.f32.mrf.mxu0
        %v6621 = vadd.f32 %v6496, %v6620
        %6622 = vmatprep.mubr.f32.mxu0 %v2744
        %6623 = vmatmul.mubr.f32.gmra.mxu0 %v2743
        %v6624 = vpop.f32.mrf.mxu0
        %v6625 = vadd.f32 %v6500, %v6624
        %v6626 = vpop.f32.mrf.mxu0
        %v6627 = vadd.f32 %v6502, %v6626
        %6628 = vmatprep.mubr.f32.mxu0 %v2750
        %6629 = vmatmul.mubr.f32.gmra.mxu0 %v2749
        %v6630 = vpop.f32.mrf.mxu0
        %v6631 = vadd.f32 %v6506, %v6630
        %v6632 = vpop.f32.mrf.mxu0
        %v6633 = vadd.f32 %v6508, %v6632
        %6634 = vmatprep.mubr.f32.mxu0 %v2756
        %6635 = vmatmul.mubr.f32.gmra.mxu0 %v2755
        %v6636 = vpop.f32.mrf.mxu0
        %v6637 = vadd.f32 %v6512, %v6636
        %v6638 = vpop.f32.mrf.mxu0
        %v6639 = vadd.f32 %v6514, %v6638
        %6640 = vmatprep.mubr.f32.mxu0 %v2762
        %6641 = vmatmul.mubr.f32.gmra.mxu0 %v2761
        %v6642 = vpop.f32.mrf.mxu0
        %v6643 = vadd.f32 %v6518, %v6642
        %v6644 = vpop.f32.mrf.mxu0
        %v6645 = vadd.f32 %v6520, %v6644
        %6646 = vmatprep.mubr.f32.mxu0 %v2768
        %6647 = vmatmul.mubr.f32.gmra.mxu0 %v2767
        %v6648 = vpop.f32.mrf.mxu0
        %v6649 = vadd.f32 %v6524, %v6648
        %v6650 = vpop.f32.mrf.mxu0
        %v6651 = vadd.f32 %v6526, %v6650
        %6652 = vmatprep.mubr.f32.mxu0 %v2774
        %6653 = vmatmul.mubr.f32.gmra.mxu0 %v2773
        %v6654 = vpop.f32.mrf.mxu0
        %v6655 = vadd.f32 %v6530, %v6654
        %v6656 = vpop.f32.mrf.mxu0
        %v6657 = vadd.f32 %v6532, %v6656
        %6658 = vmatprep.mubr.f32.mxu0 %v2780
        %6659 = vmatmul.mubr.f32.gmra.mxu0 %v2779
        %v6660 = vpop.f32.mrf.mxu0
        %v6661 = vadd.f32 %v6536, %v6660
        %v6662 = vpop.f32.mrf.mxu0
        %v6663 = vadd.f32 %v6538, %v6662
        %6664 = vdwg.mxu0
        %6665 = vmatprep.subr.mxu0 %v6331
        %6666 = vmatpush1.msra.mxu0 %v6330
        %6667 = vmatprep.subr.mxu0 %v6326
        %6668 = vmatpush1.msra.mxu0 %v6325
        %6669 = vmatprep.subr.mxu0 %v6321
        %6670 = vmatpush1.msra.mxu0 %v6320
        %6671 = vmatprep.subr.mxu0 %v6316
        %6672 = vmatpush1.msra.mxu0 %v6315
        %6673 = vmatprep.subr.mxu0 %v6311
        %6674 = vmatpush1.msra.mxu0 %v6310
        %6675 = vmatprep.subr.mxu0 %v6306
        %6676 = vmatpush1.msra.mxu0 %v6305
        %6677 = vmatprep.subr.mxu0 %v6301
        %6678 = vmatpush1.msra.mxu0 %v6300
        %6679 = vmatprep.subr.mxu0 %v6296
        %6680 = vmatpush1.msra.mxu0 %v6295
        %6681 = vmatprep.subr.mxu0 %v6291
        %6682 = vmatpush1.msra.mxu0 %v6290
        %6683 = vmatprep.subr.mxu0 %v6286
        %6684 = vmatpush1.msra.mxu0 %v6285
        %6685 = vmatprep.subr.mxu0 %v6281
        %6686 = vmatpush1.msra.mxu0 %v6280
        %6687 = vmatprep.subr.mxu0 %v6276
        %6688 = vmatpush1.msra.mxu0 %v6275
        %6689 = vmatprep.subr.mxu0 %v6271
        %6690 = vmatpush1.msra.mxu0 %v6270
        %6691 = vmatprep.subr.mxu0 %v6266
        %6692 = vmatpush1.msra.mxu0 %v6265
        %6693 = vmatprep.subr.mxu0 %v6261
        %6694 = vmatpush1.msra.mxu0 %v6260
        %6695 = vmatprep.subr.mxu0 %v6256
        %6696 = vmatpush1.msra.mxu0 %v6255
        %6697 = vmatprep.subr.mxu0 %v6411
        %6698 = vmatpush2.msra.mxu0 %v6410
        %6699 = vmatprep.subr.mxu0 %v6406
        %6700 = vmatpush2.msra.mxu0 %v6405
        %6701 = vmatprep.subr.mxu0 %v6401
        %6702 = vmatpush2.msra.mxu0 %v6400
        %6703 = vmatprep.subr.mxu0 %v6396
        %6704 = vmatpush2.msra.mxu0 %v6395
        %6705 = vmatprep.subr.mxu0 %v6391
        %6706 = vmatpush2.msra.mxu0 %v6390
        %6707 = vmatprep.subr.mxu0 %v6386
        %6708 = vmatpush2.msra.mxu0 %v6385
        %6709 = vmatprep.subr.mxu0 %v6381
        %6710 = vmatpush2.msra.mxu0 %v6380
        %6711 = vmatprep.subr.mxu0 %v6376
        %6712 = vmatpush2.msra.mxu0 %v6375
        %6713 = vmatprep.subr.mxu0 %v6371
        %6714 = vmatpush2.msra.mxu0 %v6370
        %6715 = vmatprep.subr.mxu0 %v6366
        %6716 = vmatpush2.msra.mxu0 %v6365
        %6717 = vmatprep.subr.mxu0 %v6361
        %6718 = vmatpush2.msra.mxu0 %v6360
        %6719 = vmatprep.subr.mxu0 %v6356
        %6720 = vmatpush2.msra.mxu0 %v6355
        %6721 = vmatprep.subr.mxu0 %v6351
        %6722 = vmatpush2.msra.mxu0 %v6350
        %6723 = vmatprep.subr.mxu0 %v6346
        %6724 = vmatpush2.msra.mxu0 %v6345
        %6725 = vmatprep.subr.mxu0 %v6341
        %6726 = vmatpush2.msra.mxu0 %v6340
        %6727 = vmatprep.subr.mxu0 %v6336
        %6728 = vmatpush2.msra.mxu0 %v6335
        %6729 = vmatprep.mubr.f32.mxu0 %v2728
        %6730 = vmatmul.mubr.f32.gmra.mxu0 %v2727
        %v6731 = vpop.f32.mrf.mxu0
        %v6732 = vadd.f32 %v6607, %v6731
        %v6733 = vpop.f32.mrf.mxu0
        %v6734 = vadd.f32 %v6609, %v6733
        %6735 = vmatprep.mubr.f32.mxu0 %v2734
        %6736 = vmatmul.mubr.f32.gmra.mxu0 %v2733
        %v6737 = vpop.f32.mrf.mxu0
        %v6738 = vadd.f32 %v6613, %v6737
        %v6739 = vpop.f32.mrf.mxu0
        %v6740 = vadd.f32 %v6615, %v6739
        %6741 = vmatprep.mubr.f32.mxu0 %v2740
        %6742 = vmatmul.mubr.f32.gmra.mxu0 %v2739
        %v6743 = vpop.f32.mrf.mxu0
        %v6744 = vadd.f32 %v6619, %v6743
        %v6745 = vpop.f32.mrf.mxu0
        %v6746 = vadd.f32 %v6621, %v6745
        %6747 = vmatprep.mubr.f32.mxu0 %v2746
        %6748 = vmatmul.mubr.f32.gmra.mxu0 %v2745
        %v6749 = vpop.f32.mrf.mxu0
        %v6750 = vadd.f32 %v6625, %v6749
        %v6751 = vpop.f32.mrf.mxu0
        %v6752 = vadd.f32 %v6627, %v6751
        %6753 = vmatprep.mubr.f32.mxu0 %v2752
        %6754 = vmatmul.mubr.f32.gmra.mxu0 %v2751
        %v6755 = vpop.f32.mrf.mxu0
        %v6756 = vadd.f32 %v6631, %v6755
        %v6757 = vpop.f32.mrf.mxu0
        %v6758 = vadd.f32 %v6633, %v6757
        %6759 = vmatprep.mubr.f32.mxu0 %v2758
        %6760 = vmatmul.mubr.f32.gmra.mxu0 %v2757
        %v6761 = vpop.f32.mrf.mxu0
        %v6762 = vadd.f32 %v6637, %v6761
        %v6763 = vpop.f32.mrf.mxu0
        %v6764 = vadd.f32 %v6639, %v6763
        %6765 = vmatprep.mubr.f32.mxu0 %v2764
        %6766 = vmatmul.mubr.f32.gmra.mxu0 %v2763
        %v6767 = vpop.f32.mrf.mxu0
        %v6768 = vadd.f32 %v6643, %v6767
        %v6769 = vpop.f32.mrf.mxu0
        %v6770 = vadd.f32 %v6645, %v6769
        %6771 = vmatprep.mubr.f32.mxu0 %v2770
        %6772 = vmatmul.mubr.f32.gmra.mxu0 %v2769
        %v6773 = vpop.f32.mrf.mxu0
        %v6774 = vadd.f32 %v6649, %v6773
        %v6775 = vpop.f32.mrf.mxu0
        %v6776 = vadd.f32 %v6651, %v6775
        %6777 = vmatprep.mubr.f32.mxu0 %v2776
        %6778 = vmatmul.mubr.f32.gmra.mxu0 %v2775
        %v6779 = vpop.f32.mrf.mxu0
        %v6780 = vadd.f32 %v6655, %v6779
        %v6781 = vpop.f32.mrf.mxu0
        %v6782 = vadd.f32 %v6657, %v6781
        %6783 = vmatprep.mubr.f32.mxu0 %v2782
        %6784 = vmatmul.mubr.f32.gmra.mxu0 %v2781
        %v6785 = vpop.f32.mrf.mxu0
        %v6786 = vadd.f32 %v6661, %v6785
        %v6787 = vpop.f32.mrf.mxu0
        %v6788 = vadd.f32 %v6663, %v6787
        %6789 = vdwg.mxu0
        %6790 = vmatprep.subr.mxu0 %v6013
        %6791 = vmatpush1.msra.mxu0 %v6012
        %6792 = vmatprep.subr.mxu0 %v6008
        %6793 = vmatpush1.msra.mxu0 %v6007
        %6794 = vmatprep.subr.mxu0 %v6003
        %6795 = vmatpush1.msra.mxu0 %v6002
        %6796 = vmatprep.subr.mxu0 %v5998
        %6797 = vmatpush1.msra.mxu0 %v5997
        %6798 = vmatprep.subr.mxu0 %v5993
        %6799 = vmatpush1.msra.mxu0 %v5992
        %6800 = vmatprep.subr.mxu0 %v5988
        %6801 = vmatpush1.msra.mxu0 %v5987
        %6802 = vmatprep.subr.mxu0 %v5983
        %6803 = vmatpush1.msra.mxu0 %v5982
        %6804 = vmatprep.subr.mxu0 %v5978
        %6805 = vmatpush1.msra.mxu0 %v5977
        %6806 = vmatprep.subr.mxu0 %v5973
        %6807 = vmatpush1.msra.mxu0 %v5972
        %6808 = vmatprep.subr.mxu0 %v5968
        %6809 = vmatpush1.msra.mxu0 %v5967
        %6810 = vmatprep.subr.mxu0 %v5963
        %6811 = vmatpush1.msra.mxu0 %v5962
        %6812 = vmatprep.subr.mxu0 %v5958
        %6813 = vmatpush1.msra.mxu0 %v5957
        %6814 = vmatprep.subr.mxu0 %v5953
        %6815 = vmatpush1.msra.mxu0 %v5952
        %6816 = vmatprep.subr.mxu0 %v5948
        %6817 = vmatpush1.msra.mxu0 %v5947
        %6818 = vmatprep.subr.mxu0 %v5943
        %6819 = vmatpush1.msra.mxu0 %v5942
        %6820 = vmatprep.subr.mxu0 %v5938
        %6821 = vmatpush1.msra.mxu0 %v5937
        %6822 = vmatprep.subr.mxu0 %v6093
        %6823 = vmatpush2.msra.mxu0 %v6092
        %6824 = vmatprep.subr.mxu0 %v6088
        %6825 = vmatpush2.msra.mxu0 %v6087
        %6826 = vmatprep.subr.mxu0 %v6083
        %6827 = vmatpush2.msra.mxu0 %v6082
        %6828 = vmatprep.subr.mxu0 %v6078
        %6829 = vmatpush2.msra.mxu0 %v6077
        %6830 = vmatprep.subr.mxu0 %v6073
        %6831 = vmatpush2.msra.mxu0 %v6072
        %6832 = vmatprep.subr.mxu0 %v6068
        %6833 = vmatpush2.msra.mxu0 %v6067
        %6834 = vmatprep.subr.mxu0 %v6063
        %6835 = vmatpush2.msra.mxu0 %v6062
        %6836 = vmatprep.subr.mxu0 %v6058
        %6837 = vmatpush2.msra.mxu0 %v6057
        %6838 = vmatprep.subr.mxu0 %v6053
        %6839 = vmatpush2.msra.mxu0 %v6052
        %6840 = vmatprep.subr.mxu0 %v6048
        %6841 = vmatpush2.msra.mxu0 %v6047
        %6842 = vmatprep.subr.mxu0 %v6043
        %6843 = vmatpush2.msra.mxu0 %v6042
        %6844 = vmatprep.subr.mxu0 %v6038
        %6845 = vmatpush2.msra.mxu0 %v6037
        %6846 = vmatprep.subr.mxu0 %v6033
        %6847 = vmatpush2.msra.mxu0 %v6032
        %6848 = vmatprep.subr.mxu0 %v6028
        %6849 = vmatpush2.msra.mxu0 %v6027
        %6850 = vmatprep.subr.mxu0 %v6023
        %6851 = vmatpush2.msra.mxu0 %v6022
        %6852 = vmatprep.subr.mxu0 %v6018
        %6853 = vmatpush2.msra.mxu0 %v6017
        %6854 = vmatprep.mubr.f32.mxu0 %v2724
        %6855 = vmatmul.mubr.f32.gmra.mxu0 %v2723
        %v6856 = vpop.f32.mrf.mxu0
        %v6857 = vadd.f32 0.0, %v6856
        %v6858 = vpop.f32.mrf.mxu0
        %v6859 = vadd.f32 0.0, %v6858
        %6860 = vmatprep.mubr.f32.mxu0 %v2730
        %6861 = vmatmul.mubr.f32.gmra.mxu0 %v2729
        %v6862 = vpop.f32.mrf.mxu0
        %v6863 = vadd.f32 0.0, %v6862
        %v6864 = vpop.f32.mrf.mxu0
        %v6865 = vadd.f32 0.0, %v6864
        %6866 = vmatprep.mubr.f32.mxu0 %v2736
        %6867 = vmatmul.mubr.f32.gmra.mxu0 %v2735
        %v6868 = vpop.f32.mrf.mxu0
        %v6869 = vadd.f32 0.0, %v6868
        %v6870 = vpop.f32.mrf.mxu0
        %v6871 = vadd.f32 0.0, %v6870
        %6872 = vmatprep.mubr.f32.mxu0 %v2742
        %6873 = vmatmul.mubr.f32.gmra.mxu0 %v2741
        %v6874 = vpop.f32.mrf.mxu0
        %v6875 = vadd.f32 0.0, %v6874
        %v6876 = vpop.f32.mrf.mxu0
        %v6877 = vadd.f32 0.0, %v6876
        %6878 = vmatprep.mubr.f32.mxu0 %v2748
        %6879 = vmatmul.mubr.f32.gmra.mxu0 %v2747
        %v6880 = vpop.f32.mrf.mxu0
        %v6881 = vadd.f32 0.0, %v6880
        %v6882 = vpop.f32.mrf.mxu0
        %v6883 = vadd.f32 0.0, %v6882
        %6884 = vmatprep.mubr.f32.mxu0 %v2754
        %6885 = vmatmul.mubr.f32.gmra.mxu0 %v2753
        %v6886 = vpop.f32.mrf.mxu0
        %v6887 = vadd.f32 0.0, %v6886
        %v6888 = vpop.f32.mrf.mxu0
        %v6889 = vadd.f32 0.0, %v6888
        %6890 = vmatprep.mubr.f32.mxu0 %v2760
        %6891 = vmatmul.mubr.f32.gmra.mxu0 %v2759
        %v6892 = vpop.f32.mrf.mxu0
        %v6893 = vadd.f32 0.0, %v6892
        %v6894 = vpop.f32.mrf.mxu0
        %v6895 = vadd.f32 0.0, %v6894
        %6896 = vmatprep.mubr.f32.mxu0 %v2766
        %6897 = vmatmul.mubr.f32.gmra.mxu0 %v2765
        %v6898 = vpop.f32.mrf.mxu0
        %v6899 = vadd.f32 0.0, %v6898
        %v6900 = vpop.f32.mrf.mxu0
        %v6901 = vadd.f32 0.0, %v6900
        %6902 = vmatprep.mubr.f32.mxu0 %v2772
        %6903 = vmatmul.mubr.f32.gmra.mxu0 %v2771
        %v6904 = vpop.f32.mrf.mxu0
        %v6905 = vadd.f32 0.0, %v6904
        %v6906 = vpop.f32.mrf.mxu0
        %v6907 = vadd.f32 0.0, %v6906
        %6908 = vmatprep.mubr.f32.mxu0 %v2778
        %6909 = vmatmul.mubr.f32.gmra.mxu0 %v2777
        %v6910 = vpop.f32.mrf.mxu0
        %v6911 = vadd.f32 0.0, %v6910
        %v6912 = vpop.f32.mrf.mxu0
        %v6913 = vadd.f32 0.0, %v6912
        %6914 = vdwg.mxu0
        %6915 = vmatprep.subr.mxu0 %v6173
        %6916 = vmatpush1.msra.mxu0 %v6172
        %6917 = vmatprep.subr.mxu0 %v6168
        %6918 = vmatpush1.msra.mxu0 %v6167
        %6919 = vmatprep.subr.mxu0 %v6163
        %6920 = vmatpush1.msra.mxu0 %v6162
        %6921 = vmatprep.subr.mxu0 %v6158
        %6922 = vmatpush1.msra.mxu0 %v6157
        %6923 = vmatprep.subr.mxu0 %v6153
        %6924 = vmatpush1.msra.mxu0 %v6152
        %6925 = vmatprep.subr.mxu0 %v6148
        %6926 = vmatpush1.msra.mxu0 %v6147
        %6927 = vmatprep.subr.mxu0 %v6143
        %6928 = vmatpush1.msra.mxu0 %v6142
        %6929 = vmatprep.subr.mxu0 %v6138
        %6930 = vmatpush1.msra.mxu0 %v6137
        %6931 = vmatprep.subr.mxu0 %v6133
        %6932 = vmatpush1.msra.mxu0 %v6132
        %6933 = vmatprep.subr.mxu0 %v6128
        %6934 = vmatpush1.msra.mxu0 %v6127
        %6935 = vmatprep.subr.mxu0 %v6123
        %6936 = vmatpush1.msra.mxu0 %v6122
        %6937 = vmatprep.subr.mxu0 %v6118
        %6938 = vmatpush1.msra.mxu0 %v6117
        %6939 = vmatprep.subr.mxu0 %v6113
        %6940 = vmatpush1.msra.mxu0 %v6112
        %6941 = vmatprep.subr.mxu0 %v6108
        %6942 = vmatpush1.msra.mxu0 %v6107
        %6943 = vmatprep.subr.mxu0 %v6103
        %6944 = vmatpush1.msra.mxu0 %v6102
        %6945 = vmatprep.subr.mxu0 %v6098
        %6946 = vmatpush1.msra.mxu0 %v6097
        %6947 = vmatprep.subr.mxu0 %v6253
        %6948 = vmatpush2.msra.mxu0 %v6252
        %6949 = vmatprep.subr.mxu0 %v6248
        %6950 = vmatpush2.msra.mxu0 %v6247
        %6951 = vmatprep.subr.mxu0 %v6243
        %6952 = vmatpush2.msra.mxu0 %v6242
        %6953 = vmatprep.subr.mxu0 %v6238
        %6954 = vmatpush2.msra.mxu0 %v6237
        %6955 = vmatprep.subr.mxu0 %v6233
        %6956 = vmatpush2.msra.mxu0 %v6232
        %6957 = vmatprep.subr.mxu0 %v6228
        %6958 = vmatpush2.msra.mxu0 %v6227
        %6959 = vmatprep.subr.mxu0 %v6223
        %6960 = vmatpush2.msra.mxu0 %v6222
        %6961 = vmatprep.subr.mxu0 %v6218
        %6962 = vmatpush2.msra.mxu0 %v6217
        %6963 = vmatprep.subr.mxu0 %v6213
        %6964 = vmatpush2.msra.mxu0 %v6212
        %6965 = vmatprep.subr.mxu0 %v6208
        %6966 = vmatpush2.msra.mxu0 %v6207
        %6967 = vmatprep.subr.mxu0 %v6203
        %6968 = vmatpush2.msra.mxu0 %v6202
        %6969 = vmatprep.subr.mxu0 %v6198
        %6970 = vmatpush2.msra.mxu0 %v6197
        %6971 = vmatprep.subr.mxu0 %v6193
        %6972 = vmatpush2.msra.mxu0 %v6192
        %6973 = vmatprep.subr.mxu0 %v6188
        %6974 = vmatpush2.msra.mxu0 %v6187
        %6975 = vmatprep.subr.mxu0 %v6183
        %6976 = vmatpush2.msra.mxu0 %v6182
        %6977 = vmatprep.subr.mxu0 %v6178
        %6978 = vmatpush2.msra.mxu0 %v6177
        %6979 = vmatprep.mubr.f32.mxu0 %v2726
        %6980 = vmatmul.mubr.f32.gmra.mxu0 %v2725
        %v6981 = vpop.f32.mrf.mxu0
        %v6982 = vadd.f32 %v6857, %v6981
        %v6983 = vpop.f32.mrf.mxu0
        %v6984 = vadd.f32 %v6859, %v6983
        %6985 = vmatprep.mubr.f32.mxu0 %v2732
        %6986 = vmatmul.mubr.f32.gmra.mxu0 %v2731
        %v6987 = vpop.f32.mrf.mxu0
        %v6988 = vadd.f32 %v6863, %v6987
        %v6989 = vpop.f32.mrf.mxu0
        %v6990 = vadd.f32 %v6865, %v6989
        %6991 = vmatprep.mubr.f32.mxu0 %v2738
        %6992 = vmatmul.mubr.f32.gmra.mxu0 %v2737
        %v6993 = vpop.f32.mrf.mxu0
        %v6994 = vadd.f32 %v6869, %v6993
        %v6995 = vpop.f32.mrf.mxu0
        %v6996 = vadd.f32 %v6871, %v6995
        %6997 = vmatprep.mubr.f32.mxu0 %v2744
        %6998 = vmatmul.mubr.f32.gmra.mxu0 %v2743
        %v6999 = vpop.f32.mrf.mxu0
        %v7000 = vadd.f32 %v6875, %v6999
        %v7001 = vpop.f32.mrf.mxu0
        %v7002 = vadd.f32 %v6877, %v7001
        %7003 = vmatprep.mubr.f32.mxu0 %v2750
        %7004 = vmatmul.mubr.f32.gmra.mxu0 %v2749
        %v7005 = vpop.f32.mrf.mxu0
        %v7006 = vadd.f32 %v6881, %v7005
        %v7007 = vpop.f32.mrf.mxu0
        %v7008 = vadd.f32 %v6883, %v7007
        %7009 = vmatprep.mubr.f32.mxu0 %v2756
        %7010 = vmatmul.mubr.f32.gmra.mxu0 %v2755
        %v7011 = vpop.f32.mrf.mxu0
        %v7012 = vadd.f32 %v6887, %v7011
        %v7013 = vpop.f32.mrf.mxu0
        %v7014 = vadd.f32 %v6889, %v7013
        %7015 = vmatprep.mubr.f32.mxu0 %v2762
        %7016 = vmatmul.mubr.f32.gmra.mxu0 %v2761
        %v7017 = vpop.f32.mrf.mxu0
        %v7018 = vadd.f32 %v6893, %v7017
        %v7019 = vpop.f32.mrf.mxu0
        %v7020 = vadd.f32 %v6895, %v7019
        %7021 = vmatprep.mubr.f32.mxu0 %v2768
        %7022 = vmatmul.mubr.f32.gmra.mxu0 %v2767
        %v7023 = vpop.f32.mrf.mxu0
        %v7024 = vadd.f32 %v6899, %v7023
        %v7025 = vpop.f32.mrf.mxu0
        %v7026 = vadd.f32 %v6901, %v7025
        %7027 = vmatprep.mubr.f32.mxu0 %v2774
        %7028 = vmatmul.mubr.f32.gmra.mxu0 %v2773
        %v7029 = vpop.f32.mrf.mxu0
        %v7030 = vadd.f32 %v6905, %v7029
        %v7031 = vpop.f32.mrf.mxu0
        %v7032 = vadd.f32 %v6907, %v7031
        %7033 = vmatprep.mubr.f32.mxu0 %v2780
        %7034 = vmatmul.mubr.f32.gmra.mxu0 %v2779
        %v7035 = vpop.f32.mrf.mxu0
        %v7036 = vadd.f32 %v6911, %v7035
        %v7037 = vpop.f32.mrf.mxu0
        %v7038 = vadd.f32 %v6913, %v7037
        %7039 = vdwg.mxu0
        %7040 = vmatprep.subr.mxu0 %v6333
        %7041 = vmatpush1.msra.mxu0 %v6332
        %7042 = vmatprep.subr.mxu0 %v6328
        %7043 = vmatpush1.msra.mxu0 %v6327
        %7044 = vmatprep.subr.mxu0 %v6323
        %7045 = vmatpush1.msra.mxu0 %v6322
        %7046 = vmatprep.subr.mxu0 %v6318
        %7047 = vmatpush1.msra.mxu0 %v6317
        %7048 = vmatprep.subr.mxu0 %v6313
        %7049 = vmatpush1.msra.mxu0 %v6312
        %7050 = vmatprep.subr.mxu0 %v6308
        %7051 = vmatpush1.msra.mxu0 %v6307
        %7052 = vmatprep.subr.mxu0 %v6303
        %7053 = vmatpush1.msra.mxu0 %v6302
        %7054 = vmatprep.subr.mxu0 %v6298
        %7055 = vmatpush1.msra.mxu0 %v6297
        %7056 = vmatprep.subr.mxu0 %v6293
        %7057 = vmatpush1.msra.mxu0 %v6292
        %7058 = vmatprep.subr.mxu0 %v6288
        %7059 = vmatpush1.msra.mxu0 %v6287
        %7060 = vmatprep.subr.mxu0 %v6283
        %7061 = vmatpush1.msra.mxu0 %v6282
        %7062 = vmatprep.subr.mxu0 %v6278
        %7063 = vmatpush1.msra.mxu0 %v6277
        %7064 = vmatprep.subr.mxu0 %v6273
        %7065 = vmatpush1.msra.mxu0 %v6272
        %7066 = vmatprep.subr.mxu0 %v6268
        %7067 = vmatpush1.msra.mxu0 %v6267
        %7068 = vmatprep.subr.mxu0 %v6263
        %7069 = vmatpush1.msra.mxu0 %v6262
        %7070 = vmatprep.subr.mxu0 %v6258
        %7071 = vmatpush1.msra.mxu0 %v6257
        %7072 = vmatprep.subr.mxu0 %v6413
        %7073 = vmatpush2.msra.mxu0 %v6412
        %7074 = vmatprep.subr.mxu0 %v6408
        %7075 = vmatpush2.msra.mxu0 %v6407
        %7076 = vmatprep.subr.mxu0 %v6403
        %7077 = vmatpush2.msra.mxu0 %v6402
        %7078 = vmatprep.subr.mxu0 %v6398
        %7079 = vmatpush2.msra.mxu0 %v6397
        %7080 = vmatprep.subr.mxu0 %v6393
        %7081 = vmatpush2.msra.mxu0 %v6392
        %7082 = vmatprep.subr.mxu0 %v6388
        %7083 = vmatpush2.msra.mxu0 %v6387
        %7084 = vmatprep.subr.mxu0 %v6383
        %7085 = vmatpush2.msra.mxu0 %v6382
        %7086 = vmatprep.subr.mxu0 %v6378
        %7087 = vmatpush2.msra.mxu0 %v6377
        %7088 = vmatprep.subr.mxu0 %v6373
        %7089 = vmatpush2.msra.mxu0 %v6372
        %7090 = vmatprep.subr.mxu0 %v6368
        %7091 = vmatpush2.msra.mxu0 %v6367
        %7092 = vmatprep.subr.mxu0 %v6363
        %7093 = vmatpush2.msra.mxu0 %v6362
        %7094 = vmatprep.subr.mxu0 %v6358
        %7095 = vmatpush2.msra.mxu0 %v6357
        %7096 = vmatprep.subr.mxu0 %v6353
        %7097 = vmatpush2.msra.mxu0 %v6352
        %7098 = vmatprep.subr.mxu0 %v6348
        %7099 = vmatpush2.msra.mxu0 %v6347
        %7100 = vmatprep.subr.mxu0 %v6343
        %7101 = vmatpush2.msra.mxu0 %v6342
        %7102 = vmatprep.subr.mxu0 %v6338
        %7103 = vmatpush2.msra.mxu0 %v6337
        %7104 = vmatprep.mubr.f32.mxu0 %v2728
        %7105 = vmatmul.mubr.f32.gmra.mxu0 %v2727
        %v7106 = vpop.f32.mrf.mxu0
        %v7107 = vadd.f32 %v6982, %v7106
        %v7108 = vpop.f32.mrf.mxu0
        %v7109 = vadd.f32 %v6984, %v7108
        %7110 = vmatprep.mubr.f32.mxu0 %v2734
        %7111 = vmatmul.mubr.f32.gmra.mxu0 %v2733
        %v7112 = vpop.f32.mrf.mxu0
        %v7113 = vadd.f32 %v6988, %v7112
        %v7114 = vpop.f32.mrf.mxu0
        %v7115 = vadd.f32 %v6990, %v7114
        %7116 = vmatprep.mubr.f32.mxu0 %v2740
        %7117 = vmatmul.mubr.f32.gmra.mxu0 %v2739
        %v7118 = vpop.f32.mrf.mxu0
        %v7119 = vadd.f32 %v6994, %v7118
        %v7120 = vpop.f32.mrf.mxu0
        %v7121 = vadd.f32 %v6996, %v7120
        %7122 = vmatprep.mubr.f32.mxu0 %v2746
        %7123 = vmatmul.mubr.f32.gmra.mxu0 %v2745
        %v7124 = vpop.f32.mrf.mxu0
        %v7125 = vadd.f32 %v7000, %v7124
        %v7126 = vpop.f32.mrf.mxu0
        %v7127 = vadd.f32 %v7002, %v7126
        %7128 = vmatprep.mubr.f32.mxu0 %v2752
        %7129 = vmatmul.mubr.f32.gmra.mxu0 %v2751
        %v7130 = vpop.f32.mrf.mxu0
        %v7131 = vadd.f32 %v7006, %v7130
        %v7132 = vpop.f32.mrf.mxu0
        %v7133 = vadd.f32 %v7008, %v7132
        %7134 = vmatprep.mubr.f32.mxu0 %v2758
        %7135 = vmatmul.mubr.f32.gmra.mxu0 %v2757
        %v7136 = vpop.f32.mrf.mxu0
        %v7137 = vadd.f32 %v7012, %v7136
        %v7138 = vpop.f32.mrf.mxu0
        %v7139 = vadd.f32 %v7014, %v7138
        %7140 = vmatprep.mubr.f32.mxu0 %v2764
        %7141 = vmatmul.mubr.f32.gmra.mxu0 %v2763
        %v7142 = vpop.f32.mrf.mxu0
        %v7143 = vadd.f32 %v7018, %v7142
        %v7144 = vpop.f32.mrf.mxu0
        %v7145 = vadd.f32 %v7020, %v7144
        %7146 = vmatprep.mubr.f32.mxu0 %v2770
        %7147 = vmatmul.mubr.f32.gmra.mxu0 %v2769
        %v7148 = vpop.f32.mrf.mxu0
        %v7149 = vadd.f32 %v7024, %v7148
        %v7150 = vpop.f32.mrf.mxu0
        %v7151 = vadd.f32 %v7026, %v7150
        %7152 = vmatprep.mubr.f32.mxu0 %v2776
        %7153 = vmatmul.mubr.f32.gmra.mxu0 %v2775
        %v7154 = vpop.f32.mrf.mxu0
        %v7155 = vadd.f32 %v7030, %v7154
        %v7156 = vpop.f32.mrf.mxu0
        %v7157 = vadd.f32 %v7032, %v7156
        %7158 = vmatprep.mubr.f32.mxu0 %v2782
        %7159 = vmatmul.mubr.f32.gmra.mxu0 %v2781
        %v7160 = vpop.f32.mrf.mxu0
        %v7161 = vadd.f32 %v7036, %v7160
        %v7162 = vpop.f32.mrf.mxu0
        %v7163 = vadd.f32 %v7038, %v7162
        %7164 = vdwg.mxu0
        %7165 = vmatprep.subr.mxu0 0.0
        %7166 = vmatpush1.msra.mxu0 %v6014
        %7167 = vmatprep.subr.mxu0 0.0
        %7168 = vmatpush1.msra.mxu0 %v6009
        %7169 = vmatprep.subr.mxu0 0.0
        %7170 = vmatpush1.msra.mxu0 %v6004
        %7171 = vmatprep.subr.mxu0 0.0
        %7172 = vmatpush1.msra.mxu0 %v5999
        %7173 = vmatprep.subr.mxu0 0.0
        %7174 = vmatpush1.msra.mxu0 %v5994
        %7175 = vmatprep.subr.mxu0 0.0
        %7176 = vmatpush1.msra.mxu0 %v5989
        %7177 = vmatprep.subr.mxu0 0.0
        %7178 = vmatpush1.msra.mxu0 %v5984
        %7179 = vmatprep.subr.mxu0 0.0
        %7180 = vmatpush1.msra.mxu0 %v5979
        %7181 = vmatprep.subr.mxu0 0.0
        %7182 = vmatpush1.msra.mxu0 %v5974
        %7183 = vmatprep.subr.mxu0 0.0
        %7184 = vmatpush1.msra.mxu0 %v5969
        %7185 = vmatprep.subr.mxu0 0.0
        %7186 = vmatpush1.msra.mxu0 %v5964
        %7187 = vmatprep.subr.mxu0 0.0
        %7188 = vmatpush1.msra.mxu0 %v5959
        %7189 = vmatprep.subr.mxu0 0.0
        %7190 = vmatpush1.msra.mxu0 %v5954
        %7191 = vmatprep.subr.mxu0 0.0
        %7192 = vmatpush1.msra.mxu0 %v5949
        %7193 = vmatprep.subr.mxu0 0.0
        %7194 = vmatpush1.msra.mxu0 %v5944
        %7195 = vmatprep.subr.mxu0 0.0
        %7196 = vmatpush1.msra.mxu0 %v5939
        %7197 = vmatprep.subr.mxu0 0.0
        %7198 = vmatpush2.msra.mxu0 %v6094
        %7199 = vmatprep.subr.mxu0 0.0
        %7200 = vmatpush2.msra.mxu0 %v6089
        %7201 = vmatprep.subr.mxu0 0.0
        %7202 = vmatpush2.msra.mxu0 %v6084
        %7203 = vmatprep.subr.mxu0 0.0
        %7204 = vmatpush2.msra.mxu0 %v6079
        %7205 = vmatprep.subr.mxu0 0.0
        %7206 = vmatpush2.msra.mxu0 %v6074
        %7207 = vmatprep.subr.mxu0 0.0
        %7208 = vmatpush2.msra.mxu0 %v6069
        %7209 = vmatprep.subr.mxu0 0.0
        %7210 = vmatpush2.msra.mxu0 %v6064
        %7211 = vmatprep.subr.mxu0 0.0
        %7212 = vmatpush2.msra.mxu0 %v6059
        %7213 = vmatprep.subr.mxu0 0.0
        %7214 = vmatpush2.msra.mxu0 %v6054
        %7215 = vmatprep.subr.mxu0 0.0
        %7216 = vmatpush2.msra.mxu0 %v6049
        %7217 = vmatprep.subr.mxu0 0.0
        %7218 = vmatpush2.msra.mxu0 %v6044
        %7219 = vmatprep.subr.mxu0 0.0
        %7220 = vmatpush2.msra.mxu0 %v6039
        %7221 = vmatprep.subr.mxu0 0.0
        %7222 = vmatpush2.msra.mxu0 %v6034
        %7223 = vmatprep.subr.mxu0 0.0
        %7224 = vmatpush2.msra.mxu0 %v6029
        %7225 = vmatprep.subr.mxu0 0.0
        %7226 = vmatpush2.msra.mxu0 %v6024
        %7227 = vmatprep.subr.mxu0 0.0
        %7228 = vmatpush2.msra.mxu0 %v6019
        %7229 = vmatprep.mubr.f32.mxu0 %v2724
        %7230 = vmatmul.mubr.f32.gmra.mxu0 %v2723
        %v7231 = vpop.f32.mrf.mxu0
        %v7232 = vadd.f32 0.0, %v7231
        %v7233 = vpop.f32.mrf.mxu0
        %7234 = vmatprep.mubr.f32.mxu0 %v2730
        %7235 = vmatmul.mubr.f32.gmra.mxu0 %v2729
        %v7236 = vpop.f32.mrf.mxu0
        %v7237 = vadd.f32 0.0, %v7236
        %v7238 = vpop.f32.mrf.mxu0
        %7239 = vmatprep.mubr.f32.mxu0 %v2736
        %7240 = vmatmul.mubr.f32.gmra.mxu0 %v2735
        %v7241 = vpop.f32.mrf.mxu0
        %v7242 = vadd.f32 0.0, %v7241
        %v7243 = vpop.f32.mrf.mxu0
        %7244 = vmatprep.mubr.f32.mxu0 %v2742
        %7245 = vmatmul.mubr.f32.gmra.mxu0 %v2741
        %v7246 = vpop.f32.mrf.mxu0
        %v7247 = vadd.f32 0.0, %v7246
        %v7248 = vpop.f32.mrf.mxu0
        %7249 = vmatprep.mubr.f32.mxu0 %v2748
        %7250 = vmatmul.mubr.f32.gmra.mxu0 %v2747
        %v7251 = vpop.f32.mrf.mxu0
        %v7252 = vadd.f32 0.0, %v7251
        %v7253 = vpop.f32.mrf.mxu0
        %7254 = vmatprep.mubr.f32.mxu0 %v2754
        %7255 = vmatmul.mubr.f32.gmra.mxu0 %v2753
        %v7256 = vpop.f32.mrf.mxu0
        %v7257 = vadd.f32 0.0, %v7256
        %v7258 = vpop.f32.mrf.mxu0
        %7259 = vmatprep.mubr.f32.mxu0 %v2760
        %7260 = vmatmul.mubr.f32.gmra.mxu0 %v2759
        %v7261 = vpop.f32.mrf.mxu0
        %v7262 = vadd.f32 0.0, %v7261
        %v7263 = vpop.f32.mrf.mxu0
        %7264 = vmatprep.mubr.f32.mxu0 %v2766
        %7265 = vmatmul.mubr.f32.gmra.mxu0 %v2765
        %v7266 = vpop.f32.mrf.mxu0
        %v7267 = vadd.f32 0.0, %v7266
        %v7268 = vpop.f32.mrf.mxu0
        %7269 = vmatprep.mubr.f32.mxu0 %v2772
        %7270 = vmatmul.mubr.f32.gmra.mxu0 %v2771
        %v7271 = vpop.f32.mrf.mxu0
        %v7272 = vadd.f32 0.0, %v7271
        %v7273 = vpop.f32.mrf.mxu0
        %7274 = vmatprep.mubr.f32.mxu0 %v2778
        %7275 = vmatmul.mubr.f32.gmra.mxu0 %v2777
        %v7276 = vpop.f32.mrf.mxu0
        %v7277 = vadd.f32 0.0, %v7276
        %v7278 = vpop.f32.mrf.mxu0
        %7279 = vdwg.mxu0
        %7280 = vmatprep.subr.mxu0 0.0
        %7281 = vmatpush1.msra.mxu0 %v6174
        %7282 = vmatprep.subr.mxu0 0.0
        %7283 = vmatpush1.msra.mxu0 %v6169
        %7284 = vmatprep.subr.mxu0 0.0
        %7285 = vmatpush1.msra.mxu0 %v6164
        %7286 = vmatprep.subr.mxu0 0.0
        %7287 = vmatpush1.msra.mxu0 %v6159
        %7288 = vmatprep.subr.mxu0 0.0
        %7289 = vmatpush1.msra.mxu0 %v6154
        %7290 = vmatprep.subr.mxu0 0.0
        %7291 = vmatpush1.msra.mxu0 %v6149
        %7292 = vmatprep.subr.mxu0 0.0
        %7293 = vmatpush1.msra.mxu0 %v6144
        %7294 = vmatprep.subr.mxu0 0.0
        %7295 = vmatpush1.msra.mxu0 %v6139
        %7296 = vmatprep.subr.mxu0 0.0
        %7297 = vmatpush1.msra.mxu0 %v6134
        %7298 = vmatprep.subr.mxu0 0.0
        %7299 = vmatpush1.msra.mxu0 %v6129
        %7300 = vmatprep.subr.mxu0 0.0
        %7301 = vmatpush1.msra.mxu0 %v6124
        %7302 = vmatprep.subr.mxu0 0.0
        %7303 = vmatpush1.msra.mxu0 %v6119
        %7304 = vmatprep.subr.mxu0 0.0
        %7305 = vmatpush1.msra.mxu0 %v6114
        %7306 = vmatprep.subr.mxu0 0.0
        %7307 = vmatpush1.msra.mxu0 %v6109
        %7308 = vmatprep.subr.mxu0 0.0
        %7309 = vmatpush1.msra.mxu0 %v6104
        %7310 = vmatprep.subr.mxu0 0.0
        %7311 = vmatpush1.msra.mxu0 %v6099
        %7312 = vmatprep.subr.mxu0 0.0
        %7313 = vmatpush2.msra.mxu0 %v6254
        %7314 = vmatprep.subr.mxu0 0.0
        %7315 = vmatpush2.msra.mxu0 %v6249
        %7316 = vmatprep.subr.mxu0 0.0
        %7317 = vmatpush2.msra.mxu0 %v6244
        %7318 = vmatprep.subr.mxu0 0.0
        %7319 = vmatpush2.msra.mxu0 %v6239
        %7320 = vmatprep.subr.mxu0 0.0
        %7321 = vmatpush2.msra.mxu0 %v6234
        %7322 = vmatprep.subr.mxu0 0.0
        %7323 = vmatpush2.msra.mxu0 %v6229
        %7324 = vmatprep.subr.mxu0 0.0
        %7325 = vmatpush2.msra.mxu0 %v6224
        %7326 = vmatprep.subr.mxu0 0.0
        %7327 = vmatpush2.msra.mxu0 %v6219
        %7328 = vmatprep.subr.mxu0 0.0
        %7329 = vmatpush2.msra.mxu0 %v6214
        %7330 = vmatprep.subr.mxu0 0.0
        %7331 = vmatpush2.msra.mxu0 %v6209
        %7332 = vmatprep.subr.mxu0 0.0
        %7333 = vmatpush2.msra.mxu0 %v6204
        %7334 = vmatprep.subr.mxu0 0.0
        %7335 = vmatpush2.msra.mxu0 %v6199
        %7336 = vmatprep.subr.mxu0 0.0
        %7337 = vmatpush2.msra.mxu0 %v6194
        %7338 = vmatprep.subr.mxu0 0.0
        %7339 = vmatpush2.msra.mxu0 %v6189
        %7340 = vmatprep.subr.mxu0 0.0
        %7341 = vmatpush2.msra.mxu0 %v6184
        %7342 = vmatprep.subr.mxu0 0.0
        %7343 = vmatpush2.msra.mxu0 %v6179
        %7344 = vmatprep.mubr.f32.mxu0 %v2726
        %7345 = vmatmul.mubr.f32.gmra.mxu0 %v2725
        %v7346 = vpop.f32.mrf.mxu0
        %v7347 = vadd.f32 %v7232, %v7346
        %v7348 = vpop.f32.mrf.mxu0
        %7349 = vmatprep.mubr.f32.mxu0 %v2732
        %7350 = vmatmul.mubr.f32.gmra.mxu0 %v2731
        %v7351 = vpop.f32.mrf.mxu0
        %v7352 = vadd.f32 %v7237, %v7351
        %v7353 = vpop.f32.mrf.mxu0
        %7354 = vmatprep.mubr.f32.mxu0 %v2738
        %7355 = vmatmul.mubr.f32.gmra.mxu0 %v2737
        %v7356 = vpop.f32.mrf.mxu0
        %v7357 = vadd.f32 %v7242, %v7356
        %v7358 = vpop.f32.mrf.mxu0
        %7359 = vmatprep.mubr.f32.mxu0 %v2744
        %7360 = vmatmul.mubr.f32.gmra.mxu0 %v2743
        %v7361 = vpop.f32.mrf.mxu0
        %v7362 = vadd.f32 %v7247, %v7361
        %v7363 = vpop.f32.mrf.mxu0
        %7364 = vmatprep.mubr.f32.mxu0 %v2750
        %7365 = vmatmul.mubr.f32.gmra.mxu0 %v2749
        %v7366 = vpop.f32.mrf.mxu0
        %v7367 = vadd.f32 %v7252, %v7366
        %v7368 = vpop.f32.mrf.mxu0
        %7369 = vmatprep.mubr.f32.mxu0 %v2756
        %7370 = vmatmul.mubr.f32.gmra.mxu0 %v2755
        %v7371 = vpop.f32.mrf.mxu0
        %v7372 = vadd.f32 %v7257, %v7371
        %v7373 = vpop.f32.mrf.mxu0
        %7374 = vmatprep.mubr.f32.mxu0 %v2762
        %7375 = vmatmul.mubr.f32.gmra.mxu0 %v2761
        %v7376 = vpop.f32.mrf.mxu0
        %v7377 = vadd.f32 %v7262, %v7376
        %v7378 = vpop.f32.mrf.mxu0
        %7379 = vmatprep.mubr.f32.mxu0 %v2768
        %7380 = vmatmul.mubr.f32.gmra.mxu0 %v2767
        %v7381 = vpop.f32.mrf.mxu0
        %v7382 = vadd.f32 %v7267, %v7381
        %v7383 = vpop.f32.mrf.mxu0
        %7384 = vmatprep.mubr.f32.mxu0 %v2774
        %7385 = vmatmul.mubr.f32.gmra.mxu0 %v2773
        %v7386 = vpop.f32.mrf.mxu0
        %v7387 = vadd.f32 %v7272, %v7386
        %v7388 = vpop.f32.mrf.mxu0
        %7389 = vmatprep.mubr.f32.mxu0 %v2780
        %7390 = vmatmul.mubr.f32.gmra.mxu0 %v2779
        %v7391 = vpop.f32.mrf.mxu0
        %v7392 = vadd.f32 %v7277, %v7391
        %v7393 = vpop.f32.mrf.mxu0
        %7394 = vdwg.mxu0
        %7395 = vmatprep.subr.mxu0 0.0
        %7396 = vmatpush1.msra.mxu0 %v6334
        %7397 = vmatprep.subr.mxu0 0.0
        %7398 = vmatpush1.msra.mxu0 %v6329
        %7399 = vmatprep.subr.mxu0 0.0
        %7400 = vmatpush1.msra.mxu0 %v6324
        %7401 = vmatprep.subr.mxu0 0.0
        %7402 = vmatpush1.msra.mxu0 %v6319
        %7403 = vmatprep.subr.mxu0 0.0
        %7404 = vmatpush1.msra.mxu0 %v6314
        %7405 = vmatprep.subr.mxu0 0.0
        %7406 = vmatpush1.msra.mxu0 %v6309
        %7407 = vmatprep.subr.mxu0 0.0
        %7408 = vmatpush1.msra.mxu0 %v6304
        %7409 = vmatprep.subr.mxu0 0.0
        %7410 = vmatpush1.msra.mxu0 %v6299
        %7411 = vmatprep.subr.mxu0 0.0
        %7412 = vmatpush1.msra.mxu0 %v6294
        %7413 = vmatprep.subr.mxu0 0.0
        %7414 = vmatpush1.msra.mxu0 %v6289
        %7415 = vmatprep.subr.mxu0 0.0
        %7416 = vmatpush1.msra.mxu0 %v6284
        %7417 = vmatprep.subr.mxu0 0.0
        %7418 = vmatpush1.msra.mxu0 %v6279
        %7419 = vmatprep.subr.mxu0 0.0
        %7420 = vmatpush1.msra.mxu0 %v6274
        %7421 = vmatprep.subr.mxu0 0.0
        %7422 = vmatpush1.msra.mxu0 %v6269
        %7423 = vmatprep.subr.mxu0 0.0
        %7424 = vmatpush1.msra.mxu0 %v6264
        %7425 = vmatprep.subr.mxu0 0.0
        %7426 = vmatpush1.msra.mxu0 %v6259
        %7427 = vmatprep.subr.mxu0 0.0
        %7428 = vmatpush2.msra.mxu0 %v6414
        %7429 = vmatprep.subr.mxu0 0.0
        %7430 = vmatpush2.msra.mxu0 %v6409
        %7431 = vmatprep.subr.mxu0 0.0
        %7432 = vmatpush2.msra.mxu0 %v6404
        %7433 = vmatprep.subr.mxu0 0.0
        %7434 = vmatpush2.msra.mxu0 %v6399
        %7435 = vmatprep.subr.mxu0 0.0
        %7436 = vmatpush2.msra.mxu0 %v6394
        %7437 = vmatprep.subr.mxu0 0.0
        %7438 = vmatpush2.msra.mxu0 %v6389
        %7439 = vmatprep.subr.mxu0 0.0
        %7440 = vmatpush2.msra.mxu0 %v6384
        %7441 = vmatprep.subr.mxu0 0.0
        %7442 = vmatpush2.msra.mxu0 %v6379
        %7443 = vmatprep.subr.mxu0 0.0
        %7444 = vmatpush2.msra.mxu0 %v6374
        %7445 = vmatprep.subr.mxu0 0.0
        %7446 = vmatpush2.msra.mxu0 %v6369
        %7447 = vmatprep.subr.mxu0 0.0
        %7448 = vmatpush2.msra.mxu0 %v6364
        %7449 = vmatprep.subr.mxu0 0.0
        %7450 = vmatpush2.msra.mxu0 %v6359
        %7451 = vmatprep.subr.mxu0 0.0
        %7452 = vmatpush2.msra.mxu0 %v6354
        %7453 = vmatprep.subr.mxu0 0.0
        %7454 = vmatpush2.msra.mxu0 %v6349
        %7455 = vmatprep.subr.mxu0 0.0
        %7456 = vmatpush2.msra.mxu0 %v6344
        %7457 = vmatprep.subr.mxu0 0.0
        %7458 = vmatpush2.msra.mxu0 %v6339
        %7459 = vmatprep.mubr.f32.mxu0 %v2728
        %7460 = vmatmul.mubr.f32.gmra.mxu0 %v2727
        %v7461 = vpop.f32.mrf.mxu0
        %v7462 = vadd.f32 %v7347, %v7461
        %v7463 = vpop.f32.mrf.mxu0
        %7464 = vmatprep.mubr.f32.mxu0 %v2734
        %7465 = vmatmul.mubr.f32.gmra.mxu0 %v2733
        %v7466 = vpop.f32.mrf.mxu0
        %v7467 = vadd.f32 %v7352, %v7466
        %v7468 = vpop.f32.mrf.mxu0
        %7469 = vmatprep.mubr.f32.mxu0 %v2740
        %7470 = vmatmul.mubr.f32.gmra.mxu0 %v2739
        %v7471 = vpop.f32.mrf.mxu0
        %v7472 = vadd.f32 %v7357, %v7471
        %v7473 = vpop.f32.mrf.mxu0
        %7474 = vmatprep.mubr.f32.mxu0 %v2746
        %7475 = vmatmul.mubr.f32.gmra.mxu0 %v2745
        %v7476 = vpop.f32.mrf.mxu0
        %v7477 = vadd.f32 %v7362, %v7476
        %v7478 = vpop.f32.mrf.mxu0
        %7479 = vmatprep.mubr.f32.mxu0 %v2752
        %7480 = vmatmul.mubr.f32.gmra.mxu0 %v2751
        %v7481 = vpop.f32.mrf.mxu0
        %v7482 = vadd.f32 %v7367, %v7481
        %v7483 = vpop.f32.mrf.mxu0
        %7484 = vmatprep.mubr.f32.mxu0 %v2758
        %7485 = vmatmul.mubr.f32.gmra.mxu0 %v2757
        %v7486 = vpop.f32.mrf.mxu0
        %v7487 = vadd.f32 %v7372, %v7486
        %v7488 = vpop.f32.mrf.mxu0
        %7489 = vmatprep.mubr.f32.mxu0 %v2764
        %7490 = vmatmul.mubr.f32.gmra.mxu0 %v2763
        %v7491 = vpop.f32.mrf.mxu0
        %v7492 = vadd.f32 %v7377, %v7491
        %v7493 = vpop.f32.mrf.mxu0
        %7494 = vmatprep.mubr.f32.mxu0 %v2770
        %7495 = vmatmul.mubr.f32.gmra.mxu0 %v2769
        %v7496 = vpop.f32.mrf.mxu0
        %v7497 = vadd.f32 %v7382, %v7496
        %v7498 = vpop.f32.mrf.mxu0
        %7499 = vmatprep.mubr.f32.mxu0 %v2776
        %7500 = vmatmul.mubr.f32.gmra.mxu0 %v2775
        %v7501 = vpop.f32.mrf.mxu0
        %v7502 = vadd.f32 %v7387, %v7501
        %v7503 = vpop.f32.mrf.mxu0
        %7504 = vmatprep.mubr.f32.mxu0 %v2782
        %7505 = vmatmul.mubr.f32.gmra.mxu0 %v2781
        %v7506 = vpop.f32.mrf.mxu0
        %v7507 = vadd.f32 %v7392, %v7506
        %v7508 = vpop.f32.mrf.mxu0
        %7509 = vdwg.mxu0
        %v7510 = vadd.f32 %v5156, %v6732
        %v7511 = vadd.f32 %v5158, %v6734
        %v7512 = vadd.f32 %v5531, %v7107
        %v7513 = vadd.f32 %v5533, %v7109
        %v7514 = vadd.f32 %v5886, %v7462
        %v7515 = vadd.f32 %v5162, %v6738
        %v7516 = vadd.f32 %v5164, %v6740
        %v7517 = vadd.f32 %v5537, %v7113
        %v7518 = vadd.f32 %v5539, %v7115
        %v7519 = vadd.f32 %v5891, %v7467
        %v7520 = vadd.f32 %v5168, %v6744
        %v7521 = vadd.f32 %v5170, %v6746
        %v7522 = vadd.f32 %v5543, %v7119
        %v7523 = vadd.f32 %v5545, %v7121
        %v7524 = vadd.f32 %v5896, %v7472
        %v7525 = vadd.f32 %v5174, %v6750
        %v7526 = vadd.f32 %v5176, %v6752
        %v7527 = vadd.f32 %v5549, %v7125
        %v7528 = vadd.f32 %v5551, %v7127
        %v7529 = vadd.f32 %v5901, %v7477
        %v7530 = vadd.f32 %v5180, %v6756
        %v7531 = vadd.f32 %v5182, %v6758
        %v7532 = vadd.f32 %v5555, %v7131
        %v7533 = vadd.f32 %v5557, %v7133
        %v7534 = vadd.f32 %v5906, %v7482
        %v7535 = vadd.f32 %v5186, %v6762
        %v7536 = vadd.f32 %v5188, %v6764
        %v7537 = vadd.f32 %v5561, %v7137
        %v7538 = vadd.f32 %v5563, %v7139
        %v7539 = vadd.f32 %v5911, %v7487
        %v7540 = vadd.f32 %v5192, %v6768
        %v7541 = vadd.f32 %v5194, %v6770
        %v7542 = vadd.f32 %v5567, %v7143
        %v7543 = vadd.f32 %v5569, %v7145
        %v7544 = vadd.f32 %v5916, %v7492
        %v7545 = vadd.f32 %v5198, %v6774
        %v7546 = vadd.f32 %v5200, %v6776
        %v7547 = vadd.f32 %v5573, %v7149
        %v7548 = vadd.f32 %v5575, %v7151
        %v7549 = vadd.f32 %v5921, %v7497
        %v7550 = vadd.f32 %v5204, %v6780
        %v7551 = vadd.f32 %v5206, %v6782
        %v7552 = vadd.f32 %v5579, %v7155
        %v7553 = vadd.f32 %v5581, %v7157
        %v7554 = vadd.f32 %v5926, %v7502
        %v7555 = vadd.f32 %v5210, %v6786
        %v7556 = vadd.f32 %v5212, %v6788
        %v7557 = vadd.f32 %v5585, %v7161
        %v7558 = vadd.f32 %v5587, %v7163
        %v7559 = vadd.f32 %v5931, %v7507
        %v7560 = vld [vmem:[#allocation9] sm:$0x1f]
        %v7562 = vlaneseq
        %v7563 = vshrl.u32 %v7562, 7
        %v7564 = vsub.s32 0, %v7563
        %v7565 = vrot.slane %v7560, %v7564
        %v7566 = vlaneseq
        %v7567 = vshrl.u32 %v7566, 7
        %v7568 = vsub.s32 1, %v7567
        %v7569 = vrot.slane %v7560, %v7568
        %v7570 = vlaneseq
        %v7571 = vshrl.u32 %v7570, 7
        %v7572 = vsub.s32 2, %v7571
        %v7573 = vrot.slane %v7560, %v7572
        %v7574 = vlaneseq
        %v7575 = vshrl.u32 %v7574, 7
        %v7576 = vsub.s32 3, %v7575
        %v7577 = vrot.slane %v7560, %v7576
        %v7578 = vlaneseq
        %v7579 = vshrl.u32 %v7578, 7
        %v7580 = vsub.s32 4, %v7579
        %v7581 = vrot.slane %v7560, %v7580
        %v7587 = vadd.f32 %v7510, %v7565
        %v7588 = vadd.f32 %v7511, %v7569
        %v7589 = vadd.f32 %v7512, %v7573
        %v7590 = vadd.f32 %v7513, %v7577
        %v7591 = vadd.f32 %v7514, %v7581
        %v7592 = vadd.f32 %v7515, %v7565
        %v7593 = vadd.f32 %v7516, %v7569
        %v7594 = vadd.f32 %v7517, %v7573
        %v7595 = vadd.f32 %v7518, %v7577
        %v7596 = vadd.f32 %v7519, %v7581
        %v7597 = vadd.f32 %v7520, %v7565
        %v7598 = vadd.f32 %v7521, %v7569
        %v7599 = vadd.f32 %v7522, %v7573
        %v7600 = vadd.f32 %v7523, %v7577
        %v7601 = vadd.f32 %v7524, %v7581
        %v7602 = vadd.f32 %v7525, %v7565
        %v7603 = vadd.f32 %v7526, %v7569
        %v7604 = vadd.f32 %v7527, %v7573
        %v7605 = vadd.f32 %v7528, %v7577
        %v7606 = vadd.f32 %v7529, %v7581
        %v7607 = vadd.f32 %v7530, %v7565
        %v7608 = vadd.f32 %v7531, %v7569
        %v7609 = vadd.f32 %v7532, %v7573
        %v7610 = vadd.f32 %v7533, %v7577
        %v7611 = vadd.f32 %v7534, %v7581
        %v7612 = vadd.f32 %v7535, %v7565
        %v7613 = vadd.f32 %v7536, %v7569
        %v7614 = vadd.f32 %v7537, %v7573
        %v7615 = vadd.f32 %v7538, %v7577
        %v7616 = vadd.f32 %v7539, %v7581
        %v7617 = vadd.f32 %v7540, %v7565
        %v7618 = vadd.f32 %v7541, %v7569
        %v7619 = vadd.f32 %v7542, %v7573
        %v7620 = vadd.f32 %v7543, %v7577
        %v7621 = vadd.f32 %v7544, %v7581
        %v7622 = vadd.f32 %v7545, %v7565
        %v7623 = vadd.f32 %v7546, %v7569
        %v7624 = vadd.f32 %v7547, %v7573
        %v7625 = vadd.f32 %v7548, %v7577
        %v7626 = vadd.f32 %v7549, %v7581
        %v7627 = vadd.f32 %v7550, %v7565
        %v7628 = vadd.f32 %v7551, %v7569
        %v7629 = vadd.f32 %v7552, %v7573
        %v7630 = vadd.f32 %v7553, %v7577
        %v7631 = vadd.f32 %v7554, %v7581
        %v7632 = vadd.f32 %v7555, %v7565
        %v7633 = vadd.f32 %v7556, %v7569
        %v7634 = vadd.f32 %v7557, %v7573
        %v7635 = vadd.f32 %v7558, %v7577
        %v7636 = vadd.f32 %v7559, %v7581
        %v7637 = vmax.f32 %v7587, 0.0
        %v7638 = vmax.f32 %v7588, 0.0
        %v7639 = vmax.f32 %v7589, 0.0
        %v7640 = vmax.f32 %v7590, 0.0
        %v7641 = vmax.f32 %v7591, 0.0
        %v7642 = vmax.f32 %v7592, 0.0
        %v7643 = vmax.f32 %v7593, 0.0
        %v7644 = vmax.f32 %v7594, 0.0
        %v7645 = vmax.f32 %v7595, 0.0
        %v7646 = vmax.f32 %v7596, 0.0
        %v7647 = vmax.f32 %v7597, 0.0
        %v7648 = vmax.f32 %v7598, 0.0
        %v7649 = vmax.f32 %v7599, 0.0
        %v7650 = vmax.f32 %v7600, 0.0
        %v7651 = vmax.f32 %v7601, 0.0
        %v7652 = vmax.f32 %v7602, 0.0
        %v7653 = vmax.f32 %v7603, 0.0
        %v7654 = vmax.f32 %v7604, 0.0
        %v7655 = vmax.f32 %v7605, 0.0
        %v7656 = vmax.f32 %v7606, 0.0
        %v7657 = vmax.f32 %v7607, 0.0
        %v7658 = vmax.f32 %v7608, 0.0
        %v7659 = vmax.f32 %v7609, 0.0
        %v7660 = vmax.f32 %v7610, 0.0
        %v7661 = vmax.f32 %v7611, 0.0
        %v7662 = vmax.f32 %v7612, 0.0
        %v7663 = vmax.f32 %v7613, 0.0
        %v7664 = vmax.f32 %v7614, 0.0
        %v7665 = vmax.f32 %v7615, 0.0
        %v7666 = vmax.f32 %v7616, 0.0
        %v7667 = vmax.f32 %v7617, 0.0
        %v7668 = vmax.f32 %v7618, 0.0
        %v7669 = vmax.f32 %v7619, 0.0
        %v7670 = vmax.f32 %v7620, 0.0
        %v7671 = vmax.f32 %v7621, 0.0
        %v7672 = vmax.f32 %v7622, 0.0
        %v7673 = vmax.f32 %v7623, 0.0
        %v7674 = vmax.f32 %v7624, 0.0
        %v7675 = vmax.f32 %v7625, 0.0
        %v7676 = vmax.f32 %v7626, 0.0
        %v7677 = vmax.f32 %v7627, 0.0
        %v7678 = vmax.f32 %v7628, 0.0
        %v7679 = vmax.f32 %v7629, 0.0
        %v7680 = vmax.f32 %v7630, 0.0
        %v7681 = vmax.f32 %v7631, 0.0
        %v7682 = vmax.f32 %v7632, 0.0
        %v7683 = vmax.f32 %v7633, 0.0
        %v7684 = vmax.f32 %v7634, 0.0
        %v7685 = vmax.f32 %v7635, 0.0
        %v7686 = vmax.f32 %v7636, 0.0
        %v7687 = vld [vmem:[#allocation11] sm:$0xff]
        %v7688 = vld [vmem:[#allocation11 + $0x8] sm:$0xff]
        %v7689 = vld [vmem:[#allocation11 + $0x10] sm:$0xff]
        %v7690 = vld [vmem:[#allocation11 + $0x18] sm:$0xff]
        %v7691 = vld [vmem:[#allocation11 + $0x20] sm:$0xff]
        %v7692 = vld [vmem:[#allocation11 + $0x28] sm:$0x3]
        %v7693 = vld [vmem:[#allocation11 + $0x30] sm:$0x3]
        %v7694 = vld [vmem:[#allocation11 + $0x38] sm:$0x3]
        %v7695 = vld [vmem:[#allocation11 + $0x40] sm:$0x3]
        %v7696 = vld [vmem:[#allocation11 + $0x48] sm:$0x3]
        %v7697 = vld [vmem:[#allocation11 + $0x50] sm:$0xff]
        %v7698 = vld [vmem:[#allocation11 + $0x58] sm:$0xff]
        %v7699 = vld [vmem:[#allocation11 + $0x60] sm:$0xff]
        %v7700 = vld [vmem:[#allocation11 + $0x68] sm:$0xff]
        %v7701 = vld [vmem:[#allocation11 + $0x70] sm:$0xff]
        %v7702 = vld [vmem:[#allocation11 + $0x78] sm:$0x3]
        %v7703 = vld [vmem:[#allocation11 + $0x80] sm:$0x3]
        %v7704 = vld [vmem:[#allocation11 + $0x88] sm:$0x3]
        %v7705 = vld [vmem:[#allocation11 + $0x90] sm:$0x3]
        %v7706 = vld [vmem:[#allocation11 + $0x98] sm:$0x3]
        %v7707 = vld [vmem:[#allocation11 + $0xa0] sm:$0xff]
        %v7708 = vld [vmem:[#allocation11 + $0xa8] sm:$0xff]
        %v7709 = vld [vmem:[#allocation11 + $0xb0] sm:$0xff]
        %v7710 = vld [vmem:[#allocation11 + $0xb8] sm:$0xff]
        %v7711 = vld [vmem:[#allocation11 + $0xc0] sm:$0xff]
        %v7712 = vld [vmem:[#allocation11 + $0xc8] sm:$0x3]
        %v7713 = vld [vmem:[#allocation11 + $0xd0] sm:$0x3]
        %v7714 = vld [vmem:[#allocation11 + $0xd8] sm:$0x3]
        %v7715 = vld [vmem:[#allocation11 + $0xe0] sm:$0x3]
        %v7716 = vld [vmem:[#allocation11 + $0xe8] sm:$0x3]
        %v7717 = vld [vmem:[#allocation11 + $0xf0] sm:$0xff]
        %v7718 = vld [vmem:[#allocation11 + $0xf8] sm:$0xff]
        %v7719 = vld [vmem:[#allocation11 + $0x100] sm:$0xff]
        %v7720 = vld [vmem:[#allocation11 + $0x108] sm:$0xff]
        %v7721 = vld [vmem:[#allocation11 + $0x110] sm:$0xff]
        %v7722 = vld [vmem:[#allocation11 + $0x118] sm:$0x3]
        %v7723 = vld [vmem:[#allocation11 + $0x120] sm:$0x3]
        %v7724 = vld [vmem:[#allocation11 + $0x128] sm:$0x3]
        %v7725 = vld [vmem:[#allocation11 + $0x130] sm:$0x3]
        %v7726 = vld [vmem:[#allocation11 + $0x138] sm:$0x3]
        %v7727 = vld [vmem:[#allocation11 + $0x140] sm:$0xff]
        %v7728 = vld [vmem:[#allocation11 + $0x148] sm:$0xff]
        %v7729 = vld [vmem:[#allocation11 + $0x150] sm:$0xff]
        %v7730 = vld [vmem:[#allocation11 + $0x158] sm:$0xff]
        %v7731 = vld [vmem:[#allocation11 + $0x160] sm:$0xff]
        %v7732 = vld [vmem:[#allocation11 + $0x168] sm:$0x3]
        %v7733 = vld [vmem:[#allocation11 + $0x170] sm:$0x3]
        %v7734 = vld [vmem:[#allocation11 + $0x178] sm:$0x3]
        %v7735 = vld [vmem:[#allocation11 + $0x180] sm:$0x3]
        %v7736 = vld [vmem:[#allocation11 + $0x188] sm:$0x3]
        %v7737 = vld [vmem:[#allocation11 + $0x190] sm:$0xff]
        %v7738 = vld [vmem:[#allocation11 + $0x198] sm:$0xff]
        %v7739 = vld [vmem:[#allocation11 + $0x1a0] sm:$0xff]
        %v7740 = vld [vmem:[#allocation11 + $0x1a8] sm:$0xff]
        %v7741 = vld [vmem:[#allocation11 + $0x1b0] sm:$0xff]
        %v7742 = vld [vmem:[#allocation11 + $0x1b8] sm:$0x3]
        %v7743 = vld [vmem:[#allocation11 + $0x1c0] sm:$0x3]
        %v7744 = vld [vmem:[#allocation11 + $0x1c8] sm:$0x3]
        %v7745 = vld [vmem:[#allocation11 + $0x1d0] sm:$0x3]
        %v7746 = vld [vmem:[#allocation11 + $0x1d8] sm:$0x3]
        %v7747 = vld [vmem:[#allocation11 + $0x1e0] sm:$0xff]
        %v7748 = vld [vmem:[#allocation11 + $0x1e8] sm:$0xff]
        %v7749 = vld [vmem:[#allocation11 + $0x1f0] sm:$0xff]
        %v7750 = vld [vmem:[#allocation11 + $0x1f8] sm:$0xff]
        %v7751 = vld [vmem:[#allocation11 + $0x200] sm:$0xff]
        %v7752 = vld [vmem:[#allocation11 + $0x208] sm:$0x3]
        %v7753 = vld [vmem:[#allocation11 + $0x210] sm:$0x3]
        %v7754 = vld [vmem:[#allocation11 + $0x218] sm:$0x3]
        %v7755 = vld [vmem:[#allocation11 + $0x220] sm:$0x3]
        %v7756 = vld [vmem:[#allocation11 + $0x228] sm:$0x3]
        %v7757 = vld [vmem:[#allocation11 + $0x230] sm:$0xff]
        %v7758 = vld [vmem:[#allocation11 + $0x238] sm:$0xff]
        %v7759 = vld [vmem:[#allocation11 + $0x240] sm:$0xff]
        %v7760 = vld [vmem:[#allocation11 + $0x248] sm:$0xff]
        %v7761 = vld [vmem:[#allocation11 + $0x250] sm:$0xff]
        %v7762 = vld [vmem:[#allocation11 + $0x258] sm:$0x3]
        %v7763 = vld [vmem:[#allocation11 + $0x260] sm:$0x3]
        %v7764 = vld [vmem:[#allocation11 + $0x268] sm:$0x3]
        %v7765 = vld [vmem:[#allocation11 + $0x270] sm:$0x3]
        %v7766 = vld [vmem:[#allocation11 + $0x278] sm:$0x3]
        %v7767 = vld [vmem:[#allocation11 + $0x280] sm:$0xff]
        %v7768 = vld [vmem:[#allocation11 + $0x288] sm:$0xff]
        %v7769 = vld [vmem:[#allocation11 + $0x290] sm:$0xff]
        %v7770 = vld [vmem:[#allocation11 + $0x298] sm:$0xff]
        %v7771 = vld [vmem:[#allocation11 + $0x2a0] sm:$0xff]
        %v7772 = vld [vmem:[#allocation11 + $0x2a8] sm:$0x3]
        %v7773 = vld [vmem:[#allocation11 + $0x2b0] sm:$0x3]
        %v7774 = vld [vmem:[#allocation11 + $0x2b8] sm:$0x3]
        %v7775 = vld [vmem:[#allocation11 + $0x2c0] sm:$0x3]
        %v7776 = vld [vmem:[#allocation11 + $0x2c8] sm:$0x3]
        %v7777 = vld [vmem:[#allocation11 + $0x2d0] sm:$0xff]
        %v7778 = vld [vmem:[#allocation11 + $0x2d8] sm:$0xff]
        %v7779 = vld [vmem:[#allocation11 + $0x2e0] sm:$0xff]
        %v7780 = vld [vmem:[#allocation11 + $0x2e8] sm:$0xff]
        %v7781 = vld [vmem:[#allocation11 + $0x2f0] sm:$0xff]
        %v7782 = vld [vmem:[#allocation11 + $0x2f8] sm:$0x3]
        %v7783 = vld [vmem:[#allocation11 + $0x300] sm:$0x3]
        %v7784 = vld [vmem:[#allocation11 + $0x308] sm:$0x3]
        %v7785 = vld [vmem:[#allocation11 + $0x310] sm:$0x3]
        %v7786 = vld [vmem:[#allocation11 + $0x318] sm:$0x3]
        %7787 = vmatprep.subr.mxu0 0.0
        %7788 = vmatpush1.xpose.msra.mxu0 0.0
        %7789 = vmatprep.subr.mxu0 0.0
        %7790 = vmatpush1.xpose.msra.mxu0 0.0
        %7791 = vmatprep.subr.mxu0 0.0
        %7792 = vmatpush1.xpose.msra.mxu0 0.0
        %7793 = vmatprep.subr.mxu0 0.0
        %7794 = vmatpush1.xpose.msra.mxu0 0.0
        %7795 = vmatprep.subr.mxu0 0.0
        %7796 = vmatpush1.xpose.msra.mxu0 0.0
        %7797 = vmatprep.subr.mxu0 0.0
        %7798 = vmatpush1.xpose.msra.mxu0 0.0
        %7799 = vmatprep.subr.mxu0 0.0
        %7800 = vmatpush1.xpose.msra.mxu0 0.0
        %7801 = vmatprep.subr.mxu0 0.0
        %7802 = vmatpush1.xpose.msra.mxu0 0.0
        %7803 = vmatprep.subr.mxu0 0.0
        %7804 = vmatpush1.xpose.msra.mxu0 0.0
        %7805 = vmatprep.subr.mxu0 0.0
        %7806 = vmatpush1.xpose.msra.mxu0 0.0
        %7807 = vmatprep.subr.mxu0 0.0
        %7808 = vmatpush1.xpose.msra.mxu0 0.0
        %7809 = vmatprep.subr.mxu0 0.0
        %7810 = vmatpush1.xpose.msra.mxu0 0.0
        %7811 = vmatprep.subr.mxu0 0.0
        %7812 = vmatpush1.xpose.msra.mxu0 0.0
        %7813 = vmatprep.subr.mxu0 0.0
        %7814 = vmatpush1.xpose.msra.mxu0 0.0
        %7815 = vmatprep.subr.mxu0 %v7693
        %7816 = vmatpush1.xpose.msra.mxu0 %v7692
        %7817 = vmatprep.subr.mxu0 %v7688
        %7818 = vmatpush1.xpose.msra.mxu0 %v7687
        %7819 = vmatprep.subr.mxu0 0.0
        %7820 = vmatpush2.xpose.msra.mxu0 0.0
        %7821 = vmatprep.subr.mxu0 0.0
        %7822 = vmatpush2.xpose.msra.mxu0 0.0
        %7823 = vmatprep.subr.mxu0 0.0
        %7824 = vmatpush2.xpose.msra.mxu0 0.0
        %7825 = vmatprep.subr.mxu0 0.0
        %7826 = vmatpush2.xpose.msra.mxu0 0.0
        %7827 = vmatprep.subr.mxu0 0.0
        %7828 = vmatpush2.xpose.msra.mxu0 0.0
        %7829 = vmatprep.subr.mxu0 0.0
        %7830 = vmatpush2.xpose.msra.mxu0 0.0
        %7831 = vmatprep.subr.mxu0 0.0
        %7832 = vmatpush2.xpose.msra.mxu0 0.0
        %7833 = vmatprep.subr.mxu0 0.0
        %7834 = vmatpush2.xpose.msra.mxu0 0.0
        %7835 = vmatprep.subr.mxu0 0.0
        %7836 = vmatpush2.xpose.msra.mxu0 0.0
        %7837 = vmatprep.subr.mxu0 0.0
        %7838 = vmatpush2.xpose.msra.mxu0 0.0
        %7839 = vmatprep.subr.mxu0 0.0
        %7840 = vmatpush2.xpose.msra.mxu0 0.0
        %7841 = vmatprep.subr.mxu0 0.0
        %7842 = vmatpush2.xpose.msra.mxu0 0.0
        %7843 = vmatprep.subr.mxu0 0.0
        %7844 = vmatpush2.xpose.msra.mxu0 0.0
        %7845 = vmatprep.subr.mxu0 0.0
        %7846 = vmatpush2.xpose.msra.mxu0 0.0
        %7847 = vmatprep.subr.mxu0 0.0
        %7848 = vmatpush2.xpose.msra.mxu0 0.0
        %7849 = vmatprep.subr.mxu0 0.0
        %7850 = vmatpush2.xpose.msra.mxu0 0.0
        %7851 = vmatprep.mubr.f32.mxu0 %v7638
        %7852 = vmatmul.mubr.f32.gmra.mxu0 %v7637
        %v7853 = vpop.f32.mrf.mxu0
        %v7854 = vadd.f32 0.0, %v7853
        %v7855 = vpop.f32.mrf.mxu0
        %7856 = vdwg.mxu0
        %7857 = vmatprep.subr.mxu0 0.0
        %7858 = vmatpush1.xpose.msra.mxu0 0.0
        %7859 = vmatprep.subr.mxu0 0.0
        %7860 = vmatpush1.xpose.msra.mxu0 0.0
        %7861 = vmatprep.subr.mxu0 0.0
        %7862 = vmatpush1.xpose.msra.mxu0 0.0
        %7863 = vmatprep.subr.mxu0 0.0
        %7864 = vmatpush1.xpose.msra.mxu0 0.0
        %7865 = vmatprep.subr.mxu0 0.0
        %7866 = vmatpush1.xpose.msra.mxu0 0.0
        %7867 = vmatprep.subr.mxu0 0.0
        %7868 = vmatpush1.xpose.msra.mxu0 0.0
        %7869 = vmatprep.subr.mxu0 0.0
        %7870 = vmatpush1.xpose.msra.mxu0 0.0
        %7871 = vmatprep.subr.mxu0 0.0
        %7872 = vmatpush1.xpose.msra.mxu0 0.0
        %7873 = vmatprep.subr.mxu0 0.0
        %7874 = vmatpush1.xpose.msra.mxu0 0.0
        %7875 = vmatprep.subr.mxu0 0.0
        %7876 = vmatpush1.xpose.msra.mxu0 0.0
        %7877 = vmatprep.subr.mxu0 0.0
        %7878 = vmatpush1.xpose.msra.mxu0 0.0
        %7879 = vmatprep.subr.mxu0 0.0
        %7880 = vmatpush1.xpose.msra.mxu0 0.0
        %7881 = vmatprep.subr.mxu0 0.0
        %7882 = vmatpush1.xpose.msra.mxu0 0.0
        %7883 = vmatprep.subr.mxu0 0.0
        %7884 = vmatpush1.xpose.msra.mxu0 0.0
        %7885 = vmatprep.subr.mxu0 %v7695
        %7886 = vmatpush1.xpose.msra.mxu0 %v7694
        %7887 = vmatprep.subr.mxu0 %v7690
        %7888 = vmatpush1.xpose.msra.mxu0 %v7689
        %7889 = vmatprep.subr.mxu0 0.0
        %7890 = vmatpush2.xpose.msra.mxu0 0.0
        %7891 = vmatprep.subr.mxu0 0.0
        %7892 = vmatpush2.xpose.msra.mxu0 0.0
        %7893 = vmatprep.subr.mxu0 0.0
        %7894 = vmatpush2.xpose.msra.mxu0 0.0
        %7895 = vmatprep.subr.mxu0 0.0
        %7896 = vmatpush2.xpose.msra.mxu0 0.0
        %7897 = vmatprep.subr.mxu0 0.0
        %7898 = vmatpush2.xpose.msra.mxu0 0.0
        %7899 = vmatprep.subr.mxu0 0.0
        %7900 = vmatpush2.xpose.msra.mxu0 0.0
        %7901 = vmatprep.subr.mxu0 0.0
        %7902 = vmatpush2.xpose.msra.mxu0 0.0
        %7903 = vmatprep.subr.mxu0 0.0
        %7904 = vmatpush2.xpose.msra.mxu0 0.0
        %7905 = vmatprep.subr.mxu0 0.0
        %7906 = vmatpush2.xpose.msra.mxu0 0.0
        %7907 = vmatprep.subr.mxu0 0.0
        %7908 = vmatpush2.xpose.msra.mxu0 0.0
        %7909 = vmatprep.subr.mxu0 0.0
        %7910 = vmatpush2.xpose.msra.mxu0 0.0
        %7911 = vmatprep.subr.mxu0 0.0
        %7912 = vmatpush2.xpose.msra.mxu0 0.0
        %7913 = vmatprep.subr.mxu0 0.0
        %7914 = vmatpush2.xpose.msra.mxu0 0.0
        %7915 = vmatprep.subr.mxu0 0.0
        %7916 = vmatpush2.xpose.msra.mxu0 0.0
        %7917 = vmatprep.subr.mxu0 0.0
        %7918 = vmatpush2.xpose.msra.mxu0 0.0
        %7919 = vmatprep.subr.mxu0 0.0
        %7920 = vmatpush2.xpose.msra.mxu0 0.0
        %7921 = vmatprep.mubr.f32.mxu0 %v7640
        %7922 = vmatmul.mubr.f32.gmra.mxu0 %v7639
        %v7923 = vpop.f32.mrf.mxu0
        %v7924 = vadd.f32 %v7854, %v7923
        %v7925 = vpop.f32.mrf.mxu0
        %7926 = vdwg.mxu0
        %7927 = vmatprep.subr.mxu0 0.0
        %7928 = vmatpush1.xpose.msra.mxu0 0.0
        %7929 = vmatprep.subr.mxu0 0.0
        %7930 = vmatpush1.xpose.msra.mxu0 0.0
        %7931 = vmatprep.subr.mxu0 0.0
        %7932 = vmatpush1.xpose.msra.mxu0 0.0
        %7933 = vmatprep.subr.mxu0 0.0
        %7934 = vmatpush1.xpose.msra.mxu0 0.0
        %7935 = vmatprep.subr.mxu0 0.0
        %7936 = vmatpush1.xpose.msra.mxu0 0.0
        %7937 = vmatprep.subr.mxu0 0.0
        %7938 = vmatpush1.xpose.msra.mxu0 0.0
        %7939 = vmatprep.subr.mxu0 0.0
        %7940 = vmatpush1.xpose.msra.mxu0 0.0
        %7941 = vmatprep.subr.mxu0 0.0
        %7942 = vmatpush1.xpose.msra.mxu0 0.0
        %7943 = vmatprep.subr.mxu0 0.0
        %7944 = vmatpush1.xpose.msra.mxu0 0.0
        %7945 = vmatprep.subr.mxu0 0.0
        %7946 = vmatpush1.xpose.msra.mxu0 0.0
        %7947 = vmatprep.subr.mxu0 0.0
        %7948 = vmatpush1.xpose.msra.mxu0 0.0
        %7949 = vmatprep.subr.mxu0 0.0
        %7950 = vmatpush1.xpose.msra.mxu0 0.0
        %7951 = vmatprep.subr.mxu0 0.0
        %7952 = vmatpush1.xpose.msra.mxu0 0.0
        %7953 = vmatprep.subr.mxu0 0.0
        %7954 = vmatpush1.xpose.msra.mxu0 0.0
        %7955 = vmatprep.subr.mxu0 0.0
        %7956 = vmatpush1.xpose.msra.mxu0 %v7696
        %7957 = vmatprep.subr.mxu0 0.0
        %7958 = vmatpush1.xpose.msra.mxu0 %v7691
        %7959 = vmatprep.subr.mxu0 0.0
        %7960 = vmatpush2.xpose.msra.mxu0 0.0
        %7961 = vmatprep.subr.mxu0 0.0
        %7962 = vmatpush2.xpose.msra.mxu0 0.0
        %7963 = vmatprep.subr.mxu0 0.0
        %7964 = vmatpush2.xpose.msra.mxu0 0.0
        %7965 = vmatprep.subr.mxu0 0.0
        %7966 = vmatpush2.xpose.msra.mxu0 0.0
        %7967 = vmatprep.subr.mxu0 0.0
        %7968 = vmatpush2.xpose.msra.mxu0 0.0
        %7969 = vmatprep.subr.mxu0 0.0
        %7970 = vmatpush2.xpose.msra.mxu0 0.0
        %7971 = vmatprep.subr.mxu0 0.0
        %7972 = vmatpush2.xpose.msra.mxu0 0.0
        %7973 = vmatprep.subr.mxu0 0.0
        %7974 = vmatpush2.xpose.msra.mxu0 0.0
        %7975 = vmatprep.subr.mxu0 0.0
        %7976 = vmatpush2.xpose.msra.mxu0 0.0
        %7977 = vmatprep.subr.mxu0 0.0
        %7978 = vmatpush2.xpose.msra.mxu0 0.0
        %7979 = vmatprep.subr.mxu0 0.0
        %7980 = vmatpush2.xpose.msra.mxu0 0.0
        %7981 = vmatprep.subr.mxu0 0.0
        %7982 = vmatpush2.xpose.msra.mxu0 0.0
        %7983 = vmatprep.subr.mxu0 0.0
        %7984 = vmatpush2.xpose.msra.mxu0 0.0
        %7985 = vmatprep.subr.mxu0 0.0
        %7986 = vmatpush2.xpose.msra.mxu0 0.0
        %7987 = vmatprep.subr.mxu0 0.0
        %7988 = vmatpush2.xpose.msra.mxu0 0.0
        %7989 = vmatprep.subr.mxu0 0.0
        %7990 = vmatpush2.xpose.msra.mxu0 0.0
        %7991 = vmatprep.mubr.f32.mxu0 0.0
        %7992 = vmatmul.mubr.f32.gmra.mxu0 %v7641
        %v7993 = vpop.f32.mrf.mxu0
        %v7994 = vadd.f32 %v7924, %v7993
        %v7995 = vpop.f32.mrf.mxu0
        %7996 = vdwg.mxu0
        %7997 = vmatprep.subr.mxu0 0.0
        %7998 = vmatpush1.xpose.msra.mxu0 0.0
        %7999 = vmatprep.subr.mxu0 0.0
        %8000 = vmatpush1.xpose.msra.mxu0 0.0
        %8001 = vmatprep.subr.mxu0 0.0
        %8002 = vmatpush1.xpose.msra.mxu0 0.0
        %8003 = vmatprep.subr.mxu0 0.0
        %8004 = vmatpush1.xpose.msra.mxu0 0.0
        %8005 = vmatprep.subr.mxu0 0.0
        %8006 = vmatpush1.xpose.msra.mxu0 0.0
        %8007 = vmatprep.subr.mxu0 0.0
        %8008 = vmatpush1.xpose.msra.mxu0 0.0
        %8009 = vmatprep.subr.mxu0 0.0
        %8010 = vmatpush1.xpose.msra.mxu0 0.0
        %8011 = vmatprep.subr.mxu0 0.0
        %8012 = vmatpush1.xpose.msra.mxu0 0.0
        %8013 = vmatprep.subr.mxu0 0.0
        %8014 = vmatpush1.xpose.msra.mxu0 0.0
        %8015 = vmatprep.subr.mxu0 0.0
        %8016 = vmatpush1.xpose.msra.mxu0 0.0
        %8017 = vmatprep.subr.mxu0 0.0
        %8018 = vmatpush1.xpose.msra.mxu0 0.0
        %8019 = vmatprep.subr.mxu0 0.0
        %8020 = vmatpush1.xpose.msra.mxu0 0.0
        %8021 = vmatprep.subr.mxu0 0.0
        %8022 = vmatpush1.xpose.msra.mxu0 0.0
        %8023 = vmatprep.subr.mxu0 0.0
        %8024 = vmatpush1.xpose.msra.mxu0 0.0
        %8025 = vmatprep.subr.mxu0 %v7703
        %8026 = vmatpush1.xpose.msra.mxu0 %v7702
        %8027 = vmatprep.subr.mxu0 %v7698
        %8028 = vmatpush1.xpose.msra.mxu0 %v7697
        %8029 = vmatprep.subr.mxu0 0.0
        %8030 = vmatpush2.xpose.msra.mxu0 0.0
        %8031 = vmatprep.subr.mxu0 0.0
        %8032 = vmatpush2.xpose.msra.mxu0 0.0
        %8033 = vmatprep.subr.mxu0 0.0
        %8034 = vmatpush2.xpose.msra.mxu0 0.0
        %8035 = vmatprep.subr.mxu0 0.0
        %8036 = vmatpush2.xpose.msra.mxu0 0.0
        %8037 = vmatprep.subr.mxu0 0.0
        %8038 = vmatpush2.xpose.msra.mxu0 0.0
        %8039 = vmatprep.subr.mxu0 0.0
        %8040 = vmatpush2.xpose.msra.mxu0 0.0
        %8041 = vmatprep.subr.mxu0 0.0
        %8042 = vmatpush2.xpose.msra.mxu0 0.0
        %8043 = vmatprep.subr.mxu0 0.0
        %8044 = vmatpush2.xpose.msra.mxu0 0.0
        %8045 = vmatprep.subr.mxu0 0.0
        %8046 = vmatpush2.xpose.msra.mxu0 0.0
        %8047 = vmatprep.subr.mxu0 0.0
        %8048 = vmatpush2.xpose.msra.mxu0 0.0
        %8049 = vmatprep.subr.mxu0 0.0
        %8050 = vmatpush2.xpose.msra.mxu0 0.0
        %8051 = vmatprep.subr.mxu0 0.0
        %8052 = vmatpush2.xpose.msra.mxu0 0.0
        %8053 = vmatprep.subr.mxu0 0.0
        %8054 = vmatpush2.xpose.msra.mxu0 0.0
        %8055 = vmatprep.subr.mxu0 0.0
        %8056 = vmatpush2.xpose.msra.mxu0 0.0
        %8057 = vmatprep.subr.mxu0 0.0
        %8058 = vmatpush2.xpose.msra.mxu0 0.0
        %8059 = vmatprep.subr.mxu0 0.0
        %8060 = vmatpush2.xpose.msra.mxu0 0.0
        %8061 = vmatprep.mubr.f32.mxu0 %v7643
        %8062 = vmatmul.mubr.f32.gmra.mxu0 %v7642
        %v8063 = vpop.f32.mrf.mxu0
        %v8064 = vadd.f32 0.0, %v8063
        %v8065 = vpop.f32.mrf.mxu0
        %8066 = vdwg.mxu0
        %8067 = vmatprep.subr.mxu0 0.0
        %8068 = vmatpush1.xpose.msra.mxu0 0.0
        %8069 = vmatprep.subr.mxu0 0.0
        %8070 = vmatpush1.xpose.msra.mxu0 0.0
        %8071 = vmatprep.subr.mxu0 0.0
        %8072 = vmatpush1.xpose.msra.mxu0 0.0
        %8073 = vmatprep.subr.mxu0 0.0
        %8074 = vmatpush1.xpose.msra.mxu0 0.0
        %8075 = vmatprep.subr.mxu0 0.0
        %8076 = vmatpush1.xpose.msra.mxu0 0.0
        %8077 = vmatprep.subr.mxu0 0.0
        %8078 = vmatpush1.xpose.msra.mxu0 0.0
        %8079 = vmatprep.subr.mxu0 0.0
        %8080 = vmatpush1.xpose.msra.mxu0 0.0
        %8081 = vmatprep.subr.mxu0 0.0
        %8082 = vmatpush1.xpose.msra.mxu0 0.0
        %8083 = vmatprep.subr.mxu0 0.0
        %8084 = vmatpush1.xpose.msra.mxu0 0.0
        %8085 = vmatprep.subr.mxu0 0.0
        %8086 = vmatpush1.xpose.msra.mxu0 0.0
        %8087 = vmatprep.subr.mxu0 0.0
        %8088 = vmatpush1.xpose.msra.mxu0 0.0
        %8089 = vmatprep.subr.mxu0 0.0
        %8090 = vmatpush1.xpose.msra.mxu0 0.0
        %8091 = vmatprep.subr.mxu0 0.0
        %8092 = vmatpush1.xpose.msra.mxu0 0.0
        %8093 = vmatprep.subr.mxu0 0.0
        %8094 = vmatpush1.xpose.msra.mxu0 0.0
        %8095 = vmatprep.subr.mxu0 %v7705
        %8096 = vmatpush1.xpose.msra.mxu0 %v7704
        %8097 = vmatprep.subr.mxu0 %v7700
        %8098 = vmatpush1.xpose.msra.mxu0 %v7699
        %8099 = vmatprep.subr.mxu0 0.0
        %8100 = vmatpush2.xpose.msra.mxu0 0.0
        %8101 = vmatprep.subr.mxu0 0.0
        %8102 = vmatpush2.xpose.msra.mxu0 0.0
        %8103 = vmatprep.subr.mxu0 0.0
        %8104 = vmatpush2.xpose.msra.mxu0 0.0
        %8105 = vmatprep.subr.mxu0 0.0
        %8106 = vmatpush2.xpose.msra.mxu0 0.0
        %8107 = vmatprep.subr.mxu0 0.0
        %8108 = vmatpush2.xpose.msra.mxu0 0.0
        %8109 = vmatprep.subr.mxu0 0.0
        %8110 = vmatpush2.xpose.msra.mxu0 0.0
        %8111 = vmatprep.subr.mxu0 0.0
        %8112 = vmatpush2.xpose.msra.mxu0 0.0
        %8113 = vmatprep.subr.mxu0 0.0
        %8114 = vmatpush2.xpose.msra.mxu0 0.0
        %8115 = vmatprep.subr.mxu0 0.0
        %8116 = vmatpush2.xpose.msra.mxu0 0.0
        %8117 = vmatprep.subr.mxu0 0.0
        %8118 = vmatpush2.xpose.msra.mxu0 0.0
        %8119 = vmatprep.subr.mxu0 0.0
        %8120 = vmatpush2.xpose.msra.mxu0 0.0
        %8121 = vmatprep.subr.mxu0 0.0
        %8122 = vmatpush2.xpose.msra.mxu0 0.0
        %8123 = vmatprep.subr.mxu0 0.0
        %8124 = vmatpush2.xpose.msra.mxu0 0.0
        %8125 = vmatprep.subr.mxu0 0.0
        %8126 = vmatpush2.xpose.msra.mxu0 0.0
        %8127 = vmatprep.subr.mxu0 0.0
        %8128 = vmatpush2.xpose.msra.mxu0 0.0
        %8129 = vmatprep.subr.mxu0 0.0
        %8130 = vmatpush2.xpose.msra.mxu0 0.0
        %8131 = vmatprep.mubr.f32.mxu0 %v7645
        %8132 = vmatmul.mubr.f32.gmra.mxu0 %v7644
        %v8133 = vpop.f32.mrf.mxu0
        %v8134 = vadd.f32 %v8064, %v8133
        %v8135 = vpop.f32.mrf.mxu0
        %8136 = vdwg.mxu0
        %8137 = vmatprep.subr.mxu0 0.0
        %8138 = vmatpush1.xpose.msra.mxu0 0.0
        %8139 = vmatprep.subr.mxu0 0.0
        %8140 = vmatpush1.xpose.msra.mxu0 0.0
        %8141 = vmatprep.subr.mxu0 0.0
        %8142 = vmatpush1.xpose.msra.mxu0 0.0
        %8143 = vmatprep.subr.mxu0 0.0
        %8144 = vmatpush1.xpose.msra.mxu0 0.0
        %8145 = vmatprep.subr.mxu0 0.0
        %8146 = vmatpush1.xpose.msra.mxu0 0.0
        %8147 = vmatprep.subr.mxu0 0.0
        %8148 = vmatpush1.xpose.msra.mxu0 0.0
        %8149 = vmatprep.subr.mxu0 0.0
        %8150 = vmatpush1.xpose.msra.mxu0 0.0
        %8151 = vmatprep.subr.mxu0 0.0
        %8152 = vmatpush1.xpose.msra.mxu0 0.0
        %8153 = vmatprep.subr.mxu0 0.0
        %8154 = vmatpush1.xpose.msra.mxu0 0.0
        %8155 = vmatprep.subr.mxu0 0.0
        %8156 = vmatpush1.xpose.msra.mxu0 0.0
        %8157 = vmatprep.subr.mxu0 0.0
        %8158 = vmatpush1.xpose.msra.mxu0 0.0
        %8159 = vmatprep.subr.mxu0 0.0
        %8160 = vmatpush1.xpose.msra.mxu0 0.0
        %8161 = vmatprep.subr.mxu0 0.0
        %8162 = vmatpush1.xpose.msra.mxu0 0.0
        %8163 = vmatprep.subr.mxu0 0.0
        %8164 = vmatpush1.xpose.msra.mxu0 0.0
        %8165 = vmatprep.subr.mxu0 0.0
        %8166 = vmatpush1.xpose.msra.mxu0 %v7706
        %8167 = vmatprep.subr.mxu0 0.0
        %8168 = vmatpush1.xpose.msra.mxu0 %v7701
        %8169 = vmatprep.subr.mxu0 0.0
        %8170 = vmatpush2.xpose.msra.mxu0 0.0
        %8171 = vmatprep.subr.mxu0 0.0
        %8172 = vmatpush2.xpose.msra.mxu0 0.0
        %8173 = vmatprep.subr.mxu0 0.0
        %8174 = vmatpush2.xpose.msra.mxu0 0.0
        %8175 = vmatprep.subr.mxu0 0.0
        %8176 = vmatpush2.xpose.msra.mxu0 0.0
        %8177 = vmatprep.subr.mxu0 0.0
        %8178 = vmatpush2.xpose.msra.mxu0 0.0
        %8179 = vmatprep.subr.mxu0 0.0
        %8180 = vmatpush2.xpose.msra.mxu0 0.0
        %8181 = vmatprep.subr.mxu0 0.0
        %8182 = vmatpush2.xpose.msra.mxu0 0.0
        %8183 = vmatprep.subr.mxu0 0.0
        %8184 = vmatpush2.xpose.msra.mxu0 0.0
        %8185 = vmatprep.subr.mxu0 0.0
        %8186 = vmatpush2.xpose.msra.mxu0 0.0
        %8187 = vmatprep.subr.mxu0 0.0
        %8188 = vmatpush2.xpose.msra.mxu0 0.0
        %8189 = vmatprep.subr.mxu0 0.0
        %8190 = vmatpush2.xpose.msra.mxu0 0.0
        %8191 = vmatprep.subr.mxu0 0.0
        %8192 = vmatpush2.xpose.msra.mxu0 0.0
        %8193 = vmatprep.subr.mxu0 0.0
        %8194 = vmatpush2.xpose.msra.mxu0 0.0
        %8195 = vmatprep.subr.mxu0 0.0
        %8196 = vmatpush2.xpose.msra.mxu0 0.0
        %8197 = vmatprep.subr.mxu0 0.0
        %8198 = vmatpush2.xpose.msra.mxu0 0.0
        %8199 = vmatprep.subr.mxu0 0.0
        %8200 = vmatpush2.xpose.msra.mxu0 0.0
        %8201 = vmatprep.mubr.f32.mxu0 0.0
        %8202 = vmatmul.mubr.f32.gmra.mxu0 %v7646
        %v8203 = vpop.f32.mrf.mxu0
        %v8204 = vadd.f32 %v8134, %v8203
        %v8205 = vpop.f32.mrf.mxu0
        %8206 = vdwg.mxu0
        %8207 = vmatprep.subr.mxu0 0.0
        %8208 = vmatpush1.xpose.msra.mxu0 0.0
        %8209 = vmatprep.subr.mxu0 0.0
        %8210 = vmatpush1.xpose.msra.mxu0 0.0
        %8211 = vmatprep.subr.mxu0 0.0
        %8212 = vmatpush1.xpose.msra.mxu0 0.0
        %8213 = vmatprep.subr.mxu0 0.0
        %8214 = vmatpush1.xpose.msra.mxu0 0.0
        %8215 = vmatprep.subr.mxu0 0.0
        %8216 = vmatpush1.xpose.msra.mxu0 0.0
        %8217 = vmatprep.subr.mxu0 0.0
        %8218 = vmatpush1.xpose.msra.mxu0 0.0
        %8219 = vmatprep.subr.mxu0 0.0
        %8220 = vmatpush1.xpose.msra.mxu0 0.0
        %8221 = vmatprep.subr.mxu0 0.0
        %8222 = vmatpush1.xpose.msra.mxu0 0.0
        %8223 = vmatprep.subr.mxu0 0.0
        %8224 = vmatpush1.xpose.msra.mxu0 0.0
        %8225 = vmatprep.subr.mxu0 0.0
        %8226 = vmatpush1.xpose.msra.mxu0 0.0
        %8227 = vmatprep.subr.mxu0 0.0
        %8228 = vmatpush1.xpose.msra.mxu0 0.0
        %8229 = vmatprep.subr.mxu0 0.0
        %8230 = vmatpush1.xpose.msra.mxu0 0.0
        %8231 = vmatprep.subr.mxu0 0.0
        %8232 = vmatpush1.xpose.msra.mxu0 0.0
        %8233 = vmatprep.subr.mxu0 0.0
        %8234 = vmatpush1.xpose.msra.mxu0 0.0
        %8235 = vmatprep.subr.mxu0 %v7713
        %8236 = vmatpush1.xpose.msra.mxu0 %v7712
        %8237 = vmatprep.subr.mxu0 %v7708
        %8238 = vmatpush1.xpose.msra.mxu0 %v7707
        %8239 = vmatprep.subr.mxu0 0.0
        %8240 = vmatpush2.xpose.msra.mxu0 0.0
        %8241 = vmatprep.subr.mxu0 0.0
        %8242 = vmatpush2.xpose.msra.mxu0 0.0
        %8243 = vmatprep.subr.mxu0 0.0
        %8244 = vmatpush2.xpose.msra.mxu0 0.0
        %8245 = vmatprep.subr.mxu0 0.0
        %8246 = vmatpush2.xpose.msra.mxu0 0.0
        %8247 = vmatprep.subr.mxu0 0.0
        %8248 = vmatpush2.xpose.msra.mxu0 0.0
        %8249 = vmatprep.subr.mxu0 0.0
        %8250 = vmatpush2.xpose.msra.mxu0 0.0
        %8251 = vmatprep.subr.mxu0 0.0
        %8252 = vmatpush2.xpose.msra.mxu0 0.0
        %8253 = vmatprep.subr.mxu0 0.0
        %8254 = vmatpush2.xpose.msra.mxu0 0.0
        %8255 = vmatprep.subr.mxu0 0.0
        %8256 = vmatpush2.xpose.msra.mxu0 0.0
        %8257 = vmatprep.subr.mxu0 0.0
        %8258 = vmatpush2.xpose.msra.mxu0 0.0
        %8259 = vmatprep.subr.mxu0 0.0
        %8260 = vmatpush2.xpose.msra.mxu0 0.0
        %8261 = vmatprep.subr.mxu0 0.0
        %8262 = vmatpush2.xpose.msra.mxu0 0.0
        %8263 = vmatprep.subr.mxu0 0.0
        %8264 = vmatpush2.xpose.msra.mxu0 0.0
        %8265 = vmatprep.subr.mxu0 0.0
        %8266 = vmatpush2.xpose.msra.mxu0 0.0
        %8267 = vmatprep.subr.mxu0 0.0
        %8268 = vmatpush2.xpose.msra.mxu0 0.0
        %8269 = vmatprep.subr.mxu0 0.0
        %8270 = vmatpush2.xpose.msra.mxu0 0.0
        %8271 = vmatprep.mubr.f32.mxu0 %v7648
        %8272 = vmatmul.mubr.f32.gmra.mxu0 %v7647
        %v8273 = vpop.f32.mrf.mxu0
        %v8274 = vadd.f32 0.0, %v8273
        %v8275 = vpop.f32.mrf.mxu0
        %8276 = vdwg.mxu0
        %8277 = vmatprep.subr.mxu0 0.0
        %8278 = vmatpush1.xpose.msra.mxu0 0.0
        %8279 = vmatprep.subr.mxu0 0.0
        %8280 = vmatpush1.xpose.msra.mxu0 0.0
        %8281 = vmatprep.subr.mxu0 0.0
        %8282 = vmatpush1.xpose.msra.mxu0 0.0
        %8283 = vmatprep.subr.mxu0 0.0
        %8284 = vmatpush1.xpose.msra.mxu0 0.0
        %8285 = vmatprep.subr.mxu0 0.0
        %8286 = vmatpush1.xpose.msra.mxu0 0.0
        %8287 = vmatprep.subr.mxu0 0.0
        %8288 = vmatpush1.xpose.msra.mxu0 0.0
        %8289 = vmatprep.subr.mxu0 0.0
        %8290 = vmatpush1.xpose.msra.mxu0 0.0
        %8291 = vmatprep.subr.mxu0 0.0
        %8292 = vmatpush1.xpose.msra.mxu0 0.0
        %8293 = vmatprep.subr.mxu0 0.0
        %8294 = vmatpush1.xpose.msra.mxu0 0.0
        %8295 = vmatprep.subr.mxu0 0.0
        %8296 = vmatpush1.xpose.msra.mxu0 0.0
        %8297 = vmatprep.subr.mxu0 0.0
        %8298 = vmatpush1.xpose.msra.mxu0 0.0
        %8299 = vmatprep.subr.mxu0 0.0
        %8300 = vmatpush1.xpose.msra.mxu0 0.0
        %8301 = vmatprep.subr.mxu0 0.0
        %8302 = vmatpush1.xpose.msra.mxu0 0.0
        %8303 = vmatprep.subr.mxu0 0.0
        %8304 = vmatpush1.xpose.msra.mxu0 0.0
        %8305 = vmatprep.subr.mxu0 %v7715
        %8306 = vmatpush1.xpose.msra.mxu0 %v7714
        %8307 = vmatprep.subr.mxu0 %v7710
        %8308 = vmatpush1.xpose.msra.mxu0 %v7709
        %8309 = vmatprep.subr.mxu0 0.0
        %8310 = vmatpush2.xpose.msra.mxu0 0.0
        %8311 = vmatprep.subr.mxu0 0.0
        %8312 = vmatpush2.xpose.msra.mxu0 0.0
        %8313 = vmatprep.subr.mxu0 0.0
        %8314 = vmatpush2.xpose.msra.mxu0 0.0
        %8315 = vmatprep.subr.mxu0 0.0
        %8316 = vmatpush2.xpose.msra.mxu0 0.0
        %8317 = vmatprep.subr.mxu0 0.0
        %8318 = vmatpush2.xpose.msra.mxu0 0.0
        %8319 = vmatprep.subr.mxu0 0.0
        %8320 = vmatpush2.xpose.msra.mxu0 0.0
        %8321 = vmatprep.subr.mxu0 0.0
        %8322 = vmatpush2.xpose.msra.mxu0 0.0
        %8323 = vmatprep.subr.mxu0 0.0
        %8324 = vmatpush2.xpose.msra.mxu0 0.0
        %8325 = vmatprep.subr.mxu0 0.0
        %8326 = vmatpush2.xpose.msra.mxu0 0.0
        %8327 = vmatprep.subr.mxu0 0.0
        %8328 = vmatpush2.xpose.msra.mxu0 0.0
        %8329 = vmatprep.subr.mxu0 0.0
        %8330 = vmatpush2.xpose.msra.mxu0 0.0
        %8331 = vmatprep.subr.mxu0 0.0
        %8332 = vmatpush2.xpose.msra.mxu0 0.0
        %8333 = vmatprep.subr.mxu0 0.0
        %8334 = vmatpush2.xpose.msra.mxu0 0.0
        %8335 = vmatprep.subr.mxu0 0.0
        %8336 = vmatpush2.xpose.msra.mxu0 0.0
        %8337 = vmatprep.subr.mxu0 0.0
        %8338 = vmatpush2.xpose.msra.mxu0 0.0
        %8339 = vmatprep.subr.mxu0 0.0
        %8340 = vmatpush2.xpose.msra.mxu0 0.0
        %8341 = vmatprep.mubr.f32.mxu0 %v7650
        %8342 = vmatmul.mubr.f32.gmra.mxu0 %v7649
        %v8343 = vpop.f32.mrf.mxu0
        %v8344 = vadd.f32 %v8274, %v8343
        %v8345 = vpop.f32.mrf.mxu0
        %8346 = vdwg.mxu0
        %8347 = vmatprep.subr.mxu0 0.0
        %8348 = vmatpush1.xpose.msra.mxu0 0.0
        %8349 = vmatprep.subr.mxu0 0.0
        %8350 = vmatpush1.xpose.msra.mxu0 0.0
        %8351 = vmatprep.subr.mxu0 0.0
        %8352 = vmatpush1.xpose.msra.mxu0 0.0
        %8353 = vmatprep.subr.mxu0 0.0
        %8354 = vmatpush1.xpose.msra.mxu0 0.0
        %8355 = vmatprep.subr.mxu0 0.0
        %8356 = vmatpush1.xpose.msra.mxu0 0.0
        %8357 = vmatprep.subr.mxu0 0.0
        %8358 = vmatpush1.xpose.msra.mxu0 0.0
        %8359 = vmatprep.subr.mxu0 0.0
        %8360 = vmatpush1.xpose.msra.mxu0 0.0
        %8361 = vmatprep.subr.mxu0 0.0
        %8362 = vmatpush1.xpose.msra.mxu0 0.0
        %8363 = vmatprep.subr.mxu0 0.0
        %8364 = vmatpush1.xpose.msra.mxu0 0.0
        %8365 = vmatprep.subr.mxu0 0.0
        %8366 = vmatpush1.xpose.msra.mxu0 0.0
        %8367 = vmatprep.subr.mxu0 0.0
        %8368 = vmatpush1.xpose.msra.mxu0 0.0
        %8369 = vmatprep.subr.mxu0 0.0
        %8370 = vmatpush1.xpose.msra.mxu0 0.0
        %8371 = vmatprep.subr.mxu0 0.0
        %8372 = vmatpush1.xpose.msra.mxu0 0.0
        %8373 = vmatprep.subr.mxu0 0.0
        %8374 = vmatpush1.xpose.msra.mxu0 0.0
        %8375 = vmatprep.subr.mxu0 0.0
        %8376 = vmatpush1.xpose.msra.mxu0 %v7716
        %8377 = vmatprep.subr.mxu0 0.0
        %8378 = vmatpush1.xpose.msra.mxu0 %v7711
        %8379 = vmatprep.subr.mxu0 0.0
        %8380 = vmatpush2.xpose.msra.mxu0 0.0
        %8381 = vmatprep.subr.mxu0 0.0
        %8382 = vmatpush2.xpose.msra.mxu0 0.0
        %8383 = vmatprep.subr.mxu0 0.0
        %8384 = vmatpush2.xpose.msra.mxu0 0.0
        %8385 = vmatprep.subr.mxu0 0.0
        %8386 = vmatpush2.xpose.msra.mxu0 0.0
        %8387 = vmatprep.subr.mxu0 0.0
        %8388 = vmatpush2.xpose.msra.mxu0 0.0
        %8389 = vmatprep.subr.mxu0 0.0
        %8390 = vmatpush2.xpose.msra.mxu0 0.0
        %8391 = vmatprep.subr.mxu0 0.0
        %8392 = vmatpush2.xpose.msra.mxu0 0.0
        %8393 = vmatprep.subr.mxu0 0.0
        %8394 = vmatpush2.xpose.msra.mxu0 0.0
        %8395 = vmatprep.subr.mxu0 0.0
        %8396 = vmatpush2.xpose.msra.mxu0 0.0
        %8397 = vmatprep.subr.mxu0 0.0
        %8398 = vmatpush2.xpose.msra.mxu0 0.0
        %8399 = vmatprep.subr.mxu0 0.0
        %8400 = vmatpush2.xpose.msra.mxu0 0.0
        %8401 = vmatprep.subr.mxu0 0.0
        %8402 = vmatpush2.xpose.msra.mxu0 0.0
        %8403 = vmatprep.subr.mxu0 0.0
        %8404 = vmatpush2.xpose.msra.mxu0 0.0
        %8405 = vmatprep.subr.mxu0 0.0
        %8406 = vmatpush2.xpose.msra.mxu0 0.0
        %8407 = vmatprep.subr.mxu0 0.0
        %8408 = vmatpush2.xpose.msra.mxu0 0.0
        %8409 = vmatprep.subr.mxu0 0.0
        %8410 = vmatpush2.xpose.msra.mxu0 0.0
        %8411 = vmatprep.mubr.f32.mxu0 0.0
        %8412 = vmatmul.mubr.f32.gmra.mxu0 %v7651
        %v8413 = vpop.f32.mrf.mxu0
        %v8414 = vadd.f32 %v8344, %v8413
        %v8415 = vpop.f32.mrf.mxu0
        %8416 = vdwg.mxu0
        %8417 = vmatprep.subr.mxu0 0.0
        %8418 = vmatpush1.xpose.msra.mxu0 0.0
        %8419 = vmatprep.subr.mxu0 0.0
        %8420 = vmatpush1.xpose.msra.mxu0 0.0
        %8421 = vmatprep.subr.mxu0 0.0
        %8422 = vmatpush1.xpose.msra.mxu0 0.0
        %8423 = vmatprep.subr.mxu0 0.0
        %8424 = vmatpush1.xpose.msra.mxu0 0.0
        %8425 = vmatprep.subr.mxu0 0.0
        %8426 = vmatpush1.xpose.msra.mxu0 0.0
        %8427 = vmatprep.subr.mxu0 0.0
        %8428 = vmatpush1.xpose.msra.mxu0 0.0
        %8429 = vmatprep.subr.mxu0 0.0
        %8430 = vmatpush1.xpose.msra.mxu0 0.0
        %8431 = vmatprep.subr.mxu0 0.0
        %8432 = vmatpush1.xpose.msra.mxu0 0.0
        %8433 = vmatprep.subr.mxu0 0.0
        %8434 = vmatpush1.xpose.msra.mxu0 0.0
        %8435 = vmatprep.subr.mxu0 0.0
        %8436 = vmatpush1.xpose.msra.mxu0 0.0
        %8437 = vmatprep.subr.mxu0 0.0
        %8438 = vmatpush1.xpose.msra.mxu0 0.0
        %8439 = vmatprep.subr.mxu0 0.0
        %8440 = vmatpush1.xpose.msra.mxu0 0.0
        %8441 = vmatprep.subr.mxu0 0.0
        %8442 = vmatpush1.xpose.msra.mxu0 0.0
        %8443 = vmatprep.subr.mxu0 0.0
        %8444 = vmatpush1.xpose.msra.mxu0 0.0
        %8445 = vmatprep.subr.mxu0 %v7723
        %8446 = vmatpush1.xpose.msra.mxu0 %v7722
        %8447 = vmatprep.subr.mxu0 %v7718
        %8448 = vmatpush1.xpose.msra.mxu0 %v7717
        %8449 = vmatprep.subr.mxu0 0.0
        %8450 = vmatpush2.xpose.msra.mxu0 0.0
        %8451 = vmatprep.subr.mxu0 0.0
        %8452 = vmatpush2.xpose.msra.mxu0 0.0
        %8453 = vmatprep.subr.mxu0 0.0
        %8454 = vmatpush2.xpose.msra.mxu0 0.0
        %8455 = vmatprep.subr.mxu0 0.0
        %8456 = vmatpush2.xpose.msra.mxu0 0.0
        %8457 = vmatprep.subr.mxu0 0.0
        %8458 = vmatpush2.xpose.msra.mxu0 0.0
        %8459 = vmatprep.subr.mxu0 0.0
        %8460 = vmatpush2.xpose.msra.mxu0 0.0
        %8461 = vmatprep.subr.mxu0 0.0
        %8462 = vmatpush2.xpose.msra.mxu0 0.0
        %8463 = vmatprep.subr.mxu0 0.0
        %8464 = vmatpush2.xpose.msra.mxu0 0.0
        %8465 = vmatprep.subr.mxu0 0.0
        %8466 = vmatpush2.xpose.msra.mxu0 0.0
        %8467 = vmatprep.subr.mxu0 0.0
        %8468 = vmatpush2.xpose.msra.mxu0 0.0
        %8469 = vmatprep.subr.mxu0 0.0
        %8470 = vmatpush2.xpose.msra.mxu0 0.0
        %8471 = vmatprep.subr.mxu0 0.0
        %8472 = vmatpush2.xpose.msra.mxu0 0.0
        %8473 = vmatprep.subr.mxu0 0.0
        %8474 = vmatpush2.xpose.msra.mxu0 0.0
        %8475 = vmatprep.subr.mxu0 0.0
        %8476 = vmatpush2.xpose.msra.mxu0 0.0
        %8477 = vmatprep.subr.mxu0 0.0
        %8478 = vmatpush2.xpose.msra.mxu0 0.0
        %8479 = vmatprep.subr.mxu0 0.0
        %8480 = vmatpush2.xpose.msra.mxu0 0.0
        %8481 = vmatprep.mubr.f32.mxu0 %v7653
        %8482 = vmatmul.mubr.f32.gmra.mxu0 %v7652
        %v8483 = vpop.f32.mrf.mxu0
        %v8484 = vadd.f32 0.0, %v8483
        %v8485 = vpop.f32.mrf.mxu0
        %8486 = vdwg.mxu0
        %8487 = vmatprep.subr.mxu0 0.0
        %8488 = vmatpush1.xpose.msra.mxu0 0.0
        %8489 = vmatprep.subr.mxu0 0.0
        %8490 = vmatpush1.xpose.msra.mxu0 0.0
        %8491 = vmatprep.subr.mxu0 0.0
        %8492 = vmatpush1.xpose.msra.mxu0 0.0
        %8493 = vmatprep.subr.mxu0 0.0
        %8494 = vmatpush1.xpose.msra.mxu0 0.0
        %8495 = vmatprep.subr.mxu0 0.0
        %8496 = vmatpush1.xpose.msra.mxu0 0.0
        %8497 = vmatprep.subr.mxu0 0.0
        %8498 = vmatpush1.xpose.msra.mxu0 0.0
        %8499 = vmatprep.subr.mxu0 0.0
        %8500 = vmatpush1.xpose.msra.mxu0 0.0
        %8501 = vmatprep.subr.mxu0 0.0
        %8502 = vmatpush1.xpose.msra.mxu0 0.0
        %8503 = vmatprep.subr.mxu0 0.0
        %8504 = vmatpush1.xpose.msra.mxu0 0.0
        %8505 = vmatprep.subr.mxu0 0.0
        %8506 = vmatpush1.xpose.msra.mxu0 0.0
        %8507 = vmatprep.subr.mxu0 0.0
        %8508 = vmatpush1.xpose.msra.mxu0 0.0
        %8509 = vmatprep.subr.mxu0 0.0
        %8510 = vmatpush1.xpose.msra.mxu0 0.0
        %8511 = vmatprep.subr.mxu0 0.0
        %8512 = vmatpush1.xpose.msra.mxu0 0.0
        %8513 = vmatprep.subr.mxu0 0.0
        %8514 = vmatpush1.xpose.msra.mxu0 0.0
        %8515 = vmatprep.subr.mxu0 %v7725
        %8516 = vmatpush1.xpose.msra.mxu0 %v7724
        %8517 = vmatprep.subr.mxu0 %v7720
        %8518 = vmatpush1.xpose.msra.mxu0 %v7719
        %8519 = vmatprep.subr.mxu0 0.0
        %8520 = vmatpush2.xpose.msra.mxu0 0.0
        %8521 = vmatprep.subr.mxu0 0.0
        %8522 = vmatpush2.xpose.msra.mxu0 0.0
        %8523 = vmatprep.subr.mxu0 0.0
        %8524 = vmatpush2.xpose.msra.mxu0 0.0
        %8525 = vmatprep.subr.mxu0 0.0
        %8526 = vmatpush2.xpose.msra.mxu0 0.0
        %8527 = vmatprep.subr.mxu0 0.0
        %8528 = vmatpush2.xpose.msra.mxu0 0.0
        %8529 = vmatprep.subr.mxu0 0.0
        %8530 = vmatpush2.xpose.msra.mxu0 0.0
        %8531 = vmatprep.subr.mxu0 0.0
        %8532 = vmatpush2.xpose.msra.mxu0 0.0
        %8533 = vmatprep.subr.mxu0 0.0
        %8534 = vmatpush2.xpose.msra.mxu0 0.0
        %8535 = vmatprep.subr.mxu0 0.0
        %8536 = vmatpush2.xpose.msra.mxu0 0.0
        %8537 = vmatprep.subr.mxu0 0.0
        %8538 = vmatpush2.xpose.msra.mxu0 0.0
        %8539 = vmatprep.subr.mxu0 0.0
        %8540 = vmatpush2.xpose.msra.mxu0 0.0
        %8541 = vmatprep.subr.mxu0 0.0
        %8542 = vmatpush2.xpose.msra.mxu0 0.0
        %8543 = vmatprep.subr.mxu0 0.0
        %8544 = vmatpush2.xpose.msra.mxu0 0.0
        %8545 = vmatprep.subr.mxu0 0.0
        %8546 = vmatpush2.xpose.msra.mxu0 0.0
        %8547 = vmatprep.subr.mxu0 0.0
        %8548 = vmatpush2.xpose.msra.mxu0 0.0
        %8549 = vmatprep.subr.mxu0 0.0
        %8550 = vmatpush2.xpose.msra.mxu0 0.0
        %8551 = vmatprep.mubr.f32.mxu0 %v7655
        %8552 = vmatmul.mubr.f32.gmra.mxu0 %v7654
        %v8553 = vpop.f32.mrf.mxu0
        %v8554 = vadd.f32 %v8484, %v8553
        %v8555 = vpop.f32.mrf.mxu0
        %8556 = vdwg.mxu0
        %8557 = vmatprep.subr.mxu0 0.0
        %8558 = vmatpush1.xpose.msra.mxu0 0.0
        %8559 = vmatprep.subr.mxu0 0.0
        %8560 = vmatpush1.xpose.msra.mxu0 0.0
        %8561 = vmatprep.subr.mxu0 0.0
        %8562 = vmatpush1.xpose.msra.mxu0 0.0
        %8563 = vmatprep.subr.mxu0 0.0
        %8564 = vmatpush1.xpose.msra.mxu0 0.0
        %8565 = vmatprep.subr.mxu0 0.0
        %8566 = vmatpush1.xpose.msra.mxu0 0.0
        %8567 = vmatprep.subr.mxu0 0.0
        %8568 = vmatpush1.xpose.msra.mxu0 0.0
        %8569 = vmatprep.subr.mxu0 0.0
        %8570 = vmatpush1.xpose.msra.mxu0 0.0
        %8571 = vmatprep.subr.mxu0 0.0
        %8572 = vmatpush1.xpose.msra.mxu0 0.0
        %8573 = vmatprep.subr.mxu0 0.0
        %8574 = vmatpush1.xpose.msra.mxu0 0.0
        %8575 = vmatprep.subr.mxu0 0.0
        %8576 = vmatpush1.xpose.msra.mxu0 0.0
        %8577 = vmatprep.subr.mxu0 0.0
        %8578 = vmatpush1.xpose.msra.mxu0 0.0
        %8579 = vmatprep.subr.mxu0 0.0
        %8580 = vmatpush1.xpose.msra.mxu0 0.0
        %8581 = vmatprep.subr.mxu0 0.0
        %8582 = vmatpush1.xpose.msra.mxu0 0.0
        %8583 = vmatprep.subr.mxu0 0.0
        %8584 = vmatpush1.xpose.msra.mxu0 0.0
        %8585 = vmatprep.subr.mxu0 0.0
        %8586 = vmatpush1.xpose.msra.mxu0 %v7726
        %8587 = vmatprep.subr.mxu0 0.0
        %8588 = vmatpush1.xpose.msra.mxu0 %v7721
        %8589 = vmatprep.subr.mxu0 0.0
        %8590 = vmatpush2.xpose.msra.mxu0 0.0
        %8591 = vmatprep.subr.mxu0 0.0
        %8592 = vmatpush2.xpose.msra.mxu0 0.0
        %8593 = vmatprep.subr.mxu0 0.0
        %8594 = vmatpush2.xpose.msra.mxu0 0.0
        %8595 = vmatprep.subr.mxu0 0.0
        %8596 = vmatpush2.xpose.msra.mxu0 0.0
        %8597 = vmatprep.subr.mxu0 0.0
        %8598 = vmatpush2.xpose.msra.mxu0 0.0
        %8599 = vmatprep.subr.mxu0 0.0
        %8600 = vmatpush2.xpose.msra.mxu0 0.0
        %8601 = vmatprep.subr.mxu0 0.0
        %8602 = vmatpush2.xpose.msra.mxu0 0.0
        %8603 = vmatprep.subr.mxu0 0.0
        %8604 = vmatpush2.xpose.msra.mxu0 0.0
        %8605 = vmatprep.subr.mxu0 0.0
        %8606 = vmatpush2.xpose.msra.mxu0 0.0
        %8607 = vmatprep.subr.mxu0 0.0
        %8608 = vmatpush2.xpose.msra.mxu0 0.0
        %8609 = vmatprep.subr.mxu0 0.0
        %8610 = vmatpush2.xpose.msra.mxu0 0.0
        %8611 = vmatprep.subr.mxu0 0.0
        %8612 = vmatpush2.xpose.msra.mxu0 0.0
        %8613 = vmatprep.subr.mxu0 0.0
        %8614 = vmatpush2.xpose.msra.mxu0 0.0
        %8615 = vmatprep.subr.mxu0 0.0
        %8616 = vmatpush2.xpose.msra.mxu0 0.0
        %8617 = vmatprep.subr.mxu0 0.0
        %8618 = vmatpush2.xpose.msra.mxu0 0.0
        %8619 = vmatprep.subr.mxu0 0.0
        %8620 = vmatpush2.xpose.msra.mxu0 0.0
        %8621 = vmatprep.mubr.f32.mxu0 0.0
        %8622 = vmatmul.mubr.f32.gmra.mxu0 %v7656
        %v8623 = vpop.f32.mrf.mxu0
        %v8624 = vadd.f32 %v8554, %v8623
        %v8625 = vpop.f32.mrf.mxu0
        %8626 = vdwg.mxu0
        %8627 = vmatprep.subr.mxu0 0.0
        %8628 = vmatpush1.xpose.msra.mxu0 0.0
        %8629 = vmatprep.subr.mxu0 0.0
        %8630 = vmatpush1.xpose.msra.mxu0 0.0
        %8631 = vmatprep.subr.mxu0 0.0
        %8632 = vmatpush1.xpose.msra.mxu0 0.0
        %8633 = vmatprep.subr.mxu0 0.0
        %8634 = vmatpush1.xpose.msra.mxu0 0.0
        %8635 = vmatprep.subr.mxu0 0.0
        %8636 = vmatpush1.xpose.msra.mxu0 0.0
        %8637 = vmatprep.subr.mxu0 0.0
        %8638 = vmatpush1.xpose.msra.mxu0 0.0
        %8639 = vmatprep.subr.mxu0 0.0
        %8640 = vmatpush1.xpose.msra.mxu0 0.0
        %8641 = vmatprep.subr.mxu0 0.0
        %8642 = vmatpush1.xpose.msra.mxu0 0.0
        %8643 = vmatprep.subr.mxu0 0.0
        %8644 = vmatpush1.xpose.msra.mxu0 0.0
        %8645 = vmatprep.subr.mxu0 0.0
        %8646 = vmatpush1.xpose.msra.mxu0 0.0
        %8647 = vmatprep.subr.mxu0 0.0
        %8648 = vmatpush1.xpose.msra.mxu0 0.0
        %8649 = vmatprep.subr.mxu0 0.0
        %8650 = vmatpush1.xpose.msra.mxu0 0.0
        %8651 = vmatprep.subr.mxu0 0.0
        %8652 = vmatpush1.xpose.msra.mxu0 0.0
        %8653 = vmatprep.subr.mxu0 0.0
        %8654 = vmatpush1.xpose.msra.mxu0 0.0
        %8655 = vmatprep.subr.mxu0 %v7733
        %8656 = vmatpush1.xpose.msra.mxu0 %v7732
        %8657 = vmatprep.subr.mxu0 %v7728
        %8658 = vmatpush1.xpose.msra.mxu0 %v7727
        %8659 = vmatprep.subr.mxu0 0.0
        %8660 = vmatpush2.xpose.msra.mxu0 0.0
        %8661 = vmatprep.subr.mxu0 0.0
        %8662 = vmatpush2.xpose.msra.mxu0 0.0
        %8663 = vmatprep.subr.mxu0 0.0
        %8664 = vmatpush2.xpose.msra.mxu0 0.0
        %8665 = vmatprep.subr.mxu0 0.0
        %8666 = vmatpush2.xpose.msra.mxu0 0.0
        %8667 = vmatprep.subr.mxu0 0.0
        %8668 = vmatpush2.xpose.msra.mxu0 0.0
        %8669 = vmatprep.subr.mxu0 0.0
        %8670 = vmatpush2.xpose.msra.mxu0 0.0
        %8671 = vmatprep.subr.mxu0 0.0
        %8672 = vmatpush2.xpose.msra.mxu0 0.0
        %8673 = vmatprep.subr.mxu0 0.0
        %8674 = vmatpush2.xpose.msra.mxu0 0.0
        %8675 = vmatprep.subr.mxu0 0.0
        %8676 = vmatpush2.xpose.msra.mxu0 0.0
        %8677 = vmatprep.subr.mxu0 0.0
        %8678 = vmatpush2.xpose.msra.mxu0 0.0
        %8679 = vmatprep.subr.mxu0 0.0
        %8680 = vmatpush2.xpose.msra.mxu0 0.0
        %8681 = vmatprep.subr.mxu0 0.0
        %8682 = vmatpush2.xpose.msra.mxu0 0.0
        %8683 = vmatprep.subr.mxu0 0.0
        %8684 = vmatpush2.xpose.msra.mxu0 0.0
        %8685 = vmatprep.subr.mxu0 0.0
        %8686 = vmatpush2.xpose.msra.mxu0 0.0
        %8687 = vmatprep.subr.mxu0 0.0
        %8688 = vmatpush2.xpose.msra.mxu0 0.0
        %8689 = vmatprep.subr.mxu0 0.0
        %8690 = vmatpush2.xpose.msra.mxu0 0.0
        %8691 = vmatprep.mubr.f32.mxu0 %v7658
        %8692 = vmatmul.mubr.f32.gmra.mxu0 %v7657
        %v8693 = vpop.f32.mrf.mxu0
        %v8694 = vadd.f32 0.0, %v8693
        %v8695 = vpop.f32.mrf.mxu0
        %8696 = vdwg.mxu0
        %8697 = vmatprep.subr.mxu0 0.0
        %8698 = vmatpush1.xpose.msra.mxu0 0.0
        %8699 = vmatprep.subr.mxu0 0.0
        %8700 = vmatpush1.xpose.msra.mxu0 0.0
        %8701 = vmatprep.subr.mxu0 0.0
        %8702 = vmatpush1.xpose.msra.mxu0 0.0
        %8703 = vmatprep.subr.mxu0 0.0
        %8704 = vmatpush1.xpose.msra.mxu0 0.0
        %8705 = vmatprep.subr.mxu0 0.0
        %8706 = vmatpush1.xpose.msra.mxu0 0.0
        %8707 = vmatprep.subr.mxu0 0.0
        %8708 = vmatpush1.xpose.msra.mxu0 0.0
        %8709 = vmatprep.subr.mxu0 0.0
        %8710 = vmatpush1.xpose.msra.mxu0 0.0
        %8711 = vmatprep.subr.mxu0 0.0
        %8712 = vmatpush1.xpose.msra.mxu0 0.0
        %8713 = vmatprep.subr.mxu0 0.0
        %8714 = vmatpush1.xpose.msra.mxu0 0.0
        %8715 = vmatprep.subr.mxu0 0.0
        %8716 = vmatpush1.xpose.msra.mxu0 0.0
        %8717 = vmatprep.subr.mxu0 0.0
        %8718 = vmatpush1.xpose.msra.mxu0 0.0
        %8719 = vmatprep.subr.mxu0 0.0
        %8720 = vmatpush1.xpose.msra.mxu0 0.0
        %8721 = vmatprep.subr.mxu0 0.0
        %8722 = vmatpush1.xpose.msra.mxu0 0.0
        %8723 = vmatprep.subr.mxu0 0.0
        %8724 = vmatpush1.xpose.msra.mxu0 0.0
        %8725 = vmatprep.subr.mxu0 %v7735
        %8726 = vmatpush1.xpose.msra.mxu0 %v7734
        %8727 = vmatprep.subr.mxu0 %v7730
        %8728 = vmatpush1.xpose.msra.mxu0 %v7729
        %8729 = vmatprep.subr.mxu0 0.0
        %8730 = vmatpush2.xpose.msra.mxu0 0.0
        %8731 = vmatprep.subr.mxu0 0.0
        %8732 = vmatpush2.xpose.msra.mxu0 0.0
        %8733 = vmatprep.subr.mxu0 0.0
        %8734 = vmatpush2.xpose.msra.mxu0 0.0
        %8735 = vmatprep.subr.mxu0 0.0
        %8736 = vmatpush2.xpose.msra.mxu0 0.0
        %8737 = vmatprep.subr.mxu0 0.0
        %8738 = vmatpush2.xpose.msra.mxu0 0.0
        %8739 = vmatprep.subr.mxu0 0.0
        %8740 = vmatpush2.xpose.msra.mxu0 0.0
        %8741 = vmatprep.subr.mxu0 0.0
        %8742 = vmatpush2.xpose.msra.mxu0 0.0
        %8743 = vmatprep.subr.mxu0 0.0
        %8744 = vmatpush2.xpose.msra.mxu0 0.0
        %8745 = vmatprep.subr.mxu0 0.0
        %8746 = vmatpush2.xpose.msra.mxu0 0.0
        %8747 = vmatprep.subr.mxu0 0.0
        %8748 = vmatpush2.xpose.msra.mxu0 0.0
        %8749 = vmatprep.subr.mxu0 0.0
        %8750 = vmatpush2.xpose.msra.mxu0 0.0
        %8751 = vmatprep.subr.mxu0 0.0
        %8752 = vmatpush2.xpose.msra.mxu0 0.0
        %8753 = vmatprep.subr.mxu0 0.0
        %8754 = vmatpush2.xpose.msra.mxu0 0.0
        %8755 = vmatprep.subr.mxu0 0.0
        %8756 = vmatpush2.xpose.msra.mxu0 0.0
        %8757 = vmatprep.subr.mxu0 0.0
        %8758 = vmatpush2.xpose.msra.mxu0 0.0
        %8759 = vmatprep.subr.mxu0 0.0
        %8760 = vmatpush2.xpose.msra.mxu0 0.0
        %8761 = vmatprep.mubr.f32.mxu0 %v7660
        %8762 = vmatmul.mubr.f32.gmra.mxu0 %v7659
        %v8763 = vpop.f32.mrf.mxu0
        %v8764 = vadd.f32 %v8694, %v8763
        %v8765 = vpop.f32.mrf.mxu0
        %8766 = vdwg.mxu0
        %8767 = vmatprep.subr.mxu0 0.0
        %8768 = vmatpush1.xpose.msra.mxu0 0.0
        %8769 = vmatprep.subr.mxu0 0.0
        %8770 = vmatpush1.xpose.msra.mxu0 0.0
        %8771 = vmatprep.subr.mxu0 0.0
        %8772 = vmatpush1.xpose.msra.mxu0 0.0
        %8773 = vmatprep.subr.mxu0 0.0
        %8774 = vmatpush1.xpose.msra.mxu0 0.0
        %8775 = vmatprep.subr.mxu0 0.0
        %8776 = vmatpush1.xpose.msra.mxu0 0.0
        %8777 = vmatprep.subr.mxu0 0.0
        %8778 = vmatpush1.xpose.msra.mxu0 0.0
        %8779 = vmatprep.subr.mxu0 0.0
        %8780 = vmatpush1.xpose.msra.mxu0 0.0
        %8781 = vmatprep.subr.mxu0 0.0
        %8782 = vmatpush1.xpose.msra.mxu0 0.0
        %8783 = vmatprep.subr.mxu0 0.0
        %8784 = vmatpush1.xpose.msra.mxu0 0.0
        %8785 = vmatprep.subr.mxu0 0.0
        %8786 = vmatpush1.xpose.msra.mxu0 0.0
        %8787 = vmatprep.subr.mxu0 0.0
        %8788 = vmatpush1.xpose.msra.mxu0 0.0
        %8789 = vmatprep.subr.mxu0 0.0
        %8790 = vmatpush1.xpose.msra.mxu0 0.0
        %8791 = vmatprep.subr.mxu0 0.0
        %8792 = vmatpush1.xpose.msra.mxu0 0.0
        %8793 = vmatprep.subr.mxu0 0.0
        %8794 = vmatpush1.xpose.msra.mxu0 0.0
        %8795 = vmatprep.subr.mxu0 0.0
        %8796 = vmatpush1.xpose.msra.mxu0 %v7736
        %8797 = vmatprep.subr.mxu0 0.0
        %8798 = vmatpush1.xpose.msra.mxu0 %v7731
        %8799 = vmatprep.subr.mxu0 0.0
        %8800 = vmatpush2.xpose.msra.mxu0 0.0
        %8801 = vmatprep.subr.mxu0 0.0
        %8802 = vmatpush2.xpose.msra.mxu0 0.0
        %8803 = vmatprep.subr.mxu0 0.0
        %8804 = vmatpush2.xpose.msra.mxu0 0.0
        %8805 = vmatprep.subr.mxu0 0.0
        %8806 = vmatpush2.xpose.msra.mxu0 0.0
        %8807 = vmatprep.subr.mxu0 0.0
        %8808 = vmatpush2.xpose.msra.mxu0 0.0
        %8809 = vmatprep.subr.mxu0 0.0
        %8810 = vmatpush2.xpose.msra.mxu0 0.0
        %8811 = vmatprep.subr.mxu0 0.0
        %8812 = vmatpush2.xpose.msra.mxu0 0.0
        %8813 = vmatprep.subr.mxu0 0.0
        %8814 = vmatpush2.xpose.msra.mxu0 0.0
        %8815 = vmatprep.subr.mxu0 0.0
        %8816 = vmatpush2.xpose.msra.mxu0 0.0
        %8817 = vmatprep.subr.mxu0 0.0
        %8818 = vmatpush2.xpose.msra.mxu0 0.0
        %8819 = vmatprep.subr.mxu0 0.0
        %8820 = vmatpush2.xpose.msra.mxu0 0.0
        %8821 = vmatprep.subr.mxu0 0.0
        %8822 = vmatpush2.xpose.msra.mxu0 0.0
        %8823 = vmatprep.subr.mxu0 0.0
        %8824 = vmatpush2.xpose.msra.mxu0 0.0
        %8825 = vmatprep.subr.mxu0 0.0
        %8826 = vmatpush2.xpose.msra.mxu0 0.0
        %8827 = vmatprep.subr.mxu0 0.0
        %8828 = vmatpush2.xpose.msra.mxu0 0.0
        %8829 = vmatprep.subr.mxu0 0.0
        %8830 = vmatpush2.xpose.msra.mxu0 0.0
        %8831 = vmatprep.mubr.f32.mxu0 0.0
        %8832 = vmatmul.mubr.f32.gmra.mxu0 %v7661
        %v8833 = vpop.f32.mrf.mxu0
        %v8834 = vadd.f32 %v8764, %v8833
        %v8835 = vpop.f32.mrf.mxu0
        %8836 = vdwg.mxu0
        %8837 = vmatprep.subr.mxu0 0.0
        %8838 = vmatpush1.xpose.msra.mxu0 0.0
        %8839 = vmatprep.subr.mxu0 0.0
        %8840 = vmatpush1.xpose.msra.mxu0 0.0
        %8841 = vmatprep.subr.mxu0 0.0
        %8842 = vmatpush1.xpose.msra.mxu0 0.0
        %8843 = vmatprep.subr.mxu0 0.0
        %8844 = vmatpush1.xpose.msra.mxu0 0.0
        %8845 = vmatprep.subr.mxu0 0.0
        %8846 = vmatpush1.xpose.msra.mxu0 0.0
        %8847 = vmatprep.subr.mxu0 0.0
        %8848 = vmatpush1.xpose.msra.mxu0 0.0
        %8849 = vmatprep.subr.mxu0 0.0
        %8850 = vmatpush1.xpose.msra.mxu0 0.0
        %8851 = vmatprep.subr.mxu0 0.0
        %8852 = vmatpush1.xpose.msra.mxu0 0.0
        %8853 = vmatprep.subr.mxu0 0.0
        %8854 = vmatpush1.xpose.msra.mxu0 0.0
        %8855 = vmatprep.subr.mxu0 0.0
        %8856 = vmatpush1.xpose.msra.mxu0 0.0
        %8857 = vmatprep.subr.mxu0 0.0
        %8858 = vmatpush1.xpose.msra.mxu0 0.0
        %8859 = vmatprep.subr.mxu0 0.0
        %8860 = vmatpush1.xpose.msra.mxu0 0.0
        %8861 = vmatprep.subr.mxu0 0.0
        %8862 = vmatpush1.xpose.msra.mxu0 0.0
        %8863 = vmatprep.subr.mxu0 0.0
        %8864 = vmatpush1.xpose.msra.mxu0 0.0
        %8865 = vmatprep.subr.mxu0 %v7743
        %8866 = vmatpush1.xpose.msra.mxu0 %v7742
        %8867 = vmatprep.subr.mxu0 %v7738
        %8868 = vmatpush1.xpose.msra.mxu0 %v7737
        %8869 = vmatprep.subr.mxu0 0.0
        %8870 = vmatpush2.xpose.msra.mxu0 0.0
        %8871 = vmatprep.subr.mxu0 0.0
        %8872 = vmatpush2.xpose.msra.mxu0 0.0
        %8873 = vmatprep.subr.mxu0 0.0
        %8874 = vmatpush2.xpose.msra.mxu0 0.0
        %8875 = vmatprep.subr.mxu0 0.0
        %8876 = vmatpush2.xpose.msra.mxu0 0.0
        %8877 = vmatprep.subr.mxu0 0.0
        %8878 = vmatpush2.xpose.msra.mxu0 0.0
        %8879 = vmatprep.subr.mxu0 0.0
        %8880 = vmatpush2.xpose.msra.mxu0 0.0
        %8881 = vmatprep.subr.mxu0 0.0
        %8882 = vmatpush2.xpose.msra.mxu0 0.0
        %8883 = vmatprep.subr.mxu0 0.0
        %8884 = vmatpush2.xpose.msra.mxu0 0.0
        %8885 = vmatprep.subr.mxu0 0.0
        %8886 = vmatpush2.xpose.msra.mxu0 0.0
        %8887 = vmatprep.subr.mxu0 0.0
        %8888 = vmatpush2.xpose.msra.mxu0 0.0
        %8889 = vmatprep.subr.mxu0 0.0
        %8890 = vmatpush2.xpose.msra.mxu0 0.0
        %8891 = vmatprep.subr.mxu0 0.0
        %8892 = vmatpush2.xpose.msra.mxu0 0.0
        %8893 = vmatprep.subr.mxu0 0.0
        %8894 = vmatpush2.xpose.msra.mxu0 0.0
        %8895 = vmatprep.subr.mxu0 0.0
        %8896 = vmatpush2.xpose.msra.mxu0 0.0
        %8897 = vmatprep.subr.mxu0 0.0
        %8898 = vmatpush2.xpose.msra.mxu0 0.0
        %8899 = vmatprep.subr.mxu0 0.0
        %8900 = vmatpush2.xpose.msra.mxu0 0.0
        %8901 = vmatprep.mubr.f32.mxu0 %v7663
        %8902 = vmatmul.mubr.f32.gmra.mxu0 %v7662
        %v8903 = vpop.f32.mrf.mxu0
        %v8904 = vadd.f32 0.0, %v8903
        %v8905 = vpop.f32.mrf.mxu0
        %8906 = vdwg.mxu0
        %8907 = vmatprep.subr.mxu0 0.0
        %8908 = vmatpush1.xpose.msra.mxu0 0.0
        %8909 = vmatprep.subr.mxu0 0.0
        %8910 = vmatpush1.xpose.msra.mxu0 0.0
        %8911 = vmatprep.subr.mxu0 0.0
        %8912 = vmatpush1.xpose.msra.mxu0 0.0
        %8913 = vmatprep.subr.mxu0 0.0
        %8914 = vmatpush1.xpose.msra.mxu0 0.0
        %8915 = vmatprep.subr.mxu0 0.0
        %8916 = vmatpush1.xpose.msra.mxu0 0.0
        %8917 = vmatprep.subr.mxu0 0.0
        %8918 = vmatpush1.xpose.msra.mxu0 0.0
        %8919 = vmatprep.subr.mxu0 0.0
        %8920 = vmatpush1.xpose.msra.mxu0 0.0
        %8921 = vmatprep.subr.mxu0 0.0
        %8922 = vmatpush1.xpose.msra.mxu0 0.0
        %8923 = vmatprep.subr.mxu0 0.0
        %8924 = vmatpush1.xpose.msra.mxu0 0.0
        %8925 = vmatprep.subr.mxu0 0.0
        %8926 = vmatpush1.xpose.msra.mxu0 0.0
        %8927 = vmatprep.subr.mxu0 0.0
        %8928 = vmatpush1.xpose.msra.mxu0 0.0
        %8929 = vmatprep.subr.mxu0 0.0
        %8930 = vmatpush1.xpose.msra.mxu0 0.0
        %8931 = vmatprep.subr.mxu0 0.0
        %8932 = vmatpush1.xpose.msra.mxu0 0.0
        %8933 = vmatprep.subr.mxu0 0.0
        %8934 = vmatpush1.xpose.msra.mxu0 0.0
        %8935 = vmatprep.subr.mxu0 %v7745
        %8936 = vmatpush1.xpose.msra.mxu0 %v7744
        %8937 = vmatprep.subr.mxu0 %v7740
        %8938 = vmatpush1.xpose.msra.mxu0 %v7739
        %8939 = vmatprep.subr.mxu0 0.0
        %8940 = vmatpush2.xpose.msra.mxu0 0.0
        %8941 = vmatprep.subr.mxu0 0.0
        %8942 = vmatpush2.xpose.msra.mxu0 0.0
        %8943 = vmatprep.subr.mxu0 0.0
        %8944 = vmatpush2.xpose.msra.mxu0 0.0
        %8945 = vmatprep.subr.mxu0 0.0
        %8946 = vmatpush2.xpose.msra.mxu0 0.0
        %8947 = vmatprep.subr.mxu0 0.0
        %8948 = vmatpush2.xpose.msra.mxu0 0.0
        %8949 = vmatprep.subr.mxu0 0.0
        %8950 = vmatpush2.xpose.msra.mxu0 0.0
        %8951 = vmatprep.subr.mxu0 0.0
        %8952 = vmatpush2.xpose.msra.mxu0 0.0
        %8953 = vmatprep.subr.mxu0 0.0
        %8954 = vmatpush2.xpose.msra.mxu0 0.0
        %8955 = vmatprep.subr.mxu0 0.0
        %8956 = vmatpush2.xpose.msra.mxu0 0.0
        %8957 = vmatprep.subr.mxu0 0.0
        %8958 = vmatpush2.xpose.msra.mxu0 0.0
        %8959 = vmatprep.subr.mxu0 0.0
        %8960 = vmatpush2.xpose.msra.mxu0 0.0
        %8961 = vmatprep.subr.mxu0 0.0
        %8962 = vmatpush2.xpose.msra.mxu0 0.0
        %8963 = vmatprep.subr.mxu0 0.0
        %8964 = vmatpush2.xpose.msra.mxu0 0.0
        %8965 = vmatprep.subr.mxu0 0.0
        %8966 = vmatpush2.xpose.msra.mxu0 0.0
        %8967 = vmatprep.subr.mxu0 0.0
        %8968 = vmatpush2.xpose.msra.mxu0 0.0
        %8969 = vmatprep.subr.mxu0 0.0
        %8970 = vmatpush2.xpose.msra.mxu0 0.0
        %8971 = vmatprep.mubr.f32.mxu0 %v7665
        %8972 = vmatmul.mubr.f32.gmra.mxu0 %v7664
        %v8973 = vpop.f32.mrf.mxu0
        %v8974 = vadd.f32 %v8904, %v8973
        %v8975 = vpop.f32.mrf.mxu0
        %8976 = vdwg.mxu0
        %8977 = vmatprep.subr.mxu0 0.0
        %8978 = vmatpush1.xpose.msra.mxu0 0.0
        %8979 = vmatprep.subr.mxu0 0.0
        %8980 = vmatpush1.xpose.msra.mxu0 0.0
        %8981 = vmatprep.subr.mxu0 0.0
        %8982 = vmatpush1.xpose.msra.mxu0 0.0
        %8983 = vmatprep.subr.mxu0 0.0
        %8984 = vmatpush1.xpose.msra.mxu0 0.0
        %8985 = vmatprep.subr.mxu0 0.0
        %8986 = vmatpush1.xpose.msra.mxu0 0.0
        %8987 = vmatprep.subr.mxu0 0.0
        %8988 = vmatpush1.xpose.msra.mxu0 0.0
        %8989 = vmatprep.subr.mxu0 0.0
        %8990 = vmatpush1.xpose.msra.mxu0 0.0
        %8991 = vmatprep.subr.mxu0 0.0
        %8992 = vmatpush1.xpose.msra.mxu0 0.0
        %8993 = vmatprep.subr.mxu0 0.0
        %8994 = vmatpush1.xpose.msra.mxu0 0.0
        %8995 = vmatprep.subr.mxu0 0.0
        %8996 = vmatpush1.xpose.msra.mxu0 0.0
        %8997 = vmatprep.subr.mxu0 0.0
        %8998 = vmatpush1.xpose.msra.mxu0 0.0
        %8999 = vmatprep.subr.mxu0 0.0
        %9000 = vmatpush1.xpose.msra.mxu0 0.0
        %9001 = vmatprep.subr.mxu0 0.0
        %9002 = vmatpush1.xpose.msra.mxu0 0.0
        %9003 = vmatprep.subr.mxu0 0.0
        %9004 = vmatpush1.xpose.msra.mxu0 0.0
        %9005 = vmatprep.subr.mxu0 0.0
        %9006 = vmatpush1.xpose.msra.mxu0 %v7746
        %9007 = vmatprep.subr.mxu0 0.0
        %9008 = vmatpush1.xpose.msra.mxu0 %v7741
        %9009 = vmatprep.subr.mxu0 0.0
        %9010 = vmatpush2.xpose.msra.mxu0 0.0
        %9011 = vmatprep.subr.mxu0 0.0
        %9012 = vmatpush2.xpose.msra.mxu0 0.0
        %9013 = vmatprep.subr.mxu0 0.0
        %9014 = vmatpush2.xpose.msra.mxu0 0.0
        %9015 = vmatprep.subr.mxu0 0.0
        %9016 = vmatpush2.xpose.msra.mxu0 0.0
        %9017 = vmatprep.subr.mxu0 0.0
        %9018 = vmatpush2.xpose.msra.mxu0 0.0
        %9019 = vmatprep.subr.mxu0 0.0
        %9020 = vmatpush2.xpose.msra.mxu0 0.0
        %9021 = vmatprep.subr.mxu0 0.0
        %9022 = vmatpush2.xpose.msra.mxu0 0.0
        %9023 = vmatprep.subr.mxu0 0.0
        %9024 = vmatpush2.xpose.msra.mxu0 0.0
        %9025 = vmatprep.subr.mxu0 0.0
        %9026 = vmatpush2.xpose.msra.mxu0 0.0
        %9027 = vmatprep.subr.mxu0 0.0
        %9028 = vmatpush2.xpose.msra.mxu0 0.0
        %9029 = vmatprep.subr.mxu0 0.0
        %9030 = vmatpush2.xpose.msra.mxu0 0.0
        %9031 = vmatprep.subr.mxu0 0.0
        %9032 = vmatpush2.xpose.msra.mxu0 0.0
        %9033 = vmatprep.subr.mxu0 0.0
        %9034 = vmatpush2.xpose.msra.mxu0 0.0
        %9035 = vmatprep.subr.mxu0 0.0
        %9036 = vmatpush2.xpose.msra.mxu0 0.0
        %9037 = vmatprep.subr.mxu0 0.0
        %9038 = vmatpush2.xpose.msra.mxu0 0.0
        %9039 = vmatprep.subr.mxu0 0.0
        %9040 = vmatpush2.xpose.msra.mxu0 0.0
        %9041 = vmatprep.mubr.f32.mxu0 0.0
        %9042 = vmatmul.mubr.f32.gmra.mxu0 %v7666
        %v9043 = vpop.f32.mrf.mxu0
        %v9044 = vadd.f32 %v8974, %v9043
        %v9045 = vpop.f32.mrf.mxu0
        %9046 = vdwg.mxu0
        %9047 = vmatprep.subr.mxu0 0.0
        %9048 = vmatpush1.xpose.msra.mxu0 0.0
        %9049 = vmatprep.subr.mxu0 0.0
        %9050 = vmatpush1.xpose.msra.mxu0 0.0
        %9051 = vmatprep.subr.mxu0 0.0
        %9052 = vmatpush1.xpose.msra.mxu0 0.0
        %9053 = vmatprep.subr.mxu0 0.0
        %9054 = vmatpush1.xpose.msra.mxu0 0.0
        %9055 = vmatprep.subr.mxu0 0.0
        %9056 = vmatpush1.xpose.msra.mxu0 0.0
        %9057 = vmatprep.subr.mxu0 0.0
        %9058 = vmatpush1.xpose.msra.mxu0 0.0
        %9059 = vmatprep.subr.mxu0 0.0
        %9060 = vmatpush1.xpose.msra.mxu0 0.0
        %9061 = vmatprep.subr.mxu0 0.0
        %9062 = vmatpush1.xpose.msra.mxu0 0.0
        %9063 = vmatprep.subr.mxu0 0.0
        %9064 = vmatpush1.xpose.msra.mxu0 0.0
        %9065 = vmatprep.subr.mxu0 0.0
        %9066 = vmatpush1.xpose.msra.mxu0 0.0
        %9067 = vmatprep.subr.mxu0 0.0
        %9068 = vmatpush1.xpose.msra.mxu0 0.0
        %9069 = vmatprep.subr.mxu0 0.0
        %9070 = vmatpush1.xpose.msra.mxu0 0.0
        %9071 = vmatprep.subr.mxu0 0.0
        %9072 = vmatpush1.xpose.msra.mxu0 0.0
        %9073 = vmatprep.subr.mxu0 0.0
        %9074 = vmatpush1.xpose.msra.mxu0 0.0
        %9075 = vmatprep.subr.mxu0 %v7753
        %9076 = vmatpush1.xpose.msra.mxu0 %v7752
        %9077 = vmatprep.subr.mxu0 %v7748
        %9078 = vmatpush1.xpose.msra.mxu0 %v7747
        %9079 = vmatprep.subr.mxu0 0.0
        %9080 = vmatpush2.xpose.msra.mxu0 0.0
        %9081 = vmatprep.subr.mxu0 0.0
        %9082 = vmatpush2.xpose.msra.mxu0 0.0
        %9083 = vmatprep.subr.mxu0 0.0
        %9084 = vmatpush2.xpose.msra.mxu0 0.0
        %9085 = vmatprep.subr.mxu0 0.0
        %9086 = vmatpush2.xpose.msra.mxu0 0.0
        %9087 = vmatprep.subr.mxu0 0.0
        %9088 = vmatpush2.xpose.msra.mxu0 0.0
        %9089 = vmatprep.subr.mxu0 0.0
        %9090 = vmatpush2.xpose.msra.mxu0 0.0
        %9091 = vmatprep.subr.mxu0 0.0
        %9092 = vmatpush2.xpose.msra.mxu0 0.0
        %9093 = vmatprep.subr.mxu0 0.0
        %9094 = vmatpush2.xpose.msra.mxu0 0.0
        %9095 = vmatprep.subr.mxu0 0.0
        %9096 = vmatpush2.xpose.msra.mxu0 0.0
        %9097 = vmatprep.subr.mxu0 0.0
        %9098 = vmatpush2.xpose.msra.mxu0 0.0
        %9099 = vmatprep.subr.mxu0 0.0
        %9100 = vmatpush2.xpose.msra.mxu0 0.0
        %9101 = vmatprep.subr.mxu0 0.0
        %9102 = vmatpush2.xpose.msra.mxu0 0.0
        %9103 = vmatprep.subr.mxu0 0.0
        %9104 = vmatpush2.xpose.msra.mxu0 0.0
        %9105 = vmatprep.subr.mxu0 0.0
        %9106 = vmatpush2.xpose.msra.mxu0 0.0
        %9107 = vmatprep.subr.mxu0 0.0
        %9108 = vmatpush2.xpose.msra.mxu0 0.0
        %9109 = vmatprep.subr.mxu0 0.0
        %9110 = vmatpush2.xpose.msra.mxu0 0.0
        %9111 = vmatprep.mubr.f32.mxu0 %v7668
        %9112 = vmatmul.mubr.f32.gmra.mxu0 %v7667
        %v9113 = vpop.f32.mrf.mxu0
        %v9114 = vadd.f32 0.0, %v9113
        %v9115 = vpop.f32.mrf.mxu0
        %9116 = vdwg.mxu0
        %9117 = vmatprep.subr.mxu0 0.0
        %9118 = vmatpush1.xpose.msra.mxu0 0.0
        %9119 = vmatprep.subr.mxu0 0.0
        %9120 = vmatpush1.xpose.msra.mxu0 0.0
        %9121 = vmatprep.subr.mxu0 0.0
        %9122 = vmatpush1.xpose.msra.mxu0 0.0
        %9123 = vmatprep.subr.mxu0 0.0
        %9124 = vmatpush1.xpose.msra.mxu0 0.0
        %9125 = vmatprep.subr.mxu0 0.0
        %9126 = vmatpush1.xpose.msra.mxu0 0.0
        %9127 = vmatprep.subr.mxu0 0.0
        %9128 = vmatpush1.xpose.msra.mxu0 0.0
        %9129 = vmatprep.subr.mxu0 0.0
        %9130 = vmatpush1.xpose.msra.mxu0 0.0
        %9131 = vmatprep.subr.mxu0 0.0
        %9132 = vmatpush1.xpose.msra.mxu0 0.0
        %9133 = vmatprep.subr.mxu0 0.0
        %9134 = vmatpush1.xpose.msra.mxu0 0.0
        %9135 = vmatprep.subr.mxu0 0.0
        %9136 = vmatpush1.xpose.msra.mxu0 0.0
        %9137 = vmatprep.subr.mxu0 0.0
        %9138 = vmatpush1.xpose.msra.mxu0 0.0
        %9139 = vmatprep.subr.mxu0 0.0
        %9140 = vmatpush1.xpose.msra.mxu0 0.0
        %9141 = vmatprep.subr.mxu0 0.0
        %9142 = vmatpush1.xpose.msra.mxu0 0.0
        %9143 = vmatprep.subr.mxu0 0.0
        %9144 = vmatpush1.xpose.msra.mxu0 0.0
        %9145 = vmatprep.subr.mxu0 %v7755
        %9146 = vmatpush1.xpose.msra.mxu0 %v7754
        %9147 = vmatprep.subr.mxu0 %v7750
        %9148 = vmatpush1.xpose.msra.mxu0 %v7749
        %9149 = vmatprep.subr.mxu0 0.0
        %9150 = vmatpush2.xpose.msra.mxu0 0.0
        %9151 = vmatprep.subr.mxu0 0.0
        %9152 = vmatpush2.xpose.msra.mxu0 0.0
        %9153 = vmatprep.subr.mxu0 0.0
        %9154 = vmatpush2.xpose.msra.mxu0 0.0
        %9155 = vmatprep.subr.mxu0 0.0
        %9156 = vmatpush2.xpose.msra.mxu0 0.0
        %9157 = vmatprep.subr.mxu0 0.0
        %9158 = vmatpush2.xpose.msra.mxu0 0.0
        %9159 = vmatprep.subr.mxu0 0.0
        %9160 = vmatpush2.xpose.msra.mxu0 0.0
        %9161 = vmatprep.subr.mxu0 0.0
        %9162 = vmatpush2.xpose.msra.mxu0 0.0
        %9163 = vmatprep.subr.mxu0 0.0
        %9164 = vmatpush2.xpose.msra.mxu0 0.0
        %9165 = vmatprep.subr.mxu0 0.0
        %9166 = vmatpush2.xpose.msra.mxu0 0.0
        %9167 = vmatprep.subr.mxu0 0.0
        %9168 = vmatpush2.xpose.msra.mxu0 0.0
        %9169 = vmatprep.subr.mxu0 0.0
        %9170 = vmatpush2.xpose.msra.mxu0 0.0
        %9171 = vmatprep.subr.mxu0 0.0
        %9172 = vmatpush2.xpose.msra.mxu0 0.0
        %9173 = vmatprep.subr.mxu0 0.0
        %9174 = vmatpush2.xpose.msra.mxu0 0.0
        %9175 = vmatprep.subr.mxu0 0.0
        %9176 = vmatpush2.xpose.msra.mxu0 0.0
        %9177 = vmatprep.subr.mxu0 0.0
        %9178 = vmatpush2.xpose.msra.mxu0 0.0
        %9179 = vmatprep.subr.mxu0 0.0
        %9180 = vmatpush2.xpose.msra.mxu0 0.0
        %9181 = vmatprep.mubr.f32.mxu0 %v7670
        %9182 = vmatmul.mubr.f32.gmra.mxu0 %v7669
        %v9183 = vpop.f32.mrf.mxu0
        %v9184 = vadd.f32 %v9114, %v9183
        %v9185 = vpop.f32.mrf.mxu0
        %9186 = vdwg.mxu0
        %9187 = vmatprep.subr.mxu0 0.0
        %9188 = vmatpush1.xpose.msra.mxu0 0.0
        %9189 = vmatprep.subr.mxu0 0.0
        %9190 = vmatpush1.xpose.msra.mxu0 0.0
        %9191 = vmatprep.subr.mxu0 0.0
        %9192 = vmatpush1.xpose.msra.mxu0 0.0
        %9193 = vmatprep.subr.mxu0 0.0
        %9194 = vmatpush1.xpose.msra.mxu0 0.0
        %9195 = vmatprep.subr.mxu0 0.0
        %9196 = vmatpush1.xpose.msra.mxu0 0.0
        %9197 = vmatprep.subr.mxu0 0.0
        %9198 = vmatpush1.xpose.msra.mxu0 0.0
        %9199 = vmatprep.subr.mxu0 0.0
        %9200 = vmatpush1.xpose.msra.mxu0 0.0
        %9201 = vmatprep.subr.mxu0 0.0
        %9202 = vmatpush1.xpose.msra.mxu0 0.0
        %9203 = vmatprep.subr.mxu0 0.0
        %9204 = vmatpush1.xpose.msra.mxu0 0.0
        %9205 = vmatprep.subr.mxu0 0.0
        %9206 = vmatpush1.xpose.msra.mxu0 0.0
        %9207 = vmatprep.subr.mxu0 0.0
        %9208 = vmatpush1.xpose.msra.mxu0 0.0
        %9209 = vmatprep.subr.mxu0 0.0
        %9210 = vmatpush1.xpose.msra.mxu0 0.0
        %9211 = vmatprep.subr.mxu0 0.0
        %9212 = vmatpush1.xpose.msra.mxu0 0.0
        %9213 = vmatprep.subr.mxu0 0.0
        %9214 = vmatpush1.xpose.msra.mxu0 0.0
        %9215 = vmatprep.subr.mxu0 0.0
        %9216 = vmatpush1.xpose.msra.mxu0 %v7756
        %9217 = vmatprep.subr.mxu0 0.0
        %9218 = vmatpush1.xpose.msra.mxu0 %v7751
        %9219 = vmatprep.subr.mxu0 0.0
        %9220 = vmatpush2.xpose.msra.mxu0 0.0
        %9221 = vmatprep.subr.mxu0 0.0
        %9222 = vmatpush2.xpose.msra.mxu0 0.0
        %9223 = vmatprep.subr.mxu0 0.0
        %9224 = vmatpush2.xpose.msra.mxu0 0.0
        %9225 = vmatprep.subr.mxu0 0.0
        %9226 = vmatpush2.xpose.msra.mxu0 0.0
        %9227 = vmatprep.subr.mxu0 0.0
        %9228 = vmatpush2.xpose.msra.mxu0 0.0
        %9229 = vmatprep.subr.mxu0 0.0
        %9230 = vmatpush2.xpose.msra.mxu0 0.0
        %9231 = vmatprep.subr.mxu0 0.0
        %9232 = vmatpush2.xpose.msra.mxu0 0.0
        %9233 = vmatprep.subr.mxu0 0.0
        %9234 = vmatpush2.xpose.msra.mxu0 0.0
        %9235 = vmatprep.subr.mxu0 0.0
        %9236 = vmatpush2.xpose.msra.mxu0 0.0
        %9237 = vmatprep.subr.mxu0 0.0
        %9238 = vmatpush2.xpose.msra.mxu0 0.0
        %9239 = vmatprep.subr.mxu0 0.0
        %9240 = vmatpush2.xpose.msra.mxu0 0.0
        %9241 = vmatprep.subr.mxu0 0.0
        %9242 = vmatpush2.xpose.msra.mxu0 0.0
        %9243 = vmatprep.subr.mxu0 0.0
        %9244 = vmatpush2.xpose.msra.mxu0 0.0
        %9245 = vmatprep.subr.mxu0 0.0
        %9246 = vmatpush2.xpose.msra.mxu0 0.0
        %9247 = vmatprep.subr.mxu0 0.0
        %9248 = vmatpush2.xpose.msra.mxu0 0.0
        %9249 = vmatprep.subr.mxu0 0.0
        %9250 = vmatpush2.xpose.msra.mxu0 0.0
        %9251 = vmatprep.mubr.f32.mxu0 0.0
        %9252 = vmatmul.mubr.f32.gmra.mxu0 %v7671
        %v9253 = vpop.f32.mrf.mxu0
        %v9254 = vadd.f32 %v9184, %v9253
        %v9255 = vpop.f32.mrf.mxu0
        %9256 = vdwg.mxu0
        %9257 = vmatprep.subr.mxu0 0.0
        %9258 = vmatpush1.xpose.msra.mxu0 0.0
        %9259 = vmatprep.subr.mxu0 0.0
        %9260 = vmatpush1.xpose.msra.mxu0 0.0
        %9261 = vmatprep.subr.mxu0 0.0
        %9262 = vmatpush1.xpose.msra.mxu0 0.0
        %9263 = vmatprep.subr.mxu0 0.0
        %9264 = vmatpush1.xpose.msra.mxu0 0.0
        %9265 = vmatprep.subr.mxu0 0.0
        %9266 = vmatpush1.xpose.msra.mxu0 0.0
        %9267 = vmatprep.subr.mxu0 0.0
        %9268 = vmatpush1.xpose.msra.mxu0 0.0
        %9269 = vmatprep.subr.mxu0 0.0
        %9270 = vmatpush1.xpose.msra.mxu0 0.0
        %9271 = vmatprep.subr.mxu0 0.0
        %9272 = vmatpush1.xpose.msra.mxu0 0.0
        %9273 = vmatprep.subr.mxu0 0.0
        %9274 = vmatpush1.xpose.msra.mxu0 0.0
        %9275 = vmatprep.subr.mxu0 0.0
        %9276 = vmatpush1.xpose.msra.mxu0 0.0
        %9277 = vmatprep.subr.mxu0 0.0
        %9278 = vmatpush1.xpose.msra.mxu0 0.0
        %9279 = vmatprep.subr.mxu0 0.0
        %9280 = vmatpush1.xpose.msra.mxu0 0.0
        %9281 = vmatprep.subr.mxu0 0.0
        %9282 = vmatpush1.xpose.msra.mxu0 0.0
        %9283 = vmatprep.subr.mxu0 0.0
        %9284 = vmatpush1.xpose.msra.mxu0 0.0
        %9285 = vmatprep.subr.mxu0 %v7763
        %9286 = vmatpush1.xpose.msra.mxu0 %v7762
        %9287 = vmatprep.subr.mxu0 %v7758
        %9288 = vmatpush1.xpose.msra.mxu0 %v7757
        %9289 = vmatprep.subr.mxu0 0.0
        %9290 = vmatpush2.xpose.msra.mxu0 0.0
        %9291 = vmatprep.subr.mxu0 0.0
        %9292 = vmatpush2.xpose.msra.mxu0 0.0
        %9293 = vmatprep.subr.mxu0 0.0
        %9294 = vmatpush2.xpose.msra.mxu0 0.0
        %9295 = vmatprep.subr.mxu0 0.0
        %9296 = vmatpush2.xpose.msra.mxu0 0.0
        %9297 = vmatprep.subr.mxu0 0.0
        %9298 = vmatpush2.xpose.msra.mxu0 0.0
        %9299 = vmatprep.subr.mxu0 0.0
        %9300 = vmatpush2.xpose.msra.mxu0 0.0
        %9301 = vmatprep.subr.mxu0 0.0
        %9302 = vmatpush2.xpose.msra.mxu0 0.0
        %9303 = vmatprep.subr.mxu0 0.0
        %9304 = vmatpush2.xpose.msra.mxu0 0.0
        %9305 = vmatprep.subr.mxu0 0.0
        %9306 = vmatpush2.xpose.msra.mxu0 0.0
        %9307 = vmatprep.subr.mxu0 0.0
        %9308 = vmatpush2.xpose.msra.mxu0 0.0
        %9309 = vmatprep.subr.mxu0 0.0
        %9310 = vmatpush2.xpose.msra.mxu0 0.0
        %9311 = vmatprep.subr.mxu0 0.0
        %9312 = vmatpush2.xpose.msra.mxu0 0.0
        %9313 = vmatprep.subr.mxu0 0.0
        %9314 = vmatpush2.xpose.msra.mxu0 0.0
        %9315 = vmatprep.subr.mxu0 0.0
        %9316 = vmatpush2.xpose.msra.mxu0 0.0
        %9317 = vmatprep.subr.mxu0 0.0
        %9318 = vmatpush2.xpose.msra.mxu0 0.0
        %9319 = vmatprep.subr.mxu0 0.0
        %9320 = vmatpush2.xpose.msra.mxu0 0.0
        %9321 = vmatprep.mubr.f32.mxu0 %v7673
        %9322 = vmatmul.mubr.f32.gmra.mxu0 %v7672
        %v9323 = vpop.f32.mrf.mxu0
        %v9324 = vadd.f32 0.0, %v9323
        %v9325 = vpop.f32.mrf.mxu0
        %9326 = vdwg.mxu0
        %9327 = vmatprep.subr.mxu0 0.0
        %9328 = vmatpush1.xpose.msra.mxu0 0.0
        %9329 = vmatprep.subr.mxu0 0.0
        %9330 = vmatpush1.xpose.msra.mxu0 0.0
        %9331 = vmatprep.subr.mxu0 0.0
        %9332 = vmatpush1.xpose.msra.mxu0 0.0
        %9333 = vmatprep.subr.mxu0 0.0
        %9334 = vmatpush1.xpose.msra.mxu0 0.0
        %9335 = vmatprep.subr.mxu0 0.0
        %9336 = vmatpush1.xpose.msra.mxu0 0.0
        %9337 = vmatprep.subr.mxu0 0.0
        %9338 = vmatpush1.xpose.msra.mxu0 0.0
        %9339 = vmatprep.subr.mxu0 0.0
        %9340 = vmatpush1.xpose.msra.mxu0 0.0
        %9341 = vmatprep.subr.mxu0 0.0
        %9342 = vmatpush1.xpose.msra.mxu0 0.0
        %9343 = vmatprep.subr.mxu0 0.0
        %9344 = vmatpush1.xpose.msra.mxu0 0.0
        %9345 = vmatprep.subr.mxu0 0.0
        %9346 = vmatpush1.xpose.msra.mxu0 0.0
        %9347 = vmatprep.subr.mxu0 0.0
        %9348 = vmatpush1.xpose.msra.mxu0 0.0
        %9349 = vmatprep.subr.mxu0 0.0
        %9350 = vmatpush1.xpose.msra.mxu0 0.0
        %9351 = vmatprep.subr.mxu0 0.0
        %9352 = vmatpush1.xpose.msra.mxu0 0.0
        %9353 = vmatprep.subr.mxu0 0.0
        %9354 = vmatpush1.xpose.msra.mxu0 0.0
        %9355 = vmatprep.subr.mxu0 %v7765
        %9356 = vmatpush1.xpose.msra.mxu0 %v7764
        %9357 = vmatprep.subr.mxu0 %v7760
        %9358 = vmatpush1.xpose.msra.mxu0 %v7759
        %9359 = vmatprep.subr.mxu0 0.0
        %9360 = vmatpush2.xpose.msra.mxu0 0.0
        %9361 = vmatprep.subr.mxu0 0.0
        %9362 = vmatpush2.xpose.msra.mxu0 0.0
        %9363 = vmatprep.subr.mxu0 0.0
        %9364 = vmatpush2.xpose.msra.mxu0 0.0
        %9365 = vmatprep.subr.mxu0 0.0
        %9366 = vmatpush2.xpose.msra.mxu0 0.0
        %9367 = vmatprep.subr.mxu0 0.0
        %9368 = vmatpush2.xpose.msra.mxu0 0.0
        %9369 = vmatprep.subr.mxu0 0.0
        %9370 = vmatpush2.xpose.msra.mxu0 0.0
        %9371 = vmatprep.subr.mxu0 0.0
        %9372 = vmatpush2.xpose.msra.mxu0 0.0
        %9373 = vmatprep.subr.mxu0 0.0
        %9374 = vmatpush2.xpose.msra.mxu0 0.0
        %9375 = vmatprep.subr.mxu0 0.0
        %9376 = vmatpush2.xpose.msra.mxu0 0.0
        %9377 = vmatprep.subr.mxu0 0.0
        %9378 = vmatpush2.xpose.msra.mxu0 0.0
        %9379 = vmatprep.subr.mxu0 0.0
        %9380 = vmatpush2.xpose.msra.mxu0 0.0
        %9381 = vmatprep.subr.mxu0 0.0
        %9382 = vmatpush2.xpose.msra.mxu0 0.0
        %9383 = vmatprep.subr.mxu0 0.0
        %9384 = vmatpush2.xpose.msra.mxu0 0.0
        %9385 = vmatprep.subr.mxu0 0.0
        %9386 = vmatpush2.xpose.msra.mxu0 0.0
        %9387 = vmatprep.subr.mxu0 0.0
        %9388 = vmatpush2.xpose.msra.mxu0 0.0
        %9389 = vmatprep.subr.mxu0 0.0
        %9390 = vmatpush2.xpose.msra.mxu0 0.0
        %9391 = vmatprep.mubr.f32.mxu0 %v7675
        %9392 = vmatmul.mubr.f32.gmra.mxu0 %v7674
        %v9393 = vpop.f32.mrf.mxu0
        %v9394 = vadd.f32 %v9324, %v9393
        %v9395 = vpop.f32.mrf.mxu0
        %9396 = vdwg.mxu0
        %9397 = vmatprep.subr.mxu0 0.0
        %9398 = vmatpush1.xpose.msra.mxu0 0.0
        %9399 = vmatprep.subr.mxu0 0.0
        %9400 = vmatpush1.xpose.msra.mxu0 0.0
        %9401 = vmatprep.subr.mxu0 0.0
        %9402 = vmatpush1.xpose.msra.mxu0 0.0
        %9403 = vmatprep.subr.mxu0 0.0
        %9404 = vmatpush1.xpose.msra.mxu0 0.0
        %9405 = vmatprep.subr.mxu0 0.0
        %9406 = vmatpush1.xpose.msra.mxu0 0.0
        %9407 = vmatprep.subr.mxu0 0.0
        %9408 = vmatpush1.xpose.msra.mxu0 0.0
        %9409 = vmatprep.subr.mxu0 0.0
        %9410 = vmatpush1.xpose.msra.mxu0 0.0
        %9411 = vmatprep.subr.mxu0 0.0
        %9412 = vmatpush1.xpose.msra.mxu0 0.0
        %9413 = vmatprep.subr.mxu0 0.0
        %9414 = vmatpush1.xpose.msra.mxu0 0.0
        %9415 = vmatprep.subr.mxu0 0.0
        %9416 = vmatpush1.xpose.msra.mxu0 0.0
        %9417 = vmatprep.subr.mxu0 0.0
        %9418 = vmatpush1.xpose.msra.mxu0 0.0
        %9419 = vmatprep.subr.mxu0 0.0
        %9420 = vmatpush1.xpose.msra.mxu0 0.0
        %9421 = vmatprep.subr.mxu0 0.0
        %9422 = vmatpush1.xpose.msra.mxu0 0.0
        %9423 = vmatprep.subr.mxu0 0.0
        %9424 = vmatpush1.xpose.msra.mxu0 0.0
        %9425 = vmatprep.subr.mxu0 0.0
        %9426 = vmatpush1.xpose.msra.mxu0 %v7766
        %9427 = vmatprep.subr.mxu0 0.0
        %9428 = vmatpush1.xpose.msra.mxu0 %v7761
        %9429 = vmatprep.subr.mxu0 0.0
        %9430 = vmatpush2.xpose.msra.mxu0 0.0
        %9431 = vmatprep.subr.mxu0 0.0
        %9432 = vmatpush2.xpose.msra.mxu0 0.0
        %9433 = vmatprep.subr.mxu0 0.0
        %9434 = vmatpush2.xpose.msra.mxu0 0.0
        %9435 = vmatprep.subr.mxu0 0.0
        %9436 = vmatpush2.xpose.msra.mxu0 0.0
        %9437 = vmatprep.subr.mxu0 0.0
        %9438 = vmatpush2.xpose.msra.mxu0 0.0
        %9439 = vmatprep.subr.mxu0 0.0
        %9440 = vmatpush2.xpose.msra.mxu0 0.0
        %9441 = vmatprep.subr.mxu0 0.0
        %9442 = vmatpush2.xpose.msra.mxu0 0.0
        %9443 = vmatprep.subr.mxu0 0.0
        %9444 = vmatpush2.xpose.msra.mxu0 0.0
        %9445 = vmatprep.subr.mxu0 0.0
        %9446 = vmatpush2.xpose.msra.mxu0 0.0
        %9447 = vmatprep.subr.mxu0 0.0
        %9448 = vmatpush2.xpose.msra.mxu0 0.0
        %9449 = vmatprep.subr.mxu0 0.0
        %9450 = vmatpush2.xpose.msra.mxu0 0.0
        %9451 = vmatprep.subr.mxu0 0.0
        %9452 = vmatpush2.xpose.msra.mxu0 0.0
        %9453 = vmatprep.subr.mxu0 0.0
        %9454 = vmatpush2.xpose.msra.mxu0 0.0
        %9455 = vmatprep.subr.mxu0 0.0
        %9456 = vmatpush2.xpose.msra.mxu0 0.0
        %9457 = vmatprep.subr.mxu0 0.0
        %9458 = vmatpush2.xpose.msra.mxu0 0.0
        %9459 = vmatprep.subr.mxu0 0.0
        %9460 = vmatpush2.xpose.msra.mxu0 0.0
        %9461 = vmatprep.mubr.f32.mxu0 0.0
        %9462 = vmatmul.mubr.f32.gmra.mxu0 %v7676
        %v9463 = vpop.f32.mrf.mxu0
        %v9464 = vadd.f32 %v9394, %v9463
        %v9465 = vpop.f32.mrf.mxu0
        %9466 = vdwg.mxu0
        %9467 = vmatprep.subr.mxu0 0.0
        %9468 = vmatpush1.xpose.msra.mxu0 0.0
        %9469 = vmatprep.subr.mxu0 0.0
        %9470 = vmatpush1.xpose.msra.mxu0 0.0
        %9471 = vmatprep.subr.mxu0 0.0
        %9472 = vmatpush1.xpose.msra.mxu0 0.0
        %9473 = vmatprep.subr.mxu0 0.0
        %9474 = vmatpush1.xpose.msra.mxu0 0.0
        %9475 = vmatprep.subr.mxu0 0.0
        %9476 = vmatpush1.xpose.msra.mxu0 0.0
        %9477 = vmatprep.subr.mxu0 0.0
        %9478 = vmatpush1.xpose.msra.mxu0 0.0
        %9479 = vmatprep.subr.mxu0 0.0
        %9480 = vmatpush1.xpose.msra.mxu0 0.0
        %9481 = vmatprep.subr.mxu0 0.0
        %9482 = vmatpush1.xpose.msra.mxu0 0.0
        %9483 = vmatprep.subr.mxu0 0.0
        %9484 = vmatpush1.xpose.msra.mxu0 0.0
        %9485 = vmatprep.subr.mxu0 0.0
        %9486 = vmatpush1.xpose.msra.mxu0 0.0
        %9487 = vmatprep.subr.mxu0 0.0
        %9488 = vmatpush1.xpose.msra.mxu0 0.0
        %9489 = vmatprep.subr.mxu0 0.0
        %9490 = vmatpush1.xpose.msra.mxu0 0.0
        %9491 = vmatprep.subr.mxu0 0.0
        %9492 = vmatpush1.xpose.msra.mxu0 0.0
        %9493 = vmatprep.subr.mxu0 0.0
        %9494 = vmatpush1.xpose.msra.mxu0 0.0
        %9495 = vmatprep.subr.mxu0 %v7773
        %9496 = vmatpush1.xpose.msra.mxu0 %v7772
        %9497 = vmatprep.subr.mxu0 %v7768
        %9498 = vmatpush1.xpose.msra.mxu0 %v7767
        %9499 = vmatprep.subr.mxu0 0.0
        %9500 = vmatpush2.xpose.msra.mxu0 0.0
        %9501 = vmatprep.subr.mxu0 0.0
        %9502 = vmatpush2.xpose.msra.mxu0 0.0
        %9503 = vmatprep.subr.mxu0 0.0
        %9504 = vmatpush2.xpose.msra.mxu0 0.0
        %9505 = vmatprep.subr.mxu0 0.0
        %9506 = vmatpush2.xpose.msra.mxu0 0.0
        %9507 = vmatprep.subr.mxu0 0.0
        %9508 = vmatpush2.xpose.msra.mxu0 0.0
        %9509 = vmatprep.subr.mxu0 0.0
        %9510 = vmatpush2.xpose.msra.mxu0 0.0
        %9511 = vmatprep.subr.mxu0 0.0
        %9512 = vmatpush2.xpose.msra.mxu0 0.0
        %9513 = vmatprep.subr.mxu0 0.0
        %9514 = vmatpush2.xpose.msra.mxu0 0.0
        %9515 = vmatprep.subr.mxu0 0.0
        %9516 = vmatpush2.xpose.msra.mxu0 0.0
        %9517 = vmatprep.subr.mxu0 0.0
        %9518 = vmatpush2.xpose.msra.mxu0 0.0
        %9519 = vmatprep.subr.mxu0 0.0
        %9520 = vmatpush2.xpose.msra.mxu0 0.0
        %9521 = vmatprep.subr.mxu0 0.0
        %9522 = vmatpush2.xpose.msra.mxu0 0.0
        %9523 = vmatprep.subr.mxu0 0.0
        %9524 = vmatpush2.xpose.msra.mxu0 0.0
        %9525 = vmatprep.subr.mxu0 0.0
        %9526 = vmatpush2.xpose.msra.mxu0 0.0
        %9527 = vmatprep.subr.mxu0 0.0
        %9528 = vmatpush2.xpose.msra.mxu0 0.0
        %9529 = vmatprep.subr.mxu0 0.0
        %9530 = vmatpush2.xpose.msra.mxu0 0.0
        %9531 = vmatprep.mubr.f32.mxu0 %v7678
        %9532 = vmatmul.mubr.f32.gmra.mxu0 %v7677
        %v9533 = vpop.f32.mrf.mxu0
        %v9534 = vadd.f32 0.0, %v9533
        %v9535 = vpop.f32.mrf.mxu0
        %9536 = vdwg.mxu0
        %9537 = vmatprep.subr.mxu0 0.0
        %9538 = vmatpush1.xpose.msra.mxu0 0.0
        %9539 = vmatprep.subr.mxu0 0.0
        %9540 = vmatpush1.xpose.msra.mxu0 0.0
        %9541 = vmatprep.subr.mxu0 0.0
        %9542 = vmatpush1.xpose.msra.mxu0 0.0
        %9543 = vmatprep.subr.mxu0 0.0
        %9544 = vmatpush1.xpose.msra.mxu0 0.0
        %9545 = vmatprep.subr.mxu0 0.0
        %9546 = vmatpush1.xpose.msra.mxu0 0.0
        %9547 = vmatprep.subr.mxu0 0.0
        %9548 = vmatpush1.xpose.msra.mxu0 0.0
        %9549 = vmatprep.subr.mxu0 0.0
        %9550 = vmatpush1.xpose.msra.mxu0 0.0
        %9551 = vmatprep.subr.mxu0 0.0
        %9552 = vmatpush1.xpose.msra.mxu0 0.0
        %9553 = vmatprep.subr.mxu0 0.0
        %9554 = vmatpush1.xpose.msra.mxu0 0.0
        %9555 = vmatprep.subr.mxu0 0.0
        %9556 = vmatpush1.xpose.msra.mxu0 0.0
        %9557 = vmatprep.subr.mxu0 0.0
        %9558 = vmatpush1.xpose.msra.mxu0 0.0
        %9559 = vmatprep.subr.mxu0 0.0
        %9560 = vmatpush1.xpose.msra.mxu0 0.0
        %9561 = vmatprep.subr.mxu0 0.0
        %9562 = vmatpush1.xpose.msra.mxu0 0.0
        %9563 = vmatprep.subr.mxu0 0.0
        %9564 = vmatpush1.xpose.msra.mxu0 0.0
        %9565 = vmatprep.subr.mxu0 %v7775
        %9566 = vmatpush1.xpose.msra.mxu0 %v7774
        %9567 = vmatprep.subr.mxu0 %v7770
        %9568 = vmatpush1.xpose.msra.mxu0 %v7769
        %9569 = vmatprep.subr.mxu0 0.0
        %9570 = vmatpush2.xpose.msra.mxu0 0.0
        %9571 = vmatprep.subr.mxu0 0.0
        %9572 = vmatpush2.xpose.msra.mxu0 0.0
        %9573 = vmatprep.subr.mxu0 0.0
        %9574 = vmatpush2.xpose.msra.mxu0 0.0
        %9575 = vmatprep.subr.mxu0 0.0
        %9576 = vmatpush2.xpose.msra.mxu0 0.0
        %9577 = vmatprep.subr.mxu0 0.0
        %9578 = vmatpush2.xpose.msra.mxu0 0.0
        %9579 = vmatprep.subr.mxu0 0.0
        %9580 = vmatpush2.xpose.msra.mxu0 0.0
        %9581 = vmatprep.subr.mxu0 0.0
        %9582 = vmatpush2.xpose.msra.mxu0 0.0
        %9583 = vmatprep.subr.mxu0 0.0
        %9584 = vmatpush2.xpose.msra.mxu0 0.0
        %9585 = vmatprep.subr.mxu0 0.0
        %9586 = vmatpush2.xpose.msra.mxu0 0.0
        %9587 = vmatprep.subr.mxu0 0.0
        %9588 = vmatpush2.xpose.msra.mxu0 0.0
        %9589 = vmatprep.subr.mxu0 0.0
        %9590 = vmatpush2.xpose.msra.mxu0 0.0
        %9591 = vmatprep.subr.mxu0 0.0
        %9592 = vmatpush2.xpose.msra.mxu0 0.0
        %9593 = vmatprep.subr.mxu0 0.0
        %9594 = vmatpush2.xpose.msra.mxu0 0.0
        %9595 = vmatprep.subr.mxu0 0.0
        %9596 = vmatpush2.xpose.msra.mxu0 0.0
        %9597 = vmatprep.subr.mxu0 0.0
        %9598 = vmatpush2.xpose.msra.mxu0 0.0
        %9599 = vmatprep.subr.mxu0 0.0
        %9600 = vmatpush2.xpose.msra.mxu0 0.0
        %9601 = vmatprep.mubr.f32.mxu0 %v7680
        %9602 = vmatmul.mubr.f32.gmra.mxu0 %v7679
        %v9603 = vpop.f32.mrf.mxu0
        %v9604 = vadd.f32 %v9534, %v9603
        %v9605 = vpop.f32.mrf.mxu0
        %9606 = vdwg.mxu0
        %9607 = vmatprep.subr.mxu0 0.0
        %9608 = vmatpush1.xpose.msra.mxu0 0.0
        %9609 = vmatprep.subr.mxu0 0.0
        %9610 = vmatpush1.xpose.msra.mxu0 0.0
        %9611 = vmatprep.subr.mxu0 0.0
        %9612 = vmatpush1.xpose.msra.mxu0 0.0
        %9613 = vmatprep.subr.mxu0 0.0
        %9614 = vmatpush1.xpose.msra.mxu0 0.0
        %9615 = vmatprep.subr.mxu0 0.0
        %9616 = vmatpush1.xpose.msra.mxu0 0.0
        %9617 = vmatprep.subr.mxu0 0.0
        %9618 = vmatpush1.xpose.msra.mxu0 0.0
        %9619 = vmatprep.subr.mxu0 0.0
        %9620 = vmatpush1.xpose.msra.mxu0 0.0
        %9621 = vmatprep.subr.mxu0 0.0
        %9622 = vmatpush1.xpose.msra.mxu0 0.0
        %9623 = vmatprep.subr.mxu0 0.0
        %9624 = vmatpush1.xpose.msra.mxu0 0.0
        %9625 = vmatprep.subr.mxu0 0.0
        %9626 = vmatpush1.xpose.msra.mxu0 0.0
        %9627 = vmatprep.subr.mxu0 0.0
        %9628 = vmatpush1.xpose.msra.mxu0 0.0
        %9629 = vmatprep.subr.mxu0 0.0
        %9630 = vmatpush1.xpose.msra.mxu0 0.0
        %9631 = vmatprep.subr.mxu0 0.0
        %9632 = vmatpush1.xpose.msra.mxu0 0.0
        %9633 = vmatprep.subr.mxu0 0.0
        %9634 = vmatpush1.xpose.msra.mxu0 0.0
        %9635 = vmatprep.subr.mxu0 0.0
        %9636 = vmatpush1.xpose.msra.mxu0 %v7776
        %9637 = vmatprep.subr.mxu0 0.0
        %9638 = vmatpush1.xpose.msra.mxu0 %v7771
        %9639 = vmatprep.subr.mxu0 0.0
        %9640 = vmatpush2.xpose.msra.mxu0 0.0
        %9641 = vmatprep.subr.mxu0 0.0
        %9642 = vmatpush2.xpose.msra.mxu0 0.0
        %9643 = vmatprep.subr.mxu0 0.0
        %9644 = vmatpush2.xpose.msra.mxu0 0.0
        %9645 = vmatprep.subr.mxu0 0.0
        %9646 = vmatpush2.xpose.msra.mxu0 0.0
        %9647 = vmatprep.subr.mxu0 0.0
        %9648 = vmatpush2.xpose.msra.mxu0 0.0
        %9649 = vmatprep.subr.mxu0 0.0
        %9650 = vmatpush2.xpose.msra.mxu0 0.0
        %9651 = vmatprep.subr.mxu0 0.0
        %9652 = vmatpush2.xpose.msra.mxu0 0.0
        %9653 = vmatprep.subr.mxu0 0.0
        %9654 = vmatpush2.xpose.msra.mxu0 0.0
        %9655 = vmatprep.subr.mxu0 0.0
        %9656 = vmatpush2.xpose.msra.mxu0 0.0
        %9657 = vmatprep.subr.mxu0 0.0
        %9658 = vmatpush2.xpose.msra.mxu0 0.0
        %9659 = vmatprep.subr.mxu0 0.0
        %9660 = vmatpush2.xpose.msra.mxu0 0.0
        %9661 = vmatprep.subr.mxu0 0.0
        %9662 = vmatpush2.xpose.msra.mxu0 0.0
        %9663 = vmatprep.subr.mxu0 0.0
        %9664 = vmatpush2.xpose.msra.mxu0 0.0
        %9665 = vmatprep.subr.mxu0 0.0
        %9666 = vmatpush2.xpose.msra.mxu0 0.0
        %9667 = vmatprep.subr.mxu0 0.0
        %9668 = vmatpush2.xpose.msra.mxu0 0.0
        %9669 = vmatprep.subr.mxu0 0.0
        %9670 = vmatpush2.xpose.msra.mxu0 0.0
        %9671 = vmatprep.mubr.f32.mxu0 0.0
        %9672 = vmatmul.mubr.f32.gmra.mxu0 %v7681
        %v9673 = vpop.f32.mrf.mxu0
        %v9674 = vadd.f32 %v9604, %v9673
        %v9675 = vpop.f32.mrf.mxu0
        %9676 = vdwg.mxu0
        %9677 = vmatprep.subr.mxu0 0.0
        %9678 = vmatpush1.xpose.msra.mxu0 0.0
        %9679 = vmatprep.subr.mxu0 0.0
        %9680 = vmatpush1.xpose.msra.mxu0 0.0
        %9681 = vmatprep.subr.mxu0 0.0
        %9682 = vmatpush1.xpose.msra.mxu0 0.0
        %9683 = vmatprep.subr.mxu0 0.0
        %9684 = vmatpush1.xpose.msra.mxu0 0.0
        %9685 = vmatprep.subr.mxu0 0.0
        %9686 = vmatpush1.xpose.msra.mxu0 0.0
        %9687 = vmatprep.subr.mxu0 0.0
        %9688 = vmatpush1.xpose.msra.mxu0 0.0
        %9689 = vmatprep.subr.mxu0 0.0
        %9690 = vmatpush1.xpose.msra.mxu0 0.0
        %9691 = vmatprep.subr.mxu0 0.0
        %9692 = vmatpush1.xpose.msra.mxu0 0.0
        %9693 = vmatprep.subr.mxu0 0.0
        %9694 = vmatpush1.xpose.msra.mxu0 0.0
        %9695 = vmatprep.subr.mxu0 0.0
        %9696 = vmatpush1.xpose.msra.mxu0 0.0
        %9697 = vmatprep.subr.mxu0 0.0
        %9698 = vmatpush1.xpose.msra.mxu0 0.0
        %9699 = vmatprep.subr.mxu0 0.0
        %9700 = vmatpush1.xpose.msra.mxu0 0.0
        %9701 = vmatprep.subr.mxu0 0.0
        %9702 = vmatpush1.xpose.msra.mxu0 0.0
        %9703 = vmatprep.subr.mxu0 0.0
        %9704 = vmatpush1.xpose.msra.mxu0 0.0
        %9705 = vmatprep.subr.mxu0 %v7783
        %9706 = vmatpush1.xpose.msra.mxu0 %v7782
        %9707 = vmatprep.subr.mxu0 %v7778
        %9708 = vmatpush1.xpose.msra.mxu0 %v7777
        %9709 = vmatprep.subr.mxu0 0.0
        %9710 = vmatpush2.xpose.msra.mxu0 0.0
        %9711 = vmatprep.subr.mxu0 0.0
        %9712 = vmatpush2.xpose.msra.mxu0 0.0
        %9713 = vmatprep.subr.mxu0 0.0
        %9714 = vmatpush2.xpose.msra.mxu0 0.0
        %9715 = vmatprep.subr.mxu0 0.0
        %9716 = vmatpush2.xpose.msra.mxu0 0.0
        %9717 = vmatprep.subr.mxu0 0.0
        %9718 = vmatpush2.xpose.msra.mxu0 0.0
        %9719 = vmatprep.subr.mxu0 0.0
        %9720 = vmatpush2.xpose.msra.mxu0 0.0
        %9721 = vmatprep.subr.mxu0 0.0
        %9722 = vmatpush2.xpose.msra.mxu0 0.0
        %9723 = vmatprep.subr.mxu0 0.0
        %9724 = vmatpush2.xpose.msra.mxu0 0.0
        %9725 = vmatprep.subr.mxu0 0.0
        %9726 = vmatpush2.xpose.msra.mxu0 0.0
        %9727 = vmatprep.subr.mxu0 0.0
        %9728 = vmatpush2.xpose.msra.mxu0 0.0
        %9729 = vmatprep.subr.mxu0 0.0
        %9730 = vmatpush2.xpose.msra.mxu0 0.0
        %9731 = vmatprep.subr.mxu0 0.0
        %9732 = vmatpush2.xpose.msra.mxu0 0.0
        %9733 = vmatprep.subr.mxu0 0.0
        %9734 = vmatpush2.xpose.msra.mxu0 0.0
        %9735 = vmatprep.subr.mxu0 0.0
        %9736 = vmatpush2.xpose.msra.mxu0 0.0
        %9737 = vmatprep.subr.mxu0 0.0
        %9738 = vmatpush2.xpose.msra.mxu0 0.0
        %9739 = vmatprep.subr.mxu0 0.0
        %9740 = vmatpush2.xpose.msra.mxu0 0.0
        %9741 = vmatprep.mubr.f32.mxu0 %v7683
        %9742 = vmatmul.mubr.f32.gmra.mxu0 %v7682
        %v9743 = vpop.f32.mrf.mxu0
        %v9744 = vadd.f32 0.0, %v9743
        %v9745 = vpop.f32.mrf.mxu0
        %9746 = vdwg.mxu0
        %9747 = vmatprep.subr.mxu0 0.0
        %9748 = vmatpush1.xpose.msra.mxu0 0.0
        %9749 = vmatprep.subr.mxu0 0.0
        %9750 = vmatpush1.xpose.msra.mxu0 0.0
        %9751 = vmatprep.subr.mxu0 0.0
        %9752 = vmatpush1.xpose.msra.mxu0 0.0
        %9753 = vmatprep.subr.mxu0 0.0
        %9754 = vmatpush1.xpose.msra.mxu0 0.0
        %9755 = vmatprep.subr.mxu0 0.0
        %9756 = vmatpush1.xpose.msra.mxu0 0.0
        %9757 = vmatprep.subr.mxu0 0.0
        %9758 = vmatpush1.xpose.msra.mxu0 0.0
        %9759 = vmatprep.subr.mxu0 0.0
        %9760 = vmatpush1.xpose.msra.mxu0 0.0
        %9761 = vmatprep.subr.mxu0 0.0
        %9762 = vmatpush1.xpose.msra.mxu0 0.0
        %9763 = vmatprep.subr.mxu0 0.0
        %9764 = vmatpush1.xpose.msra.mxu0 0.0
        %9765 = vmatprep.subr.mxu0 0.0
        %9766 = vmatpush1.xpose.msra.mxu0 0.0
        %9767 = vmatprep.subr.mxu0 0.0
        %9768 = vmatpush1.xpose.msra.mxu0 0.0
        %9769 = vmatprep.subr.mxu0 0.0
        %9770 = vmatpush1.xpose.msra.mxu0 0.0
        %9771 = vmatprep.subr.mxu0 0.0
        %9772 = vmatpush1.xpose.msra.mxu0 0.0
        %9773 = vmatprep.subr.mxu0 0.0
        %9774 = vmatpush1.xpose.msra.mxu0 0.0
        %9775 = vmatprep.subr.mxu0 %v7785
        %9776 = vmatpush1.xpose.msra.mxu0 %v7784
        %9777 = vmatprep.subr.mxu0 %v7780
        %9778 = vmatpush1.xpose.msra.mxu0 %v7779
        %9779 = vmatprep.subr.mxu0 0.0
        %9780 = vmatpush2.xpose.msra.mxu0 0.0
        %9781 = vmatprep.subr.mxu0 0.0
        %9782 = vmatpush2.xpose.msra.mxu0 0.0
        %9783 = vmatprep.subr.mxu0 0.0
        %9784 = vmatpush2.xpose.msra.mxu0 0.0
        %9785 = vmatprep.subr.mxu0 0.0
        %9786 = vmatpush2.xpose.msra.mxu0 0.0
        %9787 = vmatprep.subr.mxu0 0.0
        %9788 = vmatpush2.xpose.msra.mxu0 0.0
        %9789 = vmatprep.subr.mxu0 0.0
        %9790 = vmatpush2.xpose.msra.mxu0 0.0
        %9791 = vmatprep.subr.mxu0 0.0
        %9792 = vmatpush2.xpose.msra.mxu0 0.0
        %9793 = vmatprep.subr.mxu0 0.0
        %9794 = vmatpush2.xpose.msra.mxu0 0.0
        %9795 = vmatprep.subr.mxu0 0.0
        %9796 = vmatpush2.xpose.msra.mxu0 0.0
        %9797 = vmatprep.subr.mxu0 0.0
        %9798 = vmatpush2.xpose.msra.mxu0 0.0
        %9799 = vmatprep.subr.mxu0 0.0
        %9800 = vmatpush2.xpose.msra.mxu0 0.0
        %9801 = vmatprep.subr.mxu0 0.0
        %9802 = vmatpush2.xpose.msra.mxu0 0.0
        %9803 = vmatprep.subr.mxu0 0.0
        %9804 = vmatpush2.xpose.msra.mxu0 0.0
        %9805 = vmatprep.subr.mxu0 0.0
        %9806 = vmatpush2.xpose.msra.mxu0 0.0
        %9807 = vmatprep.subr.mxu0 0.0
        %9808 = vmatpush2.xpose.msra.mxu0 0.0
        %9809 = vmatprep.subr.mxu0 0.0
        %9810 = vmatpush2.xpose.msra.mxu0 0.0
        %9811 = vmatprep.mubr.f32.mxu0 %v7685
        %9812 = vmatmul.mubr.f32.gmra.mxu0 %v7684
        %v9813 = vpop.f32.mrf.mxu0
        %v9814 = vadd.f32 %v9744, %v9813
        %v9815 = vpop.f32.mrf.mxu0
        %9816 = vdwg.mxu0
        %9817 = vmatprep.subr.mxu0 0.0
        %9818 = vmatpush1.xpose.msra.mxu0 0.0
        %9819 = vmatprep.subr.mxu0 0.0
        %9820 = vmatpush1.xpose.msra.mxu0 0.0
        %9821 = vmatprep.subr.mxu0 0.0
        %9822 = vmatpush1.xpose.msra.mxu0 0.0
        %9823 = vmatprep.subr.mxu0 0.0
        %9824 = vmatpush1.xpose.msra.mxu0 0.0
        %9825 = vmatprep.subr.mxu0 0.0
        %9826 = vmatpush1.xpose.msra.mxu0 0.0
        %9827 = vmatprep.subr.mxu0 0.0
        %9828 = vmatpush1.xpose.msra.mxu0 0.0
        %9829 = vmatprep.subr.mxu0 0.0
        %9830 = vmatpush1.xpose.msra.mxu0 0.0
        %9831 = vmatprep.subr.mxu0 0.0
        %9832 = vmatpush1.xpose.msra.mxu0 0.0
        %9833 = vmatprep.subr.mxu0 0.0
        %9834 = vmatpush1.xpose.msra.mxu0 0.0
        %9835 = vmatprep.subr.mxu0 0.0
        %9836 = vmatpush1.xpose.msra.mxu0 0.0
        %9837 = vmatprep.subr.mxu0 0.0
        %9838 = vmatpush1.xpose.msra.mxu0 0.0
        %9839 = vmatprep.subr.mxu0 0.0
        %9840 = vmatpush1.xpose.msra.mxu0 0.0
        %9841 = vmatprep.subr.mxu0 0.0
        %9842 = vmatpush1.xpose.msra.mxu0 0.0
        %9843 = vmatprep.subr.mxu0 0.0
        %9844 = vmatpush1.xpose.msra.mxu0 0.0
        %9845 = vmatprep.subr.mxu0 0.0
        %9846 = vmatpush1.xpose.msra.mxu0 %v7786
        %9847 = vmatprep.subr.mxu0 0.0
        %9848 = vmatpush1.xpose.msra.mxu0 %v7781
        %9849 = vmatprep.subr.mxu0 0.0
        %9850 = vmatpush2.xpose.msra.mxu0 0.0
        %9851 = vmatprep.subr.mxu0 0.0
        %9852 = vmatpush2.xpose.msra.mxu0 0.0
        %9853 = vmatprep.subr.mxu0 0.0
        %9854 = vmatpush2.xpose.msra.mxu0 0.0
        %9855 = vmatprep.subr.mxu0 0.0
        %9856 = vmatpush2.xpose.msra.mxu0 0.0
        %9857 = vmatprep.subr.mxu0 0.0
        %9858 = vmatpush2.xpose.msra.mxu0 0.0
        %9859 = vmatprep.subr.mxu0 0.0
        %9860 = vmatpush2.xpose.msra.mxu0 0.0
        %9861 = vmatprep.subr.mxu0 0.0
        %9862 = vmatpush2.xpose.msra.mxu0 0.0
        %9863 = vmatprep.subr.mxu0 0.0
        %9864 = vmatpush2.xpose.msra.mxu0 0.0
        %9865 = vmatprep.subr.mxu0 0.0
        %9866 = vmatpush2.xpose.msra.mxu0 0.0
        %9867 = vmatprep.subr.mxu0 0.0
        %9868 = vmatpush2.xpose.msra.mxu0 0.0
        %9869 = vmatprep.subr.mxu0 0.0
        %9870 = vmatpush2.xpose.msra.mxu0 0.0
        %9871 = vmatprep.subr.mxu0 0.0
        %9872 = vmatpush2.xpose.msra.mxu0 0.0
        %9873 = vmatprep.subr.mxu0 0.0
        %9874 = vmatpush2.xpose.msra.mxu0 0.0
        %9875 = vmatprep.subr.mxu0 0.0
        %9876 = vmatpush2.xpose.msra.mxu0 0.0
        %9877 = vmatprep.subr.mxu0 0.0
        %9878 = vmatpush2.xpose.msra.mxu0 0.0
        %9879 = vmatprep.subr.mxu0 0.0
        %9880 = vmatpush2.xpose.msra.mxu0 0.0
        %9881 = vmatprep.mubr.f32.mxu0 0.0
        %9882 = vmatmul.mubr.f32.gmra.mxu0 %v7686
        %v9883 = vpop.f32.mrf.mxu0
        %v9884 = vadd.f32 %v9814, %v9883
        %v9885 = vpop.f32.mrf.mxu0
        %9886 = vdwg.mxu0
        %vm9887 = vcmask 80896
        %v9888 = vsel %vm9887, %v7994, 0.0
        %v9889 = vsel %vm9887, %v8204, 0.0
        %v9890 = vadd.f32 %v9888, %v9889
        %v9891 = vsel %vm9887, %v8414, 0.0
        %v9892 = vadd.f32 %v9890, %v9891
        %v9893 = vsel %vm9887, %v8624, 0.0
        %v9894 = vadd.f32 %v9892, %v9893
        %v9895 = vsel %vm9887, %v8834, 0.0
        %v9896 = vadd.f32 %v9894, %v9895
        %v9897 = vsel %vm9887, %v9044, 0.0
        %v9898 = vadd.f32 %v9896, %v9897
        %v9899 = vsel %vm9887, %v9254, 0.0
        %v9900 = vadd.f32 %v9898, %v9899
        %v9901 = vsel %vm9887, %v9464, 0.0
        %v9902 = vadd.f32 %v9900, %v9901
        %v9903 = vsel %vm9887, %v9674, 0.0
        %v9904 = vadd.f32 %v9902, %v9903
        %v9905 = vsel %vm9887, %v9884, 0.0
        %v9906 = vadd.f32 %v9904, %v9905
        %v9907 = vld [vmem:[#allocation12] sm:$0x1]
        %v9909 = vlaneseq
        %v9910 = vshrl.u32 %v9909, 7
        %v9911 = vsub.s32 0, %v9910
        %v9912 = vrot.slane %v9907, %v9911
        %v9914 = vadd.f32 %v9906, %v9912
        %9915 = vst.msk [vmem:[%s493] sm:$0xff] %vm9887, %v9914
        %s9916 = sand.u32 %s185, 1
        %s9917 = scalar_lea.sflag [#allocation5], %s9916
        %s9918 = sand.u32 %s185, 1
        %s9919 = smul.addr %s9918, 8
        %s9920 = scalar_lea.vmem [#allocation14], %s9919
        // Predicated region
        $region111: #{cnn_forward.1} parent=81 // pred_check
          %p9921 = pneg %p195
        $region112: #{cnn_forward.1} parent=81 // pred_check_branch
          %9923 = sbr.rel (%p9921) target = $region114
        $region113: #{cnn_forward.1} parent=81 // pred_region
          %s9925 = ssub.s32 128, 128
          %9926 = vsyncadd %s9917, %s9925
          %s9927 = smul.addr %s25, 128
          %s9928 = scalar_lea.hbm %s7, %s9927
          %s9930 = sshll.u32 %s9920, 4
          %s9931 = int_to_ptr.vmem [resolvable:$true] %s9930
          %9933 = dma.vmem_to_hbm [thread:$0]  %s9931, 128, %s9928, %s9917
        $region114: #{cnn_forward.1} parent=81 // pred_fallthru
          _
      $region82: #{cnn_forward.1} parent=5 // pred_fallthru
        _
      %p9934 = scmp.le.s32.totalorder 2, %s20
      // Predicated region
      $region115: #{cnn_forward.1} parent=5 // pred_check
        %p9935 = pneg %p9934
      $region116: #{cnn_forward.1} parent=5 // pred_check_branch
        %9937 = sbr.rel (%p9935) target = $region118
      $region117: #{cnn_forward.1} parent=5 // pred_region
        %s9938 = ssub.s32 %s20, 2
        // Predicated region
        $region119: #{cnn_forward.1} parent=117 // pred_check
          %p9939 = pneg %p201
        $region120: #{cnn_forward.1} parent=117 // pred_check_branch
          %9941 = sbr.rel (%p9939) target = $region122
        $region121: #{cnn_forward.1} parent=117 // pred_region
          %s9942 = sand.u32 %s186, 1
          %s9943 = scalar_lea.sflag [#allocation5], %s9942
          %s9944 = sand.u32 %s186, 1
          %s9945 = smul.addr %s9944, 8
          %s9946 = scalar_lea.vmem [#allocation14], %s9945
          %9947 = dma.done %s9943, 128
        $region122: #{cnn_forward.1} parent=117 // pred_fallthru
          _
      $region118: #{cnn_forward.1} parent=5 // pred_fallthru
        _
    $region6: #{cnn_forward.1} parent=1 // loop_footer
      %s24 = sadd.s32 1, %s20
    $region7: #{cnn_forward.1} parent=1 // loop_footer_branch
      %19 = sbr.rel target = $region3
    $region8: #{cnn_forward.1} parent=1 // loop_exit
      _
    %9948 = vsyncpa [#allocation4], 1
    %s9949 = scalar_lea.sflag [#allocation4], 1
    %9950 = vsyncpa %s9949, 1
    %9951 = vsyncpa [#allocation7], 1
    %9952 = vsyncpa [#allocation10], 1
    %9953 = vsyncpa [#allocation13], 1
    %9954 = vsyncpa [#allocation5], 1
    %s9955 = scalar_lea.sflag [#allocation5], 1
    %9956 = vsyncpa %s9955, 1

</llo_original>
